<compile_context>
chip_gen: v7x
topology: tpu7x:2x2x1
jax: 0.10.0
libtpu: 0.0.40
codegen_flags: <defaults>
</compile_context>

<pallas_src>
import functools

import jax
import jax.numpy as jnp
from jax.experimental import pallas as pl
from jax.experimental.pallas import tpu as pltpu

EPS = 1e-8
NEG_SLOPE = 0.2


def _round_up(x, m):
    return (x + m - 1) // m * m


# ------------------------------ Pallas kernel -------------------------------

def _conv3x3_act(col_fn, w_ref, bias, h, w, n_real, use_pn):
    """3x3 same-conv + bias -> LeakyReLU(0.2) -> optional pixelnorm.

    col_fn(dx) -> ((h+2)*w, Cin) bf16: flattened dx-shifted column view of the
    zero-padded input tile (built once per dx, then sliced along aligned row
    offsets per dy).  w_ref: (9, Cin, Cf) bf16 (scale folded, row t = dy*3+dx).
    bias: (1, Cf) f32.  Returns (h*w, Cf) f32.
    """
    cf = w_ref.shape[-1]
    cols = [col_fn(dx) for dx in range(3)]              # 3 shifted views only
    acc = jnp.zeros((h * w, cf), jnp.float32)
    for dy in range(3):
        for dx in range(3):
            lhs = cols[dx][dy * w:dy * w + h * w, :]    # aligned row slice
            acc = acc + jnp.dot(lhs, w_ref[dy * 3 + dx],
                                preferred_element_type=jnp.float32)
    y = acc + bias                                      # f32
    y = jnp.where(y > 0, y, NEG_SLOPE * y)              # LeakyReLU(0.2)
    if use_pn:                                          # pixelnorm over lanes
        ss = jnp.sum(y * y, axis=-1, keepdims=True) * (1.0 / n_real)
        y = y * jax.lax.rsqrt(ss + EPS)
    return y


def conv_block_kernel(x_ref, w1_ref, b1_ref, w2_ref, b2_ref, o_ref, mid_ref,
                      *, use_pn, n_real):
    """Fused conv1 -> leaky -> pn -> conv2 -> leaky -> pn for one image.

    x_ref:   (H+2, Wp, Cin_pad)  zero-padded input image (bf16)
    w*_ref:  (9, C, Cf)          scale-folded weights (bf16)
    b*_ref:  (1, Cf)             bias (f32)
    o_ref:   (H, W, Cout_pad)    output (f32)
    mid_ref: (H+2, Wp, Cmid_pad) VMEM scratch holding the layer-1 halo tile
    """
    h, w, _ = o_ref.shape
    hp = x_ref.shape[0]
    cin = x_ref.shape[2]
    cmid = mid_ref.shape[2]

    # ---- layer 1 ----
    y1 = _conv3x3_act(
        lambda dx: x_ref[:, dx:dx + w, :].reshape(hp * w, cin),
        w1_ref, b1_ref[...], h, w, n_real, use_pn)

    # Layer-1 activation stays in VMEM as a zero-padded halo tile (no HBM trip).
    mid_ref[...] = jnp.zeros(mid_ref.shape, mid_ref.dtype)
    mid_ref[1:h + 1, 1:w + 1, :] = y1.reshape(h, w, cmid).astype(mid_ref.dtype)

    # ---- layer 2 ----
    y2 = _conv3x3_act(
        lambda dx: mid_ref[:, dx:dx + w, :].reshape(hp * w, cmid),
        w2_ref, b2_ref[...], h, w, n_real, use_pn)

    o_ref[...] = y2.reshape(h, w, o_ref.shape[2]).astype(o_ref.dtype)


# ------------------------------ pallas_call glue -----------------------------

def conv_block_forward(params, x_nchw, out_ch, use_pixelnorm=True):
    """x: NCHW (N, Cin, H, W) -> NCHW (N, out_ch, H, W), matching conv_block."""
    n, cin, h, w = x_nchw.shape
    cin_pad = params["w1"].shape[1]
    c_pad = params["w1"].shape[2]
    assert params["w2"].shape[1] == c_pad and params["w2"].shape[2] == c_pad
    assert cin <= cin_pad and out_ch <= c_pad
    wp = _round_up(w + 2, 8)                       # sublane-friendly tile width

    x = jnp.transpose(x_nchw, (0, 2, 3, 1)).astype(jnp.bfloat16)   # NHWC bf16
    xp = jnp.pad(x, ((0, 0), (1, 1), (1, wp - w - 1), (0, cin_pad - cin)))

    kernel = functools.partial(conv_block_kernel,
                               use_pn=use_pixelnorm, n_real=out_ch)

    flops = 2 * n * h * w * 9 * (cin * out_ch + out_ch * out_ch)
    transc = (2 * n * h * w) if use_pixelnorm else 0
    bytes_accessed = int(xp.size * xp.dtype.itemsize
                         + params["w1"].size * 2 + params["w2"].size * 2
                         + params["b1"].size * 4 + params["b2"].size * 4
                         + n * h * w * c_pad * 4)

    y = pl.pallas_call(
        kernel,
        out_shape=jax.ShapeDtypeStruct((n, h, w, c_pad), jnp.float32),
        grid=(n,),
        in_specs=[
            pl.BlockSpec((None, h + 2, wp, cin_pad), lambda i: (i, 0, 0, 0)),
            pl.BlockSpec((9, cin_pad, c_pad), lambda i: (0, 0, 0)),  # resident
            pl.BlockSpec((1, c_pad), lambda i: (0, 0)),              # resident
            pl.BlockSpec((9, c_pad, c_pad), lambda i: (0, 0, 0)),    # resident
            pl.BlockSpec((1, c_pad), lambda i: (0, 0)),              # resident
        ],
        out_specs=pl.BlockSpec((None, h, w, c_pad), lambda i: (i, 0, 0, 0)),
        scratch_shapes=[pltpu.VMEM((h + 2, wp, c_pad), jnp.bfloat16)],
        compiler_params=pltpu.CompilerParams(
            dimension_semantics=("parallel",),
            vmem_limit_bytes=32 * 1024 * 1024),
        cost_estimate=pl.CostEstimate(flops=flops, transcendentals=transc,
                                      bytes_accessed=bytes_accessed),
    )(xp, params["w1"], params["b1"], params["w2"], params["b2"])

    y = y[..., :out_ch]                              # drop lane padding
    return jnp.transpose(y, (0, 3, 1, 2))            # back to NCHW


# ------------------------------ parameters -----------------------------------

def _fold_weight(w_oihw, scale, cin_pad, cout_pad):
    """PyTorch (Cout, Cin, 3, 3) -> (9, Cin_pad, Cout_pad) bf16, scale folded.

    conv(x * scale) + b == conv with (W * scale) + b  (linearity).  Channel
    padding columns/rows are zero so padded lanes stay exactly zero."""
    cout, cin = w_oihw.shape[0], w_oihw.shape[1]
    wk = (jnp.transpose(w_oihw, (2, 3, 1, 0)) * scale).reshape(9, cin, cout)
    wk = jnp.pad(wk, ((0, 0), (0, cin_pad - cin), (0, cout_pad - cout)))
    return wk.astype(jnp.bfloat16)


def init_conv_block(key, in_ch, out_ch):
    k1, k2 = jax.random.split(key)
    w1 = jax.random.normal(k1, (out_ch, in_ch, 3, 3), jnp.float32)   # N(0,1)
    w2 = jax.random.normal(k2, (out_ch, out_ch, 3, 3), jnp.float32)
    s1 = (2.0 / (in_ch * 9)) ** 0.5
    s2 = (2.0 / (out_ch * 9)) ** 0.5
    cin_pad = _round_up(in_ch, 128)
    c_pad = _round_up(out_ch, 128)
    params = {
        "w1": _fold_weight(w1, s1, cin_pad, c_pad),
        "b1": jnp.zeros((1, c_pad), jnp.float32),        # zeros_ init
        "w2": _fold_weight(w2, s2, c_pad, c_pad),
        "b2": jnp.zeros((1, c_pad), jnp.float32),
    }
    ref = {"w1": w1, "w2": w2, "s1": s1, "s2": s2,
           "b1": jnp.zeros((out_ch,), jnp.float32),
           "b2": jnp.zeros((out_ch,), jnp.float32)}
    return params, ref


# ------------------------------ pure-JAX reference ---------------------------

def _ref_layer(x_nhwc, w_oihw, b, scale, use_pn):
    xb = x_nhwc.astype(jnp.bfloat16)
    wb = (w_oihw * scale).astype(jnp.bfloat16)
    y = jax.lax.conv_general_dilated(
        xb, wb, window_strides=(1, 1), padding=((1, 1), (1, 1)),
        dimension_numbers=("NHWC", "OIHW", "NHWC"),
        preferred_element_type=jnp.float32)
    y = y + b.reshape(1, 1, 1, -1)
    y = jnp.where(y > 0, y, NEG_SLOPE * y)
    if use_pn:
        y = y * jax.lax.rsqrt(jnp.mean(y * y, axis=-1, keepdims=True) + EPS)
    return y


def conv_block_reference(ref, x_nchw, use_pixelnorm=True):
    x = jnp.transpose(x_nchw, (0, 2, 3, 1))
    x = _ref_layer(x, ref["w1"], ref["b1"], ref["s1"], use_pixelnorm)
    x = _ref_layer(x, ref["w2"], ref["b2"], ref["s2"], use_pixelnorm)
    return jnp.transpose(x, (0, 3, 1, 2))


# ------------------------------ demo ------------------------------------------

if __name__ == "__main__":
    N, IN_CH, OUT_CH, H, W = 2, 128, 64, 16, 16   # typical small ProGAN block

    key = jax.random.PRNGKey(0)
    pkey, xkey = jax.random.split(key)
    params, ref_params = init_conv_block(pkey, IN_CH, OUT_CH)
    x = jax.random.normal(xkey, (N, IN_CH, H, W), jnp.float32)   # NCHW like PyTorch

    fwd = jax.jit(functools.partial(conv_block_forward, out_ch=OUT_CH))
    out = jax.block_until_ready(fwd(params, x))
    ref = jax.block_until_ready(conv_block_reference(ref_params, x))

    assert out.shape == (N, OUT_CH, H, W), out.shape
    assert bool(jnp.all(jnp.isfinite(out)))
    max_err = float(jnp.max(jnp.abs(out - ref)))
    assert max_err < 5e-2, f"max abs error vs reference: {max_err}"
    print("KERNEL_OK")
</pallas_src>

<mosaic_0001>
module attributes {stable_mosaic.version = 11 : i64} {
  func.func @conv_block_kernel(%arg0: i32, %arg1: memref<1x18x24x128xbf16, #tpu.memory_space<vmem>>, %arg2: memref<9x128x128xbf16, #tpu.memory_space<vmem>>, %arg3: memref<1x128xf32, #tpu.memory_space<vmem>>, %arg4: memref<9x128x128xbf16, #tpu.memory_space<vmem>>, %arg5: memref<1x128xf32, #tpu.memory_space<vmem>>, %arg6: memref<1x16x16x128xf32, #tpu.memory_space<vmem>>, %arg7: memref<18x24x128xbf16, #tpu.memory_space<vmem>>) attributes {dimension_semantics = [#tpu.dimension_semantics<parallel>], iteration_bounds = array<i64: 2>, scalar_prefetch = 0 : i64, scratch_operands = 1 : i64, tpu.core_type = #tpu.core_type<tc>, window_params = [{transform_indices = @transform_0, window_bounds = array<i64: 1, 18, 24, 128>}, {pipeline_mode = #tpu.pipeline_mode<synchronous>, transform_indices = @transform_1, window_bounds = array<i64: 9, 128, 128>}, {pipeline_mode = #tpu.pipeline_mode<synchronous>, transform_indices = @transform_2, window_bounds = array<i64: 1, 128>}, {pipeline_mode = #tpu.pipeline_mode<synchronous>, transform_indices = @transform_3, window_bounds = array<i64: 9, 128, 128>}, {pipeline_mode = #tpu.pipeline_mode<synchronous>, transform_indices = @transform_4, window_bounds = array<i64: 1, 128>}, {transform_indices = @transform_5, window_bounds = array<i64: 1, 16, 16, 128>}]} {
    %c0 = arith.constant 0 : index
    %c0_0 = arith.constant 0 : index
    %0 = vector.load %arg3[%c0, %c0_0] : memref<1x128xf32, #tpu.memory_space<vmem>>, vector<1x128xf32>
    %c0_1 = arith.constant 0 : index
    %c0_2 = arith.constant 0 : index
    %c0_3 = arith.constant 0 : index
    %c0_4 = arith.constant 0 : index
    %1 = vector.load %arg1[%c0_1, %c0_2, %c0_3, %c0_4] : memref<1x18x24x128xbf16, #tpu.memory_space<vmem>>, vector<1x18x16x128xbf16>
    %2 = vector.shape_cast %1 : vector<1x18x16x128xbf16> to vector<18x16x128xbf16>
    %3 = vector.shape_cast %2 : vector<18x16x128xbf16> to vector<288x128xbf16>
    %c0_5 = arith.constant 0 : index
    %c0_6 = arith.constant 0 : index
    %c1 = arith.constant 1 : index
    %c0_7 = arith.constant 0 : index
    %4 = vector.load %arg1[%c0_5, %c0_6, %c1, %c0_7] : memref<1x18x24x128xbf16, #tpu.memory_space<vmem>>, vector<1x18x16x128xbf16>
    %5 = vector.shape_cast %4 : vector<1x18x16x128xbf16> to vector<18x16x128xbf16>
    %6 = vector.shape_cast %5 : vector<18x16x128xbf16> to vector<288x128xbf16>
    %c0_8 = arith.constant 0 : index
    %c0_9 = arith.constant 0 : index
    %c2 = arith.constant 2 : index
    %c0_10 = arith.constant 0 : index
    %7 = vector.load %arg1[%c0_8, %c0_9, %c2, %c0_10] : memref<1x18x24x128xbf16, #tpu.memory_space<vmem>>, vector<1x18x16x128xbf16>
    %8 = vector.shape_cast %7 : vector<1x18x16x128xbf16> to vector<18x16x128xbf16>
    %9 = vector.shape_cast %8 : vector<18x16x128xbf16> to vector<288x128xbf16>
    %cst = arith.constant 0.000000e+00 : f32
    %10 = vector.broadcast %cst : f32 to vector<256x128xf32>
    %11 = vector.extract_strided_slice %3 {offsets = [0, 0], sizes = [256, 128], strides = [1, 1]} : vector<288x128xbf16> to vector<256x128xbf16>
    %c0_11 = arith.constant 0 : index
    %c0_12 = arith.constant 0 : index
    %c0_13 = arith.constant 0 : index
    %12 = vector.load %arg2[%c0_11, %c0_12, %c0_13] : memref<9x128x128xbf16, #tpu.memory_space<vmem>>, vector<1x128x128xbf16>
    %13 = vector.shape_cast %12 : vector<1x128x128xbf16> to vector<128x128xbf16>
    %cst_14 = arith.constant dense<0.000000e+00> : vector<256x128xf32>
    %14 = tpu.matmul %11, %13, %cst_14 {dimension_numbers = #tpu.dot_dimension_numbers<[1], [0], [0], [1], [0, 0, 1, 1], [], []>} : vector<256x128xbf16>, vector<128x128xbf16>, vector<256x128xf32> -> vector<256x128xf32>
    %15 = arith.addf %10, %14 : vector<256x128xf32>
    %16 = vector.extract_strided_slice %6 {offsets = [0, 0], sizes = [256, 128], strides = [1, 1]} : vector<288x128xbf16> to vector<256x128xbf16>
    %c1_15 = arith.constant 1 : index
    %c0_16 = arith.constant 0 : index
    %c0_17 = arith.constant 0 : index
    %17 = vector.load %arg2[%c1_15, %c0_16, %c0_17] : memref<9x128x128xbf16, #tpu.memory_space<vmem>>, vector<1x128x128xbf16>
    %18 = vector.shape_cast %17 : vector<1x128x128xbf16> to vector<128x128xbf16>
    %cst_18 = arith.constant dense<0.000000e+00> : vector<256x128xf32>
    %19 = tpu.matmul %16, %18, %cst_18 {dimension_numbers = #tpu.dot_dimension_numbers<[1], [0], [0], [1], [0, 0, 1, 1], [], []>} : vector<256x128xbf16>, vector<128x128xbf16>, vector<256x128xf32> -> vector<256x128xf32>
    %20 = arith.addf %15, %19 : vector<256x128xf32>
    %21 = vector.extract_strided_slice %9 {offsets = [0, 0], sizes = [256, 128], strides = [1, 1]} : vector<288x128xbf16> to vector<256x128xbf16>
    %c2_19 = arith.constant 2 : index
    %c0_20 = arith.constant 0 : index
    %c0_21 = arith.constant 0 : index
    %22 = vector.load %arg2[%c2_19, %c0_20, %c0_21] : memref<9x128x128xbf16, #tpu.memory_space<vmem>>, vector<1x128x128xbf16>
    %23 = vector.shape_cast %22 : vector<1x128x128xbf16> to vector<128x128xbf16>
    %cst_22 = arith.constant dense<0.000000e+00> : vector<256x128xf32>
    %24 = tpu.matmul %21, %23, %cst_22 {dimension_numbers = #tpu.dot_dimension_numbers<[1], [0], [0], [1], [0, 0, 1, 1], [], []>} : vector<256x128xbf16>, vector<128x128xbf16>, vector<256x128xf32> -> vector<256x128xf32>
    %25 = arith.addf %20, %24 : vector<256x128xf32>
    %26 = vector.extract_strided_slice %3 {offsets = [16, 0], sizes = [256, 128], strides = [1, 1]} : vector<288x128xbf16> to vector<256x128xbf16>
    %c3 = arith.constant 3 : index
    %c0_23 = arith.constant 0 : index
    %c0_24 = arith.constant 0 : index
    %27 = vector.load %arg2[%c3, %c0_23, %c0_24] : memref<9x128x128xbf16, #tpu.memory_space<vmem>>, vector<1x128x128xbf16>
    %28 = vector.shape_cast %27 : vector<1x128x128xbf16> to vector<128x128xbf16>
    %cst_25 = arith.constant dense<0.000000e+00> : vector<256x128xf32>
    %29 = tpu.matmul %26, %28, %cst_25 {dimension_numbers = #tpu.dot_dimension_numbers<[1], [0], [0], [1], [0, 0, 1, 1], [], []>} : vector<256x128xbf16>, vector<128x128xbf16>, vector<256x128xf32> -> vector<256x128xf32>
    %30 = arith.addf %25, %29 : vector<256x128xf32>
    %31 = vector.extract_strided_slice %6 {offsets = [16, 0], sizes = [256, 128], strides = [1, 1]} : vector<288x128xbf16> to vector<256x128xbf16>
    %c4 = arith.constant 4 : index
    %c0_26 = arith.constant 0 : index
    %c0_27 = arith.constant 0 : index
    %32 = vector.load %arg2[%c4, %c0_26, %c0_27] : memref<9x128x128xbf16, #tpu.memory_space<vmem>>, vector<1x128x128xbf16>
    %33 = vector.shape_cast %32 : vector<1x128x128xbf16> to vector<128x128xbf16>
    %cst_28 = arith.constant dense<0.000000e+00> : vector<256x128xf32>
    %34 = tpu.matmul %31, %33, %cst_28 {dimension_numbers = #tpu.dot_dimension_numbers<[1], [0], [0], [1], [0, 0, 1, 1], [], []>} : vector<256x128xbf16>, vector<128x128xbf16>, vector<256x128xf32> -> vector<256x128xf32>
    %35 = arith.addf %30, %34 : vector<256x128xf32>
    %36 = vector.extract_strided_slice %9 {offsets = [16, 0], sizes = [256, 128], strides = [1, 1]} : vector<288x128xbf16> to vector<256x128xbf16>
    %c5 = arith.constant 5 : index
    %c0_29 = arith.constant 0 : index
    %c0_30 = arith.constant 0 : index
    %37 = vector.load %arg2[%c5, %c0_29, %c0_30] : memref<9x128x128xbf16, #tpu.memory_space<vmem>>, vector<1x128x128xbf16>
    %38 = vector.shape_cast %37 : vector<1x128x128xbf16> to vector<128x128xbf16>
    %cst_31 = arith.constant dense<0.000000e+00> : vector<256x128xf32>
    %39 = tpu.matmul %36, %38, %cst_31 {dimension_numbers = #tpu.dot_dimension_numbers<[1], [0], [0], [1], [0, 0, 1, 1], [], []>} : vector<256x128xbf16>, vector<128x128xbf16>, vector<256x128xf32> -> vector<256x128xf32>
    %40 = arith.addf %35, %39 : vector<256x128xf32>
    %41 = vector.extract_strided_slice %3 {offsets = [32, 0], sizes = [256, 128], strides = [1, 1]} : vector<288x128xbf16> to vector<256x128xbf16>
    %c6 = arith.constant 6 : index
    %c0_32 = arith.constant 0 : index
    %c0_33 = arith.constant 0 : index
    %42 = vector.load %arg2[%c6, %c0_32, %c0_33] : memref<9x128x128xbf16, #tpu.memory_space<vmem>>, vector<1x128x128xbf16>
    %43 = vector.shape_cast %42 : vector<1x128x128xbf16> to vector<128x128xbf16>
    %cst_34 = arith.constant dense<0.000000e+00> : vector<256x128xf32>
    %44 = tpu.matmul %41, %43, %cst_34 {dimension_numbers = #tpu.dot_dimension_numbers<[1], [0], [0], [1], [0, 0, 1, 1], [], []>} : vector<256x128xbf16>, vector<128x128xbf16>, vector<256x128xf32> -> vector<256x128xf32>
    %45 = arith.addf %40, %44 : vector<256x128xf32>
    %46 = vector.extract_strided_slice %6 {offsets = [32, 0], sizes = [256, 128], strides = [1, 1]} : vector<288x128xbf16> to vector<256x128xbf16>
    %c7 = arith.constant 7 : index
    %c0_35 = arith.constant 0 : index
    %c0_36 = arith.constant 0 : index
    %47 = vector.load %arg2[%c7, %c0_35, %c0_36] : memref<9x128x128xbf16, #tpu.memory_space<vmem>>, vector<1x128x128xbf16>
    %48 = vector.shape_cast %47 : vector<1x128x128xbf16> to vector<128x128xbf16>
    %cst_37 = arith.constant dense<0.000000e+00> : vector<256x128xf32>
    %49 = tpu.matmul %46, %48, %cst_37 {dimension_numbers = #tpu.dot_dimension_numbers<[1], [0], [0], [1], [0, 0, 1, 1], [], []>} : vector<256x128xbf16>, vector<128x128xbf16>, vector<256x128xf32> -> vector<256x128xf32>
    %50 = arith.addf %45, %49 : vector<256x128xf32>
    %51 = vector.extract_strided_slice %9 {offsets = [32, 0], sizes = [256, 128], strides = [1, 1]} : vector<288x128xbf16> to vector<256x128xbf16>
    %c8 = arith.constant 8 : index
    %c0_38 = arith.constant 0 : index
    %c0_39 = arith.constant 0 : index
    %52 = vector.load %arg2[%c8, %c0_38, %c0_39] : memref<9x128x128xbf16, #tpu.memory_space<vmem>>, vector<1x128x128xbf16>
    %53 = vector.shape_cast %52 : vector<1x128x128xbf16> to vector<128x128xbf16>
    %cst_40 = arith.constant dense<0.000000e+00> : vector<256x128xf32>
    %54 = tpu.matmul %51, %53, %cst_40 {dimension_numbers = #tpu.dot_dimension_numbers<[1], [0], [0], [1], [0, 0, 1, 1], [], []>} : vector<256x128xbf16>, vector<128x128xbf16>, vector<256x128xf32> -> vector<256x128xf32>
    %55 = arith.addf %50, %54 : vector<256x128xf32>
    %56 = vector.broadcast %0 : vector<1x128xf32> to vector<256x128xf32>
    %57 = arith.addf %55, %56 : vector<256x128xf32>
    %cst_41 = arith.constant 0.000000e+00 : f32
    %58 = vector.broadcast %cst_41 : f32 to vector<256x128xf32>
    %59 = arith.cmpf ogt, %57, %58 : vector<256x128xf32>
    %cst_42 = arith.constant 2.000000e-01 : f32
    %60 = vector.broadcast %cst_42 : f32 to vector<256x128xf32>
    %61 = arith.mulf %60, %57 : vector<256x128xf32>
    %62 = arith.select %59, %57, %61 : vector<256x128xi1>, vector<256x128xf32>
    %63 = arith.mulf %62, %62 : vector<256x128xf32>
    %cst_43 = arith.constant dense<0.000000e+00> : vector<256xf32>
    %64 = vector.multi_reduction <add>, %63, %cst_43 [1] : vector<256x128xf32> to vector<256xf32>
    %65 = vector.shape_cast %64 : vector<256xf32> to vector<256x1xf32>
    %cst_44 = arith.constant 1.562500e-02 : f32
    %66 = vector.broadcast %cst_44 : f32 to vector<256x1xf32>
    %67 = arith.mulf %65, %66 : vector<256x1xf32>
    %cst_45 = arith.constant 9.99999993E-9 : f32
    %68 = vector.broadcast %cst_45 : f32 to vector<256x1xf32>
    %69 = arith.addf %67, %68 : vector<256x1xf32>
    %70 = math.rsqrt %69 : vector<256x1xf32>
    %71 = vector.broadcast %70 : vector<256x1xf32> to vector<256x128xf32>
    %72 = arith.mulf %62, %71 : vector<256x128xf32>
    %cst_46 = arith.constant 0.000000e+00 : bf16
    %73 = vector.broadcast %cst_46 : bf16 to vector<18x24x128xbf16>
    %c0_47 = arith.constant 0 : index
    %c0_48 = arith.constant 0 : index
    %c0_49 = arith.constant 0 : index
    %74 = vector.load %arg7[%c0_47, %c0_48, %c0_49] : memref<18x24x128xbf16, #tpu.memory_space<vmem>>, vector<18x24x128xbf16>
    tpu.vector_store %arg7[%c0_47, %c0_48, %c0_49], %73 {strides = array<i32>} : memref<18x24x128xbf16, #tpu.memory_space<vmem>>, vector<18x24x128xbf16>,
    %75 = vector.shape_cast %72 : vector<256x128xf32> to vector<16x16x128xf32>
    %76 = arith.truncf %75 : vector<16x16x128xf32> to vector<16x16x128xbf16>
    %c1_50 = arith.constant 1 : index
    %c1_51 = arith.constant 1 : index
    %c0_52 = arith.constant 0 : index
    %77 = vector.load %arg7[%c1_50, %c1_51, %c0_52] : memref<18x24x128xbf16, #tpu.memory_space<vmem>>, vector<16x16x128xbf16>
    tpu.vector_store %arg7[%c1_50, %c1_51, %c0_52], %76 {strides = array<i32>} : memref<18x24x128xbf16, #tpu.memory_space<vmem>>, vector<16x16x128xbf16>,
    %c0_53 = arith.constant 0 : index
    %c0_54 = arith.constant 0 : index
    %78 = vector.load %arg5[%c0_53, %c0_54] : memref<1x128xf32, #tpu.memory_space<vmem>>, vector<1x128xf32>
    %c0_55 = arith.constant 0 : index
    %c0_56 = arith.constant 0 : index
    %c0_57 = arith.constant 0 : index
    %79 = vector.load %arg7[%c0_55, %c0_56, %c0_57] : memref<18x24x128xbf16, #tpu.memory_space<vmem>>, vector<18x16x128xbf16>
    %80 = vector.shape_cast %79 : vector<18x16x128xbf16> to vector<288x128xbf16>
    %c0_58 = arith.constant 0 : index
    %c1_59 = arith.constant 1 : index
    %c0_60 = arith.constant 0 : index
    %81 = vector.load %arg7[%c0_58, %c1_59, %c0_60] : memref<18x24x128xbf16, #tpu.memory_space<vmem>>, vector<18x16x128xbf16>
    %82 = vector.shape_cast %81 : vector<18x16x128xbf16> to vector<288x128xbf16>
    %c0_61 = arith.constant 0 : index
    %c2_62 = arith.constant 2 : index
    %c0_63 = arith.constant 0 : index
    %83 = vector.load %arg7[%c0_61, %c2_62, %c0_63] : memref<18x24x128xbf16, #tpu.memory_space<vmem>>, vector<18x16x128xbf16>
    %84 = vector.shape_cast %83 : vector<18x16x128xbf16> to vector<288x128xbf16>
    %cst_64 = arith.constant 0.000000e+00 : f32
    %85 = vector.broadcast %cst_64 : f32 to vector<256x128xf32>
    %86 = vector.extract_strided_slice %80 {offsets = [0, 0], sizes = [256, 128], strides = [1, 1]} : vector<288x128xbf16> to vector<256x128xbf16>
    %c0_65 = arith.constant 0 : index
    %c0_66 = arith.constant 0 : index
    %c0_67 = arith.constant 0 : index
    %87 = vector.load %arg4[%c0_65, %c0_66, %c0_67] : memref<9x128x128xbf16, #tpu.memory_space<vmem>>, vector<1x128x128xbf16>
    %88 = vector.shape_cast %87 : vector<1x128x128xbf16> to vector<128x128xbf16>
    %cst_68 = arith.constant dense<0.000000e+00> : vector<256x128xf32>
    %89 = tpu.matmul %86, %88, %cst_68 {dimension_numbers = #tpu.dot_dimension_numbers<[1], [0], [0], [1], [0, 0, 1, 1], [], []>} : vector<256x128xbf16>, vector<128x128xbf16>, vector<256x128xf32> -> vector<256x128xf32>
    %90 = arith.addf %85, %89 : vector<256x128xf32>
    %91 = vector.extract_strided_slice %82 {offsets = [0, 0], sizes = [256, 128], strides = [1, 1]} : vector<288x128xbf16> to vector<256x128xbf16>
    %c1_69 = arith.constant 1 : index
    %c0_70 = arith.constant 0 : index
    %c0_71 = arith.constant 0 : index
    %92 = vector.load %arg4[%c1_69, %c0_70, %c0_71] : memref<9x128x128xbf16, #tpu.memory_space<vmem>>, vector<1x128x128xbf16>
    %93 = vector.shape_cast %92 : vector<1x128x128xbf16> to vector<128x128xbf16>
    %cst_72 = arith.constant dense<0.000000e+00> : vector<256x128xf32>
    %94 = tpu.matmul %91, %93, %cst_72 {dimension_numbers = #tpu.dot_dimension_numbers<[1], [0], [0], [1], [0, 0, 1, 1], [], []>} : vector<256x128xbf16>, vector<128x128xbf16>, vector<256x128xf32> -> vector<256x128xf32>
    %95 = arith.addf %90, %94 : vector<256x128xf32>
    %96 = vector.extract_strided_slice %84 {offsets = [0, 0], sizes = [256, 128], strides = [1, 1]} : vector<288x128xbf16> to vector<256x128xbf16>
    %c2_73 = arith.constant 2 : index
    %c0_74 = arith.constant 0 : index
    %c0_75 = arith.constant 0 : index
    %97 = vector.load %arg4[%c2_73, %c0_74, %c0_75] : memref<9x128x128xbf16, #tpu.memory_space<vmem>>, vector<1x128x128xbf16>
    %98 = vector.shape_cast %97 : vector<1x128x128xbf16> to vector<128x128xbf16>
    %cst_76 = arith.constant dense<0.000000e+00> : vector<256x128xf32>
    %99 = tpu.matmul %96, %98, %cst_76 {dimension_numbers = #tpu.dot_dimension_numbers<[1], [0], [0], [1], [0, 0, 1, 1], [], []>} : vector<256x128xbf16>, vector<128x128xbf16>, vector<256x128xf32> -> vector<256x128xf32>
    %100 = arith.addf %95, %99 : vector<256x128xf32>
    %101 = vector.extract_strided_slice %80 {offsets = [16, 0], sizes = [256, 128], strides = [1, 1]} : vector<288x128xbf16> to vector<256x128xbf16>
    %c3_77 = arith.constant 3 : index
    %c0_78 = arith.constant 0 : index
    %c0_79 = arith.constant 0 : index
    %102 = vector.load %arg4[%c3_77, %c0_78, %c0_79] : memref<9x128x128xbf16, #tpu.memory_space<vmem>>, vector<1x128x128xbf16>
    %103 = vector.shape_cast %102 : vector<1x128x128xbf16> to vector<128x128xbf16>
    %cst_80 = arith.constant dense<0.000000e+00> : vector<256x128xf32>
    %104 = tpu.matmul %101, %103, %cst_80 {dimension_numbers = #tpu.dot_dimension_numbers<[1], [0], [0], [1], [0, 0, 1, 1], [], []>} : vector<256x128xbf16>, vector<128x128xbf16>, vector<256x128xf32> -> vector<256x128xf32>
    %105 = arith.addf %100, %104 : vector<256x128xf32>
    %106 = vector.extract_strided_slice %82 {offsets = [16, 0], sizes = [256, 128], strides = [1, 1]} : vector<288x128xbf16> to vector<256x128xbf16>
    %c4_81 = arith.constant 4 : index
    %c0_82 = arith.constant 0 : index
    %c0_83 = arith.constant 0 : index
    %107 = vector.load %arg4[%c4_81, %c0_82, %c0_83] : memref<9x128x128xbf16, #tpu.memory_space<vmem>>, vector<1x128x128xbf16>
    %108 = vector.shape_cast %107 : vector<1x128x128xbf16> to vector<128x128xbf16>
    %cst_84 = arith.constant dense<0.000000e+00> : vector<256x128xf32>
    %109 = tpu.matmul %106, %108, %cst_84 {dimension_numbers = #tpu.dot_dimension_numbers<[1], [0], [0], [1], [0, 0, 1, 1], [], []>} : vector<256x128xbf16>, vector<128x128xbf16>, vector<256x128xf32> -> vector<256x128xf32>
    %110 = arith.addf %105, %109 : vector<256x128xf32>
    %111 = vector.extract_strided_slice %84 {offsets = [16, 0], sizes = [256, 128], strides = [1, 1]} : vector<288x128xbf16> to vector<256x128xbf16>
    %c5_85 = arith.constant 5 : index
    %c0_86 = arith.constant 0 : index
    %c0_87 = arith.constant 0 : index
    %112 = vector.load %arg4[%c5_85, %c0_86, %c0_87] : memref<9x128x128xbf16, #tpu.memory_space<vmem>>, vector<1x128x128xbf16>
    %113 = vector.shape_cast %112 : vector<1x128x128xbf16> to vector<128x128xbf16>
    %cst_88 = arith.constant dense<0.000000e+00> : vector<256x128xf32>
    %114 = tpu.matmul %111, %113, %cst_88 {dimension_numbers = #tpu.dot_dimension_numbers<[1], [0], [0], [1], [0, 0, 1, 1], [], []>} : vector<256x128xbf16>, vector<128x128xbf16>, vector<256x128xf32> -> vector<256x128xf32>
    %115 = arith.addf %110, %114 : vector<256x128xf32>
    %116 = vector.extract_strided_slice %80 {offsets = [32, 0], sizes = [256, 128], strides = [1, 1]} : vector<288x128xbf16> to vector<256x128xbf16>
    %c6_89 = arith.constant 6 : index
    %c0_90 = arith.constant 0 : index
    %c0_91 = arith.constant 0 : index
    %117 = vector.load %arg4[%c6_89, %c0_90, %c0_91] : memref<9x128x128xbf16, #tpu.memory_space<vmem>>, vector<1x128x128xbf16>
    %118 = vector.shape_cast %117 : vector<1x128x128xbf16> to vector<128x128xbf16>
    %cst_92 = arith.constant dense<0.000000e+00> : vector<256x128xf32>
    %119 = tpu.matmul %116, %118, %cst_92 {dimension_numbers = #tpu.dot_dimension_numbers<[1], [0], [0], [1], [0, 0, 1, 1], [], []>} : vector<256x128xbf16>, vector<128x128xbf16>, vector<256x128xf32> -> vector<256x128xf32>
    %120 = arith.addf %115, %119 : vector<256x128xf32>
    %121 = vector.extract_strided_slice %82 {offsets = [32, 0], sizes = [256, 128], strides = [1, 1]} : vector<288x128xbf16> to vector<256x128xbf16>
    %c7_93 = arith.constant 7 : index
    %c0_94 = arith.constant 0 : index
    %c0_95 = arith.constant 0 : index
    %122 = vector.load %arg4[%c7_93, %c0_94, %c0_95] : memref<9x128x128xbf16, #tpu.memory_space<vmem>>, vector<1x128x128xbf16>
    %123 = vector.shape_cast %122 : vector<1x128x128xbf16> to vector<128x128xbf16>
    %cst_96 = arith.constant dense<0.000000e+00> : vector<256x128xf32>
    %124 = tpu.matmul %121, %123, %cst_96 {dimension_numbers = #tpu.dot_dimension_numbers<[1], [0], [0], [1], [0, 0, 1, 1], [], []>} : vector<256x128xbf16>, vector<128x128xbf16>, vector<256x128xf32> -> vector<256x128xf32>
    %125 = arith.addf %120, %124 : vector<256x128xf32>
    %126 = vector.extract_strided_slice %84 {offsets = [32, 0], sizes = [256, 128], strides = [1, 1]} : vector<288x128xbf16> to vector<256x128xbf16>
    %c8_97 = arith.constant 8 : index
    %c0_98 = arith.constant 0 : index
    %c0_99 = arith.constant 0 : index
    %127 = vector.load %arg4[%c8_97, %c0_98, %c0_99] : memref<9x128x128xbf16, #tpu.memory_space<vmem>>, vector<1x128x128xbf16>
    %128 = vector.shape_cast %127 : vector<1x128x128xbf16> to vector<128x128xbf16>
    %cst_100 = arith.constant dense<0.000000e+00> : vector<256x128xf32>
    %129 = tpu.matmul %126, %128, %cst_100 {dimension_numbers = #tpu.dot_dimension_numbers<[1], [0], [0], [1], [0, 0, 1, 1], [], []>} : vector<256x128xbf16>, vector<128x128xbf16>, vector<256x128xf32> -> vector<256x128xf32>
    %130 = arith.addf %125, %129 : vector<256x128xf32>
    %131 = vector.broadcast %78 : vector<1x128xf32> to vector<256x128xf32>
    %132 = arith.addf %130, %131 : vector<256x128xf32>
    %cst_101 = arith.constant 0.000000e+00 : f32
    %133 = vector.broadcast %cst_101 : f32 to vector<256x128xf32>
    %134 = arith.cmpf ogt, %132, %133 : vector<256x128xf32>
    %cst_102 = arith.constant 2.000000e-01 : f32
    %135 = vector.broadcast %cst_102 : f32 to vector<256x128xf32>
    %136 = arith.mulf %135, %132 : vector<256x128xf32>
    %137 = arith.select %134, %132, %136 : vector<256x128xi1>, vector<256x128xf32>
    %138 = arith.mulf %137, %137 : vector<256x128xf32>
    %cst_103 = arith.constant dense<0.000000e+00> : vector<256xf32>
    %139 = vector.multi_reduction <add>, %138, %cst_103 [1] : vector<256x128xf32> to vector<256xf32>
    %140 = vector.shape_cast %139 : vector<256xf32> to vector<256x1xf32>
    %cst_104 = arith.constant 1.562500e-02 : f32
    %141 = vector.broadcast %cst_104 : f32 to vector<256x1xf32>
    %142 = arith.mulf %140, %141 : vector<256x1xf32>
    %cst_105 = arith.constant 9.99999993E-9 : f32
    %143 = vector.broadcast %cst_105 : f32 to vector<256x1xf32>
    %144 = arith.addf %142, %143 : vector<256x1xf32>
    %145 = math.rsqrt %144 : vector<256x1xf32>
    %146 = vector.broadcast %145 : vector<256x1xf32> to vector<256x128xf32>
    %147 = arith.mulf %137, %146 : vector<256x128xf32>
    %148 = vector.shape_cast %147 : vector<256x128xf32> to vector<16x16x128xf32>
    %c0_106 = arith.constant 0 : index
    %c0_107 = arith.constant 0 : index
    %c0_108 = arith.constant 0 : index
    %c0_109 = arith.constant 0 : index
    %149 = vector.load %arg6[%c0_106, %c0_107, %c0_108, %c0_109] : memref<1x16x16x128xf32, #tpu.memory_space<vmem>>, vector<1x16x16x128xf32>
    %150 = vector.shape_cast %149 : vector<1x16x16x128xf32> to vector<16x16x128xf32>
    %151 = vector.shape_cast %148 : vector<16x16x128xf32> to vector<1x16x16x128xf32>
    tpu.vector_store %arg6[%c0_106, %c0_107, %c0_108, %c0_109], %151 {strides = array<i32>} : memref<1x16x16x128xf32, #tpu.memory_space<vmem>>, vector<1x16x16x128xf32>,
    return
  }
  func.func @transform_0(%arg0: i32) -> (i32, i32, i32, i32) {
    %c0_i32 = arith.constant 0 : i32
    %c0_i32_0 = arith.constant 0 : i32
    %c0_i32_1 = arith.constant 0 : i32
    %c0_i32_2 = arith.constant 0 : i32
    return %arg0, %c0_i32, %c0_i32_0, %c0_i32_1 : i32, i32, i32, i32
  }
  func.func @transform_1(%arg0: i32) -> (i32, i32, i32) {
    %c0_i32 = arith.constant 0 : i32
    %c0_i32_0 = arith.constant 0 : i32
    %c0_i32_1 = arith.constant 0 : i32
    %c0_i32_2 = arith.constant 0 : i32
    return %c0_i32, %c0_i32_0, %c0_i32_1 : i32, i32, i32
  }
  func.func @transform_2(%arg0: i32) -> (i32, i32) {
    %c0_i32 = arith.constant 0 : i32
    %c0_i32_0 = arith.constant 0 : i32
    %c0_i32_1 = arith.constant 0 : i32
    return %c0_i32, %c0_i32_0 : i32, i32
  }
  func.func @transform_3(%arg0: i32) -> (i32, i32, i32) {
    %c0_i32 = arith.constant 0 : i32
    %c0_i32_0 = arith.constant 0 : i32
    %c0_i32_1 = arith.constant 0 : i32
    %c0_i32_2 = arith.constant 0 : i32
    return %c0_i32, %c0_i32_0, %c0_i32_1 : i32, i32, i32
  }
  func.func @transform_4(%arg0: i32) -> (i32, i32) {
    %c0_i32 = arith.constant 0 : i32
    %c0_i32_0 = arith.constant 0 : i32
    %c0_i32_1 = arith.constant 0 : i32
    return %c0_i32, %c0_i32_0 : i32, i32
  }
  func.func @transform_5(%arg0: i32) -> (i32, i32, i32, i32) {
    %c0_i32 = arith.constant 0 : i32
    %c0_i32_0 = arith.constant 0 : i32
    %c0_i32_1 = arith.constant 0 : i32
    %c0_i32_2 = arith.constant 0 : i32
    return %arg0, %c0_i32, %c0_i32_0, %c0_i32_1 : i32, i32, i32, i32
  }
}

</mosaic_0001>

<llo_original>
// kernel: conv_block_forward.1
$region0: #{conv_block_forward.1}
  #allocation0 [shape = 'u32[]', space=smem, size = 0x4, offset = 0x4, fixed_abs, tag = 'smem constant byte address 0x4 - core index']
  #allocation1 [shape = 'u32[144,128]{1,0:T(1,128)}', space=vmem, size = 0x12000, scoped, tag = 'internal scratch']
  #allocation2 [shape = 'bf16[18,24,128]{2,1,0:T(8,128)(2,1)}', space=vmem, size = 0x1b000, scoped, tag = 'scratch operand']
  %s0 = inlined_call_operand.vmem [shape: bf16[2,18,24,128], index: 0, kind: input, shape index: {}]
  %s1 = inlined_call_operand.vmem [shape: bf16[9,128,128], index: 1, kind: input, shape index: {}]
  %s2 = inlined_call_operand.vmem [shape: f32[1,128], index: 2, kind: input, shape index: {}]
  %s3 = inlined_call_operand.vmem [shape: bf16[9,128,128], index: 3, kind: input, shape index: {}]
  %s4 = inlined_call_operand.vmem [shape: f32[1,128], index: 4, kind: input, shape index: {}]
  %s5 = inlined_call_operand.vmem [shape: f32[2,16,16,128], index: 5, kind: output, shape index: {}]
  %s6 = sld [smem:[#allocation0]]
  $region53: #{conv_block_forward.1} parent=0
    _
  %s8 = ssub.s32 1, %s6
  %s9 = scalar_select 0, %s8, %s6
  loop: start=0, step=1, limit=4
  $region2: #{conv_block_forward.1} parent=0 // loop_pre_header
    _
  $region3: #{conv_block_forward.1} parent=0 // loop_header
    %s11 = sphi 0, %s15
    %p12 = scmp.ge.s32.totalorder %s11, 4
    %s21 = sphi 0, %s23
    %s24 = sphi 0, %s21
    %s25 = sphi 0, %s24
    %s41 = sphi 0, %s25
    %s45 = sphi 0, %s45
    %s47 = sphi 0, %s45
    %s48 = sphi 0, %s47
    %s62 = sphi 0, %s48
    %s66 = sphi 0, %s66
    %s68 = sphi 0, %s66
    %s69 = sphi 0, %s68
    %s83 = sphi 0, %s69
    %s87 = sphi 0, %s87
    %s89 = sphi 0, %s87
    %s90 = sphi 0, %s89
    %s104 = sphi 0, %s90
    %s108 = sphi 0, %s108
    %s110 = sphi 0, %s108
    %s111 = sphi 0, %s110
    %s125 = sphi 0, %s111
    %s131 = sphi 0, %s133
    %s134 = sphi 0, %s131
    %s135 = sphi 0, %s134
    %s151 = sphi 0, %s135
  $region4: #{conv_block_forward.1} parent=0 // loop_header_branch
    %14 = sbr.rel (%p12) target = $region8
  $region5: #{conv_block_forward.1} parent=0 // loop_body
    %s16 = ssub.s32 %s11, 1
    %s17 = ssub.s32 %s11, 2
    %s18 = sadd.s32 %s11, 1
    %s19 = ssub.s32 %s11, %s18
    %p20 = scmp.eq.s32.totalorder %s19, 0
    %s22 = sadd.s32 %s21, 1
    %s23 = scalar_select %p20, %s21, %s22
    %p26 = pneg %p20
    %p27 = scmp.eq.s32.totalorder %s11, 1
    %p28 = por %p26, %p27
    %p29 = scmp.ne.s32.totalorder %s21, %s24
    %p30 = scmp.eq.s32.totalorder %s11, 0
    %p31 = por %p29, %p30
    %p32 = scmp.ne.s32.totalorder %s21, %s24
    %p33 = scmp.eq.s32.totalorder %s16, 1
    %p34 = por %p32, %p33
    %p35 = scmp.ne.s32.totalorder %s24, %s25
    %p36 = scmp.eq.s32.totalorder %s16, 0
    %p37 = por %p35, %p36
    %p38 = scmp.ne.s32.totalorder %s24, %s25
    %p39 = scmp.eq.s32.totalorder %s17, 1
    %p40 = por %p38, %p39
    %p42 = scmp.ne.s32.totalorder %s25, %s41
    %p43 = scmp.eq.s32.totalorder %s17, 0
    %p44 = por %p42, %p43
    %s46 = sadd.s32 %s45, 1
    %p49 = scmp.eq.s32.totalorder %s11, 1
    %p50 = scmp.ne.s32.totalorder %s45, %s47
    %p51 = scmp.eq.s32.totalorder %s11, 0
    %p52 = por %p50, %p51
    %p53 = scmp.ne.s32.totalorder %s45, %s47
    %p54 = scmp.eq.s32.totalorder %s16, 1
    %p55 = por %p53, %p54
    %p56 = scmp.ne.s32.totalorder %s47, %s48
    %p57 = scmp.eq.s32.totalorder %s16, 0
    %p58 = por %p56, %p57
    %p59 = scmp.ne.s32.totalorder %s47, %s48
    %p60 = scmp.eq.s32.totalorder %s17, 1
    %p61 = por %p59, %p60
    %p63 = scmp.ne.s32.totalorder %s48, %s62
    %p64 = scmp.eq.s32.totalorder %s17, 0
    %p65 = por %p63, %p64
    %s67 = sadd.s32 %s66, 1
    %p70 = scmp.eq.s32.totalorder %s11, 1
    %p71 = scmp.ne.s32.totalorder %s66, %s68
    %p72 = scmp.eq.s32.totalorder %s11, 0
    %p73 = por %p71, %p72
    %p74 = scmp.ne.s32.totalorder %s66, %s68
    %p75 = scmp.eq.s32.totalorder %s16, 1
    %p76 = por %p74, %p75
    %p77 = scmp.ne.s32.totalorder %s68, %s69
    %p78 = scmp.eq.s32.totalorder %s16, 0
    %p79 = por %p77, %p78
    %p80 = scmp.ne.s32.totalorder %s68, %s69
    %p81 = scmp.eq.s32.totalorder %s17, 1
    %p82 = por %p80, %p81
    %p84 = scmp.ne.s32.totalorder %s69, %s83
    %p85 = scmp.eq.s32.totalorder %s17, 0
    %p86 = por %p84, %p85
    %s88 = sadd.s32 %s87, 1
    %p91 = scmp.eq.s32.totalorder %s11, 1
    %p92 = scmp.ne.s32.totalorder %s87, %s89
    %p93 = scmp.eq.s32.totalorder %s11, 0
    %p94 = por %p92, %p93
    %p95 = scmp.ne.s32.totalorder %s87, %s89
    %p96 = scmp.eq.s32.totalorder %s16, 1
    %p97 = por %p95, %p96
    %p98 = scmp.ne.s32.totalorder %s89, %s90
    %p99 = scmp.eq.s32.totalorder %s16, 0
    %p100 = por %p98, %p99
    %p101 = scmp.ne.s32.totalorder %s89, %s90
    %p102 = scmp.eq.s32.totalorder %s17, 1
    %p103 = por %p101, %p102
    %p105 = scmp.ne.s32.totalorder %s90, %s104
    %p106 = scmp.eq.s32.totalorder %s17, 0
    %p107 = por %p105, %p106
    %s109 = sadd.s32 %s108, 1
    %p112 = scmp.eq.s32.totalorder %s11, 1
    %p113 = scmp.ne.s32.totalorder %s108, %s110
    %p114 = scmp.eq.s32.totalorder %s11, 0
    %p115 = por %p113, %p114
    %p116 = scmp.ne.s32.totalorder %s108, %s110
    %p117 = scmp.eq.s32.totalorder %s16, 1
    %p118 = por %p116, %p117
    %p119 = scmp.ne.s32.totalorder %s110, %s111
    %p120 = scmp.eq.s32.totalorder %s16, 0
    %p121 = por %p119, %p120
    %p122 = scmp.ne.s32.totalorder %s110, %s111
    %p123 = scmp.eq.s32.totalorder %s17, 1
    %p124 = por %p122, %p123
    %p126 = scmp.ne.s32.totalorder %s111, %s125
    %p127 = scmp.eq.s32.totalorder %s17, 0
    %p128 = por %p126, %p127
    %s129 = ssub.s32 %s11, %s18
    %p130 = scmp.eq.s32.totalorder %s129, 0
    %s132 = sadd.s32 %s131, 1
    %s133 = scalar_select %p130, %s131, %s132
    %p136 = pneg %p130
    %p137 = scmp.eq.s32.totalorder %s11, 1
    %p138 = por %p136, %p137
    %p139 = scmp.ne.s32.totalorder %s131, %s134
    %p140 = scmp.eq.s32.totalorder %s11, 0
    %p141 = por %p139, %p140
    %p142 = scmp.ne.s32.totalorder %s131, %s134
    %p143 = scmp.eq.s32.totalorder %s16, 1
    %p144 = por %p142, %p143
    %p145 = scmp.ne.s32.totalorder %s134, %s135
    %p146 = scmp.eq.s32.totalorder %s16, 0
    %p147 = por %p145, %p146
    %p148 = scmp.ne.s32.totalorder %s134, %s135
    %p149 = scmp.eq.s32.totalorder %s17, 1
    %p150 = por %p148, %p149
    %p152 = scmp.ne.s32.totalorder %s135, %s151
    %p153 = scmp.eq.s32.totalorder %s17, 0
    %p154 = por %p152, %p153
    %p155 = scmp.le.s32.totalorder 1, %s11
    %p156 = scmp.lt.s32.totalorder %s11, 3
    %p157 = pnand %p155, %p156
    %p158 = pneg %p157
    // Predicated region
    $region9: #{conv_block_forward.1} parent=5 // pred_check
      _
    $region10: #{conv_block_forward.1} parent=5 // pred_check_branch
      %160 = sbr.rel (%p157) target = $region12
    $region11: #{conv_block_forward.1} parent=5 // pred_region
      %s161 = ssub.s32 %s11, 1
      // Predicated region
      $region13: #{conv_block_forward.1} parent=11 // pred_check
        %p162 = pneg %p58
      $region14: #{conv_block_forward.1} parent=11 // pred_check_branch
        %164 = sbr.rel (%p162) target = $region16
      $region15: #{conv_block_forward.1} parent=11 // pred_region
        _
      $region16: #{conv_block_forward.1} parent=11 // pred_fallthru
        _
      // Predicated region
      $region17: #{conv_block_forward.1} parent=11 // pred_check
        %p165 = pneg %p79
      $region18: #{conv_block_forward.1} parent=11 // pred_check_branch
        %167 = sbr.rel (%p165) target = $region20
      $region19: #{conv_block_forward.1} parent=11 // pred_region
        _
      $region20: #{conv_block_forward.1} parent=11 // pred_fallthru
        _
      // Predicated region
      $region21: #{conv_block_forward.1} parent=11 // pred_check
        %p168 = pneg %p100
      $region22: #{conv_block_forward.1} parent=11 // pred_check_branch
        %170 = sbr.rel (%p168) target = $region24
      $region23: #{conv_block_forward.1} parent=11 // pred_region
        _
      $region24: #{conv_block_forward.1} parent=11 // pred_fallthru
        _
      // Predicated region
      $region25: #{conv_block_forward.1} parent=11 // pred_check
        %p171 = pneg %p121
      $region26: #{conv_block_forward.1} parent=11 // pred_check_branch
        %173 = sbr.rel (%p171) target = $region28
      $region27: #{conv_block_forward.1} parent=11 // pred_region
        _
      $region28: #{conv_block_forward.1} parent=11 // pred_fallthru
        _
    $region12: #{conv_block_forward.1} parent=5 // pred_fallthru
      _
    %p174 = scmp.lt.s32.totalorder %s11, 2
    // Predicated region
    $region29: #{conv_block_forward.1} parent=5 // pred_check
      %p175 = pneg %p174
    $region30: #{conv_block_forward.1} parent=5 // pred_check_branch
      %177 = sbr.rel (%p175) target = $region32
    $region31: #{conv_block_forward.1} parent=5 // pred_region
      // Predicated region
      $region33: #{conv_block_forward.1} parent=31 // pred_check
        %p178 = pneg %p31
      $region34: #{conv_block_forward.1} parent=31 // pred_check_branch
        %180 = sbr.rel (%p178) target = $region36
      $region35: #{conv_block_forward.1} parent=31 // pred_region
        %p181 = scmp.lt.s32.totalorder %s11, 1
        %s182 = scalar_select %p181, %s11, 1
        %s183 = smul.addr %s182, 54
        %s184 = smul.addr %s183, 4
        %s185 = scalar_lea.vmem %s0, %s184
      $region36: #{conv_block_forward.1} parent=31 // pred_fallthru
        _
    $region32: #{conv_block_forward.1} parent=5 // pred_fallthru
      _
    %p186 = scmp.le.s32.totalorder 1, %s11
    %p187 = scmp.lt.s32.totalorder %s11, 3
    %p188 = pnand %p186, %p187
    %p189 = pneg %p188
    // Predicated region
    $region37: #{conv_block_forward.1} parent=5 // pred_check
      _
    $region38: #{conv_block_forward.1} parent=5 // pred_check_branch
      %191 = sbr.rel (%p188) target = $region40
    $region39: #{conv_block_forward.1} parent=5 // pred_region
      %s192 = ssub.s32 %s11, 1
      %p193 = scmp.lt.s32.totalorder %s16, 1
      %s194 = scalar_select %p193, %s16, 1
      %s195 = smul.addr %s194, 54
      %s196 = smul.addr %s195, 4
      %s197 = scalar_lea.vmem %s0, %s196
      %p198 = pneg %p37
      %p199 = pneg %p34
      %p200 = pneg %p58
      %p201 = pneg %p55
      %p202 = pneg %p79
      %p203 = pneg %p76
      %p204 = pneg %p100
      %p205 = pneg %p97
      %p206 = pneg %p121
      %p207 = pneg %p118
      %p208 = pneg %p147
      %p209 = pneg %p144
      %p210 = scmp.lt.s32.totalorder %s16, 1
      %s211 = scalar_select %p210, %s16, 1
      %s212 = smul.addr %s211, 32
      %s213 = smul.addr %s212, 8
      %s214 = scalar_lea.vmem %s5, %s213
      %p215 = scmp.lt.s32.totalorder %s16, 1
      %s216 = scalar_select %p215, %s16, 1
      %s217 = smul.addr %s216, 54
      %s218 = smul.addr %s217, 4
      %s219 = scalar_lea.vmem %s0, %s218
      %p220 = scmp.lt.s32.totalorder %s16, 1
      %s221 = scalar_select %p220, %s16, 1
      %s222 = smul.addr %s221, 32
      %s223 = smul.addr %s222, 8
      %s224 = scalar_lea.vmem %s5, %s223
      %v226 = vld [vmem:[%s2] sm:$0x1]
      %v227 = vld [vmem:[%s219] sm:$0xf]
      %v228 = vld [vmem:[%s219 + $0x4] sm:$0xf]
      %v229 = vld [vmem:[%s219 + $0xc] sm:$0xf]
      %v230 = vld [vmem:[%s219 + $0x10] sm:$0xf]
      %v231 = vld [vmem:[%s219 + $0x18] sm:$0xf]
      %v232 = vld [vmem:[%s219 + $0x1c] sm:$0xf]
      %v233 = vld [vmem:[%s219 + $0x24] sm:$0xf]
      %v234 = vld [vmem:[%s219 + $0x28] sm:$0xf]
      %v235 = vld [vmem:[%s219 + $0x30] sm:$0xf]
      %v236 = vld [vmem:[%s219 + $0x34] sm:$0xf]
      %v237 = vld [vmem:[%s219 + $0x3c] sm:$0xf]
      %v238 = vld [vmem:[%s219 + $0x40] sm:$0xf]
      %v239 = vld [vmem:[%s219 + $0x48] sm:$0xf]
      %v240 = vld [vmem:[%s219 + $0x4c] sm:$0xf]
      %v241 = vld [vmem:[%s219 + $0x54] sm:$0xf]
      %v242 = vld [vmem:[%s219 + $0x58] sm:$0xf]
      %v243 = vld [vmem:[%s219 + $0x60] sm:$0xf]
      %v244 = vld [vmem:[%s219 + $0x64] sm:$0xf]
      %v245 = vld [vmem:[%s219 + $0x6c] sm:$0xf]
      %v246 = vld [vmem:[%s219 + $0x70] sm:$0xf]
      %v247 = vld [vmem:[%s219 + $0x78] sm:$0xf]
      %v248 = vld [vmem:[%s219 + $0x7c] sm:$0xf]
      %v249 = vld [vmem:[%s219 + $0x84] sm:$0xf]
      %v250 = vld [vmem:[%s219 + $0x88] sm:$0xf]
      %v251 = vld [vmem:[%s219 + $0x90] sm:$0xf]
      %v252 = vld [vmem:[%s219 + $0x94] sm:$0xf]
      %v253 = vld [vmem:[%s219 + $0x9c] sm:$0xf]
      %v254 = vld [vmem:[%s219 + $0xa0] sm:$0xf]
      %v255 = vld [vmem:[%s219 + $0xa8] sm:$0xf]
      %v256 = vld [vmem:[%s219 + $0xac] sm:$0xf]
      %v257 = vld [vmem:[%s219 + $0xb4] sm:$0xf]
      %v258 = vld [vmem:[%s219 + $0xb8] sm:$0xf]
      %v259 = vld [vmem:[%s219 + $0xc0] sm:$0xf]
      %v260 = vld [vmem:[%s219 + $0xc4] sm:$0xf]
      %v261 = vld [vmem:[%s219 + $0xcc] sm:$0xf]
      %v262 = vld [vmem:[%s219 + $0xd0] sm:$0xf]
      %v263 = vld [vmem:[%s219] sm:$0xf]
      %v264 = vld [vmem:[%s219 + $0x4] sm:$0xf]
      %v265 = vld [vmem:[%s219 + $0x8] sm:$0x1]
      %v266 = vld [vmem:[%s219 + $0xc] sm:$0xf]
      %v267 = vld [vmem:[%s219 + $0x10] sm:$0xf]
      %v268 = vld [vmem:[%s219 + $0x14] sm:$0x1]
      %v269 = vld [vmem:[%s219 + $0x18] sm:$0xf]
      %v270 = vld [vmem:[%s219 + $0x1c] sm:$0xf]
      %v271 = vld [vmem:[%s219 + $0x20] sm:$0x1]
      %v272 = vld [vmem:[%s219 + $0x24] sm:$0xf]
      %v273 = vld [vmem:[%s219 + $0x28] sm:$0xf]
      %v274 = vld [vmem:[%s219 + $0x2c] sm:$0x1]
      %v275 = vld [vmem:[%s219 + $0x30] sm:$0xf]
      %v276 = vld [vmem:[%s219 + $0x34] sm:$0xf]
      %v277 = vld [vmem:[%s219 + $0x38] sm:$0x1]
      %v278 = vld [vmem:[%s219 + $0x3c] sm:$0xf]
      %v279 = vld [vmem:[%s219 + $0x40] sm:$0xf]
      %v280 = vld [vmem:[%s219 + $0x44] sm:$0x1]
      %v281 = vld [vmem:[%s219 + $0x48] sm:$0xf]
      %v282 = vld [vmem:[%s219 + $0x4c] sm:$0xf]
      %v283 = vld [vmem:[%s219 + $0x50] sm:$0x1]
      %v284 = vld [vmem:[%s219 + $0x54] sm:$0xf]
      %v285 = vld [vmem:[%s219 + $0x58] sm:$0xf]
      %v286 = vld [vmem:[%s219 + $0x5c] sm:$0x1]
      %v287 = vld [vmem:[%s219 + $0x60] sm:$0xf]
      %v288 = vld [vmem:[%s219 + $0x64] sm:$0xf]
      %v289 = vld [vmem:[%s219 + $0x68] sm:$0x1]
      %v290 = vld [vmem:[%s219 + $0x6c] sm:$0xf]
      %v291 = vld [vmem:[%s219 + $0x70] sm:$0xf]
      %v292 = vld [vmem:[%s219 + $0x74] sm:$0x1]
      %v293 = vld [vmem:[%s219 + $0x78] sm:$0xf]
      %v294 = vld [vmem:[%s219 + $0x7c] sm:$0xf]
      %v295 = vld [vmem:[%s219 + $0x80] sm:$0x1]
      %v296 = vld [vmem:[%s219 + $0x84] sm:$0xf]
      %v297 = vld [vmem:[%s219 + $0x88] sm:$0xf]
      %v298 = vld [vmem:[%s219 + $0x8c] sm:$0x1]
      %v299 = vld [vmem:[%s219 + $0x90] sm:$0xf]
      %v300 = vld [vmem:[%s219 + $0x94] sm:$0xf]
      %v301 = vld [vmem:[%s219 + $0x98] sm:$0x1]
      %v302 = vld [vmem:[%s219 + $0x9c] sm:$0xf]
      %v303 = vld [vmem:[%s219 + $0xa0] sm:$0xf]
      %v304 = vld [vmem:[%s219 + $0xa4] sm:$0x1]
      %v305 = vld [vmem:[%s219 + $0xa8] sm:$0xf]
      %v306 = vld [vmem:[%s219 + $0xac] sm:$0xf]
      %v307 = vld [vmem:[%s219 + $0xb0] sm:$0x1]
      %v308 = vld [vmem:[%s219 + $0xb4] sm:$0xf]
      %v309 = vld [vmem:[%s219 + $0xb8] sm:$0xf]
      %v310 = vld [vmem:[%s219 + $0xbc] sm:$0x1]
      %v311 = vld [vmem:[%s219 + $0xc0] sm:$0xf]
      %v312 = vld [vmem:[%s219 + $0xc4] sm:$0xf]
      %v313 = vld [vmem:[%s219 + $0xc8] sm:$0x1]
      %v314 = vld [vmem:[%s219 + $0xcc] sm:$0xf]
      %v315 = vld [vmem:[%s219 + $0xd0] sm:$0xf]
      %v316 = vld [vmem:[%s219 + $0xd4] sm:$0x1]
      %vm317 = vsmask.f32 3328
      %vm318 = vsmask.f32 7440
      %vm319 = vmor %vm317, %vm318
      %v321 = vshrl.u32 %v263, 16
      %v323 = vrot.slane %v321, 4
      %v324 = vshll.u32 %v263, 16
      %v326 = vrot.slane %v324, 5
      %v327 = vor.u32 %v323, %v326
      %v328 = vrot.slane %v327, 4
      %v330 = vshll.u32 %v264, 16
      %v332 = vrot.slane %v330, 5
      %v333 = vsel %vm319, %v328, %v332
      %v334 = vshrl.u32 %v264, 16
      %v336 = vrot.slane %v334, 4
      %v337 = vor.u32 %v336, %v332
      %v338 = vrot.slane %v337, 4
      %v340 = vshll.u32 %v265, 16
      %v342 = vrot.slane %v340, 5
      %v343 = vsel %vm319, %v338, %v342
      %v345 = vshrl.u32 %v266, 16
      %v347 = vrot.slane %v345, 4
      %v348 = vshll.u32 %v266, 16
      %v350 = vrot.slane %v348, 5
      %v351 = vor.u32 %v347, %v350
      %v352 = vrot.slane %v351, 4
      %v354 = vshll.u32 %v267, 16
      %v356 = vrot.slane %v354, 5
      %v357 = vsel %vm319, %v352, %v356
      %v358 = vshrl.u32 %v267, 16
      %v360 = vrot.slane %v358, 4
      %v361 = vor.u32 %v360, %v356
      %v362 = vrot.slane %v361, 4
      %v364 = vshll.u32 %v268, 16
      %v366 = vrot.slane %v364, 5
      %v367 = vsel %vm319, %v362, %v366
      %v369 = vshrl.u32 %v269, 16
      %v371 = vrot.slane %v369, 4
      %v372 = vshll.u32 %v269, 16
      %v374 = vrot.slane %v372, 5
      %v375 = vor.u32 %v371, %v374
      %v376 = vrot.slane %v375, 4
      %v378 = vshll.u32 %v270, 16
      %v380 = vrot.slane %v378, 5
      %v381 = vsel %vm319, %v376, %v380
      %v382 = vshrl.u32 %v270, 16
      %v384 = vrot.slane %v382, 4
      %v385 = vor.u32 %v384, %v380
      %v386 = vrot.slane %v385, 4
      %v388 = vshll.u32 %v271, 16
      %v390 = vrot.slane %v388, 5
      %v391 = vsel %vm319, %v386, %v390
      %v393 = vshrl.u32 %v272, 16
      %v395 = vrot.slane %v393, 4
      %v396 = vshll.u32 %v272, 16
      %v398 = vrot.slane %v396, 5
      %v399 = vor.u32 %v395, %v398
      %v400 = vrot.slane %v399, 4
      %v402 = vshll.u32 %v273, 16
      %v404 = vrot.slane %v402, 5
      %v405 = vsel %vm319, %v400, %v404
      %v406 = vshrl.u32 %v273, 16
      %v408 = vrot.slane %v406, 4
      %v409 = vor.u32 %v408, %v404
      %v410 = vrot.slane %v409, 4
      %v412 = vshll.u32 %v274, 16
      %v414 = vrot.slane %v412, 5
      %v415 = vsel %vm319, %v410, %v414
      %v417 = vshrl.u32 %v275, 16
      %v419 = vrot.slane %v417, 4
      %v420 = vshll.u32 %v275, 16
      %v422 = vrot.slane %v420, 5
      %v423 = vor.u32 %v419, %v422
      %v424 = vrot.slane %v423, 4
      %v426 = vshll.u32 %v276, 16
      %v428 = vrot.slane %v426, 5
      %v429 = vsel %vm319, %v424, %v428
      %v430 = vshrl.u32 %v276, 16
      %v432 = vrot.slane %v430, 4
      %v433 = vor.u32 %v432, %v428
      %v434 = vrot.slane %v433, 4
      %v436 = vshll.u32 %v277, 16
      %v438 = vrot.slane %v436, 5
      %v439 = vsel %vm319, %v434, %v438
      %v441 = vshrl.u32 %v278, 16
      %v443 = vrot.slane %v441, 4
      %v444 = vshll.u32 %v278, 16
      %v446 = vrot.slane %v444, 5
      %v447 = vor.u32 %v443, %v446
      %v448 = vrot.slane %v447, 4
      %v450 = vshll.u32 %v279, 16
      %v452 = vrot.slane %v450, 5
      %v453 = vsel %vm319, %v448, %v452
      %v454 = vshrl.u32 %v279, 16
      %v456 = vrot.slane %v454, 4
      %v457 = vor.u32 %v456, %v452
      %v458 = vrot.slane %v457, 4
      %v460 = vshll.u32 %v280, 16
      %v462 = vrot.slane %v460, 5
      %v463 = vsel %vm319, %v458, %v462
      %v465 = vshrl.u32 %v281, 16
      %v467 = vrot.slane %v465, 4
      %v468 = vshll.u32 %v281, 16
      %v470 = vrot.slane %v468, 5
      %v471 = vor.u32 %v467, %v470
      %v472 = vrot.slane %v471, 4
      %v474 = vshll.u32 %v282, 16
      %v476 = vrot.slane %v474, 5
      %v477 = vsel %vm319, %v472, %v476
      %v478 = vshrl.u32 %v282, 16
      %v480 = vrot.slane %v478, 4
      %v481 = vor.u32 %v480, %v476
      %v482 = vrot.slane %v481, 4
      %v484 = vshll.u32 %v283, 16
      %v486 = vrot.slane %v484, 5
      %v487 = vsel %vm319, %v482, %v486
      %v489 = vshrl.u32 %v284, 16
      %v491 = vrot.slane %v489, 4
      %v492 = vshll.u32 %v284, 16
      %v494 = vrot.slane %v492, 5
      %v495 = vor.u32 %v491, %v494
      %v496 = vrot.slane %v495, 4
      %v498 = vshll.u32 %v285, 16
      %v500 = vrot.slane %v498, 5
      %v501 = vsel %vm319, %v496, %v500
      %v502 = vshrl.u32 %v285, 16
      %v504 = vrot.slane %v502, 4
      %v505 = vor.u32 %v504, %v500
      %v506 = vrot.slane %v505, 4
      %v508 = vshll.u32 %v286, 16
      %v510 = vrot.slane %v508, 5
      %v511 = vsel %vm319, %v506, %v510
      %v513 = vshrl.u32 %v287, 16
      %v515 = vrot.slane %v513, 4
      %v516 = vshll.u32 %v287, 16
      %v518 = vrot.slane %v516, 5
      %v519 = vor.u32 %v515, %v518
      %v520 = vrot.slane %v519, 4
      %v522 = vshll.u32 %v288, 16
      %v524 = vrot.slane %v522, 5
      %v525 = vsel %vm319, %v520, %v524
      %v526 = vshrl.u32 %v288, 16
      %v528 = vrot.slane %v526, 4
      %v529 = vor.u32 %v528, %v524
      %v530 = vrot.slane %v529, 4
      %v532 = vshll.u32 %v289, 16
      %v534 = vrot.slane %v532, 5
      %v535 = vsel %vm319, %v530, %v534
      %v537 = vshrl.u32 %v290, 16
      %v539 = vrot.slane %v537, 4
      %v540 = vshll.u32 %v290, 16
      %v542 = vrot.slane %v540, 5
      %v543 = vor.u32 %v539, %v542
      %v544 = vrot.slane %v543, 4
      %v546 = vshll.u32 %v291, 16
      %v548 = vrot.slane %v546, 5
      %v549 = vsel %vm319, %v544, %v548
      %v550 = vshrl.u32 %v291, 16
      %v552 = vrot.slane %v550, 4
      %v553 = vor.u32 %v552, %v548
      %v554 = vrot.slane %v553, 4
      %v556 = vshll.u32 %v292, 16
      %v558 = vrot.slane %v556, 5
      %v559 = vsel %vm319, %v554, %v558
      %v561 = vshrl.u32 %v293, 16
      %v563 = vrot.slane %v561, 4
      %v564 = vshll.u32 %v293, 16
      %v566 = vrot.slane %v564, 5
      %v567 = vor.u32 %v563, %v566
      %v568 = vrot.slane %v567, 4
      %v570 = vshll.u32 %v294, 16
      %v572 = vrot.slane %v570, 5
      %v573 = vsel %vm319, %v568, %v572
      %v574 = vshrl.u32 %v294, 16
      %v576 = vrot.slane %v574, 4
      %v577 = vor.u32 %v576, %v572
      %v578 = vrot.slane %v577, 4
      %v580 = vshll.u32 %v295, 16
      %v582 = vrot.slane %v580, 5
      %v583 = vsel %vm319, %v578, %v582
      %v585 = vshrl.u32 %v296, 16
      %v587 = vrot.slane %v585, 4
      %v588 = vshll.u32 %v296, 16
      %v590 = vrot.slane %v588, 5
      %v591 = vor.u32 %v587, %v590
      %v592 = vrot.slane %v591, 4
      %v594 = vshll.u32 %v297, 16
      %v596 = vrot.slane %v594, 5
      %v597 = vsel %vm319, %v592, %v596
      %v598 = vshrl.u32 %v297, 16
      %v600 = vrot.slane %v598, 4
      %v601 = vor.u32 %v600, %v596
      %v602 = vrot.slane %v601, 4
      %v604 = vshll.u32 %v298, 16
      %v606 = vrot.slane %v604, 5
      %v607 = vsel %vm319, %v602, %v606
      %v609 = vshrl.u32 %v299, 16
      %v611 = vrot.slane %v609, 4
      %v612 = vshll.u32 %v299, 16
      %v614 = vrot.slane %v612, 5
      %v615 = vor.u32 %v611, %v614
      %v616 = vrot.slane %v615, 4
      %v618 = vshll.u32 %v300, 16
      %v620 = vrot.slane %v618, 5
      %v621 = vsel %vm319, %v616, %v620
      %v622 = vshrl.u32 %v300, 16
      %v624 = vrot.slane %v622, 4
      %v625 = vor.u32 %v624, %v620
      %v626 = vrot.slane %v625, 4
      %v628 = vshll.u32 %v301, 16
      %v630 = vrot.slane %v628, 5
      %v631 = vsel %vm319, %v626, %v630
      %v633 = vshrl.u32 %v302, 16
      %v635 = vrot.slane %v633, 4
      %v636 = vshll.u32 %v302, 16
      %v638 = vrot.slane %v636, 5
      %v639 = vor.u32 %v635, %v638
      %v640 = vrot.slane %v639, 4
      %v642 = vshll.u32 %v303, 16
      %v644 = vrot.slane %v642, 5
      %v645 = vsel %vm319, %v640, %v644
      %v646 = vshrl.u32 %v303, 16
      %v648 = vrot.slane %v646, 4
      %v649 = vor.u32 %v648, %v644
      %v650 = vrot.slane %v649, 4
      %v652 = vshll.u32 %v304, 16
      %v654 = vrot.slane %v652, 5
      %v655 = vsel %vm319, %v650, %v654
      %v657 = vshrl.u32 %v305, 16
      %v659 = vrot.slane %v657, 4
      %v660 = vshll.u32 %v305, 16
      %v662 = vrot.slane %v660, 5
      %v663 = vor.u32 %v659, %v662
      %v664 = vrot.slane %v663, 4
      %v666 = vshll.u32 %v306, 16
      %v668 = vrot.slane %v666, 5
      %v669 = vsel %vm319, %v664, %v668
      %v670 = vshrl.u32 %v306, 16
      %v672 = vrot.slane %v670, 4
      %v673 = vor.u32 %v672, %v668
      %v674 = vrot.slane %v673, 4
      %v676 = vshll.u32 %v307, 16
      %v678 = vrot.slane %v676, 5
      %v679 = vsel %vm319, %v674, %v678
      %v681 = vshrl.u32 %v308, 16
      %v683 = vrot.slane %v681, 4
      %v684 = vshll.u32 %v308, 16
      %v686 = vrot.slane %v684, 5
      %v687 = vor.u32 %v683, %v686
      %v688 = vrot.slane %v687, 4
      %v690 = vshll.u32 %v309, 16
      %v692 = vrot.slane %v690, 5
      %v693 = vsel %vm319, %v688, %v692
      %v694 = vshrl.u32 %v309, 16
      %v696 = vrot.slane %v694, 4
      %v697 = vor.u32 %v696, %v692
      %v698 = vrot.slane %v697, 4
      %v700 = vshll.u32 %v310, 16
      %v702 = vrot.slane %v700, 5
      %v703 = vsel %vm319, %v698, %v702
      %v705 = vshrl.u32 %v311, 16
      %v707 = vrot.slane %v705, 4
      %v708 = vshll.u32 %v311, 16
      %v710 = vrot.slane %v708, 5
      %v711 = vor.u32 %v707, %v710
      %v712 = vrot.slane %v711, 4
      %v714 = vshll.u32 %v312, 16
      %v716 = vrot.slane %v714, 5
      %v717 = vsel %vm319, %v712, %v716
      %v718 = vshrl.u32 %v312, 16
      %v720 = vrot.slane %v718, 4
      %v721 = vor.u32 %v720, %v716
      %v722 = vrot.slane %v721, 4
      %v724 = vshll.u32 %v313, 16
      %v726 = vrot.slane %v724, 5
      %v727 = vsel %vm319, %v722, %v726
      %v729 = vshrl.u32 %v314, 16
      %v731 = vrot.slane %v729, 4
      %v732 = vshll.u32 %v314, 16
      %v734 = vrot.slane %v732, 5
      %v735 = vor.u32 %v731, %v734
      %v736 = vrot.slane %v735, 4
      %v738 = vshll.u32 %v315, 16
      %v740 = vrot.slane %v738, 5
      %v741 = vsel %vm319, %v736, %v740
      %v742 = vshrl.u32 %v315, 16
      %v744 = vrot.slane %v742, 4
      %v745 = vor.u32 %v744, %v740
      %v746 = vrot.slane %v745, 4
      %v748 = vshll.u32 %v316, 16
      %v750 = vrot.slane %v748, 5
      %v751 = vsel %vm319, %v746, %v750
      %v752 = vld [vmem:[%s219] sm:$0xe]
      %v753 = vld [vmem:[%s219 + $0xc] sm:$0xe]
      %v754 = vld [vmem:[%s219 + $0x18] sm:$0xe]
      %v755 = vld [vmem:[%s219 + $0x24] sm:$0xe]
      %v756 = vld [vmem:[%s219 + $0x30] sm:$0xe]
      %v757 = vld [vmem:[%s219 + $0x3c] sm:$0xe]
      %v758 = vld [vmem:[%s219 + $0x48] sm:$0xe]
      %v759 = vld [vmem:[%s219 + $0x54] sm:$0xe]
      %v760 = vld [vmem:[%s219 + $0x60] sm:$0xe]
      %v761 = vld [vmem:[%s219 + $0x6c] sm:$0xe]
      %v762 = vld [vmem:[%s219 + $0x78] sm:$0xe]
      %v763 = vld [vmem:[%s219 + $0x84] sm:$0xe]
      %v764 = vld [vmem:[%s219 + $0x90] sm:$0xe]
      %v765 = vld [vmem:[%s219 + $0x9c] sm:$0xe]
      %v766 = vld [vmem:[%s219 + $0xa8] sm:$0xe]
      %v767 = vld [vmem:[%s219 + $0xb4] sm:$0xe]
      %v768 = vld [vmem:[%s219 + $0xc0] sm:$0xe]
      %v769 = vld [vmem:[%s219 + $0xcc] sm:$0xe]
      %vm824 = vcmask 1042432
      %vm825 = vcmask 1046532
      %vm826 = vmor %vm824, %vm825
      %v827 = vrot.slane %v752, 5
      %v828 = vrot.slane %v827, 4
      %v829 = vrot.slane %v264, 5
      %v830 = vsel %vm826, %v828, %v829
      %v831 = vrot.slane %v829, 4
      %v832 = vrot.slane %v265, 5
      %v833 = vsel %vm826, %v831, %v832
      %v834 = vrot.slane %v753, 5
      %v835 = vrot.slane %v834, 4
      %v836 = vrot.slane %v267, 5
      %v837 = vsel %vm826, %v835, %v836
      %v838 = vrot.slane %v836, 4
      %v839 = vrot.slane %v268, 5
      %v840 = vsel %vm826, %v838, %v839
      %v841 = vrot.slane %v754, 5
      %v842 = vrot.slane %v841, 4
      %v843 = vrot.slane %v270, 5
      %v844 = vsel %vm826, %v842, %v843
      %v845 = vrot.slane %v843, 4
      %v846 = vrot.slane %v271, 5
      %v847 = vsel %vm826, %v845, %v846
      %v848 = vrot.slane %v755, 5
      %v849 = vrot.slane %v848, 4
      %v850 = vrot.slane %v273, 5
      %v851 = vsel %vm826, %v849, %v850
      %v852 = vrot.slane %v850, 4
      %v853 = vrot.slane %v274, 5
      %v854 = vsel %vm826, %v852, %v853
      %v855 = vrot.slane %v756, 5
      %v856 = vrot.slane %v855, 4
      %v857 = vrot.slane %v276, 5
      %v858 = vsel %vm826, %v856, %v857
      %v859 = vrot.slane %v857, 4
      %v860 = vrot.slane %v277, 5
      %v861 = vsel %vm826, %v859, %v860
      %v862 = vrot.slane %v757, 5
      %v863 = vrot.slane %v862, 4
      %v864 = vrot.slane %v279, 5
      %v865 = vsel %vm826, %v863, %v864
      %v866 = vrot.slane %v864, 4
      %v867 = vrot.slane %v280, 5
      %v868 = vsel %vm826, %v866, %v867
      %v869 = vrot.slane %v758, 5
      %v870 = vrot.slane %v869, 4
      %v871 = vrot.slane %v282, 5
      %v872 = vsel %vm826, %v870, %v871
      %v873 = vrot.slane %v871, 4
      %v874 = vrot.slane %v283, 5
      %v875 = vsel %vm826, %v873, %v874
      %v876 = vrot.slane %v759, 5
      %v877 = vrot.slane %v876, 4
      %v878 = vrot.slane %v285, 5
      %v879 = vsel %vm826, %v877, %v878
      %v880 = vrot.slane %v878, 4
      %v881 = vrot.slane %v286, 5
      %v882 = vsel %vm826, %v880, %v881
      %v883 = vrot.slane %v760, 5
      %v884 = vrot.slane %v883, 4
      %v885 = vrot.slane %v288, 5
      %v886 = vsel %vm826, %v884, %v885
      %v887 = vrot.slane %v885, 4
      %v888 = vrot.slane %v289, 5
      %v889 = vsel %vm826, %v887, %v888
      %v890 = vrot.slane %v761, 5
      %v891 = vrot.slane %v890, 4
      %v892 = vrot.slane %v291, 5
      %v893 = vsel %vm826, %v891, %v892
      %v894 = vrot.slane %v892, 4
      %v895 = vrot.slane %v292, 5
      %v896 = vsel %vm826, %v894, %v895
      %v897 = vrot.slane %v762, 5
      %v898 = vrot.slane %v897, 4
      %v899 = vrot.slane %v294, 5
      %v900 = vsel %vm826, %v898, %v899
      %v901 = vrot.slane %v899, 4
      %v902 = vrot.slane %v295, 5
      %v903 = vsel %vm826, %v901, %v902
      %v904 = vrot.slane %v763, 5
      %v905 = vrot.slane %v904, 4
      %v906 = vrot.slane %v297, 5
      %v907 = vsel %vm826, %v905, %v906
      %v908 = vrot.slane %v906, 4
      %v909 = vrot.slane %v298, 5
      %v910 = vsel %vm826, %v908, %v909
      %v911 = vrot.slane %v764, 5
      %v912 = vrot.slane %v911, 4
      %v913 = vrot.slane %v300, 5
      %v914 = vsel %vm826, %v912, %v913
      %v915 = vrot.slane %v913, 4
      %v916 = vrot.slane %v301, 5
      %v917 = vsel %vm826, %v915, %v916
      %v918 = vrot.slane %v765, 5
      %v919 = vrot.slane %v918, 4
      %v920 = vrot.slane %v303, 5
      %v921 = vsel %vm826, %v919, %v920
      %v922 = vrot.slane %v920, 4
      %v923 = vrot.slane %v304, 5
      %v924 = vsel %vm826, %v922, %v923
      %v925 = vrot.slane %v766, 5
      %v926 = vrot.slane %v925, 4
      %v927 = vrot.slane %v306, 5
      %v928 = vsel %vm826, %v926, %v927
      %v929 = vrot.slane %v927, 4
      %v930 = vrot.slane %v307, 5
      %v931 = vsel %vm826, %v929, %v930
      %v932 = vrot.slane %v767, 5
      %v933 = vrot.slane %v932, 4
      %v934 = vrot.slane %v309, 5
      %v935 = vsel %vm826, %v933, %v934
      %v936 = vrot.slane %v934, 4
      %v937 = vrot.slane %v310, 5
      %v938 = vsel %vm826, %v936, %v937
      %v939 = vrot.slane %v768, 5
      %v940 = vrot.slane %v939, 4
      %v941 = vrot.slane %v312, 5
      %v942 = vsel %vm826, %v940, %v941
      %v943 = vrot.slane %v941, 4
      %v944 = vrot.slane %v313, 5
      %v945 = vsel %vm826, %v943, %v944
      %v946 = vrot.slane %v769, 5
      %v947 = vrot.slane %v946, 4
      %v948 = vrot.slane %v315, 5
      %v949 = vsel %vm826, %v947, %v948
      %v950 = vrot.slane %v948, 4
      %v951 = vrot.slane %v316, 5
      %v952 = vsel %vm826, %v950, %v951
      %v953 = vld [vmem:[%s1] sm:$0xf]
      %v954 = vld [vmem:[%s1 + $0x4] sm:$0xf]
      %v955 = vld [vmem:[%s1 + $0x8] sm:$0xf]
      %v956 = vld [vmem:[%s1 + $0xc] sm:$0xf]
      %v957 = vld [vmem:[%s1 + $0x10] sm:$0xf]
      %v958 = vld [vmem:[%s1 + $0x14] sm:$0xf]
      %v959 = vld [vmem:[%s1 + $0x18] sm:$0xf]
      %v960 = vld [vmem:[%s1 + $0x1c] sm:$0xf]
      %v961 = vld [vmem:[%s1 + $0x20] sm:$0xf]
      %v962 = vld [vmem:[%s1 + $0x24] sm:$0xf]
      %v963 = vld [vmem:[%s1 + $0x28] sm:$0xf]
      %v964 = vld [vmem:[%s1 + $0x2c] sm:$0xf]
      %v965 = vld [vmem:[%s1 + $0x30] sm:$0xf]
      %v966 = vld [vmem:[%s1 + $0x34] sm:$0xf]
      %v967 = vld [vmem:[%s1 + $0x38] sm:$0xf]
      %v968 = vld [vmem:[%s1 + $0x3c] sm:$0xf]
      %s969 = scalar_lea.vmem %s1, 64
      %v970 = vld [vmem:[%s969] sm:$0xf]
      %v971 = vld [vmem:[%s969 + $0x4] sm:$0xf]
      %v972 = vld [vmem:[%s969 + $0x8] sm:$0xf]
      %v973 = vld [vmem:[%s969 + $0xc] sm:$0xf]
      %v974 = vld [vmem:[%s969 + $0x10] sm:$0xf]
      %v975 = vld [vmem:[%s969 + $0x14] sm:$0xf]
      %v976 = vld [vmem:[%s969 + $0x18] sm:$0xf]
      %v977 = vld [vmem:[%s969 + $0x1c] sm:$0xf]
      %v978 = vld [vmem:[%s969 + $0x20] sm:$0xf]
      %v979 = vld [vmem:[%s969 + $0x24] sm:$0xf]
      %v980 = vld [vmem:[%s969 + $0x28] sm:$0xf]
      %v981 = vld [vmem:[%s969 + $0x2c] sm:$0xf]
      %v982 = vld [vmem:[%s969 + $0x30] sm:$0xf]
      %v983 = vld [vmem:[%s969 + $0x34] sm:$0xf]
      %v984 = vld [vmem:[%s969 + $0x38] sm:$0xf]
      %v985 = vld [vmem:[%s969 + $0x3c] sm:$0xf]
      %v986 = vunpack.c.l.b16 %v333
      %v987 = vunpack.c.l.b16 %v343
      %v988 = vunpack.c.l.b16 %v357
      %v989 = vunpack.c.l.b16 %v367
      %v990 = vunpack.c.l.b16 %v381
      %v991 = vunpack.c.l.b16 %v391
      %v992 = vunpack.c.l.b16 %v405
      %v993 = vunpack.c.l.b16 %v415
      %v994 = vunpack.c.l.b16 %v429
      %v995 = vunpack.c.l.b16 %v439
      %v996 = vunpack.c.l.b16 %v453
      %v997 = vunpack.c.l.b16 %v463
      %v998 = vunpack.c.l.b16 %v477
      %v999 = vunpack.c.l.b16 %v487
      %v1000 = vunpack.c.l.b16 %v501
      %v1001 = vunpack.c.l.b16 %v511
      %v1002 = vunpack.c.l.b16 %v525
      %v1003 = vunpack.c.l.b16 %v535
      %v1004 = vunpack.c.l.b16 %v549
      %v1005 = vunpack.c.l.b16 %v559
      %v1006 = vunpack.c.l.b16 %v573
      %v1007 = vunpack.c.l.b16 %v583
      %v1008 = vunpack.c.l.b16 %v597
      %v1009 = vunpack.c.l.b16 %v607
      %v1010 = vunpack.c.l.b16 %v621
      %v1011 = vunpack.c.l.b16 %v631
      %v1012 = vunpack.c.l.b16 %v645
      %v1013 = vunpack.c.l.b16 %v655
      %v1014 = vunpack.c.l.b16 %v669
      %v1015 = vunpack.c.l.b16 %v679
      %v1016 = vunpack.c.l.b16 %v693
      %v1017 = vunpack.c.l.b16 %v703
      %v1018 = vpack.c.b16 %v987, %v986
      %v1019 = vpack.c.b16 %v989, %v988
      %v1020 = vpack.c.b16 %v991, %v990
      %v1021 = vpack.c.b16 %v993, %v992
      %v1022 = vpack.c.b16 %v995, %v994
      %v1023 = vpack.c.b16 %v997, %v996
      %v1024 = vpack.c.b16 %v999, %v998
      %v1025 = vpack.c.b16 %v1001, %v1000
      %v1026 = vpack.c.b16 %v1003, %v1002
      %v1027 = vpack.c.b16 %v1005, %v1004
      %v1028 = vpack.c.b16 %v1007, %v1006
      %v1029 = vpack.c.b16 %v1009, %v1008
      %v1030 = vpack.c.b16 %v1011, %v1010
      %v1031 = vpack.c.b16 %v1013, %v1012
      %v1032 = vpack.c.b16 %v1015, %v1014
      %v1033 = vpack.c.b16 %v1017, %v1016
      %v1066 = vunpack.c.l.b16 %v970
      %v1067 = vunpack.c.l.b16 %v971
      %v1068 = vunpack.c.l.b16 %v972
      %v1069 = vunpack.c.l.b16 %v973
      %v1070 = vunpack.c.l.b16 %v974
      %v1071 = vunpack.c.l.b16 %v975
      %v1072 = vunpack.c.l.b16 %v976
      %v1073 = vunpack.c.l.b16 %v977
      %v1074 = vunpack.c.l.b16 %v978
      %v1075 = vunpack.c.l.b16 %v979
      %v1076 = vunpack.c.l.b16 %v980
      %v1077 = vunpack.c.l.b16 %v981
      %v1078 = vunpack.c.l.b16 %v982
      %v1079 = vunpack.c.l.b16 %v983
      %v1080 = vunpack.c.l.b16 %v984
      %v1081 = vunpack.c.l.b16 %v985
      %v1082 = vpack.c.b16 %v1067, %v1066
      %v1083 = vpack.c.b16 %v1069, %v1068
      %v1084 = vpack.c.b16 %v1071, %v1070
      %v1085 = vpack.c.b16 %v1073, %v1072
      %v1086 = vpack.c.b16 %v1075, %v1074
      %v1087 = vpack.c.b16 %v1077, %v1076
      %v1088 = vpack.c.b16 %v1079, %v1078
      %v1089 = vpack.c.b16 %v1081, %v1080
      %1098 = vmatprep.subr.bf16.mxu0 0
      %1099 = vmatpush1.bf16.msra.mxu0 %v1082
      %1100 = vmatprep.subr.bf16.mxu0 0
      %1101 = vmatpush1.bf16.msra.mxu0 %v1083
      %1102 = vmatprep.subr.bf16.mxu0 0
      %1103 = vmatpush1.bf16.msra.mxu0 %v1084
      %1104 = vmatprep.subr.bf16.mxu0 0
      %1105 = vmatpush1.bf16.msra.mxu0 %v1085
      %1106 = vmatprep.subr.bf16.mxu0 0
      %1107 = vmatpush1.bf16.msra.mxu0 %v1086
      %1108 = vmatprep.subr.bf16.mxu0 0
      %1109 = vmatpush1.bf16.msra.mxu0 %v1087
      %1110 = vmatprep.subr.bf16.mxu0 0
      %1111 = vmatpush1.bf16.msra.mxu0 %v1088
      %1112 = vmatprep.subr.bf16.mxu0 0
      %1113 = vmatpush1.bf16.msra.mxu0 %v1089
      %1114 = vmatprep.subr.bf16.mxu0 0
      %1115 = vmatpush1.bf16.msra.mxu0 0
      %1116 = vmatprep.subr.bf16.mxu0 0
      %1117 = vmatpush1.bf16.msra.mxu0 0
      %1118 = vmatprep.subr.bf16.mxu0 0
      %1119 = vmatpush1.bf16.msra.mxu0 0
      %1120 = vmatprep.subr.bf16.mxu0 0
      %1121 = vmatpush1.bf16.msra.mxu0 0
      %1122 = vmatprep.subr.bf16.mxu0 0
      %1123 = vmatpush1.bf16.msra.mxu0 0
      %1124 = vmatprep.subr.bf16.mxu0 0
      %1125 = vmatpush1.bf16.msra.mxu0 0
      %1126 = vmatprep.subr.bf16.mxu0 0
      %1127 = vmatpush1.bf16.msra.mxu0 0
      %1128 = vmatprep.subr.bf16.mxu0 0
      %1129 = vmatpush1.bf16.msra.mxu0 0
      %1130 = vmatprep.mubr.bf16.mxu0 0
      %1131 = vmatmul.mubr.bf16.gmra.mrb[0].mxu0 %v1018
      %v1132 = vpop.f32.mrb[0].mxu0
      %v1133 = vadd.f32 0.0, %v1132
      %v1134 = vpop.f32.mrb[0].mxu0
      %v1135 = vpop.f32.mrb[0].mxu0
      %v1136 = vadd.f32 0.0, %v1135
      %v1137 = vpop.f32.mrb[0].mxu0
      %1138 = vmatprep.mubr.bf16.mxu0 0
      %1139 = vmatmul.mubr.bf16.gmra.mrb[0].mxu0 %v1019
      %v1140 = vpop.f32.mrb[0].mxu0
      %v1141 = vadd.f32 0.0, %v1140
      %v1142 = vpop.f32.mrb[0].mxu0
      %v1143 = vpop.f32.mrb[0].mxu0
      %v1144 = vadd.f32 0.0, %v1143
      %v1145 = vpop.f32.mrb[0].mxu0
      %1146 = vmatprep.mubr.bf16.mxu0 0
      %1147 = vmatmul.mubr.bf16.gmra.mrb[0].mxu0 %v1020
      %v1148 = vpop.f32.mrb[0].mxu0
      %v1149 = vadd.f32 0.0, %v1148
      %v1150 = vpop.f32.mrb[0].mxu0
      %v1151 = vpop.f32.mrb[0].mxu0
      %v1152 = vadd.f32 0.0, %v1151
      %v1153 = vpop.f32.mrb[0].mxu0
      %1154 = vmatprep.mubr.bf16.mxu0 0
      %1155 = vmatmul.mubr.bf16.gmra.mrb[0].mxu0 %v1021
      %v1156 = vpop.f32.mrb[0].mxu0
      %v1157 = vadd.f32 0.0, %v1156
      %v1158 = vpop.f32.mrb[0].mxu0
      %v1159 = vpop.f32.mrb[0].mxu0
      %v1160 = vadd.f32 0.0, %v1159
      %v1161 = vpop.f32.mrb[0].mxu0
      %1162 = vmatprep.mubr.bf16.mxu0 0
      %1163 = vmatmul.mubr.bf16.gmra.mrb[0].mxu0 %v1022
      %v1164 = vpop.f32.mrb[0].mxu0
      %v1165 = vadd.f32 0.0, %v1164
      %v1166 = vpop.f32.mrb[0].mxu0
      %v1167 = vpop.f32.mrb[0].mxu0
      %v1168 = vadd.f32 0.0, %v1167
      %v1169 = vpop.f32.mrb[0].mxu0
      %1170 = vmatprep.mubr.bf16.mxu0 0
      %1171 = vmatmul.mubr.bf16.gmra.mrb[0].mxu0 %v1023
      %v1172 = vpop.f32.mrb[0].mxu0
      %v1173 = vadd.f32 0.0, %v1172
      %v1174 = vpop.f32.mrb[0].mxu0
      %v1175 = vpop.f32.mrb[0].mxu0
      %v1176 = vadd.f32 0.0, %v1175
      %v1177 = vpop.f32.mrb[0].mxu0
      %1178 = vmatprep.mubr.bf16.mxu0 0
      %1179 = vmatmul.mubr.bf16.gmra.mrb[0].mxu0 %v1024
      %v1180 = vpop.f32.mrb[0].mxu0
      %v1181 = vadd.f32 0.0, %v1180
      %v1182 = vpop.f32.mrb[0].mxu0
      %v1183 = vpop.f32.mrb[0].mxu0
      %v1184 = vadd.f32 0.0, %v1183
      %v1185 = vpop.f32.mrb[0].mxu0
      %1186 = vmatprep.mubr.bf16.mxu0 0
      %1187 = vmatmul.mubr.bf16.gmra.mrb[0].mxu0 %v1025
      %v1188 = vpop.f32.mrb[0].mxu0
      %v1189 = vadd.f32 0.0, %v1188
      %v1190 = vpop.f32.mrb[0].mxu0
      %v1191 = vpop.f32.mrb[0].mxu0
      %v1192 = vadd.f32 0.0, %v1191
      %v1193 = vpop.f32.mrb[0].mxu0
      %1194 = vmatprep.mubr.bf16.mxu0 0
      %1195 = vmatmul.mubr.bf16.gmra.mrb[0].mxu0 %v1026
      %v1196 = vpop.f32.mrb[0].mxu0
      %v1197 = vadd.f32 0.0, %v1196
      %v1198 = vpop.f32.mrb[0].mxu0
      %v1199 = vpop.f32.mrb[0].mxu0
      %v1200 = vadd.f32 0.0, %v1199
      %v1201 = vpop.f32.mrb[0].mxu0
      %1202 = vmatprep.mubr.bf16.mxu0 0
      %1203 = vmatmul.mubr.bf16.gmra.mrb[0].mxu0 %v1027
      %v1204 = vpop.f32.mrb[0].mxu0
      %v1205 = vadd.f32 0.0, %v1204
      %v1206 = vpop.f32.mrb[0].mxu0
      %v1207 = vpop.f32.mrb[0].mxu0
      %v1208 = vadd.f32 0.0, %v1207
      %v1209 = vpop.f32.mrb[0].mxu0
      %1210 = vmatprep.mubr.bf16.mxu0 0
      %1211 = vmatmul.mubr.bf16.gmra.mrb[0].mxu0 %v1028
      %v1212 = vpop.f32.mrb[0].mxu0
      %v1213 = vadd.f32 0.0, %v1212
      %v1214 = vpop.f32.mrb[0].mxu0
      %v1215 = vpop.f32.mrb[0].mxu0
      %v1216 = vadd.f32 0.0, %v1215
      %v1217 = vpop.f32.mrb[0].mxu0
      %1218 = vmatprep.mubr.bf16.mxu0 0
      %1219 = vmatmul.mubr.bf16.gmra.mrb[0].mxu0 %v1029
      %v1220 = vpop.f32.mrb[0].mxu0
      %v1221 = vadd.f32 0.0, %v1220
      %v1222 = vpop.f32.mrb[0].mxu0
      %v1223 = vpop.f32.mrb[0].mxu0
      %v1224 = vadd.f32 0.0, %v1223
      %v1225 = vpop.f32.mrb[0].mxu0
      %1226 = vmatprep.mubr.bf16.mxu0 0
      %1227 = vmatmul.mubr.bf16.gmra.mrb[0].mxu0 %v1030
      %v1228 = vpop.f32.mrb[0].mxu0
      %v1229 = vadd.f32 0.0, %v1228
      %v1230 = vpop.f32.mrb[0].mxu0
      %v1231 = vpop.f32.mrb[0].mxu0
      %v1232 = vadd.f32 0.0, %v1231
      %v1233 = vpop.f32.mrb[0].mxu0
      %1234 = vmatprep.mubr.bf16.mxu0 0
      %1235 = vmatmul.mubr.bf16.gmra.mrb[0].mxu0 %v1031
      %v1236 = vpop.f32.mrb[0].mxu0
      %v1237 = vadd.f32 0.0, %v1236
      %v1238 = vpop.f32.mrb[0].mxu0
      %v1239 = vpop.f32.mrb[0].mxu0
      %v1240 = vadd.f32 0.0, %v1239
      %v1241 = vpop.f32.mrb[0].mxu0
      %1242 = vmatprep.mubr.bf16.mxu0 0
      %1243 = vmatmul.mubr.bf16.gmra.mrb[0].mxu0 %v1032
      %v1244 = vpop.f32.mrb[0].mxu0
      %v1245 = vadd.f32 0.0, %v1244
      %v1246 = vpop.f32.mrb[0].mxu0
      %v1247 = vpop.f32.mrb[0].mxu0
      %v1248 = vadd.f32 0.0, %v1247
      %v1249 = vpop.f32.mrb[0].mxu0
      %1250 = vmatprep.mubr.bf16.mxu0 0
      %1251 = vmatmul.mubr.bf16.gmra.mrb[0].mxu0 %v1033
      %v1252 = vpop.f32.mrb[0].mxu0
      %v1253 = vadd.f32 0.0, %v1252
      %v1254 = vpop.f32.mrb[0].mxu0
      %v1255 = vpop.f32.mrb[0].mxu0
      %v1256 = vadd.f32 0.0, %v1255
      %v1257 = vpop.f32.mrb[0].mxu0
      %1258 = vdwg.mxu0
      %v1291 = vunpack.c.l.b16 %v227
      %v1292 = vunpack.c.l.b16 %v228
      %v1293 = vunpack.c.l.b16 %v229
      %v1294 = vunpack.c.l.b16 %v230
      %v1295 = vunpack.c.l.b16 %v231
      %v1296 = vunpack.c.l.b16 %v232
      %v1297 = vunpack.c.l.b16 %v233
      %v1298 = vunpack.c.l.b16 %v234
      %v1299 = vunpack.c.l.b16 %v235
      %v1300 = vunpack.c.l.b16 %v236
      %v1301 = vunpack.c.l.b16 %v237
      %v1302 = vunpack.c.l.b16 %v238
      %v1303 = vunpack.c.l.b16 %v239
      %v1304 = vunpack.c.l.b16 %v240
      %v1305 = vunpack.c.l.b16 %v241
      %v1306 = vunpack.c.l.b16 %v242
      %v1307 = vunpack.c.l.b16 %v243
      %v1308 = vunpack.c.l.b16 %v244
      %v1309 = vunpack.c.l.b16 %v245
      %v1310 = vunpack.c.l.b16 %v246
      %v1311 = vunpack.c.l.b16 %v247
      %v1312 = vunpack.c.l.b16 %v248
      %v1313 = vunpack.c.l.b16 %v249
      %v1314 = vunpack.c.l.b16 %v250
      %v1315 = vunpack.c.l.b16 %v251
      %v1316 = vunpack.c.l.b16 %v252
      %v1317 = vunpack.c.l.b16 %v253
      %v1318 = vunpack.c.l.b16 %v254
      %v1319 = vunpack.c.l.b16 %v255
      %v1320 = vunpack.c.l.b16 %v256
      %v1321 = vunpack.c.l.b16 %v257
      %v1322 = vunpack.c.l.b16 %v258
      %v1323 = vpack.c.b16 %v1292, %v1291
      %v1324 = vpack.c.b16 %v1294, %v1293
      %v1325 = vpack.c.b16 %v1296, %v1295
      %v1326 = vpack.c.b16 %v1298, %v1297
      %v1327 = vpack.c.b16 %v1300, %v1299
      %v1328 = vpack.c.b16 %v1302, %v1301
      %v1329 = vpack.c.b16 %v1304, %v1303
      %v1330 = vpack.c.b16 %v1306, %v1305
      %v1331 = vpack.c.b16 %v1308, %v1307
      %v1332 = vpack.c.b16 %v1310, %v1309
      %v1333 = vpack.c.b16 %v1312, %v1311
      %v1334 = vpack.c.b16 %v1314, %v1313
      %v1335 = vpack.c.b16 %v1316, %v1315
      %v1336 = vpack.c.b16 %v1318, %v1317
      %v1337 = vpack.c.b16 %v1320, %v1319
      %v1338 = vpack.c.b16 %v1322, %v1321
      %v1371 = vunpack.c.l.b16 %v953
      %v1372 = vunpack.c.l.b16 %v954
      %v1373 = vunpack.c.l.b16 %v955
      %v1374 = vunpack.c.l.b16 %v956
      %v1375 = vunpack.c.l.b16 %v957
      %v1376 = vunpack.c.l.b16 %v958
      %v1377 = vunpack.c.l.b16 %v959
      %v1378 = vunpack.c.l.b16 %v960
      %v1379 = vunpack.c.l.b16 %v961
      %v1380 = vunpack.c.l.b16 %v962
      %v1381 = vunpack.c.l.b16 %v963
      %v1382 = vunpack.c.l.b16 %v964
      %v1383 = vunpack.c.l.b16 %v965
      %v1384 = vunpack.c.l.b16 %v966
      %v1385 = vunpack.c.l.b16 %v967
      %v1386 = vunpack.c.l.b16 %v968
      %v1387 = vpack.c.b16 %v1372, %v1371
      %v1388 = vpack.c.b16 %v1374, %v1373
      %v1389 = vpack.c.b16 %v1376, %v1375
      %v1390 = vpack.c.b16 %v1378, %v1377
      %v1391 = vpack.c.b16 %v1380, %v1379
      %v1392 = vpack.c.b16 %v1382, %v1381
      %v1393 = vpack.c.b16 %v1384, %v1383
      %v1394 = vpack.c.b16 %v1386, %v1385
      %1403 = vmatprep.subr.bf16.mxu0 0
      %1404 = vmatpush1.bf16.msra.mxu0 %v1387
      %1405 = vmatprep.subr.bf16.mxu0 0
      %1406 = vmatpush1.bf16.msra.mxu0 %v1388
      %1407 = vmatprep.subr.bf16.mxu0 0
      %1408 = vmatpush1.bf16.msra.mxu0 %v1389
      %1409 = vmatprep.subr.bf16.mxu0 0
      %1410 = vmatpush1.bf16.msra.mxu0 %v1390
      %1411 = vmatprep.subr.bf16.mxu0 0
      %1412 = vmatpush1.bf16.msra.mxu0 %v1391
      %1413 = vmatprep.subr.bf16.mxu0 0
      %1414 = vmatpush1.bf16.msra.mxu0 %v1392
      %1415 = vmatprep.subr.bf16.mxu0 0
      %1416 = vmatpush1.bf16.msra.mxu0 %v1393
      %1417 = vmatprep.subr.bf16.mxu0 0
      %1418 = vmatpush1.bf16.msra.mxu0 %v1394
      %1419 = vmatprep.subr.bf16.mxu0 0
      %1420 = vmatpush1.bf16.msra.mxu0 0
      %1421 = vmatprep.subr.bf16.mxu0 0
      %1422 = vmatpush1.bf16.msra.mxu0 0
      %1423 = vmatprep.subr.bf16.mxu0 0
      %1424 = vmatpush1.bf16.msra.mxu0 0
      %1425 = vmatprep.subr.bf16.mxu0 0
      %1426 = vmatpush1.bf16.msra.mxu0 0
      %1427 = vmatprep.subr.bf16.mxu0 0
      %1428 = vmatpush1.bf16.msra.mxu0 0
      %1429 = vmatprep.subr.bf16.mxu0 0
      %1430 = vmatpush1.bf16.msra.mxu0 0
      %1431 = vmatprep.subr.bf16.mxu0 0
      %1432 = vmatpush1.bf16.msra.mxu0 0
      %1433 = vmatprep.subr.bf16.mxu0 0
      %1434 = vmatpush1.bf16.msra.mxu0 0
      %1435 = vmatprep.mubr.bf16.mxu0 0
      %1436 = vmatmul.mubr.bf16.gmra.mrb[0].mxu0 %v1323
      %v1437 = vpop.f32.mrb[0].mxu0
      %v1438 = vadd.f32 %v1133, %v1437
      %v1439 = vpop.f32.mrb[0].mxu0
      %v1440 = vpop.f32.mrb[0].mxu0
      %v1441 = vadd.f32 %v1136, %v1440
      %v1442 = vpop.f32.mrb[0].mxu0
      %1443 = vmatprep.mubr.bf16.mxu0 0
      %1444 = vmatmul.mubr.bf16.gmra.mrb[0].mxu0 %v1324
      %v1445 = vpop.f32.mrb[0].mxu0
      %v1446 = vadd.f32 %v1141, %v1445
      %v1447 = vpop.f32.mrb[0].mxu0
      %v1448 = vpop.f32.mrb[0].mxu0
      %v1449 = vadd.f32 %v1144, %v1448
      %v1450 = vpop.f32.mrb[0].mxu0
      %1451 = vmatprep.mubr.bf16.mxu0 0
      %1452 = vmatmul.mubr.bf16.gmra.mrb[0].mxu0 %v1325
      %v1453 = vpop.f32.mrb[0].mxu0
      %v1454 = vadd.f32 %v1149, %v1453
      %v1455 = vpop.f32.mrb[0].mxu0
      %v1456 = vpop.f32.mrb[0].mxu0
      %v1457 = vadd.f32 %v1152, %v1456
      %v1458 = vpop.f32.mrb[0].mxu0
      %1459 = vmatprep.mubr.bf16.mxu0 0
      %1460 = vmatmul.mubr.bf16.gmra.mrb[0].mxu0 %v1326
      %v1461 = vpop.f32.mrb[0].mxu0
      %v1462 = vadd.f32 %v1157, %v1461
      %v1463 = vpop.f32.mrb[0].mxu0
      %v1464 = vpop.f32.mrb[0].mxu0
      %v1465 = vadd.f32 %v1160, %v1464
      %v1466 = vpop.f32.mrb[0].mxu0
      %1467 = vmatprep.mubr.bf16.mxu0 0
      %1468 = vmatmul.mubr.bf16.gmra.mrb[0].mxu0 %v1327
      %v1469 = vpop.f32.mrb[0].mxu0
      %v1470 = vadd.f32 %v1165, %v1469
      %v1471 = vpop.f32.mrb[0].mxu0
      %v1472 = vpop.f32.mrb[0].mxu0
      %v1473 = vadd.f32 %v1168, %v1472
      %v1474 = vpop.f32.mrb[0].mxu0
      %1475 = vmatprep.mubr.bf16.mxu0 0
      %1476 = vmatmul.mubr.bf16.gmra.mrb[0].mxu0 %v1328
      %v1477 = vpop.f32.mrb[0].mxu0
      %v1478 = vadd.f32 %v1173, %v1477
      %v1479 = vpop.f32.mrb[0].mxu0
      %v1480 = vpop.f32.mrb[0].mxu0
      %v1481 = vadd.f32 %v1176, %v1480
      %v1482 = vpop.f32.mrb[0].mxu0
      %1483 = vmatprep.mubr.bf16.mxu0 0
      %1484 = vmatmul.mubr.bf16.gmra.mrb[0].mxu0 %v1329
      %v1485 = vpop.f32.mrb[0].mxu0
      %v1486 = vadd.f32 %v1181, %v1485
      %v1487 = vpop.f32.mrb[0].mxu0
      %v1488 = vpop.f32.mrb[0].mxu0
      %v1489 = vadd.f32 %v1184, %v1488
      %v1490 = vpop.f32.mrb[0].mxu0
      %1491 = vmatprep.mubr.bf16.mxu0 0
      %1492 = vmatmul.mubr.bf16.gmra.mrb[0].mxu0 %v1330
      %v1493 = vpop.f32.mrb[0].mxu0
      %v1494 = vadd.f32 %v1189, %v1493
      %v1495 = vpop.f32.mrb[0].mxu0
      %v1496 = vpop.f32.mrb[0].mxu0
      %v1497 = vadd.f32 %v1192, %v1496
      %v1498 = vpop.f32.mrb[0].mxu0
      %1499 = vmatprep.mubr.bf16.mxu0 0
      %1500 = vmatmul.mubr.bf16.gmra.mrb[0].mxu0 %v1331
      %v1501 = vpop.f32.mrb[0].mxu0
      %v1502 = vadd.f32 %v1197, %v1501
      %v1503 = vpop.f32.mrb[0].mxu0
      %v1504 = vpop.f32.mrb[0].mxu0
      %v1505 = vadd.f32 %v1200, %v1504
      %v1506 = vpop.f32.mrb[0].mxu0
      %1507 = vmatprep.mubr.bf16.mxu0 0
      %1508 = vmatmul.mubr.bf16.gmra.mrb[0].mxu0 %v1332
      %v1509 = vpop.f32.mrb[0].mxu0
      %v1510 = vadd.f32 %v1205, %v1509
      %v1511 = vpop.f32.mrb[0].mxu0
      %v1512 = vpop.f32.mrb[0].mxu0
      %v1513 = vadd.f32 %v1208, %v1512
      %v1514 = vpop.f32.mrb[0].mxu0
      %1515 = vmatprep.mubr.bf16.mxu0 0
      %1516 = vmatmul.mubr.bf16.gmra.mrb[0].mxu0 %v1333
      %v1517 = vpop.f32.mrb[0].mxu0
      %v1518 = vadd.f32 %v1213, %v1517
      %v1519 = vpop.f32.mrb[0].mxu0
      %v1520 = vpop.f32.mrb[0].mxu0
      %v1521 = vadd.f32 %v1216, %v1520
      %v1522 = vpop.f32.mrb[0].mxu0
      %1523 = vmatprep.mubr.bf16.mxu0 0
      %1524 = vmatmul.mubr.bf16.gmra.mrb[0].mxu0 %v1334
      %v1525 = vpop.f32.mrb[0].mxu0
      %v1526 = vadd.f32 %v1221, %v1525
      %v1527 = vpop.f32.mrb[0].mxu0
      %v1528 = vpop.f32.mrb[0].mxu0
      %v1529 = vadd.f32 %v1224, %v1528
      %v1530 = vpop.f32.mrb[0].mxu0
      %1531 = vmatprep.mubr.bf16.mxu0 0
      %1532 = vmatmul.mubr.bf16.gmra.mrb[0].mxu0 %v1335
      %v1533 = vpop.f32.mrb[0].mxu0
      %v1534 = vadd.f32 %v1229, %v1533
      %v1535 = vpop.f32.mrb[0].mxu0
      %v1536 = vpop.f32.mrb[0].mxu0
      %v1537 = vadd.f32 %v1232, %v1536
      %v1538 = vpop.f32.mrb[0].mxu0
      %1539 = vmatprep.mubr.bf16.mxu0 0
      %1540 = vmatmul.mubr.bf16.gmra.mrb[0].mxu0 %v1336
      %v1541 = vpop.f32.mrb[0].mxu0
      %v1542 = vadd.f32 %v1237, %v1541
      %v1543 = vpop.f32.mrb[0].mxu0
      %v1544 = vpop.f32.mrb[0].mxu0
      %v1545 = vadd.f32 %v1240, %v1544
      %v1546 = vpop.f32.mrb[0].mxu0
      %1547 = vmatprep.mubr.bf16.mxu0 0
      %1548 = vmatmul.mubr.bf16.gmra.mrb[0].mxu0 %v1337
      %v1549 = vpop.f32.mrb[0].mxu0
      %v1550 = vadd.f32 %v1245, %v1549
      %v1551 = vpop.f32.mrb[0].mxu0
      %v1552 = vpop.f32.mrb[0].mxu0
      %v1553 = vadd.f32 %v1248, %v1552
      %v1554 = vpop.f32.mrb[0].mxu0
      %1555 = vmatprep.mubr.bf16.mxu0 0
      %1556 = vmatmul.mubr.bf16.gmra.mrb[0].mxu0 %v1338
      %v1557 = vpop.f32.mrb[0].mxu0
      %v1558 = vadd.f32 %v1253, %v1557
      %v1559 = vpop.f32.mrb[0].mxu0
      %v1560 = vpop.f32.mrb[0].mxu0
      %v1561 = vadd.f32 %v1256, %v1560
      %v1562 = vpop.f32.mrb[0].mxu0
      %1563 = vdwg.mxu0
      %s1564 = scalar_lea.vmem %s1, 128
      %v1565 = vld [vmem:[%s1564] sm:$0xf]
      %v1566 = vld [vmem:[%s1564 + $0x4] sm:$0xf]
      %v1567 = vld [vmem:[%s1564 + $0x8] sm:$0xf]
      %v1568 = vld [vmem:[%s1564 + $0xc] sm:$0xf]
      %v1569 = vld [vmem:[%s1564 + $0x10] sm:$0xf]
      %v1570 = vld [vmem:[%s1564 + $0x14] sm:$0xf]
      %v1571 = vld [vmem:[%s1564 + $0x18] sm:$0xf]
      %v1572 = vld [vmem:[%s1564 + $0x1c] sm:$0xf]
      %v1573 = vld [vmem:[%s1564 + $0x20] sm:$0xf]
      %v1574 = vld [vmem:[%s1564 + $0x24] sm:$0xf]
      %v1575 = vld [vmem:[%s1564 + $0x28] sm:$0xf]
      %v1576 = vld [vmem:[%s1564 + $0x2c] sm:$0xf]
      %v1577 = vld [vmem:[%s1564 + $0x30] sm:$0xf]
      %v1578 = vld [vmem:[%s1564 + $0x34] sm:$0xf]
      %v1579 = vld [vmem:[%s1564 + $0x38] sm:$0xf]
      %v1580 = vld [vmem:[%s1564 + $0x3c] sm:$0xf]
      %v1581 = vunpack.c.l.b16 %v830
      %v1582 = vunpack.c.l.b16 %v833
      %v1583 = vunpack.c.l.b16 %v837
      %v1584 = vunpack.c.l.b16 %v840
      %v1585 = vunpack.c.l.b16 %v844
      %v1586 = vunpack.c.l.b16 %v847
      %v1587 = vunpack.c.l.b16 %v851
      %v1588 = vunpack.c.l.b16 %v854
      %v1589 = vunpack.c.l.b16 %v858
      %v1590 = vunpack.c.l.b16 %v861
      %v1591 = vunpack.c.l.b16 %v865
      %v1592 = vunpack.c.l.b16 %v868
      %v1593 = vunpack.c.l.b16 %v872
      %v1594 = vunpack.c.l.b16 %v875
      %v1595 = vunpack.c.l.b16 %v879
      %v1596 = vunpack.c.l.b16 %v882
      %v1597 = vunpack.c.l.b16 %v886
      %v1598 = vunpack.c.l.b16 %v889
      %v1599 = vunpack.c.l.b16 %v893
      %v1600 = vunpack.c.l.b16 %v896
      %v1601 = vunpack.c.l.b16 %v900
      %v1602 = vunpack.c.l.b16 %v903
      %v1603 = vunpack.c.l.b16 %v907
      %v1604 = vunpack.c.l.b16 %v910
      %v1605 = vunpack.c.l.b16 %v914
      %v1606 = vunpack.c.l.b16 %v917
      %v1607 = vunpack.c.l.b16 %v921
      %v1608 = vunpack.c.l.b16 %v924
      %v1609 = vunpack.c.l.b16 %v928
      %v1610 = vunpack.c.l.b16 %v931
      %v1611 = vunpack.c.l.b16 %v935
      %v1612 = vunpack.c.l.b16 %v938
      %v1613 = vpack.c.b16 %v1582, %v1581
      %v1614 = vpack.c.b16 %v1584, %v1583
      %v1615 = vpack.c.b16 %v1586, %v1585
      %v1616 = vpack.c.b16 %v1588, %v1587
      %v1617 = vpack.c.b16 %v1590, %v1589
      %v1618 = vpack.c.b16 %v1592, %v1591
      %v1619 = vpack.c.b16 %v1594, %v1593
      %v1620 = vpack.c.b16 %v1596, %v1595
      %v1621 = vpack.c.b16 %v1598, %v1597
      %v1622 = vpack.c.b16 %v1600, %v1599
      %v1623 = vpack.c.b16 %v1602, %v1601
      %v1624 = vpack.c.b16 %v1604, %v1603
      %v1625 = vpack.c.b16 %v1606, %v1605
      %v1626 = vpack.c.b16 %v1608, %v1607
      %v1627 = vpack.c.b16 %v1610, %v1609
      %v1628 = vpack.c.b16 %v1612, %v1611
      %v1661 = vunpack.c.l.b16 %v1565
      %v1662 = vunpack.c.l.b16 %v1566
      %v1663 = vunpack.c.l.b16 %v1567
      %v1664 = vunpack.c.l.b16 %v1568
      %v1665 = vunpack.c.l.b16 %v1569
      %v1666 = vunpack.c.l.b16 %v1570
      %v1667 = vunpack.c.l.b16 %v1571
      %v1668 = vunpack.c.l.b16 %v1572
      %v1669 = vunpack.c.l.b16 %v1573
      %v1670 = vunpack.c.l.b16 %v1574
      %v1671 = vunpack.c.l.b16 %v1575
      %v1672 = vunpack.c.l.b16 %v1576
      %v1673 = vunpack.c.l.b16 %v1577
      %v1674 = vunpack.c.l.b16 %v1578
      %v1675 = vunpack.c.l.b16 %v1579
      %v1676 = vunpack.c.l.b16 %v1580
      %v1677 = vpack.c.b16 %v1662, %v1661
      %v1678 = vpack.c.b16 %v1664, %v1663
      %v1679 = vpack.c.b16 %v1666, %v1665
      %v1680 = vpack.c.b16 %v1668, %v1667
      %v1681 = vpack.c.b16 %v1670, %v1669
      %v1682 = vpack.c.b16 %v1672, %v1671
      %v1683 = vpack.c.b16 %v1674, %v1673
      %v1684 = vpack.c.b16 %v1676, %v1675
      %1693 = vmatprep.subr.bf16.mxu0 0
      %1694 = vmatpush1.bf16.msra.mxu0 %v1677
      %1695 = vmatprep.subr.bf16.mxu0 0
      %1696 = vmatpush1.bf16.msra.mxu0 %v1678
      %1697 = vmatprep.subr.bf16.mxu0 0
      %1698 = vmatpush1.bf16.msra.mxu0 %v1679
      %1699 = vmatprep.subr.bf16.mxu0 0
      %1700 = vmatpush1.bf16.msra.mxu0 %v1680
      %1701 = vmatprep.subr.bf16.mxu0 0
      %1702 = vmatpush1.bf16.msra.mxu0 %v1681
      %1703 = vmatprep.subr.bf16.mxu0 0
      %1704 = vmatpush1.bf16.msra.mxu0 %v1682
      %1705 = vmatprep.subr.bf16.mxu0 0
      %1706 = vmatpush1.bf16.msra.mxu0 %v1683
      %1707 = vmatprep.subr.bf16.mxu0 0
      %1708 = vmatpush1.bf16.msra.mxu0 %v1684
      %1709 = vmatprep.subr.bf16.mxu0 0
      %1710 = vmatpush1.bf16.msra.mxu0 0
      %1711 = vmatprep.subr.bf16.mxu0 0
      %1712 = vmatpush1.bf16.msra.mxu0 0
      %1713 = vmatprep.subr.bf16.mxu0 0
      %1714 = vmatpush1.bf16.msra.mxu0 0
      %1715 = vmatprep.subr.bf16.mxu0 0
      %1716 = vmatpush1.bf16.msra.mxu0 0
      %1717 = vmatprep.subr.bf16.mxu0 0
      %1718 = vmatpush1.bf16.msra.mxu0 0
      %1719 = vmatprep.subr.bf16.mxu0 0
      %1720 = vmatpush1.bf16.msra.mxu0 0
      %1721 = vmatprep.subr.bf16.mxu0 0
      %1722 = vmatpush1.bf16.msra.mxu0 0
      %1723 = vmatprep.subr.bf16.mxu0 0
      %1724 = vmatpush1.bf16.msra.mxu0 0
      %1725 = vmatprep.mubr.bf16.mxu0 0
      %1726 = vmatmul.mubr.bf16.gmra.mrb[0].mxu0 %v1613
      %v1727 = vpop.f32.mrb[0].mxu0
      %v1728 = vadd.f32 0.0, %v1727
      %v1729 = vpop.f32.mrb[0].mxu0
      %v1730 = vpop.f32.mrb[0].mxu0
      %v1731 = vadd.f32 0.0, %v1730
      %v1732 = vpop.f32.mrb[0].mxu0
      %1733 = vmatprep.mubr.bf16.mxu0 0
      %1734 = vmatmul.mubr.bf16.gmra.mrb[0].mxu0 %v1614
      %v1735 = vpop.f32.mrb[0].mxu0
      %v1736 = vadd.f32 0.0, %v1735
      %v1737 = vpop.f32.mrb[0].mxu0
      %v1738 = vpop.f32.mrb[0].mxu0
      %v1739 = vadd.f32 0.0, %v1738
      %v1740 = vpop.f32.mrb[0].mxu0
      %1741 = vmatprep.mubr.bf16.mxu0 0
      %1742 = vmatmul.mubr.bf16.gmra.mrb[0].mxu0 %v1615
      %v1743 = vpop.f32.mrb[0].mxu0
      %v1744 = vadd.f32 0.0, %v1743
      %v1745 = vpop.f32.mrb[0].mxu0
      %v1746 = vpop.f32.mrb[0].mxu0
      %v1747 = vadd.f32 0.0, %v1746
      %v1748 = vpop.f32.mrb[0].mxu0
      %1749 = vmatprep.mubr.bf16.mxu0 0
      %1750 = vmatmul.mubr.bf16.gmra.mrb[0].mxu0 %v1616
      %v1751 = vpop.f32.mrb[0].mxu0
      %v1752 = vadd.f32 0.0, %v1751
      %v1753 = vpop.f32.mrb[0].mxu0
      %v1754 = vpop.f32.mrb[0].mxu0
      %v1755 = vadd.f32 0.0, %v1754
      %v1756 = vpop.f32.mrb[0].mxu0
      %1757 = vmatprep.mubr.bf16.mxu0 0
      %1758 = vmatmul.mubr.bf16.gmra.mrb[0].mxu0 %v1617
      %v1759 = vpop.f32.mrb[0].mxu0
      %v1760 = vadd.f32 0.0, %v1759
      %v1761 = vpop.f32.mrb[0].mxu0
      %v1762 = vpop.f32.mrb[0].mxu0
      %v1763 = vadd.f32 0.0, %v1762
      %v1764 = vpop.f32.mrb[0].mxu0
      %1765 = vmatprep.mubr.bf16.mxu0 0
      %1766 = vmatmul.mubr.bf16.gmra.mrb[0].mxu0 %v1618
      %v1767 = vpop.f32.mrb[0].mxu0
      %v1768 = vadd.f32 0.0, %v1767
      %v1769 = vpop.f32.mrb[0].mxu0
      %v1770 = vpop.f32.mrb[0].mxu0
      %v1771 = vadd.f32 0.0, %v1770
      %v1772 = vpop.f32.mrb[0].mxu0
      %1773 = vmatprep.mubr.bf16.mxu0 0
      %1774 = vmatmul.mubr.bf16.gmra.mrb[0].mxu0 %v1619
      %v1775 = vpop.f32.mrb[0].mxu0
      %v1776 = vadd.f32 0.0, %v1775
      %v1777 = vpop.f32.mrb[0].mxu0
      %v1778 = vpop.f32.mrb[0].mxu0
      %v1779 = vadd.f32 0.0, %v1778
      %v1780 = vpop.f32.mrb[0].mxu0
      %1781 = vmatprep.mubr.bf16.mxu0 0
      %1782 = vmatmul.mubr.bf16.gmra.mrb[0].mxu0 %v1620
      %v1783 = vpop.f32.mrb[0].mxu0
      %v1784 = vadd.f32 0.0, %v1783
      %v1785 = vpop.f32.mrb[0].mxu0
      %v1786 = vpop.f32.mrb[0].mxu0
      %v1787 = vadd.f32 0.0, %v1786
      %v1788 = vpop.f32.mrb[0].mxu0
      %1789 = vmatprep.mubr.bf16.mxu0 0
      %1790 = vmatmul.mubr.bf16.gmra.mrb[0].mxu0 %v1621
      %v1791 = vpop.f32.mrb[0].mxu0
      %v1792 = vadd.f32 0.0, %v1791
      %v1793 = vpop.f32.mrb[0].mxu0
      %v1794 = vpop.f32.mrb[0].mxu0
      %v1795 = vadd.f32 0.0, %v1794
      %v1796 = vpop.f32.mrb[0].mxu0
      %1797 = vmatprep.mubr.bf16.mxu0 0
      %1798 = vmatmul.mubr.bf16.gmra.mrb[0].mxu0 %v1622
      %v1799 = vpop.f32.mrb[0].mxu0
      %v1800 = vadd.f32 0.0, %v1799
      %v1801 = vpop.f32.mrb[0].mxu0
      %v1802 = vpop.f32.mrb[0].mxu0
      %v1803 = vadd.f32 0.0, %v1802
      %v1804 = vpop.f32.mrb[0].mxu0
      %1805 = vmatprep.mubr.bf16.mxu0 0
      %1806 = vmatmul.mubr.bf16.gmra.mrb[0].mxu0 %v1623
      %v1807 = vpop.f32.mrb[0].mxu0
      %v1808 = vadd.f32 0.0, %v1807
      %v1809 = vpop.f32.mrb[0].mxu0
      %v1810 = vpop.f32.mrb[0].mxu0
      %v1811 = vadd.f32 0.0, %v1810
      %v1812 = vpop.f32.mrb[0].mxu0
      %1813 = vmatprep.mubr.bf16.mxu0 0
      %1814 = vmatmul.mubr.bf16.gmra.mrb[0].mxu0 %v1624
      %v1815 = vpop.f32.mrb[0].mxu0
      %v1816 = vadd.f32 0.0, %v1815
      %v1817 = vpop.f32.mrb[0].mxu0
      %v1818 = vpop.f32.mrb[0].mxu0
      %v1819 = vadd.f32 0.0, %v1818
      %v1820 = vpop.f32.mrb[0].mxu0
      %1821 = vmatprep.mubr.bf16.mxu0 0
      %1822 = vmatmul.mubr.bf16.gmra.mrb[0].mxu0 %v1625
      %v1823 = vpop.f32.mrb[0].mxu0
      %v1824 = vadd.f32 0.0, %v1823
      %v1825 = vpop.f32.mrb[0].mxu0
      %v1826 = vpop.f32.mrb[0].mxu0
      %v1827 = vadd.f32 0.0, %v1826
      %v1828 = vpop.f32.mrb[0].mxu0
      %1829 = vmatprep.mubr.bf16.mxu0 0
      %1830 = vmatmul.mubr.bf16.gmra.mrb[0].mxu0 %v1626
      %v1831 = vpop.f32.mrb[0].mxu0
      %v1832 = vadd.f32 0.0, %v1831
      %v1833 = vpop.f32.mrb[0].mxu0
      %v1834 = vpop.f32.mrb[0].mxu0
      %v1835 = vadd.f32 0.0, %v1834
      %v1836 = vpop.f32.mrb[0].mxu0
      %1837 = vmatprep.mubr.bf16.mxu0 0
      %1838 = vmatmul.mubr.bf16.gmra.mrb[0].mxu0 %v1627
      %v1839 = vpop.f32.mrb[0].mxu0
      %v1840 = vadd.f32 0.0, %v1839
      %v1841 = vpop.f32.mrb[0].mxu0
      %v1842 = vpop.f32.mrb[0].mxu0
      %v1843 = vadd.f32 0.0, %v1842
      %v1844 = vpop.f32.mrb[0].mxu0
      %1845 = vmatprep.mubr.bf16.mxu0 0
      %1846 = vmatmul.mubr.bf16.gmra.mrb[0].mxu0 %v1628
      %v1847 = vpop.f32.mrb[0].mxu0
      %v1848 = vadd.f32 0.0, %v1847
      %v1849 = vpop.f32.mrb[0].mxu0
      %v1850 = vpop.f32.mrb[0].mxu0
      %v1851 = vadd.f32 0.0, %v1850
      %v1852 = vpop.f32.mrb[0].mxu0
      %1853 = vdwg.mxu0
      %v1854 = vadd.f32 %v1438, %v1728
      %v1855 = vadd.f32 %v1441, %v1731
      %v1856 = vadd.f32 %v1446, %v1736
      %v1857 = vadd.f32 %v1449, %v1739
      %v1858 = vadd.f32 %v1454, %v1744
      %v1859 = vadd.f32 %v1457, %v1747
      %v1860 = vadd.f32 %v1462, %v1752
      %v1861 = vadd.f32 %v1465, %v1755
      %v1862 = vadd.f32 %v1470, %v1760
      %v1863 = vadd.f32 %v1473, %v1763
      %v1864 = vadd.f32 %v1478, %v1768
      %v1865 = vadd.f32 %v1481, %v1771
      %v1866 = vadd.f32 %v1486, %v1776
      %v1867 = vadd.f32 %v1489, %v1779
      %v1868 = vadd.f32 %v1494, %v1784
      %v1869 = vadd.f32 %v1497, %v1787
      %v1870 = vadd.f32 %v1502, %v1792
      %v1871 = vadd.f32 %v1505, %v1795
      %v1872 = vadd.f32 %v1510, %v1800
      %v1873 = vadd.f32 %v1513, %v1803
      %v1874 = vadd.f32 %v1518, %v1808
      %v1875 = vadd.f32 %v1521, %v1811
      %v1876 = vadd.f32 %v1526, %v1816
      %v1877 = vadd.f32 %v1529, %v1819
      %v1878 = vadd.f32 %v1534, %v1824
      %v1879 = vadd.f32 %v1537, %v1827
      %v1880 = vadd.f32 %v1542, %v1832
      %v1881 = vadd.f32 %v1545, %v1835
      %v1882 = vadd.f32 %v1550, %v1840
      %v1883 = vadd.f32 %v1553, %v1843
      %v1884 = vadd.f32 %v1558, %v1848
      %v1885 = vadd.f32 %v1561, %v1851
      %s1886 = scalar_lea.vmem %s1, 192
      %v1887 = vld [vmem:[%s1886] sm:$0xf]
      %v1888 = vld [vmem:[%s1886 + $0x4] sm:$0xf]
      %v1889 = vld [vmem:[%s1886 + $0x8] sm:$0xf]
      %v1890 = vld [vmem:[%s1886 + $0xc] sm:$0xf]
      %v1891 = vld [vmem:[%s1886 + $0x10] sm:$0xf]
      %v1892 = vld [vmem:[%s1886 + $0x14] sm:$0xf]
      %v1893 = vld [vmem:[%s1886 + $0x18] sm:$0xf]
      %v1894 = vld [vmem:[%s1886 + $0x1c] sm:$0xf]
      %v1895 = vld [vmem:[%s1886 + $0x20] sm:$0xf]
      %v1896 = vld [vmem:[%s1886 + $0x24] sm:$0xf]
      %v1897 = vld [vmem:[%s1886 + $0x28] sm:$0xf]
      %v1898 = vld [vmem:[%s1886 + $0x2c] sm:$0xf]
      %v1899 = vld [vmem:[%s1886 + $0x30] sm:$0xf]
      %v1900 = vld [vmem:[%s1886 + $0x34] sm:$0xf]
      %v1901 = vld [vmem:[%s1886 + $0x38] sm:$0xf]
      %v1902 = vld [vmem:[%s1886 + $0x3c] sm:$0xf]
      %v1905 = vunpack.c.l.b16 %v259
      %v1906 = vunpack.c.l.b16 %v260
      %v1907 = vpack.c.b16 %v1906, %v1905
      %v1925 = vunpack.c.l.b16 %v1887
      %v1926 = vunpack.c.l.b16 %v1888
      %v1927 = vunpack.c.l.b16 %v1889
      %v1928 = vunpack.c.l.b16 %v1890
      %v1929 = vunpack.c.l.b16 %v1891
      %v1930 = vunpack.c.l.b16 %v1892
      %v1931 = vunpack.c.l.b16 %v1893
      %v1932 = vunpack.c.l.b16 %v1894
      %v1933 = vunpack.c.l.b16 %v1895
      %v1934 = vunpack.c.l.b16 %v1896
      %v1935 = vunpack.c.l.b16 %v1897
      %v1936 = vunpack.c.l.b16 %v1898
      %v1937 = vunpack.c.l.b16 %v1899
      %v1938 = vunpack.c.l.b16 %v1900
      %v1939 = vunpack.c.l.b16 %v1901
      %v1940 = vunpack.c.l.b16 %v1902
      %v1941 = vpack.c.b16 %v1926, %v1925
      %v1942 = vpack.c.b16 %v1928, %v1927
      %v1943 = vpack.c.b16 %v1930, %v1929
      %v1944 = vpack.c.b16 %v1932, %v1931
      %v1945 = vpack.c.b16 %v1934, %v1933
      %v1946 = vpack.c.b16 %v1936, %v1935
      %v1947 = vpack.c.b16 %v1938, %v1937
      %v1948 = vpack.c.b16 %v1940, %v1939
      %1957 = vmatprep.subr.bf16.mxu0 0
      %1958 = vmatpush1.bf16.msra.mxu0 %v1941
      %1959 = vmatprep.subr.bf16.mxu0 0
      %1960 = vmatpush1.bf16.msra.mxu0 %v1942
      %1961 = vmatprep.subr.bf16.mxu0 0
      %1962 = vmatpush1.bf16.msra.mxu0 %v1943
      %1963 = vmatprep.subr.bf16.mxu0 0
      %1964 = vmatpush1.bf16.msra.mxu0 %v1944
      %1965 = vmatprep.subr.bf16.mxu0 0
      %1966 = vmatpush1.bf16.msra.mxu0 %v1945
      %1967 = vmatprep.subr.bf16.mxu0 0
      %1968 = vmatpush1.bf16.msra.mxu0 %v1946
      %1969 = vmatprep.subr.bf16.mxu0 0
      %1970 = vmatpush1.bf16.msra.mxu0 %v1947
      %1971 = vmatprep.subr.bf16.mxu0 0
      %1972 = vmatpush1.bf16.msra.mxu0 %v1948
      %1973 = vmatprep.subr.bf16.mxu0 0
      %1974 = vmatpush1.bf16.msra.mxu0 0
      %1975 = vmatprep.subr.bf16.mxu0 0
      %1976 = vmatpush1.bf16.msra.mxu0 0
      %1977 = vmatprep.subr.bf16.mxu0 0
      %1978 = vmatpush1.bf16.msra.mxu0 0
      %1979 = vmatprep.subr.bf16.mxu0 0
      %1980 = vmatpush1.bf16.msra.mxu0 0
      %1981 = vmatprep.subr.bf16.mxu0 0
      %1982 = vmatpush1.bf16.msra.mxu0 0
      %1983 = vmatprep.subr.bf16.mxu0 0
      %1984 = vmatpush1.bf16.msra.mxu0 0
      %1985 = vmatprep.subr.bf16.mxu0 0
      %1986 = vmatpush1.bf16.msra.mxu0 0
      %1987 = vmatprep.subr.bf16.mxu0 0
      %1988 = vmatpush1.bf16.msra.mxu0 0
      %1989 = vmatprep.mubr.bf16.mxu0 0
      %1990 = vmatmul.mubr.bf16.gmra.mrb[0].mxu0 %v1324
      %v1991 = vpop.f32.mrb[0].mxu0
      %v1992 = vadd.f32 0.0, %v1991
      %v1993 = vpop.f32.mrb[0].mxu0
      %v1994 = vpop.f32.mrb[0].mxu0
      %v1995 = vadd.f32 0.0, %v1994
      %v1996 = vpop.f32.mrb[0].mxu0
      %1997 = vmatprep.mubr.bf16.mxu0 0
      %1998 = vmatmul.mubr.bf16.gmra.mrb[0].mxu0 %v1325
      %v1999 = vpop.f32.mrb[0].mxu0
      %v2000 = vadd.f32 0.0, %v1999
      %v2001 = vpop.f32.mrb[0].mxu0
      %v2002 = vpop.f32.mrb[0].mxu0
      %v2003 = vadd.f32 0.0, %v2002
      %v2004 = vpop.f32.mrb[0].mxu0
      %2005 = vmatprep.mubr.bf16.mxu0 0
      %2006 = vmatmul.mubr.bf16.gmra.mrb[0].mxu0 %v1326
      %v2007 = vpop.f32.mrb[0].mxu0
      %v2008 = vadd.f32 0.0, %v2007
      %v2009 = vpop.f32.mrb[0].mxu0
      %v2010 = vpop.f32.mrb[0].mxu0
      %v2011 = vadd.f32 0.0, %v2010
      %v2012 = vpop.f32.mrb[0].mxu0
      %2013 = vmatprep.mubr.bf16.mxu0 0
      %2014 = vmatmul.mubr.bf16.gmra.mrb[0].mxu0 %v1327
      %v2015 = vpop.f32.mrb[0].mxu0
      %v2016 = vadd.f32 0.0, %v2015
      %v2017 = vpop.f32.mrb[0].mxu0
      %v2018 = vpop.f32.mrb[0].mxu0
      %v2019 = vadd.f32 0.0, %v2018
      %v2020 = vpop.f32.mrb[0].mxu0
      %2021 = vmatprep.mubr.bf16.mxu0 0
      %2022 = vmatmul.mubr.bf16.gmra.mrb[0].mxu0 %v1328
      %v2023 = vpop.f32.mrb[0].mxu0
      %v2024 = vadd.f32 0.0, %v2023
      %v2025 = vpop.f32.mrb[0].mxu0
      %v2026 = vpop.f32.mrb[0].mxu0
      %v2027 = vadd.f32 0.0, %v2026
      %v2028 = vpop.f32.mrb[0].mxu0
      %2029 = vmatprep.mubr.bf16.mxu0 0
      %2030 = vmatmul.mubr.bf16.gmra.mrb[0].mxu0 %v1329
      %v2031 = vpop.f32.mrb[0].mxu0
      %v2032 = vadd.f32 0.0, %v2031
      %v2033 = vpop.f32.mrb[0].mxu0
      %v2034 = vpop.f32.mrb[0].mxu0
      %v2035 = vadd.f32 0.0, %v2034
      %v2036 = vpop.f32.mrb[0].mxu0
      %2037 = vmatprep.mubr.bf16.mxu0 0
      %2038 = vmatmul.mubr.bf16.gmra.mrb[0].mxu0 %v1330
      %v2039 = vpop.f32.mrb[0].mxu0
      %v2040 = vadd.f32 0.0, %v2039
      %v2041 = vpop.f32.mrb[0].mxu0
      %v2042 = vpop.f32.mrb[0].mxu0
      %v2043 = vadd.f32 0.0, %v2042
      %v2044 = vpop.f32.mrb[0].mxu0
      %2045 = vmatprep.mubr.bf16.mxu0 0
      %2046 = vmatmul.mubr.bf16.gmra.mrb[0].mxu0 %v1331
      %v2047 = vpop.f32.mrb[0].mxu0
      %v2048 = vadd.f32 0.0, %v2047
      %v2049 = vpop.f32.mrb[0].mxu0
      %v2050 = vpop.f32.mrb[0].mxu0
      %v2051 = vadd.f32 0.0, %v2050
      %v2052 = vpop.f32.mrb[0].mxu0
      %2053 = vmatprep.mubr.bf16.mxu0 0
      %2054 = vmatmul.mubr.bf16.gmra.mrb[0].mxu0 %v1332
      %v2055 = vpop.f32.mrb[0].mxu0
      %v2056 = vadd.f32 0.0, %v2055
      %v2057 = vpop.f32.mrb[0].mxu0
      %v2058 = vpop.f32.mrb[0].mxu0
      %v2059 = vadd.f32 0.0, %v2058
      %v2060 = vpop.f32.mrb[0].mxu0
      %2061 = vmatprep.mubr.bf16.mxu0 0
      %2062 = vmatmul.mubr.bf16.gmra.mrb[0].mxu0 %v1333
      %v2063 = vpop.f32.mrb[0].mxu0
      %v2064 = vadd.f32 0.0, %v2063
      %v2065 = vpop.f32.mrb[0].mxu0
      %v2066 = vpop.f32.mrb[0].mxu0
      %v2067 = vadd.f32 0.0, %v2066
      %v2068 = vpop.f32.mrb[0].mxu0
      %2069 = vmatprep.mubr.bf16.mxu0 0
      %2070 = vmatmul.mubr.bf16.gmra.mrb[0].mxu0 %v1334
      %v2071 = vpop.f32.mrb[0].mxu0
      %v2072 = vadd.f32 0.0, %v2071
      %v2073 = vpop.f32.mrb[0].mxu0
      %v2074 = vpop.f32.mrb[0].mxu0
      %v2075 = vadd.f32 0.0, %v2074
      %v2076 = vpop.f32.mrb[0].mxu0
      %2077 = vmatprep.mubr.bf16.mxu0 0
      %2078 = vmatmul.mubr.bf16.gmra.mrb[0].mxu0 %v1335
      %v2079 = vpop.f32.mrb[0].mxu0
      %v2080 = vadd.f32 0.0, %v2079
      %v2081 = vpop.f32.mrb[0].mxu0
      %v2082 = vpop.f32.mrb[0].mxu0
      %v2083 = vadd.f32 0.0, %v2082
      %v2084 = vpop.f32.mrb[0].mxu0
      %2085 = vmatprep.mubr.bf16.mxu0 0
      %2086 = vmatmul.mubr.bf16.gmra.mrb[0].mxu0 %v1336
      %v2087 = vpop.f32.mrb[0].mxu0
      %v2088 = vadd.f32 0.0, %v2087
      %v2089 = vpop.f32.mrb[0].mxu0
      %v2090 = vpop.f32.mrb[0].mxu0
      %v2091 = vadd.f32 0.0, %v2090
      %v2092 = vpop.f32.mrb[0].mxu0
      %2093 = vmatprep.mubr.bf16.mxu0 0
      %2094 = vmatmul.mubr.bf16.gmra.mrb[0].mxu0 %v1337
      %v2095 = vpop.f32.mrb[0].mxu0
      %v2096 = vadd.f32 0.0, %v2095
      %v2097 = vpop.f32.mrb[0].mxu0
      %v2098 = vpop.f32.mrb[0].mxu0
      %v2099 = vadd.f32 0.0, %v2098
      %v2100 = vpop.f32.mrb[0].mxu0
      %2101 = vmatprep.mubr.bf16.mxu0 0
      %2102 = vmatmul.mubr.bf16.gmra.mrb[0].mxu0 %v1338
      %v2103 = vpop.f32.mrb[0].mxu0
      %v2104 = vadd.f32 0.0, %v2103
      %v2105 = vpop.f32.mrb[0].mxu0
      %v2106 = vpop.f32.mrb[0].mxu0
      %v2107 = vadd.f32 0.0, %v2106
      %v2108 = vpop.f32.mrb[0].mxu0
      %2109 = vmatprep.mubr.bf16.mxu0 0
      %2110 = vmatmul.mubr.bf16.gmra.mrb[0].mxu0 %v1907
      %v2111 = vpop.f32.mrb[0].mxu0
      %v2112 = vadd.f32 0.0, %v2111
      %v2113 = vpop.f32.mrb[0].mxu0
      %v2114 = vpop.f32.mrb[0].mxu0
      %v2115 = vadd.f32 0.0, %v2114
      %v2116 = vpop.f32.mrb[0].mxu0
      %2117 = vdwg.mxu0
      %v2118 = vadd.f32 %v1854, %v1992
      %v2119 = vadd.f32 %v1855, %v1995
      %v2120 = vadd.f32 %v1856, %v2000
      %v2121 = vadd.f32 %v1857, %v2003
      %v2122 = vadd.f32 %v1858, %v2008
      %v2123 = vadd.f32 %v1859, %v2011
      %v2124 = vadd.f32 %v1860, %v2016
      %v2125 = vadd.f32 %v1861, %v2019
      %v2126 = vadd.f32 %v1862, %v2024
      %v2127 = vadd.f32 %v1863, %v2027
      %v2128 = vadd.f32 %v1864, %v2032
      %v2129 = vadd.f32 %v1865, %v2035
      %v2130 = vadd.f32 %v1866, %v2040
      %v2131 = vadd.f32 %v1867, %v2043
      %v2132 = vadd.f32 %v1868, %v2048
      %v2133 = vadd.f32 %v1869, %v2051
      %v2134 = vadd.f32 %v1870, %v2056
      %v2135 = vadd.f32 %v1871, %v2059
      %v2136 = vadd.f32 %v1872, %v2064
      %v2137 = vadd.f32 %v1873, %v2067
      %v2138 = vadd.f32 %v1874, %v2072
      %v2139 = vadd.f32 %v1875, %v2075
      %v2140 = vadd.f32 %v1876, %v2080
      %v2141 = vadd.f32 %v1877, %v2083
      %v2142 = vadd.f32 %v1878, %v2088
      %v2143 = vadd.f32 %v1879, %v2091
      %v2144 = vadd.f32 %v1880, %v2096
      %v2145 = vadd.f32 %v1881, %v2099
      %v2146 = vadd.f32 %v1882, %v2104
      %v2147 = vadd.f32 %v1883, %v2107
      %v2148 = vadd.f32 %v1884, %v2112
      %v2149 = vadd.f32 %v1885, %v2115
      %s2150 = scalar_lea.vmem %s1, 256
      %v2151 = vld [vmem:[%s2150] sm:$0xf]
      %v2152 = vld [vmem:[%s2150 + $0x4] sm:$0xf]
      %v2153 = vld [vmem:[%s2150 + $0x8] sm:$0xf]
      %v2154 = vld [vmem:[%s2150 + $0xc] sm:$0xf]
      %v2155 = vld [vmem:[%s2150 + $0x10] sm:$0xf]
      %v2156 = vld [vmem:[%s2150 + $0x14] sm:$0xf]
      %v2157 = vld [vmem:[%s2150 + $0x18] sm:$0xf]
      %v2158 = vld [vmem:[%s2150 + $0x1c] sm:$0xf]
      %v2159 = vld [vmem:[%s2150 + $0x20] sm:$0xf]
      %v2160 = vld [vmem:[%s2150 + $0x24] sm:$0xf]
      %v2161 = vld [vmem:[%s2150 + $0x28] sm:$0xf]
      %v2162 = vld [vmem:[%s2150 + $0x2c] sm:$0xf]
      %v2163 = vld [vmem:[%s2150 + $0x30] sm:$0xf]
      %v2164 = vld [vmem:[%s2150 + $0x34] sm:$0xf]
      %v2165 = vld [vmem:[%s2150 + $0x38] sm:$0xf]
      %v2166 = vld [vmem:[%s2150 + $0x3c] sm:$0xf]
      %v2167 = vunpack.c.l.b16 %v717
      %v2168 = vunpack.c.l.b16 %v727
      %v2169 = vpack.c.b16 %v2168, %v2167
      %v2187 = vunpack.c.l.b16 %v2151
      %v2188 = vunpack.c.l.b16 %v2152
      %v2189 = vunpack.c.l.b16 %v2153
      %v2190 = vunpack.c.l.b16 %v2154
      %v2191 = vunpack.c.l.b16 %v2155
      %v2192 = vunpack.c.l.b16 %v2156
      %v2193 = vunpack.c.l.b16 %v2157
      %v2194 = vunpack.c.l.b16 %v2158
      %v2195 = vunpack.c.l.b16 %v2159
      %v2196 = vunpack.c.l.b16 %v2160
      %v2197 = vunpack.c.l.b16 %v2161
      %v2198 = vunpack.c.l.b16 %v2162
      %v2199 = vunpack.c.l.b16 %v2163
      %v2200 = vunpack.c.l.b16 %v2164
      %v2201 = vunpack.c.l.b16 %v2165
      %v2202 = vunpack.c.l.b16 %v2166
      %v2203 = vpack.c.b16 %v2188, %v2187
      %v2204 = vpack.c.b16 %v2190, %v2189
      %v2205 = vpack.c.b16 %v2192, %v2191
      %v2206 = vpack.c.b16 %v2194, %v2193
      %v2207 = vpack.c.b16 %v2196, %v2195
      %v2208 = vpack.c.b16 %v2198, %v2197
      %v2209 = vpack.c.b16 %v2200, %v2199
      %v2210 = vpack.c.b16 %v2202, %v2201
      %2219 = vmatprep.subr.bf16.mxu0 0
      %2220 = vmatpush1.bf16.msra.mxu0 %v2203
      %2221 = vmatprep.subr.bf16.mxu0 0
      %2222 = vmatpush1.bf16.msra.mxu0 %v2204
      %2223 = vmatprep.subr.bf16.mxu0 0
      %2224 = vmatpush1.bf16.msra.mxu0 %v2205
      %2225 = vmatprep.subr.bf16.mxu0 0
      %2226 = vmatpush1.bf16.msra.mxu0 %v2206
      %2227 = vmatprep.subr.bf16.mxu0 0
      %2228 = vmatpush1.bf16.msra.mxu0 %v2207
      %2229 = vmatprep.subr.bf16.mxu0 0
      %2230 = vmatpush1.bf16.msra.mxu0 %v2208
      %2231 = vmatprep.subr.bf16.mxu0 0
      %2232 = vmatpush1.bf16.msra.mxu0 %v2209
      %2233 = vmatprep.subr.bf16.mxu0 0
      %2234 = vmatpush1.bf16.msra.mxu0 %v2210
      %2235 = vmatprep.subr.bf16.mxu0 0
      %2236 = vmatpush1.bf16.msra.mxu0 0
      %2237 = vmatprep.subr.bf16.mxu0 0
      %2238 = vmatpush1.bf16.msra.mxu0 0
      %2239 = vmatprep.subr.bf16.mxu0 0
      %2240 = vmatpush1.bf16.msra.mxu0 0
      %2241 = vmatprep.subr.bf16.mxu0 0
      %2242 = vmatpush1.bf16.msra.mxu0 0
      %2243 = vmatprep.subr.bf16.mxu0 0
      %2244 = vmatpush1.bf16.msra.mxu0 0
      %2245 = vmatprep.subr.bf16.mxu0 0
      %2246 = vmatpush1.bf16.msra.mxu0 0
      %2247 = vmatprep.subr.bf16.mxu0 0
      %2248 = vmatpush1.bf16.msra.mxu0 0
      %2249 = vmatprep.subr.bf16.mxu0 0
      %2250 = vmatpush1.bf16.msra.mxu0 0
      %2251 = vmatprep.mubr.bf16.mxu0 0
      %2252 = vmatmul.mubr.bf16.gmra.mrb[0].mxu0 %v1019
      %v2253 = vpop.f32.mrb[0].mxu0
      %v2254 = vadd.f32 0.0, %v2253
      %v2255 = vpop.f32.mrb[0].mxu0
      %v2256 = vpop.f32.mrb[0].mxu0
      %v2257 = vadd.f32 0.0, %v2256
      %v2258 = vpop.f32.mrb[0].mxu0
      %2259 = vmatprep.mubr.bf16.mxu0 0
      %2260 = vmatmul.mubr.bf16.gmra.mrb[0].mxu0 %v1020
      %v2261 = vpop.f32.mrb[0].mxu0
      %v2262 = vadd.f32 0.0, %v2261
      %v2263 = vpop.f32.mrb[0].mxu0
      %v2264 = vpop.f32.mrb[0].mxu0
      %v2265 = vadd.f32 0.0, %v2264
      %v2266 = vpop.f32.mrb[0].mxu0
      %2267 = vmatprep.mubr.bf16.mxu0 0
      %2268 = vmatmul.mubr.bf16.gmra.mrb[0].mxu0 %v1021
      %v2269 = vpop.f32.mrb[0].mxu0
      %v2270 = vadd.f32 0.0, %v2269
      %v2271 = vpop.f32.mrb[0].mxu0
      %v2272 = vpop.f32.mrb[0].mxu0
      %v2273 = vadd.f32 0.0, %v2272
      %v2274 = vpop.f32.mrb[0].mxu0
      %2275 = vmatprep.mubr.bf16.mxu0 0
      %2276 = vmatmul.mubr.bf16.gmra.mrb[0].mxu0 %v1022
      %v2277 = vpop.f32.mrb[0].mxu0
      %v2278 = vadd.f32 0.0, %v2277
      %v2279 = vpop.f32.mrb[0].mxu0
      %v2280 = vpop.f32.mrb[0].mxu0
      %v2281 = vadd.f32 0.0, %v2280
      %v2282 = vpop.f32.mrb[0].mxu0
      %2283 = vmatprep.mubr.bf16.mxu0 0
      %2284 = vmatmul.mubr.bf16.gmra.mrb[0].mxu0 %v1023
      %v2285 = vpop.f32.mrb[0].mxu0
      %v2286 = vadd.f32 0.0, %v2285
      %v2287 = vpop.f32.mrb[0].mxu0
      %v2288 = vpop.f32.mrb[0].mxu0
      %v2289 = vadd.f32 0.0, %v2288
      %v2290 = vpop.f32.mrb[0].mxu0
      %2291 = vmatprep.mubr.bf16.mxu0 0
      %2292 = vmatmul.mubr.bf16.gmra.mrb[0].mxu0 %v1024
      %v2293 = vpop.f32.mrb[0].mxu0
      %v2294 = vadd.f32 0.0, %v2293
      %v2295 = vpop.f32.mrb[0].mxu0
      %v2296 = vpop.f32.mrb[0].mxu0
      %v2297 = vadd.f32 0.0, %v2296
      %v2298 = vpop.f32.mrb[0].mxu0
      %2299 = vmatprep.mubr.bf16.mxu0 0
      %2300 = vmatmul.mubr.bf16.gmra.mrb[0].mxu0 %v1025
      %v2301 = vpop.f32.mrb[0].mxu0
      %v2302 = vadd.f32 0.0, %v2301
      %v2303 = vpop.f32.mrb[0].mxu0
      %v2304 = vpop.f32.mrb[0].mxu0
      %v2305 = vadd.f32 0.0, %v2304
      %v2306 = vpop.f32.mrb[0].mxu0
      %2307 = vmatprep.mubr.bf16.mxu0 0
      %2308 = vmatmul.mubr.bf16.gmra.mrb[0].mxu0 %v1026
      %v2309 = vpop.f32.mrb[0].mxu0
      %v2310 = vadd.f32 0.0, %v2309
      %v2311 = vpop.f32.mrb[0].mxu0
      %v2312 = vpop.f32.mrb[0].mxu0
      %v2313 = vadd.f32 0.0, %v2312
      %v2314 = vpop.f32.mrb[0].mxu0
      %2315 = vmatprep.mubr.bf16.mxu0 0
      %2316 = vmatmul.mubr.bf16.gmra.mrb[0].mxu0 %v1027
      %v2317 = vpop.f32.mrb[0].mxu0
      %v2318 = vadd.f32 0.0, %v2317
      %v2319 = vpop.f32.mrb[0].mxu0
      %v2320 = vpop.f32.mrb[0].mxu0
      %v2321 = vadd.f32 0.0, %v2320
      %v2322 = vpop.f32.mrb[0].mxu0
      %2323 = vmatprep.mubr.bf16.mxu0 0
      %2324 = vmatmul.mubr.bf16.gmra.mrb[0].mxu0 %v1028
      %v2325 = vpop.f32.mrb[0].mxu0
      %v2326 = vadd.f32 0.0, %v2325
      %v2327 = vpop.f32.mrb[0].mxu0
      %v2328 = vpop.f32.mrb[0].mxu0
      %v2329 = vadd.f32 0.0, %v2328
      %v2330 = vpop.f32.mrb[0].mxu0
      %2331 = vmatprep.mubr.bf16.mxu0 0
      %2332 = vmatmul.mubr.bf16.gmra.mrb[0].mxu0 %v1029
      %v2333 = vpop.f32.mrb[0].mxu0
      %v2334 = vadd.f32 0.0, %v2333
      %v2335 = vpop.f32.mrb[0].mxu0
      %v2336 = vpop.f32.mrb[0].mxu0
      %v2337 = vadd.f32 0.0, %v2336
      %v2338 = vpop.f32.mrb[0].mxu0
      %2339 = vmatprep.mubr.bf16.mxu0 0
      %2340 = vmatmul.mubr.bf16.gmra.mrb[0].mxu0 %v1030
      %v2341 = vpop.f32.mrb[0].mxu0
      %v2342 = vadd.f32 0.0, %v2341
      %v2343 = vpop.f32.mrb[0].mxu0
      %v2344 = vpop.f32.mrb[0].mxu0
      %v2345 = vadd.f32 0.0, %v2344
      %v2346 = vpop.f32.mrb[0].mxu0
      %2347 = vmatprep.mubr.bf16.mxu0 0
      %2348 = vmatmul.mubr.bf16.gmra.mrb[0].mxu0 %v1031
      %v2349 = vpop.f32.mrb[0].mxu0
      %v2350 = vadd.f32 0.0, %v2349
      %v2351 = vpop.f32.mrb[0].mxu0
      %v2352 = vpop.f32.mrb[0].mxu0
      %v2353 = vadd.f32 0.0, %v2352
      %v2354 = vpop.f32.mrb[0].mxu0
      %2355 = vmatprep.mubr.bf16.mxu0 0
      %2356 = vmatmul.mubr.bf16.gmra.mrb[0].mxu0 %v1032
      %v2357 = vpop.f32.mrb[0].mxu0
      %v2358 = vadd.f32 0.0, %v2357
      %v2359 = vpop.f32.mrb[0].mxu0
      %v2360 = vpop.f32.mrb[0].mxu0
      %v2361 = vadd.f32 0.0, %v2360
      %v2362 = vpop.f32.mrb[0].mxu0
      %2363 = vmatprep.mubr.bf16.mxu0 0
      %2364 = vmatmul.mubr.bf16.gmra.mrb[0].mxu0 %v1033
      %v2365 = vpop.f32.mrb[0].mxu0
      %v2366 = vadd.f32 0.0, %v2365
      %v2367 = vpop.f32.mrb[0].mxu0
      %v2368 = vpop.f32.mrb[0].mxu0
      %v2369 = vadd.f32 0.0, %v2368
      %v2370 = vpop.f32.mrb[0].mxu0
      %2371 = vmatprep.mubr.bf16.mxu0 0
      %2372 = vmatmul.mubr.bf16.gmra.mrb[0].mxu0 %v2169
      %v2373 = vpop.f32.mrb[0].mxu0
      %v2374 = vadd.f32 0.0, %v2373
      %v2375 = vpop.f32.mrb[0].mxu0
      %v2376 = vpop.f32.mrb[0].mxu0
      %v2377 = vadd.f32 0.0, %v2376
      %v2378 = vpop.f32.mrb[0].mxu0
      %2379 = vdwg.mxu0
      %v2380 = vadd.f32 %v2118, %v2254
      %v2381 = vadd.f32 %v2119, %v2257
      %v2382 = vadd.f32 %v2120, %v2262
      %v2383 = vadd.f32 %v2121, %v2265
      %v2384 = vadd.f32 %v2122, %v2270
      %v2385 = vadd.f32 %v2123, %v2273
      %v2386 = vadd.f32 %v2124, %v2278
      %v2387 = vadd.f32 %v2125, %v2281
      %v2388 = vadd.f32 %v2126, %v2286
      %v2389 = vadd.f32 %v2127, %v2289
      %v2390 = vadd.f32 %v2128, %v2294
      %v2391 = vadd.f32 %v2129, %v2297
      %v2392 = vadd.f32 %v2130, %v2302
      %v2393 = vadd.f32 %v2131, %v2305
      %v2394 = vadd.f32 %v2132, %v2310
      %v2395 = vadd.f32 %v2133, %v2313
      %v2396 = vadd.f32 %v2134, %v2318
      %v2397 = vadd.f32 %v2135, %v2321
      %v2398 = vadd.f32 %v2136, %v2326
      %v2399 = vadd.f32 %v2137, %v2329
      %v2400 = vadd.f32 %v2138, %v2334
      %v2401 = vadd.f32 %v2139, %v2337
      %v2402 = vadd.f32 %v2140, %v2342
      %v2403 = vadd.f32 %v2141, %v2345
      %v2404 = vadd.f32 %v2142, %v2350
      %v2405 = vadd.f32 %v2143, %v2353
      %v2406 = vadd.f32 %v2144, %v2358
      %v2407 = vadd.f32 %v2145, %v2361
      %v2408 = vadd.f32 %v2146, %v2366
      %v2409 = vadd.f32 %v2147, %v2369
      %v2410 = vadd.f32 %v2148, %v2374
      %v2411 = vadd.f32 %v2149, %v2377
      %s2412 = scalar_lea.vmem %s1, 320
      %v2413 = vld [vmem:[%s2412] sm:$0xf]
      %v2414 = vld [vmem:[%s2412 + $0x4] sm:$0xf]
      %v2415 = vld [vmem:[%s2412 + $0x8] sm:$0xf]
      %v2416 = vld [vmem:[%s2412 + $0xc] sm:$0xf]
      %v2417 = vld [vmem:[%s2412 + $0x10] sm:$0xf]
      %v2418 = vld [vmem:[%s2412 + $0x14] sm:$0xf]
      %v2419 = vld [vmem:[%s2412 + $0x18] sm:$0xf]
      %v2420 = vld [vmem:[%s2412 + $0x1c] sm:$0xf]
      %v2421 = vld [vmem:[%s2412 + $0x20] sm:$0xf]
      %v2422 = vld [vmem:[%s2412 + $0x24] sm:$0xf]
      %v2423 = vld [vmem:[%s2412 + $0x28] sm:$0xf]
      %v2424 = vld [vmem:[%s2412 + $0x2c] sm:$0xf]
      %v2425 = vld [vmem:[%s2412 + $0x30] sm:$0xf]
      %v2426 = vld [vmem:[%s2412 + $0x34] sm:$0xf]
      %v2427 = vld [vmem:[%s2412 + $0x38] sm:$0xf]
      %v2428 = vld [vmem:[%s2412 + $0x3c] sm:$0xf]
      %v2429 = vunpack.c.l.b16 %v942
      %v2430 = vunpack.c.l.b16 %v945
      %v2431 = vpack.c.b16 %v2430, %v2429
      %v2449 = vunpack.c.l.b16 %v2413
      %v2450 = vunpack.c.l.b16 %v2414
      %v2451 = vunpack.c.l.b16 %v2415
      %v2452 = vunpack.c.l.b16 %v2416
      %v2453 = vunpack.c.l.b16 %v2417
      %v2454 = vunpack.c.l.b16 %v2418
      %v2455 = vunpack.c.l.b16 %v2419
      %v2456 = vunpack.c.l.b16 %v2420
      %v2457 = vunpack.c.l.b16 %v2421
      %v2458 = vunpack.c.l.b16 %v2422
      %v2459 = vunpack.c.l.b16 %v2423
      %v2460 = vunpack.c.l.b16 %v2424
      %v2461 = vunpack.c.l.b16 %v2425
      %v2462 = vunpack.c.l.b16 %v2426
      %v2463 = vunpack.c.l.b16 %v2427
      %v2464 = vunpack.c.l.b16 %v2428
      %v2465 = vpack.c.b16 %v2450, %v2449
      %v2466 = vpack.c.b16 %v2452, %v2451
      %v2467 = vpack.c.b16 %v2454, %v2453
      %v2468 = vpack.c.b16 %v2456, %v2455
      %v2469 = vpack.c.b16 %v2458, %v2457
      %v2470 = vpack.c.b16 %v2460, %v2459
      %v2471 = vpack.c.b16 %v2462, %v2461
      %v2472 = vpack.c.b16 %v2464, %v2463
      %2481 = vmatprep.subr.bf16.mxu0 0
      %2482 = vmatpush1.bf16.msra.mxu0 %v2465
      %2483 = vmatprep.subr.bf16.mxu0 0
      %2484 = vmatpush1.bf16.msra.mxu0 %v2466
      %2485 = vmatprep.subr.bf16.mxu0 0
      %2486 = vmatpush1.bf16.msra.mxu0 %v2467
      %2487 = vmatprep.subr.bf16.mxu0 0
      %2488 = vmatpush1.bf16.msra.mxu0 %v2468
      %2489 = vmatprep.subr.bf16.mxu0 0
      %2490 = vmatpush1.bf16.msra.mxu0 %v2469
      %2491 = vmatprep.subr.bf16.mxu0 0
      %2492 = vmatpush1.bf16.msra.mxu0 %v2470
      %2493 = vmatprep.subr.bf16.mxu0 0
      %2494 = vmatpush1.bf16.msra.mxu0 %v2471
      %2495 = vmatprep.subr.bf16.mxu0 0
      %2496 = vmatpush1.bf16.msra.mxu0 %v2472
      %2497 = vmatprep.subr.bf16.mxu0 0
      %2498 = vmatpush1.bf16.msra.mxu0 0
      %2499 = vmatprep.subr.bf16.mxu0 0
      %2500 = vmatpush1.bf16.msra.mxu0 0
      %2501 = vmatprep.subr.bf16.mxu0 0
      %2502 = vmatpush1.bf16.msra.mxu0 0
      %2503 = vmatprep.subr.bf16.mxu0 0
      %2504 = vmatpush1.bf16.msra.mxu0 0
      %2505 = vmatprep.subr.bf16.mxu0 0
      %2506 = vmatpush1.bf16.msra.mxu0 0
      %2507 = vmatprep.subr.bf16.mxu0 0
      %2508 = vmatpush1.bf16.msra.mxu0 0
      %2509 = vmatprep.subr.bf16.mxu0 0
      %2510 = vmatpush1.bf16.msra.mxu0 0
      %2511 = vmatprep.subr.bf16.mxu0 0
      %2512 = vmatpush1.bf16.msra.mxu0 0
      %2513 = vmatprep.mubr.bf16.mxu0 0
      %2514 = vmatmul.mubr.bf16.gmra.mrb[0].mxu0 %v1614
      %v2515 = vpop.f32.mrb[0].mxu0
      %v2516 = vadd.f32 0.0, %v2515
      %v2517 = vpop.f32.mrb[0].mxu0
      %v2518 = vpop.f32.mrb[0].mxu0
      %v2519 = vadd.f32 0.0, %v2518
      %v2520 = vpop.f32.mrb[0].mxu0
      %2521 = vmatprep.mubr.bf16.mxu0 0
      %2522 = vmatmul.mubr.bf16.gmra.mrb[0].mxu0 %v1615
      %v2523 = vpop.f32.mrb[0].mxu0
      %v2524 = vadd.f32 0.0, %v2523
      %v2525 = vpop.f32.mrb[0].mxu0
      %v2526 = vpop.f32.mrb[0].mxu0
      %v2527 = vadd.f32 0.0, %v2526
      %v2528 = vpop.f32.mrb[0].mxu0
      %2529 = vmatprep.mubr.bf16.mxu0 0
      %2530 = vmatmul.mubr.bf16.gmra.mrb[0].mxu0 %v1616
      %v2531 = vpop.f32.mrb[0].mxu0
      %v2532 = vadd.f32 0.0, %v2531
      %v2533 = vpop.f32.mrb[0].mxu0
      %v2534 = vpop.f32.mrb[0].mxu0
      %v2535 = vadd.f32 0.0, %v2534
      %v2536 = vpop.f32.mrb[0].mxu0
      %2537 = vmatprep.mubr.bf16.mxu0 0
      %2538 = vmatmul.mubr.bf16.gmra.mrb[0].mxu0 %v1617
      %v2539 = vpop.f32.mrb[0].mxu0
      %v2540 = vadd.f32 0.0, %v2539
      %v2541 = vpop.f32.mrb[0].mxu0
      %v2542 = vpop.f32.mrb[0].mxu0
      %v2543 = vadd.f32 0.0, %v2542
      %v2544 = vpop.f32.mrb[0].mxu0
      %2545 = vmatprep.mubr.bf16.mxu0 0
      %2546 = vmatmul.mubr.bf16.gmra.mrb[0].mxu0 %v1618
      %v2547 = vpop.f32.mrb[0].mxu0
      %v2548 = vadd.f32 0.0, %v2547
      %v2549 = vpop.f32.mrb[0].mxu0
      %v2550 = vpop.f32.mrb[0].mxu0
      %v2551 = vadd.f32 0.0, %v2550
      %v2552 = vpop.f32.mrb[0].mxu0
      %2553 = vmatprep.mubr.bf16.mxu0 0
      %2554 = vmatmul.mubr.bf16.gmra.mrb[0].mxu0 %v1619
      %v2555 = vpop.f32.mrb[0].mxu0
      %v2556 = vadd.f32 0.0, %v2555
      %v2557 = vpop.f32.mrb[0].mxu0
      %v2558 = vpop.f32.mrb[0].mxu0
      %v2559 = vadd.f32 0.0, %v2558
      %v2560 = vpop.f32.mrb[0].mxu0
      %2561 = vmatprep.mubr.bf16.mxu0 0
      %2562 = vmatmul.mubr.bf16.gmra.mrb[0].mxu0 %v1620
      %v2563 = vpop.f32.mrb[0].mxu0
      %v2564 = vadd.f32 0.0, %v2563
      %v2565 = vpop.f32.mrb[0].mxu0
      %v2566 = vpop.f32.mrb[0].mxu0
      %v2567 = vadd.f32 0.0, %v2566
      %v2568 = vpop.f32.mrb[0].mxu0
      %2569 = vmatprep.mubr.bf16.mxu0 0
      %2570 = vmatmul.mubr.bf16.gmra.mrb[0].mxu0 %v1621
      %v2571 = vpop.f32.mrb[0].mxu0
      %v2572 = vadd.f32 0.0, %v2571
      %v2573 = vpop.f32.mrb[0].mxu0
      %v2574 = vpop.f32.mrb[0].mxu0
      %v2575 = vadd.f32 0.0, %v2574
      %v2576 = vpop.f32.mrb[0].mxu0
      %2577 = vmatprep.mubr.bf16.mxu0 0
      %2578 = vmatmul.mubr.bf16.gmra.mrb[0].mxu0 %v1622
      %v2579 = vpop.f32.mrb[0].mxu0
      %v2580 = vadd.f32 0.0, %v2579
      %v2581 = vpop.f32.mrb[0].mxu0
      %v2582 = vpop.f32.mrb[0].mxu0
      %v2583 = vadd.f32 0.0, %v2582
      %v2584 = vpop.f32.mrb[0].mxu0
      %2585 = vmatprep.mubr.bf16.mxu0 0
      %2586 = vmatmul.mubr.bf16.gmra.mrb[0].mxu0 %v1623
      %v2587 = vpop.f32.mrb[0].mxu0
      %v2588 = vadd.f32 0.0, %v2587
      %v2589 = vpop.f32.mrb[0].mxu0
      %v2590 = vpop.f32.mrb[0].mxu0
      %v2591 = vadd.f32 0.0, %v2590
      %v2592 = vpop.f32.mrb[0].mxu0
      %2593 = vmatprep.mubr.bf16.mxu0 0
      %2594 = vmatmul.mubr.bf16.gmra.mrb[0].mxu0 %v1624
      %v2595 = vpop.f32.mrb[0].mxu0
      %v2596 = vadd.f32 0.0, %v2595
      %v2597 = vpop.f32.mrb[0].mxu0
      %v2598 = vpop.f32.mrb[0].mxu0
      %v2599 = vadd.f32 0.0, %v2598
      %v2600 = vpop.f32.mrb[0].mxu0
      %2601 = vmatprep.mubr.bf16.mxu0 0
      %2602 = vmatmul.mubr.bf16.gmra.mrb[0].mxu0 %v1625
      %v2603 = vpop.f32.mrb[0].mxu0
      %v2604 = vadd.f32 0.0, %v2603
      %v2605 = vpop.f32.mrb[0].mxu0
      %v2606 = vpop.f32.mrb[0].mxu0
      %v2607 = vadd.f32 0.0, %v2606
      %v2608 = vpop.f32.mrb[0].mxu0
      %2609 = vmatprep.mubr.bf16.mxu0 0
      %2610 = vmatmul.mubr.bf16.gmra.mrb[0].mxu0 %v1626
      %v2611 = vpop.f32.mrb[0].mxu0
      %v2612 = vadd.f32 0.0, %v2611
      %v2613 = vpop.f32.mrb[0].mxu0
      %v2614 = vpop.f32.mrb[0].mxu0
      %v2615 = vadd.f32 0.0, %v2614
      %v2616 = vpop.f32.mrb[0].mxu0
      %2617 = vmatprep.mubr.bf16.mxu0 0
      %2618 = vmatmul.mubr.bf16.gmra.mrb[0].mxu0 %v1627
      %v2619 = vpop.f32.mrb[0].mxu0
      %v2620 = vadd.f32 0.0, %v2619
      %v2621 = vpop.f32.mrb[0].mxu0
      %v2622 = vpop.f32.mrb[0].mxu0
      %v2623 = vadd.f32 0.0, %v2622
      %v2624 = vpop.f32.mrb[0].mxu0
      %2625 = vmatprep.mubr.bf16.mxu0 0
      %2626 = vmatmul.mubr.bf16.gmra.mrb[0].mxu0 %v1628
      %v2627 = vpop.f32.mrb[0].mxu0
      %v2628 = vadd.f32 0.0, %v2627
      %v2629 = vpop.f32.mrb[0].mxu0
      %v2630 = vpop.f32.mrb[0].mxu0
      %v2631 = vadd.f32 0.0, %v2630
      %v2632 = vpop.f32.mrb[0].mxu0
      %2633 = vmatprep.mubr.bf16.mxu0 0
      %2634 = vmatmul.mubr.bf16.gmra.mrb[0].mxu0 %v2431
      %v2635 = vpop.f32.mrb[0].mxu0
      %v2636 = vadd.f32 0.0, %v2635
      %v2637 = vpop.f32.mrb[0].mxu0
      %v2638 = vpop.f32.mrb[0].mxu0
      %v2639 = vadd.f32 0.0, %v2638
      %v2640 = vpop.f32.mrb[0].mxu0
      %2641 = vdwg.mxu0
      %v2642 = vadd.f32 %v2380, %v2516
      %v2643 = vadd.f32 %v2381, %v2519
      %v2644 = vadd.f32 %v2382, %v2524
      %v2645 = vadd.f32 %v2383, %v2527
      %v2646 = vadd.f32 %v2384, %v2532
      %v2647 = vadd.f32 %v2385, %v2535
      %v2648 = vadd.f32 %v2386, %v2540
      %v2649 = vadd.f32 %v2387, %v2543
      %v2650 = vadd.f32 %v2388, %v2548
      %v2651 = vadd.f32 %v2389, %v2551
      %v2652 = vadd.f32 %v2390, %v2556
      %v2653 = vadd.f32 %v2391, %v2559
      %v2654 = vadd.f32 %v2392, %v2564
      %v2655 = vadd.f32 %v2393, %v2567
      %v2656 = vadd.f32 %v2394, %v2572
      %v2657 = vadd.f32 %v2395, %v2575
      %v2658 = vadd.f32 %v2396, %v2580
      %v2659 = vadd.f32 %v2397, %v2583
      %v2660 = vadd.f32 %v2398, %v2588
      %v2661 = vadd.f32 %v2399, %v2591
      %v2662 = vadd.f32 %v2400, %v2596
      %v2663 = vadd.f32 %v2401, %v2599
      %v2664 = vadd.f32 %v2402, %v2604
      %v2665 = vadd.f32 %v2403, %v2607
      %v2666 = vadd.f32 %v2404, %v2612
      %v2667 = vadd.f32 %v2405, %v2615
      %v2668 = vadd.f32 %v2406, %v2620
      %v2669 = vadd.f32 %v2407, %v2623
      %v2670 = vadd.f32 %v2408, %v2628
      %v2671 = vadd.f32 %v2409, %v2631
      %v2672 = vadd.f32 %v2410, %v2636
      %v2673 = vadd.f32 %v2411, %v2639
      %s2674 = scalar_lea.vmem %s1, 384
      %v2675 = vld [vmem:[%s2674] sm:$0xf]
      %v2676 = vld [vmem:[%s2674 + $0x4] sm:$0xf]
      %v2677 = vld [vmem:[%s2674 + $0x8] sm:$0xf]
      %v2678 = vld [vmem:[%s2674 + $0xc] sm:$0xf]
      %v2679 = vld [vmem:[%s2674 + $0x10] sm:$0xf]
      %v2680 = vld [vmem:[%s2674 + $0x14] sm:$0xf]
      %v2681 = vld [vmem:[%s2674 + $0x18] sm:$0xf]
      %v2682 = vld [vmem:[%s2674 + $0x1c] sm:$0xf]
      %v2683 = vld [vmem:[%s2674 + $0x20] sm:$0xf]
      %v2684 = vld [vmem:[%s2674 + $0x24] sm:$0xf]
      %v2685 = vld [vmem:[%s2674 + $0x28] sm:$0xf]
      %v2686 = vld [vmem:[%s2674 + $0x2c] sm:$0xf]
      %v2687 = vld [vmem:[%s2674 + $0x30] sm:$0xf]
      %v2688 = vld [vmem:[%s2674 + $0x34] sm:$0xf]
      %v2689 = vld [vmem:[%s2674 + $0x38] sm:$0xf]
      %v2690 = vld [vmem:[%s2674 + $0x3c] sm:$0xf]
      %v2693 = vunpack.c.l.b16 %v261
      %v2694 = vunpack.c.l.b16 %v262
      %v2695 = vpack.c.b16 %v2694, %v2693
      %v2713 = vunpack.c.l.b16 %v2675
      %v2714 = vunpack.c.l.b16 %v2676
      %v2715 = vunpack.c.l.b16 %v2677
      %v2716 = vunpack.c.l.b16 %v2678
      %v2717 = vunpack.c.l.b16 %v2679
      %v2718 = vunpack.c.l.b16 %v2680
      %v2719 = vunpack.c.l.b16 %v2681
      %v2720 = vunpack.c.l.b16 %v2682
      %v2721 = vunpack.c.l.b16 %v2683
      %v2722 = vunpack.c.l.b16 %v2684
      %v2723 = vunpack.c.l.b16 %v2685
      %v2724 = vunpack.c.l.b16 %v2686
      %v2725 = vunpack.c.l.b16 %v2687
      %v2726 = vunpack.c.l.b16 %v2688
      %v2727 = vunpack.c.l.b16 %v2689
      %v2728 = vunpack.c.l.b16 %v2690
      %v2729 = vpack.c.b16 %v2714, %v2713
      %v2730 = vpack.c.b16 %v2716, %v2715
      %v2731 = vpack.c.b16 %v2718, %v2717
      %v2732 = vpack.c.b16 %v2720, %v2719
      %v2733 = vpack.c.b16 %v2722, %v2721
      %v2734 = vpack.c.b16 %v2724, %v2723
      %v2735 = vpack.c.b16 %v2726, %v2725
      %v2736 = vpack.c.b16 %v2728, %v2727
      %2745 = vmatprep.subr.bf16.mxu0 0
      %2746 = vmatpush1.bf16.msra.mxu0 %v2729
      %2747 = vmatprep.subr.bf16.mxu0 0
      %2748 = vmatpush1.bf16.msra.mxu0 %v2730
      %2749 = vmatprep.subr.bf16.mxu0 0
      %2750 = vmatpush1.bf16.msra.mxu0 %v2731
      %2751 = vmatprep.subr.bf16.mxu0 0
      %2752 = vmatpush1.bf16.msra.mxu0 %v2732
      %2753 = vmatprep.subr.bf16.mxu0 0
      %2754 = vmatpush1.bf16.msra.mxu0 %v2733
      %2755 = vmatprep.subr.bf16.mxu0 0
      %2756 = vmatpush1.bf16.msra.mxu0 %v2734
      %2757 = vmatprep.subr.bf16.mxu0 0
      %2758 = vmatpush1.bf16.msra.mxu0 %v2735
      %2759 = vmatprep.subr.bf16.mxu0 0
      %2760 = vmatpush1.bf16.msra.mxu0 %v2736
      %2761 = vmatprep.subr.bf16.mxu0 0
      %2762 = vmatpush1.bf16.msra.mxu0 0
      %2763 = vmatprep.subr.bf16.mxu0 0
      %2764 = vmatpush1.bf16.msra.mxu0 0
      %2765 = vmatprep.subr.bf16.mxu0 0
      %2766 = vmatpush1.bf16.msra.mxu0 0
      %2767 = vmatprep.subr.bf16.mxu0 0
      %2768 = vmatpush1.bf16.msra.mxu0 0
      %2769 = vmatprep.subr.bf16.mxu0 0
      %2770 = vmatpush1.bf16.msra.mxu0 0
      %2771 = vmatprep.subr.bf16.mxu0 0
      %2772 = vmatpush1.bf16.msra.mxu0 0
      %2773 = vmatprep.subr.bf16.mxu0 0
      %2774 = vmatpush1.bf16.msra.mxu0 0
      %2775 = vmatprep.subr.bf16.mxu0 0
      %2776 = vmatpush1.bf16.msra.mxu0 0
      %2777 = vmatprep.mubr.bf16.mxu0 0
      %2778 = vmatmul.mubr.bf16.gmra.mrb[0].mxu0 %v1325
      %v2779 = vpop.f32.mrb[0].mxu0
      %v2780 = vadd.f32 0.0, %v2779
      %v2781 = vpop.f32.mrb[0].mxu0
      %v2782 = vpop.f32.mrb[0].mxu0
      %v2783 = vadd.f32 0.0, %v2782
      %v2784 = vpop.f32.mrb[0].mxu0
      %2785 = vmatprep.mubr.bf16.mxu0 0
      %2786 = vmatmul.mubr.bf16.gmra.mrb[0].mxu0 %v1326
      %v2787 = vpop.f32.mrb[0].mxu0
      %v2788 = vadd.f32 0.0, %v2787
      %v2789 = vpop.f32.mrb[0].mxu0
      %v2790 = vpop.f32.mrb[0].mxu0
      %v2791 = vadd.f32 0.0, %v2790
      %v2792 = vpop.f32.mrb[0].mxu0
      %2793 = vmatprep.mubr.bf16.mxu0 0
      %2794 = vmatmul.mubr.bf16.gmra.mrb[0].mxu0 %v1327
      %v2795 = vpop.f32.mrb[0].mxu0
      %v2796 = vadd.f32 0.0, %v2795
      %v2797 = vpop.f32.mrb[0].mxu0
      %v2798 = vpop.f32.mrb[0].mxu0
      %v2799 = vadd.f32 0.0, %v2798
      %v2800 = vpop.f32.mrb[0].mxu0
      %2801 = vmatprep.mubr.bf16.mxu0 0
      %2802 = vmatmul.mubr.bf16.gmra.mrb[0].mxu0 %v1328
      %v2803 = vpop.f32.mrb[0].mxu0
      %v2804 = vadd.f32 0.0, %v2803
      %v2805 = vpop.f32.mrb[0].mxu0
      %v2806 = vpop.f32.mrb[0].mxu0
      %v2807 = vadd.f32 0.0, %v2806
      %v2808 = vpop.f32.mrb[0].mxu0
      %2809 = vmatprep.mubr.bf16.mxu0 0
      %2810 = vmatmul.mubr.bf16.gmra.mrb[0].mxu0 %v1329
      %v2811 = vpop.f32.mrb[0].mxu0
      %v2812 = vadd.f32 0.0, %v2811
      %v2813 = vpop.f32.mrb[0].mxu0
      %v2814 = vpop.f32.mrb[0].mxu0
      %v2815 = vadd.f32 0.0, %v2814
      %v2816 = vpop.f32.mrb[0].mxu0
      %2817 = vmatprep.mubr.bf16.mxu0 0
      %2818 = vmatmul.mubr.bf16.gmra.mrb[0].mxu0 %v1330
      %v2819 = vpop.f32.mrb[0].mxu0
      %v2820 = vadd.f32 0.0, %v2819
      %v2821 = vpop.f32.mrb[0].mxu0
      %v2822 = vpop.f32.mrb[0].mxu0
      %v2823 = vadd.f32 0.0, %v2822
      %v2824 = vpop.f32.mrb[0].mxu0
      %2825 = vmatprep.mubr.bf16.mxu0 0
      %2826 = vmatmul.mubr.bf16.gmra.mrb[0].mxu0 %v1331
      %v2827 = vpop.f32.mrb[0].mxu0
      %v2828 = vadd.f32 0.0, %v2827
      %v2829 = vpop.f32.mrb[0].mxu0
      %v2830 = vpop.f32.mrb[0].mxu0
      %v2831 = vadd.f32 0.0, %v2830
      %v2832 = vpop.f32.mrb[0].mxu0
      %2833 = vmatprep.mubr.bf16.mxu0 0
      %2834 = vmatmul.mubr.bf16.gmra.mrb[0].mxu0 %v1332
      %v2835 = vpop.f32.mrb[0].mxu0
      %v2836 = vadd.f32 0.0, %v2835
      %v2837 = vpop.f32.mrb[0].mxu0
      %v2838 = vpop.f32.mrb[0].mxu0
      %v2839 = vadd.f32 0.0, %v2838
      %v2840 = vpop.f32.mrb[0].mxu0
      %2841 = vmatprep.mubr.bf16.mxu0 0
      %2842 = vmatmul.mubr.bf16.gmra.mrb[0].mxu0 %v1333
      %v2843 = vpop.f32.mrb[0].mxu0
      %v2844 = vadd.f32 0.0, %v2843
      %v2845 = vpop.f32.mrb[0].mxu0
      %v2846 = vpop.f32.mrb[0].mxu0
      %v2847 = vadd.f32 0.0, %v2846
      %v2848 = vpop.f32.mrb[0].mxu0
      %2849 = vmatprep.mubr.bf16.mxu0 0
      %2850 = vmatmul.mubr.bf16.gmra.mrb[0].mxu0 %v1334
      %v2851 = vpop.f32.mrb[0].mxu0
      %v2852 = vadd.f32 0.0, %v2851
      %v2853 = vpop.f32.mrb[0].mxu0
      %v2854 = vpop.f32.mrb[0].mxu0
      %v2855 = vadd.f32 0.0, %v2854
      %v2856 = vpop.f32.mrb[0].mxu0
      %2857 = vmatprep.mubr.bf16.mxu0 0
      %2858 = vmatmul.mubr.bf16.gmra.mrb[0].mxu0 %v1335
      %v2859 = vpop.f32.mrb[0].mxu0
      %v2860 = vadd.f32 0.0, %v2859
      %v2861 = vpop.f32.mrb[0].mxu0
      %v2862 = vpop.f32.mrb[0].mxu0
      %v2863 = vadd.f32 0.0, %v2862
      %v2864 = vpop.f32.mrb[0].mxu0
      %2865 = vmatprep.mubr.bf16.mxu0 0
      %2866 = vmatmul.mubr.bf16.gmra.mrb[0].mxu0 %v1336
      %v2867 = vpop.f32.mrb[0].mxu0
      %v2868 = vadd.f32 0.0, %v2867
      %v2869 = vpop.f32.mrb[0].mxu0
      %v2870 = vpop.f32.mrb[0].mxu0
      %v2871 = vadd.f32 0.0, %v2870
      %v2872 = vpop.f32.mrb[0].mxu0
      %2873 = vmatprep.mubr.bf16.mxu0 0
      %2874 = vmatmul.mubr.bf16.gmra.mrb[0].mxu0 %v1337
      %v2875 = vpop.f32.mrb[0].mxu0
      %v2876 = vadd.f32 0.0, %v2875
      %v2877 = vpop.f32.mrb[0].mxu0
      %v2878 = vpop.f32.mrb[0].mxu0
      %v2879 = vadd.f32 0.0, %v2878
      %v2880 = vpop.f32.mrb[0].mxu0
      %2881 = vmatprep.mubr.bf16.mxu0 0
      %2882 = vmatmul.mubr.bf16.gmra.mrb[0].mxu0 %v1338
      %v2883 = vpop.f32.mrb[0].mxu0
      %v2884 = vadd.f32 0.0, %v2883
      %v2885 = vpop.f32.mrb[0].mxu0
      %v2886 = vpop.f32.mrb[0].mxu0
      %v2887 = vadd.f32 0.0, %v2886
      %v2888 = vpop.f32.mrb[0].mxu0
      %2889 = vmatprep.mubr.bf16.mxu0 0
      %2890 = vmatmul.mubr.bf16.gmra.mrb[0].mxu0 %v1907
      %v2891 = vpop.f32.mrb[0].mxu0
      %v2892 = vadd.f32 0.0, %v2891
      %v2893 = vpop.f32.mrb[0].mxu0
      %v2894 = vpop.f32.mrb[0].mxu0
      %v2895 = vadd.f32 0.0, %v2894
      %v2896 = vpop.f32.mrb[0].mxu0
      %2897 = vmatprep.mubr.bf16.mxu0 0
      %2898 = vmatmul.mubr.bf16.gmra.mrb[0].mxu0 %v2695
      %v2899 = vpop.f32.mrb[0].mxu0
      %v2900 = vadd.f32 0.0, %v2899
      %v2901 = vpop.f32.mrb[0].mxu0
      %v2902 = vpop.f32.mrb[0].mxu0
      %v2903 = vadd.f32 0.0, %v2902
      %v2904 = vpop.f32.mrb[0].mxu0
      %2905 = vdwg.mxu0
      %v2906 = vadd.f32 %v2642, %v2780
      %v2907 = vadd.f32 %v2643, %v2783
      %v2908 = vadd.f32 %v2644, %v2788
      %v2909 = vadd.f32 %v2645, %v2791
      %v2910 = vadd.f32 %v2646, %v2796
      %v2911 = vadd.f32 %v2647, %v2799
      %v2912 = vadd.f32 %v2648, %v2804
      %v2913 = vadd.f32 %v2649, %v2807
      %v2914 = vadd.f32 %v2650, %v2812
      %v2915 = vadd.f32 %v2651, %v2815
      %v2916 = vadd.f32 %v2652, %v2820
      %v2917 = vadd.f32 %v2653, %v2823
      %v2918 = vadd.f32 %v2654, %v2828
      %v2919 = vadd.f32 %v2655, %v2831
      %v2920 = vadd.f32 %v2656, %v2836
      %v2921 = vadd.f32 %v2657, %v2839
      %v2922 = vadd.f32 %v2658, %v2844
      %v2923 = vadd.f32 %v2659, %v2847
      %v2924 = vadd.f32 %v2660, %v2852
      %v2925 = vadd.f32 %v2661, %v2855
      %v2926 = vadd.f32 %v2662, %v2860
      %v2927 = vadd.f32 %v2663, %v2863
      %v2928 = vadd.f32 %v2664, %v2868
      %v2929 = vadd.f32 %v2665, %v2871
      %v2930 = vadd.f32 %v2666, %v2876
      %v2931 = vadd.f32 %v2667, %v2879
      %v2932 = vadd.f32 %v2668, %v2884
      %v2933 = vadd.f32 %v2669, %v2887
      %v2934 = vadd.f32 %v2670, %v2892
      %v2935 = vadd.f32 %v2671, %v2895
      %v2936 = vadd.f32 %v2672, %v2900
      %v2937 = vadd.f32 %v2673, %v2903
      %s2938 = scalar_lea.vmem %s1, 448
      %v2939 = vld [vmem:[%s2938] sm:$0xf]
      %v2940 = vld [vmem:[%s2938 + $0x4] sm:$0xf]
      %v2941 = vld [vmem:[%s2938 + $0x8] sm:$0xf]
      %v2942 = vld [vmem:[%s2938 + $0xc] sm:$0xf]
      %v2943 = vld [vmem:[%s2938 + $0x10] sm:$0xf]
      %v2944 = vld [vmem:[%s2938 + $0x14] sm:$0xf]
      %v2945 = vld [vmem:[%s2938 + $0x18] sm:$0xf]
      %v2946 = vld [vmem:[%s2938 + $0x1c] sm:$0xf]
      %v2947 = vld [vmem:[%s2938 + $0x20] sm:$0xf]
      %v2948 = vld [vmem:[%s2938 + $0x24] sm:$0xf]
      %v2949 = vld [vmem:[%s2938 + $0x28] sm:$0xf]
      %v2950 = vld [vmem:[%s2938 + $0x2c] sm:$0xf]
      %v2951 = vld [vmem:[%s2938 + $0x30] sm:$0xf]
      %v2952 = vld [vmem:[%s2938 + $0x34] sm:$0xf]
      %v2953 = vld [vmem:[%s2938 + $0x38] sm:$0xf]
      %v2954 = vld [vmem:[%s2938 + $0x3c] sm:$0xf]
      %v2955 = vunpack.c.l.b16 %v741
      %v2956 = vunpack.c.l.b16 %v751
      %v2957 = vpack.c.b16 %v2956, %v2955
      %v2975 = vunpack.c.l.b16 %v2939
      %v2976 = vunpack.c.l.b16 %v2940
      %v2977 = vunpack.c.l.b16 %v2941
      %v2978 = vunpack.c.l.b16 %v2942
      %v2979 = vunpack.c.l.b16 %v2943
      %v2980 = vunpack.c.l.b16 %v2944
      %v2981 = vunpack.c.l.b16 %v2945
      %v2982 = vunpack.c.l.b16 %v2946
      %v2983 = vunpack.c.l.b16 %v2947
      %v2984 = vunpack.c.l.b16 %v2948
      %v2985 = vunpack.c.l.b16 %v2949
      %v2986 = vunpack.c.l.b16 %v2950
      %v2987 = vunpack.c.l.b16 %v2951
      %v2988 = vunpack.c.l.b16 %v2952
      %v2989 = vunpack.c.l.b16 %v2953
      %v2990 = vunpack.c.l.b16 %v2954
      %v2991 = vpack.c.b16 %v2976, %v2975
      %v2992 = vpack.c.b16 %v2978, %v2977
      %v2993 = vpack.c.b16 %v2980, %v2979
      %v2994 = vpack.c.b16 %v2982, %v2981
      %v2995 = vpack.c.b16 %v2984, %v2983
      %v2996 = vpack.c.b16 %v2986, %v2985
      %v2997 = vpack.c.b16 %v2988, %v2987
      %v2998 = vpack.c.b16 %v2990, %v2989
      %3007 = vmatprep.subr.bf16.mxu0 0
      %3008 = vmatpush1.bf16.msra.mxu0 %v2991
      %3009 = vmatprep.subr.bf16.mxu0 0
      %3010 = vmatpush1.bf16.msra.mxu0 %v2992
      %3011 = vmatprep.subr.bf16.mxu0 0
      %3012 = vmatpush1.bf16.msra.mxu0 %v2993
      %3013 = vmatprep.subr.bf16.mxu0 0
      %3014 = vmatpush1.bf16.msra.mxu0 %v2994
      %3015 = vmatprep.subr.bf16.mxu0 0
      %3016 = vmatpush1.bf16.msra.mxu0 %v2995
      %3017 = vmatprep.subr.bf16.mxu0 0
      %3018 = vmatpush1.bf16.msra.mxu0 %v2996
      %3019 = vmatprep.subr.bf16.mxu0 0
      %3020 = vmatpush1.bf16.msra.mxu0 %v2997
      %3021 = vmatprep.subr.bf16.mxu0 0
      %3022 = vmatpush1.bf16.msra.mxu0 %v2998
      %3023 = vmatprep.subr.bf16.mxu0 0
      %3024 = vmatpush1.bf16.msra.mxu0 0
      %3025 = vmatprep.subr.bf16.mxu0 0
      %3026 = vmatpush1.bf16.msra.mxu0 0
      %3027 = vmatprep.subr.bf16.mxu0 0
      %3028 = vmatpush1.bf16.msra.mxu0 0
      %3029 = vmatprep.subr.bf16.mxu0 0
      %3030 = vmatpush1.bf16.msra.mxu0 0
      %3031 = vmatprep.subr.bf16.mxu0 0
      %3032 = vmatpush1.bf16.msra.mxu0 0
      %3033 = vmatprep.subr.bf16.mxu0 0
      %3034 = vmatpush1.bf16.msra.mxu0 0
      %3035 = vmatprep.subr.bf16.mxu0 0
      %3036 = vmatpush1.bf16.msra.mxu0 0
      %3037 = vmatprep.subr.bf16.mxu0 0
      %3038 = vmatpush1.bf16.msra.mxu0 0
      %3039 = vmatprep.mubr.bf16.mxu0 0
      %3040 = vmatmul.mubr.bf16.gmra.mrb[0].mxu0 %v1020
      %v3041 = vpop.f32.mrb[0].mxu0
      %v3042 = vadd.f32 0.0, %v3041
      %v3043 = vpop.f32.mrb[0].mxu0
      %v3044 = vpop.f32.mrb[0].mxu0
      %v3045 = vadd.f32 0.0, %v3044
      %v3046 = vpop.f32.mrb[0].mxu0
      %3047 = vmatprep.mubr.bf16.mxu0 0
      %3048 = vmatmul.mubr.bf16.gmra.mrb[0].mxu0 %v1021
      %v3049 = vpop.f32.mrb[0].mxu0
      %v3050 = vadd.f32 0.0, %v3049
      %v3051 = vpop.f32.mrb[0].mxu0
      %v3052 = vpop.f32.mrb[0].mxu0
      %v3053 = vadd.f32 0.0, %v3052
      %v3054 = vpop.f32.mrb[0].mxu0
      %3055 = vmatprep.mubr.bf16.mxu0 0
      %3056 = vmatmul.mubr.bf16.gmra.mrb[0].mxu0 %v1022
      %v3057 = vpop.f32.mrb[0].mxu0
      %v3058 = vadd.f32 0.0, %v3057
      %v3059 = vpop.f32.mrb[0].mxu0
      %v3060 = vpop.f32.mrb[0].mxu0
      %v3061 = vadd.f32 0.0, %v3060
      %v3062 = vpop.f32.mrb[0].mxu0
      %3063 = vmatprep.mubr.bf16.mxu0 0
      %3064 = vmatmul.mubr.bf16.gmra.mrb[0].mxu0 %v1023
      %v3065 = vpop.f32.mrb[0].mxu0
      %v3066 = vadd.f32 0.0, %v3065
      %v3067 = vpop.f32.mrb[0].mxu0
      %v3068 = vpop.f32.mrb[0].mxu0
      %v3069 = vadd.f32 0.0, %v3068
      %v3070 = vpop.f32.mrb[0].mxu0
      %3071 = vmatprep.mubr.bf16.mxu0 0
      %3072 = vmatmul.mubr.bf16.gmra.mrb[0].mxu0 %v1024
      %v3073 = vpop.f32.mrb[0].mxu0
      %v3074 = vadd.f32 0.0, %v3073
      %v3075 = vpop.f32.mrb[0].mxu0
      %v3076 = vpop.f32.mrb[0].mxu0
      %v3077 = vadd.f32 0.0, %v3076
      %v3078 = vpop.f32.mrb[0].mxu0
      %3079 = vmatprep.mubr.bf16.mxu0 0
      %3080 = vmatmul.mubr.bf16.gmra.mrb[0].mxu0 %v1025
      %v3081 = vpop.f32.mrb[0].mxu0
      %v3082 = vadd.f32 0.0, %v3081
      %v3083 = vpop.f32.mrb[0].mxu0
      %v3084 = vpop.f32.mrb[0].mxu0
      %v3085 = vadd.f32 0.0, %v3084
      %v3086 = vpop.f32.mrb[0].mxu0
      %3087 = vmatprep.mubr.bf16.mxu0 0
      %3088 = vmatmul.mubr.bf16.gmra.mrb[0].mxu0 %v1026
      %v3089 = vpop.f32.mrb[0].mxu0
      %v3090 = vadd.f32 0.0, %v3089
      %v3091 = vpop.f32.mrb[0].mxu0
      %v3092 = vpop.f32.mrb[0].mxu0
      %v3093 = vadd.f32 0.0, %v3092
      %v3094 = vpop.f32.mrb[0].mxu0
      %3095 = vmatprep.mubr.bf16.mxu0 0
      %3096 = vmatmul.mubr.bf16.gmra.mrb[0].mxu0 %v1027
      %v3097 = vpop.f32.mrb[0].mxu0
      %v3098 = vadd.f32 0.0, %v3097
      %v3099 = vpop.f32.mrb[0].mxu0
      %v3100 = vpop.f32.mrb[0].mxu0
      %v3101 = vadd.f32 0.0, %v3100
      %v3102 = vpop.f32.mrb[0].mxu0
      %3103 = vmatprep.mubr.bf16.mxu0 0
      %3104 = vmatmul.mubr.bf16.gmra.mrb[0].mxu0 %v1028
      %v3105 = vpop.f32.mrb[0].mxu0
      %v3106 = vadd.f32 0.0, %v3105
      %v3107 = vpop.f32.mrb[0].mxu0
      %v3108 = vpop.f32.mrb[0].mxu0
      %v3109 = vadd.f32 0.0, %v3108
      %v3110 = vpop.f32.mrb[0].mxu0
      %3111 = vmatprep.mubr.bf16.mxu0 0
      %3112 = vmatmul.mubr.bf16.gmra.mrb[0].mxu0 %v1029
      %v3113 = vpop.f32.mrb[0].mxu0
      %v3114 = vadd.f32 0.0, %v3113
      %v3115 = vpop.f32.mrb[0].mxu0
      %v3116 = vpop.f32.mrb[0].mxu0
      %v3117 = vadd.f32 0.0, %v3116
      %v3118 = vpop.f32.mrb[0].mxu0
      %3119 = vmatprep.mubr.bf16.mxu0 0
      %3120 = vmatmul.mubr.bf16.gmra.mrb[0].mxu0 %v1030
      %v3121 = vpop.f32.mrb[0].mxu0
      %v3122 = vadd.f32 0.0, %v3121
      %v3123 = vpop.f32.mrb[0].mxu0
      %v3124 = vpop.f32.mrb[0].mxu0
      %v3125 = vadd.f32 0.0, %v3124
      %v3126 = vpop.f32.mrb[0].mxu0
      %3127 = vmatprep.mubr.bf16.mxu0 0
      %3128 = vmatmul.mubr.bf16.gmra.mrb[0].mxu0 %v1031
      %v3129 = vpop.f32.mrb[0].mxu0
      %v3130 = vadd.f32 0.0, %v3129
      %v3131 = vpop.f32.mrb[0].mxu0
      %v3132 = vpop.f32.mrb[0].mxu0
      %v3133 = vadd.f32 0.0, %v3132
      %v3134 = vpop.f32.mrb[0].mxu0
      %3135 = vmatprep.mubr.bf16.mxu0 0
      %3136 = vmatmul.mubr.bf16.gmra.mrb[0].mxu0 %v1032
      %v3137 = vpop.f32.mrb[0].mxu0
      %v3138 = vadd.f32 0.0, %v3137
      %v3139 = vpop.f32.mrb[0].mxu0
      %v3140 = vpop.f32.mrb[0].mxu0
      %v3141 = vadd.f32 0.0, %v3140
      %v3142 = vpop.f32.mrb[0].mxu0
      %3143 = vmatprep.mubr.bf16.mxu0 0
      %3144 = vmatmul.mubr.bf16.gmra.mrb[0].mxu0 %v1033
      %v3145 = vpop.f32.mrb[0].mxu0
      %v3146 = vadd.f32 0.0, %v3145
      %v3147 = vpop.f32.mrb[0].mxu0
      %v3148 = vpop.f32.mrb[0].mxu0
      %v3149 = vadd.f32 0.0, %v3148
      %v3150 = vpop.f32.mrb[0].mxu0
      %3151 = vmatprep.mubr.bf16.mxu0 0
      %3152 = vmatmul.mubr.bf16.gmra.mrb[0].mxu0 %v2169
      %v3153 = vpop.f32.mrb[0].mxu0
      %v3154 = vadd.f32 0.0, %v3153
      %v3155 = vpop.f32.mrb[0].mxu0
      %v3156 = vpop.f32.mrb[0].mxu0
      %v3157 = vadd.f32 0.0, %v3156
      %v3158 = vpop.f32.mrb[0].mxu0
      %3159 = vmatprep.mubr.bf16.mxu0 0
      %3160 = vmatmul.mubr.bf16.gmra.mrb[0].mxu0 %v2957
      %v3161 = vpop.f32.mrb[0].mxu0
      %v3162 = vadd.f32 0.0, %v3161
      %v3163 = vpop.f32.mrb[0].mxu0
      %v3164 = vpop.f32.mrb[0].mxu0
      %v3165 = vadd.f32 0.0, %v3164
      %v3166 = vpop.f32.mrb[0].mxu0
      %3167 = vdwg.mxu0
      %v3168 = vadd.f32 %v2906, %v3042
      %v3169 = vadd.f32 %v2907, %v3045
      %v3170 = vadd.f32 %v2908, %v3050
      %v3171 = vadd.f32 %v2909, %v3053
      %v3172 = vadd.f32 %v2910, %v3058
      %v3173 = vadd.f32 %v2911, %v3061
      %v3174 = vadd.f32 %v2912, %v3066
      %v3175 = vadd.f32 %v2913, %v3069
      %v3176 = vadd.f32 %v2914, %v3074
      %v3177 = vadd.f32 %v2915, %v3077
      %v3178 = vadd.f32 %v2916, %v3082
      %v3179 = vadd.f32 %v2917, %v3085
      %v3180 = vadd.f32 %v2918, %v3090
      %v3181 = vadd.f32 %v2919, %v3093
      %v3182 = vadd.f32 %v2920, %v3098
      %v3183 = vadd.f32 %v2921, %v3101
      %v3184 = vadd.f32 %v2922, %v3106
      %v3185 = vadd.f32 %v2923, %v3109
      %v3186 = vadd.f32 %v2924, %v3114
      %v3187 = vadd.f32 %v2925, %v3117
      %v3188 = vadd.f32 %v2926, %v3122
      %v3189 = vadd.f32 %v2927, %v3125
      %v3190 = vadd.f32 %v2928, %v3130
      %v3191 = vadd.f32 %v2929, %v3133
      %v3192 = vadd.f32 %v2930, %v3138
      %v3193 = vadd.f32 %v2931, %v3141
      %v3194 = vadd.f32 %v2932, %v3146
      %v3195 = vadd.f32 %v2933, %v3149
      %v3196 = vadd.f32 %v2934, %v3154
      %v3197 = vadd.f32 %v2935, %v3157
      %v3198 = vadd.f32 %v2936, %v3162
      %v3199 = vadd.f32 %v2937, %v3165
      %s3200 = scalar_lea.vmem %s1, 512
      %v3201 = vld [vmem:[%s3200] sm:$0xf]
      %v3202 = vld [vmem:[%s3200 + $0x4] sm:$0xf]
      %v3203 = vld [vmem:[%s3200 + $0x8] sm:$0xf]
      %v3204 = vld [vmem:[%s3200 + $0xc] sm:$0xf]
      %v3205 = vld [vmem:[%s3200 + $0x10] sm:$0xf]
      %v3206 = vld [vmem:[%s3200 + $0x14] sm:$0xf]
      %v3207 = vld [vmem:[%s3200 + $0x18] sm:$0xf]
      %v3208 = vld [vmem:[%s3200 + $0x1c] sm:$0xf]
      %v3209 = vld [vmem:[%s3200 + $0x20] sm:$0xf]
      %v3210 = vld [vmem:[%s3200 + $0x24] sm:$0xf]
      %v3211 = vld [vmem:[%s3200 + $0x28] sm:$0xf]
      %v3212 = vld [vmem:[%s3200 + $0x2c] sm:$0xf]
      %v3213 = vld [vmem:[%s3200 + $0x30] sm:$0xf]
      %v3214 = vld [vmem:[%s3200 + $0x34] sm:$0xf]
      %v3215 = vld [vmem:[%s3200 + $0x38] sm:$0xf]
      %v3216 = vld [vmem:[%s3200 + $0x3c] sm:$0xf]
      %v3217 = vunpack.c.l.b16 %v949
      %v3218 = vunpack.c.l.b16 %v952
      %v3219 = vpack.c.b16 %v3218, %v3217
      %v3237 = vunpack.c.l.b16 %v3201
      %v3238 = vunpack.c.l.b16 %v3202
      %v3239 = vunpack.c.l.b16 %v3203
      %v3240 = vunpack.c.l.b16 %v3204
      %v3241 = vunpack.c.l.b16 %v3205
      %v3242 = vunpack.c.l.b16 %v3206
      %v3243 = vunpack.c.l.b16 %v3207
      %v3244 = vunpack.c.l.b16 %v3208
      %v3245 = vunpack.c.l.b16 %v3209
      %v3246 = vunpack.c.l.b16 %v3210
      %v3247 = vunpack.c.l.b16 %v3211
      %v3248 = vunpack.c.l.b16 %v3212
      %v3249 = vunpack.c.l.b16 %v3213
      %v3250 = vunpack.c.l.b16 %v3214
      %v3251 = vunpack.c.l.b16 %v3215
      %v3252 = vunpack.c.l.b16 %v3216
      %v3253 = vpack.c.b16 %v3238, %v3237
      %v3254 = vpack.c.b16 %v3240, %v3239
      %v3255 = vpack.c.b16 %v3242, %v3241
      %v3256 = vpack.c.b16 %v3244, %v3243
      %v3257 = vpack.c.b16 %v3246, %v3245
      %v3258 = vpack.c.b16 %v3248, %v3247
      %v3259 = vpack.c.b16 %v3250, %v3249
      %v3260 = vpack.c.b16 %v3252, %v3251
      %3269 = vmatprep.subr.bf16.mxu0 0
      %3270 = vmatpush1.bf16.msra.mxu0 %v3253
      %3271 = vmatprep.subr.bf16.mxu0 0
      %3272 = vmatpush1.bf16.msra.mxu0 %v3254
      %3273 = vmatprep.subr.bf16.mxu0 0
      %3274 = vmatpush1.bf16.msra.mxu0 %v3255
      %3275 = vmatprep.subr.bf16.mxu0 0
      %3276 = vmatpush1.bf16.msra.mxu0 %v3256
      %3277 = vmatprep.subr.bf16.mxu0 0
      %3278 = vmatpush1.bf16.msra.mxu0 %v3257
      %3279 = vmatprep.subr.bf16.mxu0 0
      %3280 = vmatpush1.bf16.msra.mxu0 %v3258
      %3281 = vmatprep.subr.bf16.mxu0 0
      %3282 = vmatpush1.bf16.msra.mxu0 %v3259
      %3283 = vmatprep.subr.bf16.mxu0 0
      %3284 = vmatpush1.bf16.msra.mxu0 %v3260
      %3285 = vmatprep.subr.bf16.mxu0 0
      %3286 = vmatpush1.bf16.msra.mxu0 0
      %3287 = vmatprep.subr.bf16.mxu0 0
      %3288 = vmatpush1.bf16.msra.mxu0 0
      %3289 = vmatprep.subr.bf16.mxu0 0
      %3290 = vmatpush1.bf16.msra.mxu0 0
      %3291 = vmatprep.subr.bf16.mxu0 0
      %3292 = vmatpush1.bf16.msra.mxu0 0
      %3293 = vmatprep.subr.bf16.mxu0 0
      %3294 = vmatpush1.bf16.msra.mxu0 0
      %3295 = vmatprep.subr.bf16.mxu0 0
      %3296 = vmatpush1.bf16.msra.mxu0 0
      %3297 = vmatprep.subr.bf16.mxu0 0
      %3298 = vmatpush1.bf16.msra.mxu0 0
      %3299 = vmatprep.subr.bf16.mxu0 0
      %3300 = vmatpush1.bf16.msra.mxu0 0
      %3301 = vmatprep.mubr.bf16.mxu0 0
      %3302 = vmatmul.mubr.bf16.gmra.mrb[0].mxu0 %v1615
      %v3303 = vpop.f32.mrb[0].mxu0
      %v3304 = vadd.f32 0.0, %v3303
      %v3305 = vpop.f32.mrb[0].mxu0
      %v3306 = vpop.f32.mrb[0].mxu0
      %v3307 = vadd.f32 0.0, %v3306
      %v3308 = vpop.f32.mrb[0].mxu0
      %3309 = vmatprep.mubr.bf16.mxu0 0
      %3310 = vmatmul.mubr.bf16.gmra.mrb[0].mxu0 %v1616
      %v3311 = vpop.f32.mrb[0].mxu0
      %v3312 = vadd.f32 0.0, %v3311
      %v3313 = vpop.f32.mrb[0].mxu0
      %v3314 = vpop.f32.mrb[0].mxu0
      %v3315 = vadd.f32 0.0, %v3314
      %v3316 = vpop.f32.mrb[0].mxu0
      %3317 = vmatprep.mubr.bf16.mxu0 0
      %3318 = vmatmul.mubr.bf16.gmra.mrb[0].mxu0 %v1617
      %v3319 = vpop.f32.mrb[0].mxu0
      %v3320 = vadd.f32 0.0, %v3319
      %v3321 = vpop.f32.mrb[0].mxu0
      %v3322 = vpop.f32.mrb[0].mxu0
      %v3323 = vadd.f32 0.0, %v3322
      %v3324 = vpop.f32.mrb[0].mxu0
      %3325 = vmatprep.mubr.bf16.mxu0 0
      %3326 = vmatmul.mubr.bf16.gmra.mrb[0].mxu0 %v1618
      %v3327 = vpop.f32.mrb[0].mxu0
      %v3328 = vadd.f32 0.0, %v3327
      %v3329 = vpop.f32.mrb[0].mxu0
      %v3330 = vpop.f32.mrb[0].mxu0
      %v3331 = vadd.f32 0.0, %v3330
      %v3332 = vpop.f32.mrb[0].mxu0
      %3333 = vmatprep.mubr.bf16.mxu0 0
      %3334 = vmatmul.mubr.bf16.gmra.mrb[0].mxu0 %v1619
      %v3335 = vpop.f32.mrb[0].mxu0
      %v3336 = vadd.f32 0.0, %v3335
      %v3337 = vpop.f32.mrb[0].mxu0
      %v3338 = vpop.f32.mrb[0].mxu0
      %v3339 = vadd.f32 0.0, %v3338
      %v3340 = vpop.f32.mrb[0].mxu0
      %3341 = vmatprep.mubr.bf16.mxu0 0
      %3342 = vmatmul.mubr.bf16.gmra.mrb[0].mxu0 %v1620
      %v3343 = vpop.f32.mrb[0].mxu0
      %v3344 = vadd.f32 0.0, %v3343
      %v3345 = vpop.f32.mrb[0].mxu0
      %v3346 = vpop.f32.mrb[0].mxu0
      %v3347 = vadd.f32 0.0, %v3346
      %v3348 = vpop.f32.mrb[0].mxu0
      %3349 = vmatprep.mubr.bf16.mxu0 0
      %3350 = vmatmul.mubr.bf16.gmra.mrb[0].mxu0 %v1621
      %v3351 = vpop.f32.mrb[0].mxu0
      %v3352 = vadd.f32 0.0, %v3351
      %v3353 = vpop.f32.mrb[0].mxu0
      %v3354 = vpop.f32.mrb[0].mxu0
      %v3355 = vadd.f32 0.0, %v3354
      %v3356 = vpop.f32.mrb[0].mxu0
      %3357 = vmatprep.mubr.bf16.mxu0 0
      %3358 = vmatmul.mubr.bf16.gmra.mrb[0].mxu0 %v1622
      %v3359 = vpop.f32.mrb[0].mxu0
      %v3360 = vadd.f32 0.0, %v3359
      %v3361 = vpop.f32.mrb[0].mxu0
      %v3362 = vpop.f32.mrb[0].mxu0
      %v3363 = vadd.f32 0.0, %v3362
      %v3364 = vpop.f32.mrb[0].mxu0
      %3365 = vmatprep.mubr.bf16.mxu0 0
      %3366 = vmatmul.mubr.bf16.gmra.mrb[0].mxu0 %v1623
      %v3367 = vpop.f32.mrb[0].mxu0
      %v3368 = vadd.f32 0.0, %v3367
      %v3369 = vpop.f32.mrb[0].mxu0
      %v3370 = vpop.f32.mrb[0].mxu0
      %v3371 = vadd.f32 0.0, %v3370
      %v3372 = vpop.f32.mrb[0].mxu0
      %3373 = vmatprep.mubr.bf16.mxu0 0
      %3374 = vmatmul.mubr.bf16.gmra.mrb[0].mxu0 %v1624
      %v3375 = vpop.f32.mrb[0].mxu0
      %v3376 = vadd.f32 0.0, %v3375
      %v3377 = vpop.f32.mrb[0].mxu0
      %v3378 = vpop.f32.mrb[0].mxu0
      %v3379 = vadd.f32 0.0, %v3378
      %v3380 = vpop.f32.mrb[0].mxu0
      %3381 = vmatprep.mubr.bf16.mxu0 0
      %3382 = vmatmul.mubr.bf16.gmra.mrb[0].mxu0 %v1625
      %v3383 = vpop.f32.mrb[0].mxu0
      %v3384 = vadd.f32 0.0, %v3383
      %v3385 = vpop.f32.mrb[0].mxu0
      %v3386 = vpop.f32.mrb[0].mxu0
      %v3387 = vadd.f32 0.0, %v3386
      %v3388 = vpop.f32.mrb[0].mxu0
      %3389 = vmatprep.mubr.bf16.mxu0 0
      %3390 = vmatmul.mubr.bf16.gmra.mrb[0].mxu0 %v1626
      %v3391 = vpop.f32.mrb[0].mxu0
      %v3392 = vadd.f32 0.0, %v3391
      %v3393 = vpop.f32.mrb[0].mxu0
      %v3394 = vpop.f32.mrb[0].mxu0
      %v3395 = vadd.f32 0.0, %v3394
      %v3396 = vpop.f32.mrb[0].mxu0
      %3397 = vmatprep.mubr.bf16.mxu0 0
      %3398 = vmatmul.mubr.bf16.gmra.mrb[0].mxu0 %v1627
      %v3399 = vpop.f32.mrb[0].mxu0
      %v3400 = vadd.f32 0.0, %v3399
      %v3401 = vpop.f32.mrb[0].mxu0
      %v3402 = vpop.f32.mrb[0].mxu0
      %v3403 = vadd.f32 0.0, %v3402
      %v3404 = vpop.f32.mrb[0].mxu0
      %3405 = vmatprep.mubr.bf16.mxu0 0
      %3406 = vmatmul.mubr.bf16.gmra.mrb[0].mxu0 %v1628
      %v3407 = vpop.f32.mrb[0].mxu0
      %v3408 = vadd.f32 0.0, %v3407
      %v3409 = vpop.f32.mrb[0].mxu0
      %v3410 = vpop.f32.mrb[0].mxu0
      %v3411 = vadd.f32 0.0, %v3410
      %v3412 = vpop.f32.mrb[0].mxu0
      %3413 = vmatprep.mubr.bf16.mxu0 0
      %3414 = vmatmul.mubr.bf16.gmra.mrb[0].mxu0 %v2431
      %v3415 = vpop.f32.mrb[0].mxu0
      %v3416 = vadd.f32 0.0, %v3415
      %v3417 = vpop.f32.mrb[0].mxu0
      %v3418 = vpop.f32.mrb[0].mxu0
      %v3419 = vadd.f32 0.0, %v3418
      %v3420 = vpop.f32.mrb[0].mxu0
      %3421 = vmatprep.mubr.bf16.mxu0 0
      %3422 = vmatmul.mubr.bf16.gmra.mrb[0].mxu0 %v3219
      %v3423 = vpop.f32.mrb[0].mxu0
      %v3424 = vadd.f32 0.0, %v3423
      %v3425 = vpop.f32.mrb[0].mxu0
      %v3426 = vpop.f32.mrb[0].mxu0
      %v3427 = vadd.f32 0.0, %v3426
      %v3428 = vpop.f32.mrb[0].mxu0
      %3429 = vdwg.mxu0
      %v3430 = vadd.f32 %v3168, %v3304
      %v3431 = vadd.f32 %v3169, %v3307
      %v3432 = vadd.f32 %v3170, %v3312
      %v3433 = vadd.f32 %v3171, %v3315
      %v3434 = vadd.f32 %v3172, %v3320
      %v3435 = vadd.f32 %v3173, %v3323
      %v3436 = vadd.f32 %v3174, %v3328
      %v3437 = vadd.f32 %v3175, %v3331
      %v3438 = vadd.f32 %v3176, %v3336
      %v3439 = vadd.f32 %v3177, %v3339
      %v3440 = vadd.f32 %v3178, %v3344
      %v3441 = vadd.f32 %v3179, %v3347
      %v3442 = vadd.f32 %v3180, %v3352
      %v3443 = vadd.f32 %v3181, %v3355
      %v3444 = vadd.f32 %v3182, %v3360
      %v3445 = vadd.f32 %v3183, %v3363
      %v3446 = vadd.f32 %v3184, %v3368
      %v3447 = vadd.f32 %v3185, %v3371
      %v3448 = vadd.f32 %v3186, %v3376
      %v3449 = vadd.f32 %v3187, %v3379
      %v3450 = vadd.f32 %v3188, %v3384
      %v3451 = vadd.f32 %v3189, %v3387
      %v3452 = vadd.f32 %v3190, %v3392
      %v3453 = vadd.f32 %v3191, %v3395
      %v3454 = vadd.f32 %v3192, %v3400
      %v3455 = vadd.f32 %v3193, %v3403
      %v3456 = vadd.f32 %v3194, %v3408
      %v3457 = vadd.f32 %v3195, %v3411
      %v3458 = vadd.f32 %v3196, %v3416
      %v3459 = vadd.f32 %v3197, %v3419
      %v3460 = vadd.f32 %v3198, %v3424
      %v3461 = vadd.f32 %v3199, %v3427
      %v3463 = vlaneseq
      %v3464 = vshrl.u32 %v3463, 7
      %v3465 = vsub.s32 0, %v3464
      %v3466 = vrot.slane %v226, %v3465
      %v3468 = vadd.f32 %v3430, %v3466
      %v3469 = vadd.f32 %v3431, %v3466
      %v3470 = vadd.f32 %v3432, %v3466
      %v3471 = vadd.f32 %v3433, %v3466
      %v3472 = vadd.f32 %v3434, %v3466
      %v3473 = vadd.f32 %v3435, %v3466
      %v3474 = vadd.f32 %v3436, %v3466
      %v3475 = vadd.f32 %v3437, %v3466
      %v3476 = vadd.f32 %v3438, %v3466
      %v3477 = vadd.f32 %v3439, %v3466
      %v3478 = vadd.f32 %v3440, %v3466
      %v3479 = vadd.f32 %v3441, %v3466
      %v3480 = vadd.f32 %v3442, %v3466
      %v3481 = vadd.f32 %v3443, %v3466
      %v3482 = vadd.f32 %v3444, %v3466
      %v3483 = vadd.f32 %v3445, %v3466
      %v3484 = vadd.f32 %v3446, %v3466
      %v3485 = vadd.f32 %v3447, %v3466
      %v3486 = vadd.f32 %v3448, %v3466
      %v3487 = vadd.f32 %v3449, %v3466
      %v3488 = vadd.f32 %v3450, %v3466
      %v3489 = vadd.f32 %v3451, %v3466
      %v3490 = vadd.f32 %v3452, %v3466
      %v3491 = vadd.f32 %v3453, %v3466
      %v3492 = vadd.f32 %v3454, %v3466
      %v3493 = vadd.f32 %v3455, %v3466
      %v3494 = vadd.f32 %v3456, %v3466
      %v3495 = vadd.f32 %v3457, %v3466
      %v3496 = vadd.f32 %v3458, %v3466
      %v3497 = vadd.f32 %v3459, %v3466
      %v3498 = vadd.f32 %v3460, %v3466
      %v3499 = vadd.f32 %v3461, %v3466
      %vm3500 = vcmp.gt.f32.partialorder %v3468, 0.0
      %vm3501 = vcmp.gt.f32.partialorder %v3469, 0.0
      %vm3502 = vcmp.gt.f32.partialorder %v3470, 0.0
      %vm3503 = vcmp.gt.f32.partialorder %v3471, 0.0
      %vm3504 = vcmp.gt.f32.partialorder %v3472, 0.0
      %vm3505 = vcmp.gt.f32.partialorder %v3473, 0.0
      %vm3506 = vcmp.gt.f32.partialorder %v3474, 0.0
      %vm3507 = vcmp.gt.f32.partialorder %v3475, 0.0
      %vm3508 = vcmp.gt.f32.partialorder %v3476, 0.0
      %vm3509 = vcmp.gt.f32.partialorder %v3477, 0.0
      %vm3510 = vcmp.gt.f32.partialorder %v3478, 0.0
      %vm3511 = vcmp.gt.f32.partialorder %v3479, 0.0
      %vm3512 = vcmp.gt.f32.partialorder %v3480, 0.0
      %vm3513 = vcmp.gt.f32.partialorder %v3481, 0.0
      %vm3514 = vcmp.gt.f32.partialorder %v3482, 0.0
      %vm3515 = vcmp.gt.f32.partialorder %v3483, 0.0
      %vm3516 = vcmp.gt.f32.partialorder %v3484, 0.0
      %vm3517 = vcmp.gt.f32.partialorder %v3485, 0.0
      %vm3518 = vcmp.gt.f32.partialorder %v3486, 0.0
      %vm3519 = vcmp.gt.f32.partialorder %v3487, 0.0
      %vm3520 = vcmp.gt.f32.partialorder %v3488, 0.0
      %vm3521 = vcmp.gt.f32.partialorder %v3489, 0.0
      %vm3522 = vcmp.gt.f32.partialorder %v3490, 0.0
      %vm3523 = vcmp.gt.f32.partialorder %v3491, 0.0
      %vm3524 = vcmp.gt.f32.partialorder %v3492, 0.0
      %vm3525 = vcmp.gt.f32.partialorder %v3493, 0.0
      %vm3526 = vcmp.gt.f32.partialorder %v3494, 0.0
      %vm3527 = vcmp.gt.f32.partialorder %v3495, 0.0
      %vm3528 = vcmp.gt.f32.partialorder %v3496, 0.0
      %vm3529 = vcmp.gt.f32.partialorder %v3497, 0.0
      %vm3530 = vcmp.gt.f32.partialorder %v3498, 0.0
      %vm3531 = vcmp.gt.f32.partialorder %v3499, 0.0
      %v3532 = vmul.f32 %v3468, 0.2
      %v3533 = vmul.f32 %v3469, 0.2
      %v3534 = vmul.f32 %v3470, 0.2
      %v3535 = vmul.f32 %v3471, 0.2
      %v3536 = vmul.f32 %v3472, 0.2
      %v3537 = vmul.f32 %v3473, 0.2
      %v3538 = vmul.f32 %v3474, 0.2
      %v3539 = vmul.f32 %v3475, 0.2
      %v3540 = vmul.f32 %v3476, 0.2
      %v3541 = vmul.f32 %v3477, 0.2
      %v3542 = vmul.f32 %v3478, 0.2
      %v3543 = vmul.f32 %v3479, 0.2
      %v3544 = vmul.f32 %v3480, 0.2
      %v3545 = vmul.f32 %v3481, 0.2
      %v3546 = vmul.f32 %v3482, 0.2
      %v3547 = vmul.f32 %v3483, 0.2
      %v3548 = vmul.f32 %v3484, 0.2
      %v3549 = vmul.f32 %v3485, 0.2
      %v3550 = vmul.f32 %v3486, 0.2
      %v3551 = vmul.f32 %v3487, 0.2
      %v3552 = vmul.f32 %v3488, 0.2
      %v3553 = vmul.f32 %v3489, 0.2
      %v3554 = vmul.f32 %v3490, 0.2
      %v3555 = vmul.f32 %v3491, 0.2
      %v3556 = vmul.f32 %v3492, 0.2
      %v3557 = vmul.f32 %v3493, 0.2
      %v3558 = vmul.f32 %v3494, 0.2
      %v3559 = vmul.f32 %v3495, 0.2
      %v3560 = vmul.f32 %v3496, 0.2
      %v3561 = vmul.f32 %v3497, 0.2
      %v3562 = vmul.f32 %v3498, 0.2
      %v3563 = vmul.f32 %v3499, 0.2
      %v3564 = vsel %vm3500, %v3468, %v3532
      %v3565 = vsel %vm3501, %v3469, %v3533
      %v3566 = vsel %vm3502, %v3470, %v3534
      %v3567 = vsel %vm3503, %v3471, %v3535
      %v3568 = vsel %vm3504, %v3472, %v3536
      %v3569 = vsel %vm3505, %v3473, %v3537
      %v3570 = vsel %vm3506, %v3474, %v3538
      %v3571 = vsel %vm3507, %v3475, %v3539
      %v3572 = vsel %vm3508, %v3476, %v3540
      %v3573 = vsel %vm3509, %v3477, %v3541
      %v3574 = vsel %vm3510, %v3478, %v3542
      %v3575 = vsel %vm3511, %v3479, %v3543
      %v3576 = vsel %vm3512, %v3480, %v3544
      %v3577 = vsel %vm3513, %v3481, %v3545
      %v3578 = vsel %vm3514, %v3482, %v3546
      %v3579 = vsel %vm3515, %v3483, %v3547
      %v3580 = vsel %vm3516, %v3484, %v3548
      %v3581 = vsel %vm3517, %v3485, %v3549
      %v3582 = vsel %vm3518, %v3486, %v3550
      %v3583 = vsel %vm3519, %v3487, %v3551
      %v3584 = vsel %vm3520, %v3488, %v3552
      %v3585 = vsel %vm3521, %v3489, %v3553
      %v3586 = vsel %vm3522, %v3490, %v3554
      %v3587 = vsel %vm3523, %v3491, %v3555
      %v3588 = vsel %vm3524, %v3492, %v3556
      %v3589 = vsel %vm3525, %v3493, %v3557
      %v3590 = vsel %vm3526, %v3494, %v3558
      %v3591 = vsel %vm3527, %v3495, %v3559
      %v3592 = vsel %vm3528, %v3496, %v3560
      %v3593 = vsel %vm3529, %v3497, %v3561
      %v3594 = vsel %vm3530, %v3498, %v3562
      %v3595 = vsel %vm3531, %v3499, %v3563
      %v3596 = vmul.f32 %v3564, %v3564
      %v3597 = vmul.f32 %v3565, %v3565
      %v3598 = vmul.f32 %v3566, %v3566
      %v3599 = vmul.f32 %v3567, %v3567
      %v3600 = vmul.f32 %v3568, %v3568
      %v3601 = vmul.f32 %v3569, %v3569
      %v3602 = vmul.f32 %v3570, %v3570
      %v3603 = vmul.f32 %v3571, %v3571
      %v3604 = vmul.f32 %v3572, %v3572
      %v3605 = vmul.f32 %v3573, %v3573
      %v3606 = vmul.f32 %v3574, %v3574
      %v3607 = vmul.f32 %v3575, %v3575
      %v3608 = vmul.f32 %v3576, %v3576
      %v3609 = vmul.f32 %v3577, %v3577
      %v3610 = vmul.f32 %v3578, %v3578
      %v3611 = vmul.f32 %v3579, %v3579
      %v3612 = vmul.f32 %v3580, %v3580
      %v3613 = vmul.f32 %v3581, %v3581
      %v3614 = vmul.f32 %v3582, %v3582
      %v3615 = vmul.f32 %v3583, %v3583
      %v3616 = vmul.f32 %v3584, %v3584
      %v3617 = vmul.f32 %v3585, %v3585
      %v3618 = vmul.f32 %v3586, %v3586
      %v3619 = vmul.f32 %v3587, %v3587
      %v3620 = vmul.f32 %v3588, %v3588
      %v3621 = vmul.f32 %v3589, %v3589
      %v3622 = vmul.f32 %v3590, %v3590
      %v3623 = vmul.f32 %v3591, %v3591
      %v3624 = vmul.f32 %v3592, %v3592
      %v3625 = vmul.f32 %v3593, %v3593
      %v3626 = vmul.f32 %v3594, %v3594
      %v3627 = vmul.f32 %v3595, %v3595
      %3628 = vadd.xlane.f32.xlu0 %v3596
      %v3629 = vpop.xlane.xlu0 %3628
      %3630 = vadd.xlane.f32.xlu0 %v3597
      %v3631 = vpop.xlane.xlu0 %3630
      %3632 = vadd.xlane.f32.xlu0 %v3598
      %v3633 = vpop.xlane.xlu0 %3632
      %3634 = vadd.xlane.f32.xlu0 %v3599
      %v3635 = vpop.xlane.xlu0 %3634
      %3636 = vadd.xlane.f32.xlu0 %v3600
      %v3637 = vpop.xlane.xlu0 %3636
      %3638 = vadd.xlane.f32.xlu0 %v3601
      %v3639 = vpop.xlane.xlu0 %3638
      %3640 = vadd.xlane.f32.xlu0 %v3602
      %v3641 = vpop.xlane.xlu0 %3640
      %3642 = vadd.xlane.f32.xlu0 %v3603
      %v3643 = vpop.xlane.xlu0 %3642
      %3644 = vadd.xlane.f32.xlu0 %v3604
      %v3645 = vpop.xlane.xlu0 %3644
      %3646 = vadd.xlane.f32.xlu0 %v3605
      %v3647 = vpop.xlane.xlu0 %3646
      %3648 = vadd.xlane.f32.xlu0 %v3606
      %v3649 = vpop.xlane.xlu0 %3648
      %3650 = vadd.xlane.f32.xlu0 %v3607
      %v3651 = vpop.xlane.xlu0 %3650
      %3652 = vadd.xlane.f32.xlu0 %v3608
      %v3653 = vpop.xlane.xlu0 %3652
      %3654 = vadd.xlane.f32.xlu0 %v3609
      %v3655 = vpop.xlane.xlu0 %3654
      %3656 = vadd.xlane.f32.xlu0 %v3610
      %v3657 = vpop.xlane.xlu0 %3656
      %3658 = vadd.xlane.f32.xlu0 %v3611
      %v3659 = vpop.xlane.xlu0 %3658
      %3660 = vadd.xlane.f32.xlu0 %v3612
      %v3661 = vpop.xlane.xlu0 %3660
      %3662 = vadd.xlane.f32.xlu0 %v3613
      %v3663 = vpop.xlane.xlu0 %3662
      %3664 = vadd.xlane.f32.xlu0 %v3614
      %v3665 = vpop.xlane.xlu0 %3664
      %3666 = vadd.xlane.f32.xlu0 %v3615
      %v3667 = vpop.xlane.xlu0 %3666
      %3668 = vadd.xlane.f32.xlu0 %v3616
      %v3669 = vpop.xlane.xlu0 %3668
      %3670 = vadd.xlane.f32.xlu0 %v3617
      %v3671 = vpop.xlane.xlu0 %3670
      %3672 = vadd.xlane.f32.xlu0 %v3618
      %v3673 = vpop.xlane.xlu0 %3672
      %3674 = vadd.xlane.f32.xlu0 %v3619
      %v3675 = vpop.xlane.xlu0 %3674
      %3676 = vadd.xlane.f32.xlu0 %v3620
      %v3677 = vpop.xlane.xlu0 %3676
      %3678 = vadd.xlane.f32.xlu0 %v3621
      %v3679 = vpop.xlane.xlu0 %3678
      %3680 = vadd.xlane.f32.xlu0 %v3622
      %v3681 = vpop.xlane.xlu0 %3680
      %3682 = vadd.xlane.f32.xlu0 %v3623
      %v3683 = vpop.xlane.xlu0 %3682
      %3684 = vadd.xlane.f32.xlu0 %v3624
      %v3685 = vpop.xlane.xlu0 %3684
      %3686 = vadd.xlane.f32.xlu0 %v3625
      %v3687 = vpop.xlane.xlu0 %3686
      %3688 = vadd.xlane.f32.xlu0 %v3626
      %v3689 = vpop.xlane.xlu0 %3688
      %3690 = vadd.xlane.f32.xlu0 %v3627
      %v3691 = vpop.xlane.xlu0 %3690
      %v3692 = vmul.f32 %v3629, 0.015625
      %v3693 = vmul.f32 %v3631, 0.015625
      %v3694 = vmul.f32 %v3633, 0.015625
      %v3695 = vmul.f32 %v3635, 0.015625
      %v3696 = vmul.f32 %v3637, 0.015625
      %v3697 = vmul.f32 %v3639, 0.015625
      %v3698 = vmul.f32 %v3641, 0.015625
      %v3699 = vmul.f32 %v3643, 0.015625
      %v3700 = vmul.f32 %v3645, 0.015625
      %v3701 = vmul.f32 %v3647, 0.015625
      %v3702 = vmul.f32 %v3649, 0.015625
      %v3703 = vmul.f32 %v3651, 0.015625
      %v3704 = vmul.f32 %v3653, 0.015625
      %v3705 = vmul.f32 %v3655, 0.015625
      %v3706 = vmul.f32 %v3657, 0.015625
      %v3707 = vmul.f32 %v3659, 0.015625
      %v3708 = vmul.f32 %v3661, 0.015625
      %v3709 = vmul.f32 %v3663, 0.015625
      %v3710 = vmul.f32 %v3665, 0.015625
      %v3711 = vmul.f32 %v3667, 0.015625
      %v3712 = vmul.f32 %v3669, 0.015625
      %v3713 = vmul.f32 %v3671, 0.015625
      %v3714 = vmul.f32 %v3673, 0.015625
      %v3715 = vmul.f32 %v3675, 0.015625
      %v3716 = vmul.f32 %v3677, 0.015625
      %v3717 = vmul.f32 %v3679, 0.015625
      %v3718 = vmul.f32 %v3681, 0.015625
      %v3719 = vmul.f32 %v3683, 0.015625
      %v3720 = vmul.f32 %v3685, 0.015625
      %v3721 = vmul.f32 %v3687, 0.015625
      %v3722 = vmul.f32 %v3689, 0.015625
      %v3723 = vmul.f32 %v3691, 0.015625
      %v3724 = vadd.f32 %v3692, 1e-08
      %v3725 = vadd.f32 %v3693, 1e-08
      %v3726 = vadd.f32 %v3694, 1e-08
      %v3727 = vadd.f32 %v3695, 1e-08
      %v3728 = vadd.f32 %v3696, 1e-08
      %v3729 = vadd.f32 %v3697, 1e-08
      %v3730 = vadd.f32 %v3698, 1e-08
      %v3731 = vadd.f32 %v3699, 1e-08
      %v3732 = vadd.f32 %v3700, 1e-08
      %v3733 = vadd.f32 %v3701, 1e-08
      %v3734 = vadd.f32 %v3702, 1e-08
      %v3735 = vadd.f32 %v3703, 1e-08
      %v3736 = vadd.f32 %v3704, 1e-08
      %v3737 = vadd.f32 %v3705, 1e-08
      %v3738 = vadd.f32 %v3706, 1e-08
      %v3739 = vadd.f32 %v3707, 1e-08
      %v3740 = vadd.f32 %v3708, 1e-08
      %v3741 = vadd.f32 %v3709, 1e-08
      %v3742 = vadd.f32 %v3710, 1e-08
      %v3743 = vadd.f32 %v3711, 1e-08
      %v3744 = vadd.f32 %v3712, 1e-08
      %v3745 = vadd.f32 %v3713, 1e-08
      %v3746 = vadd.f32 %v3714, 1e-08
      %v3747 = vadd.f32 %v3715, 1e-08
      %v3748 = vadd.f32 %v3716, 1e-08
      %v3749 = vadd.f32 %v3717, 1e-08
      %v3750 = vadd.f32 %v3718, 1e-08
      %v3751 = vadd.f32 %v3719, 1e-08
      %v3752 = vadd.f32 %v3720, 1e-08
      %v3753 = vadd.f32 %v3721, 1e-08
      %v3754 = vadd.f32 %v3722, 1e-08
      %v3755 = vadd.f32 %v3723, 1e-08
      %v3756 = vrsqrt.pop %v3724
      %v3757 = vrsqrt.pop %v3725
      %v3758 = vrsqrt.pop %v3726
      %v3759 = vrsqrt.pop %v3727
      %v3760 = vrsqrt.pop %v3728
      %v3761 = vrsqrt.pop %v3729
      %v3762 = vrsqrt.pop %v3730
      %v3763 = vrsqrt.pop %v3731
      %v3764 = vrsqrt.pop %v3732
      %v3765 = vrsqrt.pop %v3733
      %v3766 = vrsqrt.pop %v3734
      %v3767 = vrsqrt.pop %v3735
      %v3768 = vrsqrt.pop %v3736
      %v3769 = vrsqrt.pop %v3737
      %v3770 = vrsqrt.pop %v3738
      %v3771 = vrsqrt.pop %v3739
      %v3772 = vrsqrt.pop %v3740
      %v3773 = vrsqrt.pop %v3741
      %v3774 = vrsqrt.pop %v3742
      %v3775 = vrsqrt.pop %v3743
      %v3776 = vrsqrt.pop %v3744
      %v3777 = vrsqrt.pop %v3745
      %v3778 = vrsqrt.pop %v3746
      %v3779 = vrsqrt.pop %v3747
      %v3780 = vrsqrt.pop %v3748
      %v3781 = vrsqrt.pop %v3749
      %v3782 = vrsqrt.pop %v3750
      %v3783 = vrsqrt.pop %v3751
      %v3784 = vrsqrt.pop %v3752
      %v3785 = vrsqrt.pop %v3753
      %v3786 = vrsqrt.pop %v3754
      %v3787 = vrsqrt.pop %v3755
      %v3788 = vmul.f32 %v3564, %v3756
      %v3789 = vmul.f32 %v3565, %v3757
      %v3790 = vmul.f32 %v3566, %v3758
      %v3791 = vmul.f32 %v3567, %v3759
      %v3792 = vmul.f32 %v3568, %v3760
      %v3793 = vmul.f32 %v3569, %v3761
      %v3794 = vmul.f32 %v3570, %v3762
      %v3795 = vmul.f32 %v3571, %v3763
      %v3796 = vmul.f32 %v3572, %v3764
      %v3797 = vmul.f32 %v3573, %v3765
      %v3798 = vmul.f32 %v3574, %v3766
      %v3799 = vmul.f32 %v3575, %v3767
      %v3800 = vmul.f32 %v3576, %v3768
      %v3801 = vmul.f32 %v3577, %v3769
      %v3802 = vmul.f32 %v3578, %v3770
      %v3803 = vmul.f32 %v3579, %v3771
      %v3804 = vmul.f32 %v3580, %v3772
      %v3805 = vmul.f32 %v3581, %v3773
      %v3806 = vmul.f32 %v3582, %v3774
      %v3807 = vmul.f32 %v3583, %v3775
      %v3808 = vmul.f32 %v3584, %v3776
      %v3809 = vmul.f32 %v3585, %v3777
      %v3810 = vmul.f32 %v3586, %v3778
      %v3811 = vmul.f32 %v3587, %v3779
      %v3812 = vmul.f32 %v3588, %v3780
      %v3813 = vmul.f32 %v3589, %v3781
      %v3814 = vmul.f32 %v3590, %v3782
      %v3815 = vmul.f32 %v3591, %v3783
      %v3816 = vmul.f32 %v3592, %v3784
      %v3817 = vmul.f32 %v3593, %v3785
      %v3818 = vmul.f32 %v3594, %v3786
      %v3819 = vmul.f32 %v3595, %v3787
      %3820 = vst [vmem:[#allocation2] sm:$0xf] 0
      %3821 = vst [vmem:[#allocation2 + $0x4] sm:$0xf] 0
      %3822 = vst [vmem:[#allocation2 + $0x8] sm:$0xf] 0
      %3823 = vst [vmem:[#allocation2 + $0xc] sm:$0xf] 0
      %3824 = vst [vmem:[#allocation2 + $0x10] sm:$0xf] 0
      %3825 = vst [vmem:[#allocation2 + $0x14] sm:$0xf] 0
      %3826 = vst [vmem:[#allocation2 + $0x18] sm:$0xf] 0
      %3827 = vst [vmem:[#allocation2 + $0x1c] sm:$0xf] 0
      %3828 = vst [vmem:[#allocation2 + $0x20] sm:$0xf] 0
      %3829 = vst [vmem:[#allocation2 + $0x24] sm:$0xf] 0
      %3830 = vst [vmem:[#allocation2 + $0x28] sm:$0xf] 0
      %3831 = vst [vmem:[#allocation2 + $0x2c] sm:$0xf] 0
      %3832 = vst [vmem:[#allocation2 + $0x30] sm:$0xf] 0
      %3833 = vst [vmem:[#allocation2 + $0x34] sm:$0xf] 0
      %3834 = vst [vmem:[#allocation2 + $0x38] sm:$0xf] 0
      %3835 = vst [vmem:[#allocation2 + $0x3c] sm:$0xf] 0
      %3836 = vst [vmem:[#allocation2 + $0x40] sm:$0xf] 0
      %3837 = vst [vmem:[#allocation2 + $0x44] sm:$0xf] 0
      %3838 = vst [vmem:[#allocation2 + $0x48] sm:$0xf] 0
      %3839 = vst [vmem:[#allocation2 + $0x4c] sm:$0xf] 0
      %3840 = vst [vmem:[#allocation2 + $0x50] sm:$0xf] 0
      %3841 = vst [vmem:[#allocation2 + $0x54] sm:$0xf] 0
      %3842 = vst [vmem:[#allocation2 + $0x58] sm:$0xf] 0
      %3843 = vst [vmem:[#allocation2 + $0x5c] sm:$0xf] 0
      %3844 = vst [vmem:[#allocation2 + $0x60] sm:$0xf] 0
      %3845 = vst [vmem:[#allocation2 + $0x64] sm:$0xf] 0
      %3846 = vst [vmem:[#allocation2 + $0x68] sm:$0xf] 0
      %3847 = vst [vmem:[#allocation2 + $0x6c] sm:$0xf] 0
      %3848 = vst [vmem:[#allocation2 + $0x70] sm:$0xf] 0
      %3849 = vst [vmem:[#allocation2 + $0x74] sm:$0xf] 0
      %3850 = vst [vmem:[#allocation2 + $0x78] sm:$0xf] 0
      %3851 = vst [vmem:[#allocation2 + $0x7c] sm:$0xf] 0
      %3852 = vst [vmem:[#allocation2 + $0x80] sm:$0xf] 0
      %3853 = vst [vmem:[#allocation2 + $0x84] sm:$0xf] 0
      %3854 = vst [vmem:[#allocation2 + $0x88] sm:$0xf] 0
      %3855 = vst [vmem:[#allocation2 + $0x8c] sm:$0xf] 0
      %3856 = vst [vmem:[#allocation2 + $0x90] sm:$0xf] 0
      %3857 = vst [vmem:[#allocation2 + $0x94] sm:$0xf] 0
      %3858 = vst [vmem:[#allocation2 + $0x98] sm:$0xf] 0
      %3859 = vst [vmem:[#allocation2 + $0x9c] sm:$0xf] 0
      %3860 = vst [vmem:[#allocation2 + $0xa0] sm:$0xf] 0
      %3861 = vst [vmem:[#allocation2 + $0xa4] sm:$0xf] 0
      %3862 = vst [vmem:[#allocation2 + $0xa8] sm:$0xf] 0
      %3863 = vst [vmem:[#allocation2 + $0xac] sm:$0xf] 0
      %3864 = vst [vmem:[#allocation2 + $0xb0] sm:$0xf] 0
      %3865 = vst [vmem:[#allocation2 + $0xb4] sm:$0xf] 0
      %3866 = vst [vmem:[#allocation2 + $0xb8] sm:$0xf] 0
      %3867 = vst [vmem:[#allocation2 + $0xbc] sm:$0xf] 0
      %3868 = vst [vmem:[#allocation2 + $0xc0] sm:$0xf] 0
      %3869 = vst [vmem:[#allocation2 + $0xc4] sm:$0xf] 0
      %3870 = vst [vmem:[#allocation2 + $0xc8] sm:$0xf] 0
      %3871 = vst [vmem:[#allocation2 + $0xcc] sm:$0xf] 0
      %3872 = vst [vmem:[#allocation2 + $0xd0] sm:$0xf] 0
      %3873 = vst [vmem:[#allocation2 + $0xd4] sm:$0xf] 0
      %v3874 = vpack.c.bf16 %v3789, %v3788
      %v3875 = vpack.c.bf16 %v3791, %v3790
      %v3876 = vpack.c.bf16 %v3793, %v3792
      %v3877 = vpack.c.bf16 %v3795, %v3794
      %v3878 = vpack.c.bf16 %v3797, %v3796
      %v3879 = vpack.c.bf16 %v3799, %v3798
      %v3880 = vpack.c.bf16 %v3801, %v3800
      %v3881 = vpack.c.bf16 %v3803, %v3802
      %v3882 = vpack.c.bf16 %v3805, %v3804
      %v3883 = vpack.c.bf16 %v3807, %v3806
      %v3884 = vpack.c.bf16 %v3809, %v3808
      %v3885 = vpack.c.bf16 %v3811, %v3810
      %v3886 = vpack.c.bf16 %v3813, %v3812
      %v3887 = vpack.c.bf16 %v3815, %v3814
      %v3888 = vpack.c.bf16 %v3817, %v3816
      %v3889 = vpack.c.bf16 %v3819, %v3818
      %v3906 = vunpack.c.l.b16 %v3874
      %v3907 = vunpack.c.h.b16 %v3874
      %v3908 = vunpack.c.l.b16 %v3875
      %v3909 = vunpack.c.h.b16 %v3875
      %v3910 = vunpack.c.l.b16 %v3876
      %v3911 = vunpack.c.h.b16 %v3876
      %v3912 = vunpack.c.l.b16 %v3877
      %v3913 = vunpack.c.h.b16 %v3877
      %v3914 = vunpack.c.l.b16 %v3878
      %v3915 = vunpack.c.h.b16 %v3878
      %v3916 = vunpack.c.l.b16 %v3879
      %v3917 = vunpack.c.h.b16 %v3879
      %v3918 = vunpack.c.l.b16 %v3880
      %v3919 = vunpack.c.h.b16 %v3880
      %v3920 = vunpack.c.l.b16 %v3881
      %v3921 = vunpack.c.h.b16 %v3881
      %v3922 = vunpack.c.l.b16 %v3882
      %v3923 = vunpack.c.h.b16 %v3882
      %v3924 = vunpack.c.l.b16 %v3883
      %v3925 = vunpack.c.h.b16 %v3883
      %v3926 = vunpack.c.l.b16 %v3884
      %v3927 = vunpack.c.h.b16 %v3884
      %v3928 = vunpack.c.l.b16 %v3885
      %v3929 = vunpack.c.h.b16 %v3885
      %v3930 = vunpack.c.l.b16 %v3886
      %v3931 = vunpack.c.h.b16 %v3886
      %v3932 = vunpack.c.l.b16 %v3887
      %v3933 = vunpack.c.h.b16 %v3887
      %v3934 = vunpack.c.l.b16 %v3888
      %v3935 = vunpack.c.h.b16 %v3888
      %v3936 = vunpack.c.l.b16 %v3889
      %v3937 = vunpack.c.h.b16 %v3889
      %v3938 = vpack.c.b16 %v3906, %v3906
      %v3939 = vpack.c.b16 %v3907, %v3907
      %v3940 = vpack.c.b16 %v3908, %v3908
      %v3941 = vpack.c.b16 %v3909, %v3909
      %v3942 = vpack.c.b16 %v3910, %v3910
      %v3943 = vpack.c.b16 %v3911, %v3911
      %v3944 = vpack.c.b16 %v3912, %v3912
      %v3945 = vpack.c.b16 %v3913, %v3913
      %v3946 = vpack.c.b16 %v3914, %v3914
      %v3947 = vpack.c.b16 %v3915, %v3915
      %v3948 = vpack.c.b16 %v3916, %v3916
      %v3949 = vpack.c.b16 %v3917, %v3917
      %v3950 = vpack.c.b16 %v3918, %v3918
      %v3951 = vpack.c.b16 %v3919, %v3919
      %v3952 = vpack.c.b16 %v3920, %v3920
      %v3953 = vpack.c.b16 %v3921, %v3921
      %v3954 = vpack.c.b16 %v3922, %v3922
      %v3955 = vpack.c.b16 %v3923, %v3923
      %v3956 = vpack.c.b16 %v3924, %v3924
      %v3957 = vpack.c.b16 %v3925, %v3925
      %v3958 = vpack.c.b16 %v3926, %v3926
      %v3959 = vpack.c.b16 %v3927, %v3927
      %v3960 = vpack.c.b16 %v3928, %v3928
      %v3961 = vpack.c.b16 %v3929, %v3929
      %v3962 = vpack.c.b16 %v3930, %v3930
      %v3963 = vpack.c.b16 %v3931, %v3931
      %v3964 = vpack.c.b16 %v3932, %v3932
      %v3965 = vpack.c.b16 %v3933, %v3933
      %v3966 = vpack.c.b16 %v3934, %v3934
      %v3967 = vpack.c.b16 %v3935, %v3935
      %v3968 = vpack.c.b16 %v3936, %v3936
      %v3969 = vpack.c.b16 %v3937, %v3937
      %vm3970 = vsmask.f32 256
      %vm3971 = vsmask.f32 4368
      %vm3972 = vmor %vm3970, %vm3971
      %v3974 = vshrl.u32 %v3938, 16
      %v3976 = vrot.slane %v3974, 7
      %v3977 = vshll.u32 %v3938, 16
      %v3979 = vor.u32 %v3976, %v3977
      %v3980 = vrot.slane %v3976, 4
      %v3982 = vshrl.u32 %v3939, 16
      %v3984 = vrot.slane %v3982, 7
      %v3985 = vshll.u32 %v3939, 16
      %v3987 = vor.u32 %v3984, %v3985
      %v3988 = vsel %vm3972, %v3980, %v3987
      %v3989 = vrot.slane %v3984, 4
      %v3991 = vshrl.u32 %v3940, 16
      %v3993 = vrot.slane %v3991, 7
      %v3994 = vshll.u32 %v3940, 16
      %v3996 = vor.u32 %v3993, %v3994
      %v3997 = vrot.slane %v3993, 4
      %v3999 = vshrl.u32 %v3941, 16
      %v4001 = vrot.slane %v3999, 7
      %v4002 = vshll.u32 %v3941, 16
      %v4004 = vor.u32 %v4001, %v4002
      %v4005 = vsel %vm3972, %v3997, %v4004
      %v4006 = vrot.slane %v4001, 4
      %v4008 = vshrl.u32 %v3942, 16
      %v4010 = vrot.slane %v4008, 7
      %v4011 = vshll.u32 %v3942, 16
      %v4013 = vor.u32 %v4010, %v4011
      %v4014 = vrot.slane %v4010, 4
      %v4016 = vshrl.u32 %v3943, 16
      %v4018 = vrot.slane %v4016, 7
      %v4019 = vshll.u32 %v3943, 16
      %v4021 = vor.u32 %v4018, %v4019
      %v4022 = vsel %vm3972, %v4014, %v4021
      %v4023 = vrot.slane %v4018, 4
      %v4025 = vshrl.u32 %v3944, 16
      %v4027 = vrot.slane %v4025, 7
      %v4028 = vshll.u32 %v3944, 16
      %v4030 = vor.u32 %v4027, %v4028
      %v4031 = vrot.slane %v4027, 4
      %v4033 = vshrl.u32 %v3945, 16
      %v4035 = vrot.slane %v4033, 7
      %v4036 = vshll.u32 %v3945, 16
      %v4038 = vor.u32 %v4035, %v4036
      %v4039 = vsel %vm3972, %v4031, %v4038
      %v4040 = vrot.slane %v4035, 4
      %v4042 = vshrl.u32 %v3946, 16
      %v4044 = vrot.slane %v4042, 7
      %v4045 = vshll.u32 %v3946, 16
      %v4047 = vor.u32 %v4044, %v4045
      %v4048 = vrot.slane %v4044, 4
      %v4050 = vshrl.u32 %v3947, 16
      %v4052 = vrot.slane %v4050, 7
      %v4053 = vshll.u32 %v3947, 16
      %v4055 = vor.u32 %v4052, %v4053
      %v4056 = vsel %vm3972, %v4048, %v4055
      %v4057 = vrot.slane %v4052, 4
      %v4059 = vshrl.u32 %v3948, 16
      %v4061 = vrot.slane %v4059, 7
      %v4062 = vshll.u32 %v3948, 16
      %v4064 = vor.u32 %v4061, %v4062
      %v4065 = vrot.slane %v4061, 4
      %v4067 = vshrl.u32 %v3949, 16
      %v4069 = vrot.slane %v4067, 7
      %v4070 = vshll.u32 %v3949, 16
      %v4072 = vor.u32 %v4069, %v4070
      %v4073 = vsel %vm3972, %v4065, %v4072
      %v4074 = vrot.slane %v4069, 4
      %v4076 = vshrl.u32 %v3950, 16
      %v4078 = vrot.slane %v4076, 7
      %v4079 = vshll.u32 %v3950, 16
      %v4081 = vor.u32 %v4078, %v4079
      %v4082 = vrot.slane %v4078, 4
      %v4084 = vshrl.u32 %v3951, 16
      %v4086 = vrot.slane %v4084, 7
      %v4087 = vshll.u32 %v3951, 16
      %v4089 = vor.u32 %v4086, %v4087
      %v4090 = vsel %vm3972, %v4082, %v4089
      %v4091 = vrot.slane %v4086, 4
      %v4093 = vshrl.u32 %v3952, 16
      %v4095 = vrot.slane %v4093, 7
      %v4096 = vshll.u32 %v3952, 16
      %v4098 = vor.u32 %v4095, %v4096
      %v4099 = vrot.slane %v4095, 4
      %v4101 = vshrl.u32 %v3953, 16
      %v4103 = vrot.slane %v4101, 7
      %v4104 = vshll.u32 %v3953, 16
      %v4106 = vor.u32 %v4103, %v4104
      %v4107 = vsel %vm3972, %v4099, %v4106
      %v4108 = vrot.slane %v4103, 4
      %v4110 = vshrl.u32 %v3954, 16
      %v4112 = vrot.slane %v4110, 7
      %v4113 = vshll.u32 %v3954, 16
      %v4115 = vor.u32 %v4112, %v4113
      %v4116 = vrot.slane %v4112, 4
      %v4118 = vshrl.u32 %v3955, 16
      %v4120 = vrot.slane %v4118, 7
      %v4121 = vshll.u32 %v3955, 16
      %v4123 = vor.u32 %v4120, %v4121
      %v4124 = vsel %vm3972, %v4116, %v4123
      %v4125 = vrot.slane %v4120, 4
      %v4127 = vshrl.u32 %v3956, 16
      %v4129 = vrot.slane %v4127, 7
      %v4130 = vshll.u32 %v3956, 16
      %v4132 = vor.u32 %v4129, %v4130
      %v4133 = vrot.slane %v4129, 4
      %v4135 = vshrl.u32 %v3957, 16
      %v4137 = vrot.slane %v4135, 7
      %v4138 = vshll.u32 %v3957, 16
      %v4140 = vor.u32 %v4137, %v4138
      %v4141 = vsel %vm3972, %v4133, %v4140
      %v4142 = vrot.slane %v4137, 4
      %v4144 = vshrl.u32 %v3958, 16
      %v4146 = vrot.slane %v4144, 7
      %v4147 = vshll.u32 %v3958, 16
      %v4149 = vor.u32 %v4146, %v4147
      %v4150 = vrot.slane %v4146, 4
      %v4152 = vshrl.u32 %v3959, 16
      %v4154 = vrot.slane %v4152, 7
      %v4155 = vshll.u32 %v3959, 16
      %v4157 = vor.u32 %v4154, %v4155
      %v4158 = vsel %vm3972, %v4150, %v4157
      %v4159 = vrot.slane %v4154, 4
      %v4161 = vshrl.u32 %v3960, 16
      %v4163 = vrot.slane %v4161, 7
      %v4164 = vshll.u32 %v3960, 16
      %v4166 = vor.u32 %v4163, %v4164
      %v4167 = vrot.slane %v4163, 4
      %v4169 = vshrl.u32 %v3961, 16
      %v4171 = vrot.slane %v4169, 7
      %v4172 = vshll.u32 %v3961, 16
      %v4174 = vor.u32 %v4171, %v4172
      %v4175 = vsel %vm3972, %v4167, %v4174
      %v4176 = vrot.slane %v4171, 4
      %v4178 = vshrl.u32 %v3962, 16
      %v4180 = vrot.slane %v4178, 7
      %v4181 = vshll.u32 %v3962, 16
      %v4183 = vor.u32 %v4180, %v4181
      %v4184 = vrot.slane %v4180, 4
      %v4186 = vshrl.u32 %v3963, 16
      %v4188 = vrot.slane %v4186, 7
      %v4189 = vshll.u32 %v3963, 16
      %v4191 = vor.u32 %v4188, %v4189
      %v4192 = vsel %vm3972, %v4184, %v4191
      %v4193 = vrot.slane %v4188, 4
      %v4195 = vshrl.u32 %v3964, 16
      %v4197 = vrot.slane %v4195, 7
      %v4198 = vshll.u32 %v3964, 16
      %v4200 = vor.u32 %v4197, %v4198
      %v4201 = vrot.slane %v4197, 4
      %v4203 = vshrl.u32 %v3965, 16
      %v4205 = vrot.slane %v4203, 7
      %v4206 = vshll.u32 %v3965, 16
      %v4208 = vor.u32 %v4205, %v4206
      %v4209 = vsel %vm3972, %v4201, %v4208
      %v4210 = vrot.slane %v4205, 4
      %v4212 = vshrl.u32 %v3966, 16
      %v4214 = vrot.slane %v4212, 7
      %v4215 = vshll.u32 %v3966, 16
      %v4217 = vor.u32 %v4214, %v4215
      %v4218 = vrot.slane %v4214, 4
      %v4220 = vshrl.u32 %v3967, 16
      %v4222 = vrot.slane %v4220, 7
      %v4223 = vshll.u32 %v3967, 16
      %v4225 = vor.u32 %v4222, %v4223
      %v4226 = vsel %vm3972, %v4218, %v4225
      %v4227 = vrot.slane %v4222, 4
      %v4229 = vshrl.u32 %v3968, 16
      %v4231 = vrot.slane %v4229, 7
      %v4232 = vshll.u32 %v3968, 16
      %v4234 = vor.u32 %v4231, %v4232
      %v4235 = vrot.slane %v4231, 4
      %v4237 = vshrl.u32 %v3969, 16
      %v4239 = vrot.slane %v4237, 7
      %v4240 = vshll.u32 %v3969, 16
      %v4242 = vor.u32 %v4239, %v4240
      %v4243 = vsel %vm3972, %v4235, %v4242
      %v4244 = vrot.slane %v4239, 4
      %s4293 = scalar_lea.vmem [#allocation2], 12
      %vm4294 = vcmask 1043456
      %vm4295 = vsmask.f32 7938
      %vm4296 = vmand %vm4294, %vm4295
      %v4297 = vld [vmem:[%s4293] sm:$0xf]
      %v4298 = vsel %vm4296, %v3979, %v4297
      %4299 = vst [vmem:[%s4293] sm:$0xf] %v4298
      %4300 = vst [vmem:[%s4293 + $0x4] sm:$0xf] %v3988
      %vm4301 = vcmask 1040384
      %vm4302 = vmand %vm4301, %vm3970
      %v4303 = vld [vmem:[%s4293 + $0x8] sm:$0x1]
      %v4304 = vsel %vm4302, %v3989, %v4303
      %4305 = vst [vmem:[%s4293 + $0x8] sm:$0x1] %v4304
      %v4306 = vld [vmem:[%s4293 + $0xc] sm:$0xf]
      %v4307 = vsel %vm4296, %v3996, %v4306
      %4308 = vst [vmem:[%s4293 + $0xc] sm:$0xf] %v4307
      %4309 = vst [vmem:[%s4293 + $0x10] sm:$0xf] %v4005
      %v4310 = vld [vmem:[%s4293 + $0x14] sm:$0x1]
      %v4311 = vsel %vm4302, %v4006, %v4310
      %4312 = vst [vmem:[%s4293 + $0x14] sm:$0x1] %v4311
      %v4313 = vld [vmem:[%s4293 + $0x18] sm:$0xf]
      %v4314 = vsel %vm4296, %v4013, %v4313
      %4315 = vst [vmem:[%s4293 + $0x18] sm:$0xf] %v4314
      %4316 = vst [vmem:[%s4293 + $0x1c] sm:$0xf] %v4022
      %v4317 = vld [vmem:[%s4293 + $0x20] sm:$0x1]
      %v4318 = vsel %vm4302, %v4023, %v4317
      %4319 = vst [vmem:[%s4293 + $0x20] sm:$0x1] %v4318
      %v4320 = vld [vmem:[%s4293 + $0x24] sm:$0xf]
      %v4321 = vsel %vm4296, %v4030, %v4320
      %4322 = vst [vmem:[%s4293 + $0x24] sm:$0xf] %v4321
      %4323 = vst [vmem:[%s4293 + $0x28] sm:$0xf] %v4039
      %v4324 = vld [vmem:[%s4293 + $0x2c] sm:$0x1]
      %v4325 = vsel %vm4302, %v4040, %v4324
      %4326 = vst [vmem:[%s4293 + $0x2c] sm:$0x1] %v4325
      %v4327 = vld [vmem:[%s4293 + $0x30] sm:$0xf]
      %v4328 = vsel %vm4296, %v4047, %v4327
      %4329 = vst [vmem:[%s4293 + $0x30] sm:$0xf] %v4328
      %4330 = vst [vmem:[%s4293 + $0x34] sm:$0xf] %v4056
      %v4331 = vld [vmem:[%s4293 + $0x38] sm:$0x1]
      %v4332 = vsel %vm4302, %v4057, %v4331
      %4333 = vst [vmem:[%s4293 + $0x38] sm:$0x1] %v4332
      %v4334 = vld [vmem:[%s4293 + $0x3c] sm:$0xf]
      %v4335 = vsel %vm4296, %v4064, %v4334
      %4336 = vst [vmem:[%s4293 + $0x3c] sm:$0xf] %v4335
      %4337 = vst [vmem:[%s4293 + $0x40] sm:$0xf] %v4073
      %v4338 = vld [vmem:[%s4293 + $0x44] sm:$0x1]
      %v4339 = vsel %vm4302, %v4074, %v4338
      %4340 = vst [vmem:[%s4293 + $0x44] sm:$0x1] %v4339
      %v4341 = vld [vmem:[%s4293 + $0x48] sm:$0xf]
      %v4342 = vsel %vm4296, %v4081, %v4341
      %4343 = vst [vmem:[%s4293 + $0x48] sm:$0xf] %v4342
      %4344 = vst [vmem:[%s4293 + $0x4c] sm:$0xf] %v4090
      %v4345 = vld [vmem:[%s4293 + $0x50] sm:$0x1]
      %v4346 = vsel %vm4302, %v4091, %v4345
      %4347 = vst [vmem:[%s4293 + $0x50] sm:$0x1] %v4346
      %v4348 = vld [vmem:[%s4293 + $0x54] sm:$0xf]
      %v4349 = vsel %vm4296, %v4098, %v4348
      %4350 = vst [vmem:[%s4293 + $0x54] sm:$0xf] %v4349
      %4351 = vst [vmem:[%s4293 + $0x58] sm:$0xf] %v4107
      %v4352 = vld [vmem:[%s4293 + $0x5c] sm:$0x1]
      %v4353 = vsel %vm4302, %v4108, %v4352
      %4354 = vst [vmem:[%s4293 + $0x5c] sm:$0x1] %v4353
      %v4355 = vld [vmem:[%s4293 + $0x60] sm:$0xf]
      %v4356 = vsel %vm4296, %v4115, %v4355
      %4357 = vst [vmem:[%s4293 + $0x60] sm:$0xf] %v4356
      %4358 = vst [vmem:[%s4293 + $0x64] sm:$0xf] %v4124
      %v4359 = vld [vmem:[%s4293 + $0x68] sm:$0x1]
      %v4360 = vsel %vm4302, %v4125, %v4359
      %4361 = vst [vmem:[%s4293 + $0x68] sm:$0x1] %v4360
      %v4362 = vld [vmem:[%s4293 + $0x6c] sm:$0xf]
      %v4363 = vsel %vm4296, %v4132, %v4362
      %4364 = vst [vmem:[%s4293 + $0x6c] sm:$0xf] %v4363
      %4365 = vst [vmem:[%s4293 + $0x70] sm:$0xf] %v4141
      %v4366 = vld [vmem:[%s4293 + $0x74] sm:$0x1]
      %v4367 = vsel %vm4302, %v4142, %v4366
      %4368 = vst [vmem:[%s4293 + $0x74] sm:$0x1] %v4367
      %v4369 = vld [vmem:[%s4293 + $0x78] sm:$0xf]
      %v4370 = vsel %vm4296, %v4149, %v4369
      %4371 = vst [vmem:[%s4293 + $0x78] sm:$0xf] %v4370
      %4372 = vst [vmem:[%s4293 + $0x7c] sm:$0xf] %v4158
      %v4373 = vld [vmem:[%s4293 + $0x80] sm:$0x1]
      %v4374 = vsel %vm4302, %v4159, %v4373
      %4375 = vst [vmem:[%s4293 + $0x80] sm:$0x1] %v4374
      %v4376 = vld [vmem:[%s4293 + $0x84] sm:$0xf]
      %v4377 = vsel %vm4296, %v4166, %v4376
      %4378 = vst [vmem:[%s4293 + $0x84] sm:$0xf] %v4377
      %4379 = vst [vmem:[%s4293 + $0x88] sm:$0xf] %v4175
      %v4380 = vld [vmem:[%s4293 + $0x8c] sm:$0x1]
      %v4381 = vsel %vm4302, %v4176, %v4380
      %4382 = vst [vmem:[%s4293 + $0x8c] sm:$0x1] %v4381
      %v4383 = vld [vmem:[%s4293 + $0x90] sm:$0xf]
      %v4384 = vsel %vm4296, %v4183, %v4383
      %4385 = vst [vmem:[%s4293 + $0x90] sm:$0xf] %v4384
      %4386 = vst [vmem:[%s4293 + $0x94] sm:$0xf] %v4192
      %v4387 = vld [vmem:[%s4293 + $0x98] sm:$0x1]
      %v4388 = vsel %vm4302, %v4193, %v4387
      %4389 = vst [vmem:[%s4293 + $0x98] sm:$0x1] %v4388
      %v4390 = vld [vmem:[%s4293 + $0x9c] sm:$0xf]
      %v4391 = vsel %vm4296, %v4200, %v4390
      %4392 = vst [vmem:[%s4293 + $0x9c] sm:$0xf] %v4391
      %4393 = vst [vmem:[%s4293 + $0xa0] sm:$0xf] %v4209
      %v4394 = vld [vmem:[%s4293 + $0xa4] sm:$0x1]
      %v4395 = vsel %vm4302, %v4210, %v4394
      %4396 = vst [vmem:[%s4293 + $0xa4] sm:$0x1] %v4395
      %v4397 = vld [vmem:[%s4293 + $0xa8] sm:$0xf]
      %v4398 = vsel %vm4296, %v4217, %v4397
      %4399 = vst [vmem:[%s4293 + $0xa8] sm:$0xf] %v4398
      %4400 = vst [vmem:[%s4293 + $0xac] sm:$0xf] %v4226
      %v4401 = vld [vmem:[%s4293 + $0xb0] sm:$0x1]
      %v4402 = vsel %vm4302, %v4227, %v4401
      %4403 = vst [vmem:[%s4293 + $0xb0] sm:$0x1] %v4402
      %v4404 = vld [vmem:[%s4293 + $0xb4] sm:$0xf]
      %v4405 = vsel %vm4296, %v4234, %v4404
      %4406 = vst [vmem:[%s4293 + $0xb4] sm:$0xf] %v4405
      %4407 = vst [vmem:[%s4293 + $0xb8] sm:$0xf] %v4243
      %v4408 = vld [vmem:[%s4293 + $0xbc] sm:$0x1]
      %v4409 = vsel %vm4302, %v4244, %v4408
      %4410 = vst [vmem:[%s4293 + $0xbc] sm:$0x1] %v4409
      %v4411 = vld [vmem:[%s4] sm:$0x1]
      %v4412 = vld [vmem:[#allocation2] sm:$0xf]
      %v4413 = vld [vmem:[#allocation2 + $0x4] sm:$0xf]
      %v4414 = vld [vmem:[#allocation2 + $0xc] sm:$0xf]
      %v4415 = vld [vmem:[#allocation2 + $0x10] sm:$0xf]
      %v4416 = vld [vmem:[#allocation2 + $0x18] sm:$0xf]
      %v4417 = vld [vmem:[#allocation2 + $0x1c] sm:$0xf]
      %v4418 = vld [vmem:[#allocation2 + $0x24] sm:$0xf]
      %v4419 = vld [vmem:[#allocation2 + $0x28] sm:$0xf]
      %v4420 = vld [vmem:[#allocation2 + $0x30] sm:$0xf]
      %v4421 = vld [vmem:[#allocation2 + $0x34] sm:$0xf]
      %v4422 = vld [vmem:[#allocation2 + $0x3c] sm:$0xf]
      %v4423 = vld [vmem:[#allocation2 + $0x40] sm:$0xf]
      %v4424 = vld [vmem:[#allocation2 + $0x48] sm:$0xf]
      %v4425 = vld [vmem:[#allocation2 + $0x4c] sm:$0xf]
      %v4426 = vld [vmem:[#allocation2 + $0x54] sm:$0xf]
      %v4427 = vld [vmem:[#allocation2 + $0x58] sm:$0xf]
      %v4428 = vld [vmem:[#allocation2 + $0x60] sm:$0xf]
      %v4429 = vld [vmem:[#allocation2 + $0x64] sm:$0xf]
      %v4430 = vld [vmem:[#allocation2 + $0x6c] sm:$0xf]
      %v4431 = vld [vmem:[#allocation2 + $0x70] sm:$0xf]
      %v4432 = vld [vmem:[#allocation2 + $0x78] sm:$0xf]
      %v4433 = vld [vmem:[#allocation2 + $0x7c] sm:$0xf]
      %v4434 = vld [vmem:[#allocation2 + $0x84] sm:$0xf]
      %v4435 = vld [vmem:[#allocation2 + $0x88] sm:$0xf]
      %v4436 = vld [vmem:[#allocation2 + $0x90] sm:$0xf]
      %v4437 = vld [vmem:[#allocation2 + $0x94] sm:$0xf]
      %v4438 = vld [vmem:[#allocation2 + $0x9c] sm:$0xf]
      %v4439 = vld [vmem:[#allocation2 + $0xa0] sm:$0xf]
      %v4440 = vld [vmem:[#allocation2 + $0xa8] sm:$0xf]
      %v4441 = vld [vmem:[#allocation2 + $0xac] sm:$0xf]
      %v4442 = vld [vmem:[#allocation2 + $0xb4] sm:$0xf]
      %v4443 = vld [vmem:[#allocation2 + $0xb8] sm:$0xf]
      %v4444 = vld [vmem:[#allocation2 + $0xc0] sm:$0xf]
      %v4445 = vld [vmem:[#allocation2 + $0xc4] sm:$0xf]
      %v4446 = vld [vmem:[#allocation2 + $0xcc] sm:$0xf]
      %v4447 = vld [vmem:[#allocation2 + $0xd0] sm:$0xf]
      %v4448 = vld [vmem:[#allocation2] sm:$0xf]
      %v4449 = vld [vmem:[#allocation2 + $0x4] sm:$0xf]
      %v4450 = vld [vmem:[#allocation2 + $0x8] sm:$0x1]
      %v4451 = vld [vmem:[#allocation2 + $0xc] sm:$0xf]
      %v4452 = vld [vmem:[#allocation2 + $0x10] sm:$0xf]
      %v4453 = vld [vmem:[#allocation2 + $0x14] sm:$0x1]
      %v4454 = vld [vmem:[#allocation2 + $0x18] sm:$0xf]
      %v4455 = vld [vmem:[#allocation2 + $0x1c] sm:$0xf]
      %v4456 = vld [vmem:[#allocation2 + $0x20] sm:$0x1]
      %v4457 = vld [vmem:[#allocation2 + $0x24] sm:$0xf]
      %v4458 = vld [vmem:[#allocation2 + $0x28] sm:$0xf]
      %v4459 = vld [vmem:[#allocation2 + $0x2c] sm:$0x1]
      %v4460 = vld [vmem:[#allocation2 + $0x30] sm:$0xf]
      %v4461 = vld [vmem:[#allocation2 + $0x34] sm:$0xf]
      %v4462 = vld [vmem:[#allocation2 + $0x38] sm:$0x1]
      %v4463 = vld [vmem:[#allocation2 + $0x3c] sm:$0xf]
      %v4464 = vld [vmem:[#allocation2 + $0x40] sm:$0xf]
      %v4465 = vld [vmem:[#allocation2 + $0x44] sm:$0x1]
      %v4466 = vld [vmem:[#allocation2 + $0x48] sm:$0xf]
      %v4467 = vld [vmem:[#allocation2 + $0x4c] sm:$0xf]
      %v4468 = vld [vmem:[#allocation2 + $0x50] sm:$0x1]
      %v4469 = vld [vmem:[#allocation2 + $0x54] sm:$0xf]
      %v4470 = vld [vmem:[#allocation2 + $0x58] sm:$0xf]
      %v4471 = vld [vmem:[#allocation2 + $0x5c] sm:$0x1]
      %v4472 = vld [vmem:[#allocation2 + $0x60] sm:$0xf]
      %v4473 = vld [vmem:[#allocation2 + $0x64] sm:$0xf]
      %v4474 = vld [vmem:[#allocation2 + $0x68] sm:$0x1]
      %v4475 = vld [vmem:[#allocation2 + $0x6c] sm:$0xf]
      %v4476 = vld [vmem:[#allocation2 + $0x70] sm:$0xf]
      %v4477 = vld [vmem:[#allocation2 + $0x74] sm:$0x1]
      %v4478 = vld [vmem:[#allocation2 + $0x78] sm:$0xf]
      %v4479 = vld [vmem:[#allocation2 + $0x7c] sm:$0xf]
      %v4480 = vld [vmem:[#allocation2 + $0x80] sm:$0x1]
      %v4481 = vld [vmem:[#allocation2 + $0x84] sm:$0xf]
      %v4482 = vld [vmem:[#allocation2 + $0x88] sm:$0xf]
      %v4483 = vld [vmem:[#allocation2 + $0x8c] sm:$0x1]
      %v4484 = vld [vmem:[#allocation2 + $0x90] sm:$0xf]
      %v4485 = vld [vmem:[#allocation2 + $0x94] sm:$0xf]
      %v4486 = vld [vmem:[#allocation2 + $0x98] sm:$0x1]
      %v4487 = vld [vmem:[#allocation2 + $0x9c] sm:$0xf]
      %v4488 = vld [vmem:[#allocation2 + $0xa0] sm:$0xf]
      %v4489 = vld [vmem:[#allocation2 + $0xa4] sm:$0x1]
      %v4490 = vld [vmem:[#allocation2 + $0xa8] sm:$0xf]
      %v4491 = vld [vmem:[#allocation2 + $0xac] sm:$0xf]
      %v4492 = vld [vmem:[#allocation2 + $0xb0] sm:$0x1]
      %v4493 = vld [vmem:[#allocation2 + $0xb4] sm:$0xf]
      %v4494 = vld [vmem:[#allocation2 + $0xb8] sm:$0xf]
      %v4495 = vld [vmem:[#allocation2 + $0xbc] sm:$0x1]
      %v4496 = vld [vmem:[#allocation2 + $0xc0] sm:$0xf]
      %v4497 = vld [vmem:[#allocation2 + $0xc4] sm:$0xf]
      %v4498 = vld [vmem:[#allocation2 + $0xc8] sm:$0x1]
      %v4499 = vld [vmem:[#allocation2 + $0xcc] sm:$0xf]
      %v4500 = vld [vmem:[#allocation2 + $0xd0] sm:$0xf]
      %v4501 = vld [vmem:[#allocation2 + $0xd4] sm:$0x1]
      %v4503 = vshrl.u32 %v4448, 16
      %v4505 = vrot.slane %v4503, 4
      %v4506 = vshll.u32 %v4448, 16
      %v4508 = vrot.slane %v4506, 5
      %v4509 = vor.u32 %v4505, %v4508
      %v4510 = vrot.slane %v4509, 4
      %v4512 = vshll.u32 %v4449, 16
      %v4514 = vrot.slane %v4512, 5
      %v4515 = vsel %vm319, %v4510, %v4514
      %v4516 = vshrl.u32 %v4449, 16
      %v4518 = vrot.slane %v4516, 4
      %v4519 = vor.u32 %v4518, %v4514
      %v4520 = vrot.slane %v4519, 4
      %v4522 = vshll.u32 %v4450, 16
      %v4524 = vrot.slane %v4522, 5
      %v4525 = vsel %vm319, %v4520, %v4524
      %v4527 = vshrl.u32 %v4451, 16
      %v4529 = vrot.slane %v4527, 4
      %v4530 = vshll.u32 %v4451, 16
      %v4532 = vrot.slane %v4530, 5
      %v4533 = vor.u32 %v4529, %v4532
      %v4534 = vrot.slane %v4533, 4
      %v4536 = vshll.u32 %v4452, 16
      %v4538 = vrot.slane %v4536, 5
      %v4539 = vsel %vm319, %v4534, %v4538
      %v4540 = vshrl.u32 %v4452, 16
      %v4542 = vrot.slane %v4540, 4
      %v4543 = vor.u32 %v4542, %v4538
      %v4544 = vrot.slane %v4543, 4
      %v4546 = vshll.u32 %v4453, 16
      %v4548 = vrot.slane %v4546, 5
      %v4549 = vsel %vm319, %v4544, %v4548
      %v4551 = vshrl.u32 %v4454, 16
      %v4553 = vrot.slane %v4551, 4
      %v4554 = vshll.u32 %v4454, 16
      %v4556 = vrot.slane %v4554, 5
      %v4557 = vor.u32 %v4553, %v4556
      %v4558 = vrot.slane %v4557, 4
      %v4560 = vshll.u32 %v4455, 16
      %v4562 = vrot.slane %v4560, 5
      %v4563 = vsel %vm319, %v4558, %v4562
      %v4564 = vshrl.u32 %v4455, 16
      %v4566 = vrot.slane %v4564, 4
      %v4567 = vor.u32 %v4566, %v4562
      %v4568 = vrot.slane %v4567, 4
      %v4570 = vshll.u32 %v4456, 16
      %v4572 = vrot.slane %v4570, 5
      %v4573 = vsel %vm319, %v4568, %v4572
      %v4575 = vshrl.u32 %v4457, 16
      %v4577 = vrot.slane %v4575, 4
      %v4578 = vshll.u32 %v4457, 16
      %v4580 = vrot.slane %v4578, 5
      %v4581 = vor.u32 %v4577, %v4580
      %v4582 = vrot.slane %v4581, 4
      %v4584 = vshll.u32 %v4458, 16
      %v4586 = vrot.slane %v4584, 5
      %v4587 = vsel %vm319, %v4582, %v4586
      %v4588 = vshrl.u32 %v4458, 16
      %v4590 = vrot.slane %v4588, 4
      %v4591 = vor.u32 %v4590, %v4586
      %v4592 = vrot.slane %v4591, 4
      %v4594 = vshll.u32 %v4459, 16
      %v4596 = vrot.slane %v4594, 5
      %v4597 = vsel %vm319, %v4592, %v4596
      %v4599 = vshrl.u32 %v4460, 16
      %v4601 = vrot.slane %v4599, 4
      %v4602 = vshll.u32 %v4460, 16
      %v4604 = vrot.slane %v4602, 5
      %v4605 = vor.u32 %v4601, %v4604
      %v4606 = vrot.slane %v4605, 4
      %v4608 = vshll.u32 %v4461, 16
      %v4610 = vrot.slane %v4608, 5
      %v4611 = vsel %vm319, %v4606, %v4610
      %v4612 = vshrl.u32 %v4461, 16
      %v4614 = vrot.slane %v4612, 4
      %v4615 = vor.u32 %v4614, %v4610
      %v4616 = vrot.slane %v4615, 4
      %v4618 = vshll.u32 %v4462, 16
      %v4620 = vrot.slane %v4618, 5
      %v4621 = vsel %vm319, %v4616, %v4620
      %v4623 = vshrl.u32 %v4463, 16
      %v4625 = vrot.slane %v4623, 4
      %v4626 = vshll.u32 %v4463, 16
      %v4628 = vrot.slane %v4626, 5
      %v4629 = vor.u32 %v4625, %v4628
      %v4630 = vrot.slane %v4629, 4
      %v4632 = vshll.u32 %v4464, 16
      %v4634 = vrot.slane %v4632, 5
      %v4635 = vsel %vm319, %v4630, %v4634
      %v4636 = vshrl.u32 %v4464, 16
      %v4638 = vrot.slane %v4636, 4
      %v4639 = vor.u32 %v4638, %v4634
      %v4640 = vrot.slane %v4639, 4
      %v4642 = vshll.u32 %v4465, 16
      %v4644 = vrot.slane %v4642, 5
      %v4645 = vsel %vm319, %v4640, %v4644
      %v4647 = vshrl.u32 %v4466, 16
      %v4649 = vrot.slane %v4647, 4
      %v4650 = vshll.u32 %v4466, 16
      %v4652 = vrot.slane %v4650, 5
      %v4653 = vor.u32 %v4649, %v4652
      %v4654 = vrot.slane %v4653, 4
      %v4656 = vshll.u32 %v4467, 16
      %v4658 = vrot.slane %v4656, 5
      %v4659 = vsel %vm319, %v4654, %v4658
      %v4660 = vshrl.u32 %v4467, 16
      %v4662 = vrot.slane %v4660, 4
      %v4663 = vor.u32 %v4662, %v4658
      %v4664 = vrot.slane %v4663, 4
      %v4666 = vshll.u32 %v4468, 16
      %v4668 = vrot.slane %v4666, 5
      %v4669 = vsel %vm319, %v4664, %v4668
      %v4671 = vshrl.u32 %v4469, 16
      %v4673 = vrot.slane %v4671, 4
      %v4674 = vshll.u32 %v4469, 16
      %v4676 = vrot.slane %v4674, 5
      %v4677 = vor.u32 %v4673, %v4676
      %v4678 = vrot.slane %v4677, 4
      %v4680 = vshll.u32 %v4470, 16
      %v4682 = vrot.slane %v4680, 5
      %v4683 = vsel %vm319, %v4678, %v4682
      %v4684 = vshrl.u32 %v4470, 16
      %v4686 = vrot.slane %v4684, 4
      %v4687 = vor.u32 %v4686, %v4682
      %v4688 = vrot.slane %v4687, 4
      %v4690 = vshll.u32 %v4471, 16
      %v4692 = vrot.slane %v4690, 5
      %v4693 = vsel %vm319, %v4688, %v4692
      %v4695 = vshrl.u32 %v4472, 16
      %v4697 = vrot.slane %v4695, 4
      %v4698 = vshll.u32 %v4472, 16
      %v4700 = vrot.slane %v4698, 5
      %v4701 = vor.u32 %v4697, %v4700
      %v4702 = vrot.slane %v4701, 4
      %v4704 = vshll.u32 %v4473, 16
      %v4706 = vrot.slane %v4704, 5
      %v4707 = vsel %vm319, %v4702, %v4706
      %v4708 = vshrl.u32 %v4473, 16
      %v4710 = vrot.slane %v4708, 4
      %v4711 = vor.u32 %v4710, %v4706
      %v4712 = vrot.slane %v4711, 4
      %v4714 = vshll.u32 %v4474, 16
      %v4716 = vrot.slane %v4714, 5
      %v4717 = vsel %vm319, %v4712, %v4716
      %v4719 = vshrl.u32 %v4475, 16
      %v4721 = vrot.slane %v4719, 4
      %v4722 = vshll.u32 %v4475, 16
      %v4724 = vrot.slane %v4722, 5
      %v4725 = vor.u32 %v4721, %v4724
      %v4726 = vrot.slane %v4725, 4
      %v4728 = vshll.u32 %v4476, 16
      %v4730 = vrot.slane %v4728, 5
      %v4731 = vsel %vm319, %v4726, %v4730
      %v4732 = vshrl.u32 %v4476, 16
      %v4734 = vrot.slane %v4732, 4
      %v4735 = vor.u32 %v4734, %v4730
      %v4736 = vrot.slane %v4735, 4
      %v4738 = vshll.u32 %v4477, 16
      %v4740 = vrot.slane %v4738, 5
      %v4741 = vsel %vm319, %v4736, %v4740
      %v4743 = vshrl.u32 %v4478, 16
      %v4745 = vrot.slane %v4743, 4
      %v4746 = vshll.u32 %v4478, 16
      %v4748 = vrot.slane %v4746, 5
      %v4749 = vor.u32 %v4745, %v4748
      %v4750 = vrot.slane %v4749, 4
      %v4752 = vshll.u32 %v4479, 16
      %v4754 = vrot.slane %v4752, 5
      %v4755 = vsel %vm319, %v4750, %v4754
      %v4756 = vshrl.u32 %v4479, 16
      %v4758 = vrot.slane %v4756, 4
      %v4759 = vor.u32 %v4758, %v4754
      %v4760 = vrot.slane %v4759, 4
      %v4762 = vshll.u32 %v4480, 16
      %v4764 = vrot.slane %v4762, 5
      %v4765 = vsel %vm319, %v4760, %v4764
      %v4767 = vshrl.u32 %v4481, 16
      %v4769 = vrot.slane %v4767, 4
      %v4770 = vshll.u32 %v4481, 16
      %v4772 = vrot.slane %v4770, 5
      %v4773 = vor.u32 %v4769, %v4772
      %v4774 = vrot.slane %v4773, 4
      %v4776 = vshll.u32 %v4482, 16
      %v4778 = vrot.slane %v4776, 5
      %v4779 = vsel %vm319, %v4774, %v4778
      %v4780 = vshrl.u32 %v4482, 16
      %v4782 = vrot.slane %v4780, 4
      %v4783 = vor.u32 %v4782, %v4778
      %v4784 = vrot.slane %v4783, 4
      %v4786 = vshll.u32 %v4483, 16
      %v4788 = vrot.slane %v4786, 5
      %v4789 = vsel %vm319, %v4784, %v4788
      %v4791 = vshrl.u32 %v4484, 16
      %v4793 = vrot.slane %v4791, 4
      %v4794 = vshll.u32 %v4484, 16
      %v4796 = vrot.slane %v4794, 5
      %v4797 = vor.u32 %v4793, %v4796
      %v4798 = vrot.slane %v4797, 4
      %v4800 = vshll.u32 %v4485, 16
      %v4802 = vrot.slane %v4800, 5
      %v4803 = vsel %vm319, %v4798, %v4802
      %v4804 = vshrl.u32 %v4485, 16
      %v4806 = vrot.slane %v4804, 4
      %v4807 = vor.u32 %v4806, %v4802
      %v4808 = vrot.slane %v4807, 4
      %v4810 = vshll.u32 %v4486, 16
      %v4812 = vrot.slane %v4810, 5
      %v4813 = vsel %vm319, %v4808, %v4812
      %v4815 = vshrl.u32 %v4487, 16
      %v4817 = vrot.slane %v4815, 4
      %v4818 = vshll.u32 %v4487, 16
      %v4820 = vrot.slane %v4818, 5
      %v4821 = vor.u32 %v4817, %v4820
      %v4822 = vrot.slane %v4821, 4
      %v4824 = vshll.u32 %v4488, 16
      %v4826 = vrot.slane %v4824, 5
      %v4827 = vsel %vm319, %v4822, %v4826
      %v4828 = vshrl.u32 %v4488, 16
      %v4830 = vrot.slane %v4828, 4
      %v4831 = vor.u32 %v4830, %v4826
      %v4832 = vrot.slane %v4831, 4
      %v4834 = vshll.u32 %v4489, 16
      %v4836 = vrot.slane %v4834, 5
      %v4837 = vsel %vm319, %v4832, %v4836
      %v4839 = vshrl.u32 %v4490, 16
      %v4841 = vrot.slane %v4839, 4
      %v4842 = vshll.u32 %v4490, 16
      %v4844 = vrot.slane %v4842, 5
      %v4845 = vor.u32 %v4841, %v4844
      %v4846 = vrot.slane %v4845, 4
      %v4848 = vshll.u32 %v4491, 16
      %v4850 = vrot.slane %v4848, 5
      %v4851 = vsel %vm319, %v4846, %v4850
      %v4852 = vshrl.u32 %v4491, 16
      %v4854 = vrot.slane %v4852, 4
      %v4855 = vor.u32 %v4854, %v4850
      %v4856 = vrot.slane %v4855, 4
      %v4858 = vshll.u32 %v4492, 16
      %v4860 = vrot.slane %v4858, 5
      %v4861 = vsel %vm319, %v4856, %v4860
      %v4863 = vshrl.u32 %v4493, 16
      %v4865 = vrot.slane %v4863, 4
      %v4866 = vshll.u32 %v4493, 16
      %v4868 = vrot.slane %v4866, 5
      %v4869 = vor.u32 %v4865, %v4868
      %v4870 = vrot.slane %v4869, 4
      %v4872 = vshll.u32 %v4494, 16
      %v4874 = vrot.slane %v4872, 5
      %v4875 = vsel %vm319, %v4870, %v4874
      %v4876 = vshrl.u32 %v4494, 16
      %v4878 = vrot.slane %v4876, 4
      %v4879 = vor.u32 %v4878, %v4874
      %v4880 = vrot.slane %v4879, 4
      %v4882 = vshll.u32 %v4495, 16
      %v4884 = vrot.slane %v4882, 5
      %v4885 = vsel %vm319, %v4880, %v4884
      %v4887 = vshrl.u32 %v4496, 16
      %v4889 = vrot.slane %v4887, 4
      %v4890 = vshll.u32 %v4496, 16
      %v4892 = vrot.slane %v4890, 5
      %v4893 = vor.u32 %v4889, %v4892
      %v4894 = vrot.slane %v4893, 4
      %v4896 = vshll.u32 %v4497, 16
      %v4898 = vrot.slane %v4896, 5
      %v4899 = vsel %vm319, %v4894, %v4898
      %v4900 = vshrl.u32 %v4497, 16
      %v4902 = vrot.slane %v4900, 4
      %v4903 = vor.u32 %v4902, %v4898
      %v4904 = vrot.slane %v4903, 4
      %v4906 = vshll.u32 %v4498, 16
      %v4908 = vrot.slane %v4906, 5
      %v4909 = vsel %vm319, %v4904, %v4908
      %v4911 = vshrl.u32 %v4499, 16
      %v4913 = vrot.slane %v4911, 4
      %v4914 = vshll.u32 %v4499, 16
      %v4916 = vrot.slane %v4914, 5
      %v4917 = vor.u32 %v4913, %v4916
      %v4918 = vrot.slane %v4917, 4
      %v4920 = vshll.u32 %v4500, 16
      %v4922 = vrot.slane %v4920, 5
      %v4923 = vsel %vm319, %v4918, %v4922
      %v4924 = vshrl.u32 %v4500, 16
      %v4926 = vrot.slane %v4924, 4
      %v4927 = vor.u32 %v4926, %v4922
      %v4928 = vrot.slane %v4927, 4
      %v4930 = vshll.u32 %v4501, 16
      %v4932 = vrot.slane %v4930, 5
      %v4933 = vsel %vm319, %v4928, %v4932
      %v4934 = vld [vmem:[#allocation2] sm:$0xe]
      %v4935 = vld [vmem:[#allocation2 + $0xc] sm:$0xe]
      %v4936 = vld [vmem:[#allocation2 + $0x18] sm:$0xe]
      %v4937 = vld [vmem:[#allocation2 + $0x24] sm:$0xe]
      %v4938 = vld [vmem:[#allocation2 + $0x30] sm:$0xe]
      %v4939 = vld [vmem:[#allocation2 + $0x3c] sm:$0xe]
      %v4940 = vld [vmem:[#allocation2 + $0x48] sm:$0xe]
      %v4941 = vld [vmem:[#allocation2 + $0x54] sm:$0xe]
      %v4942 = vld [vmem:[#allocation2 + $0x60] sm:$0xe]
      %v4943 = vld [vmem:[#allocation2 + $0x6c] sm:$0xe]
      %v4944 = vld [vmem:[#allocation2 + $0x78] sm:$0xe]
      %v4945 = vld [vmem:[#allocation2 + $0x84] sm:$0xe]
      %v4946 = vld [vmem:[#allocation2 + $0x90] sm:$0xe]
      %v4947 = vld [vmem:[#allocation2 + $0x9c] sm:$0xe]
      %v4948 = vld [vmem:[#allocation2 + $0xa8] sm:$0xe]
      %v4949 = vld [vmem:[#allocation2 + $0xb4] sm:$0xe]
      %v4950 = vld [vmem:[#allocation2 + $0xc0] sm:$0xe]
      %v4951 = vld [vmem:[#allocation2 + $0xcc] sm:$0xe]
      %v5006 = vrot.slane %v4934, 5
      %v5007 = vrot.slane %v5006, 4
      %v5008 = vrot.slane %v4449, 5
      %v5009 = vsel %vm826, %v5007, %v5008
      %v5010 = vrot.slane %v5008, 4
      %v5011 = vrot.slane %v4450, 5
      %v5012 = vsel %vm826, %v5010, %v5011
      %v5013 = vrot.slane %v4935, 5
      %v5014 = vrot.slane %v5013, 4
      %v5015 = vrot.slane %v4452, 5
      %v5016 = vsel %vm826, %v5014, %v5015
      %v5017 = vrot.slane %v5015, 4
      %v5018 = vrot.slane %v4453, 5
      %v5019 = vsel %vm826, %v5017, %v5018
      %v5020 = vrot.slane %v4936, 5
      %v5021 = vrot.slane %v5020, 4
      %v5022 = vrot.slane %v4455, 5
      %v5023 = vsel %vm826, %v5021, %v5022
      %v5024 = vrot.slane %v5022, 4
      %v5025 = vrot.slane %v4456, 5
      %v5026 = vsel %vm826, %v5024, %v5025
      %v5027 = vrot.slane %v4937, 5
      %v5028 = vrot.slane %v5027, 4
      %v5029 = vrot.slane %v4458, 5
      %v5030 = vsel %vm826, %v5028, %v5029
      %v5031 = vrot.slane %v5029, 4
      %v5032 = vrot.slane %v4459, 5
      %v5033 = vsel %vm826, %v5031, %v5032
      %v5034 = vrot.slane %v4938, 5
      %v5035 = vrot.slane %v5034, 4
      %v5036 = vrot.slane %v4461, 5
      %v5037 = vsel %vm826, %v5035, %v5036
      %v5038 = vrot.slane %v5036, 4
      %v5039 = vrot.slane %v4462, 5
      %v5040 = vsel %vm826, %v5038, %v5039
      %v5041 = vrot.slane %v4939, 5
      %v5042 = vrot.slane %v5041, 4
      %v5043 = vrot.slane %v4464, 5
      %v5044 = vsel %vm826, %v5042, %v5043
      %v5045 = vrot.slane %v5043, 4
      %v5046 = vrot.slane %v4465, 5
      %v5047 = vsel %vm826, %v5045, %v5046
      %v5048 = vrot.slane %v4940, 5
      %v5049 = vrot.slane %v5048, 4
      %v5050 = vrot.slane %v4467, 5
      %v5051 = vsel %vm826, %v5049, %v5050
      %v5052 = vrot.slane %v5050, 4
      %v5053 = vrot.slane %v4468, 5
      %v5054 = vsel %vm826, %v5052, %v5053
      %v5055 = vrot.slane %v4941, 5
      %v5056 = vrot.slane %v5055, 4
      %v5057 = vrot.slane %v4470, 5
      %v5058 = vsel %vm826, %v5056, %v5057
      %v5059 = vrot.slane %v5057, 4
      %v5060 = vrot.slane %v4471, 5
      %v5061 = vsel %vm826, %v5059, %v5060
      %v5062 = vrot.slane %v4942, 5
      %v5063 = vrot.slane %v5062, 4
      %v5064 = vrot.slane %v4473, 5
      %v5065 = vsel %vm826, %v5063, %v5064
      %v5066 = vrot.slane %v5064, 4
      %v5067 = vrot.slane %v4474, 5
      %v5068 = vsel %vm826, %v5066, %v5067
      %v5069 = vrot.slane %v4943, 5
      %v5070 = vrot.slane %v5069, 4
      %v5071 = vrot.slane %v4476, 5
      %v5072 = vsel %vm826, %v5070, %v5071
      %v5073 = vrot.slane %v5071, 4
      %v5074 = vrot.slane %v4477, 5
      %v5075 = vsel %vm826, %v5073, %v5074
      %v5076 = vrot.slane %v4944, 5
      %v5077 = vrot.slane %v5076, 4
      %v5078 = vrot.slane %v4479, 5
      %v5079 = vsel %vm826, %v5077, %v5078
      %v5080 = vrot.slane %v5078, 4
      %v5081 = vrot.slane %v4480, 5
      %v5082 = vsel %vm826, %v5080, %v5081
      %v5083 = vrot.slane %v4945, 5
      %v5084 = vrot.slane %v5083, 4
      %v5085 = vrot.slane %v4482, 5
      %v5086 = vsel %vm826, %v5084, %v5085
      %v5087 = vrot.slane %v5085, 4
      %v5088 = vrot.slane %v4483, 5
      %v5089 = vsel %vm826, %v5087, %v5088
      %v5090 = vrot.slane %v4946, 5
      %v5091 = vrot.slane %v5090, 4
      %v5092 = vrot.slane %v4485, 5
      %v5093 = vsel %vm826, %v5091, %v5092
      %v5094 = vrot.slane %v5092, 4
      %v5095 = vrot.slane %v4486, 5
      %v5096 = vsel %vm826, %v5094, %v5095
      %v5097 = vrot.slane %v4947, 5
      %v5098 = vrot.slane %v5097, 4
      %v5099 = vrot.slane %v4488, 5
      %v5100 = vsel %vm826, %v5098, %v5099
      %v5101 = vrot.slane %v5099, 4
      %v5102 = vrot.slane %v4489, 5
      %v5103 = vsel %vm826, %v5101, %v5102
      %v5104 = vrot.slane %v4948, 5
      %v5105 = vrot.slane %v5104, 4
      %v5106 = vrot.slane %v4491, 5
      %v5107 = vsel %vm826, %v5105, %v5106
      %v5108 = vrot.slane %v5106, 4
      %v5109 = vrot.slane %v4492, 5
      %v5110 = vsel %vm826, %v5108, %v5109
      %v5111 = vrot.slane %v4949, 5
      %v5112 = vrot.slane %v5111, 4
      %v5113 = vrot.slane %v4494, 5
      %v5114 = vsel %vm826, %v5112, %v5113
      %v5115 = vrot.slane %v5113, 4
      %v5116 = vrot.slane %v4495, 5
      %v5117 = vsel %vm826, %v5115, %v5116
      %v5118 = vrot.slane %v4950, 5
      %v5119 = vrot.slane %v5118, 4
      %v5120 = vrot.slane %v4497, 5
      %v5121 = vsel %vm826, %v5119, %v5120
      %v5122 = vrot.slane %v5120, 4
      %v5123 = vrot.slane %v4498, 5
      %v5124 = vsel %vm826, %v5122, %v5123
      %v5125 = vrot.slane %v4951, 5
      %v5126 = vrot.slane %v5125, 4
      %v5127 = vrot.slane %v4500, 5
      %v5128 = vsel %vm826, %v5126, %v5127
      %v5129 = vrot.slane %v5127, 4
      %v5130 = vrot.slane %v4501, 5
      %v5131 = vsel %vm826, %v5129, %v5130
      %v5132 = vld [vmem:[%s3] sm:$0xf]
      %v5133 = vld [vmem:[%s3 + $0x4] sm:$0xf]
      %v5134 = vld [vmem:[%s3 + $0x8] sm:$0xf]
      %v5135 = vld [vmem:[%s3 + $0xc] sm:$0xf]
      %v5136 = vld [vmem:[%s3 + $0x10] sm:$0xf]
      %v5137 = vld [vmem:[%s3 + $0x14] sm:$0xf]
      %v5138 = vld [vmem:[%s3 + $0x18] sm:$0xf]
      %v5139 = vld [vmem:[%s3 + $0x1c] sm:$0xf]
      %v5140 = vld [vmem:[%s3 + $0x20] sm:$0xf]
      %v5141 = vld [vmem:[%s3 + $0x24] sm:$0xf]
      %v5142 = vld [vmem:[%s3 + $0x28] sm:$0xf]
      %v5143 = vld [vmem:[%s3 + $0x2c] sm:$0xf]
      %v5144 = vld [vmem:[%s3 + $0x30] sm:$0xf]
      %v5145 = vld [vmem:[%s3 + $0x34] sm:$0xf]
      %v5146 = vld [vmem:[%s3 + $0x38] sm:$0xf]
      %v5147 = vld [vmem:[%s3 + $0x3c] sm:$0xf]
      %s5148 = scalar_lea.vmem %s3, 64
      %v5149 = vld [vmem:[%s5148] sm:$0xf]
      %v5150 = vld [vmem:[%s5148 + $0x4] sm:$0xf]
      %v5151 = vld [vmem:[%s5148 + $0x8] sm:$0xf]
      %v5152 = vld [vmem:[%s5148 + $0xc] sm:$0xf]
      %v5153 = vld [vmem:[%s5148 + $0x10] sm:$0xf]
      %v5154 = vld [vmem:[%s5148 + $0x14] sm:$0xf]
      %v5155 = vld [vmem:[%s5148 + $0x18] sm:$0xf]
      %v5156 = vld [vmem:[%s5148 + $0x1c] sm:$0xf]
      %v5157 = vld [vmem:[%s5148 + $0x20] sm:$0xf]
      %v5158 = vld [vmem:[%s5148 + $0x24] sm:$0xf]
      %v5159 = vld [vmem:[%s5148 + $0x28] sm:$0xf]
      %v5160 = vld [vmem:[%s5148 + $0x2c] sm:$0xf]
      %v5161 = vld [vmem:[%s5148 + $0x30] sm:$0xf]
      %v5162 = vld [vmem:[%s5148 + $0x34] sm:$0xf]
      %v5163 = vld [vmem:[%s5148 + $0x38] sm:$0xf]
      %v5164 = vld [vmem:[%s5148 + $0x3c] sm:$0xf]
      %v5165 = vunpack.c.l.b16 %v4515
      %v5166 = vunpack.c.l.b16 %v4525
      %v5167 = vunpack.c.l.b16 %v4539
      %v5168 = vunpack.c.l.b16 %v4549
      %v5169 = vunpack.c.l.b16 %v4563
      %v5170 = vunpack.c.l.b16 %v4573
      %v5171 = vunpack.c.l.b16 %v4587
      %v5172 = vunpack.c.l.b16 %v4597
      %v5173 = vunpack.c.l.b16 %v4611
      %v5174 = vunpack.c.l.b16 %v4621
      %v5175 = vunpack.c.l.b16 %v4635
      %v5176 = vunpack.c.l.b16 %v4645
      %v5177 = vunpack.c.l.b16 %v4659
      %v5178 = vunpack.c.l.b16 %v4669
      %v5179 = vunpack.c.l.b16 %v4683
      %v5180 = vunpack.c.l.b16 %v4693
      %v5181 = vunpack.c.l.b16 %v4707
      %v5182 = vunpack.c.l.b16 %v4717
      %v5183 = vunpack.c.l.b16 %v4731
      %v5184 = vunpack.c.l.b16 %v4741
      %v5185 = vunpack.c.l.b16 %v4755
      %v5186 = vunpack.c.l.b16 %v4765
      %v5187 = vunpack.c.l.b16 %v4779
      %v5188 = vunpack.c.l.b16 %v4789
      %v5189 = vunpack.c.l.b16 %v4803
      %v5190 = vunpack.c.l.b16 %v4813
      %v5191 = vunpack.c.l.b16 %v4827
      %v5192 = vunpack.c.l.b16 %v4837
      %v5193 = vunpack.c.l.b16 %v4851
      %v5194 = vunpack.c.l.b16 %v4861
      %v5195 = vunpack.c.l.b16 %v4875
      %v5196 = vunpack.c.l.b16 %v4885
      %v5197 = vpack.c.b16 %v5166, %v5165
      %v5198 = vpack.c.b16 %v5168, %v5167
      %v5199 = vpack.c.b16 %v5170, %v5169
      %v5200 = vpack.c.b16 %v5172, %v5171
      %v5201 = vpack.c.b16 %v5174, %v5173
      %v5202 = vpack.c.b16 %v5176, %v5175
      %v5203 = vpack.c.b16 %v5178, %v5177
      %v5204 = vpack.c.b16 %v5180, %v5179
      %v5205 = vpack.c.b16 %v5182, %v5181
      %v5206 = vpack.c.b16 %v5184, %v5183
      %v5207 = vpack.c.b16 %v5186, %v5185
      %v5208 = vpack.c.b16 %v5188, %v5187
      %v5209 = vpack.c.b16 %v5190, %v5189
      %v5210 = vpack.c.b16 %v5192, %v5191
      %v5211 = vpack.c.b16 %v5194, %v5193
      %v5212 = vpack.c.b16 %v5196, %v5195
      %v5245 = vunpack.c.l.b16 %v5149
      %v5246 = vunpack.c.l.b16 %v5150
      %v5247 = vunpack.c.l.b16 %v5151
      %v5248 = vunpack.c.l.b16 %v5152
      %v5249 = vunpack.c.l.b16 %v5153
      %v5250 = vunpack.c.l.b16 %v5154
      %v5251 = vunpack.c.l.b16 %v5155
      %v5252 = vunpack.c.l.b16 %v5156
      %v5253 = vunpack.c.l.b16 %v5157
      %v5254 = vunpack.c.l.b16 %v5158
      %v5255 = vunpack.c.l.b16 %v5159
      %v5256 = vunpack.c.l.b16 %v5160
      %v5257 = vunpack.c.l.b16 %v5161
      %v5258 = vunpack.c.l.b16 %v5162
      %v5259 = vunpack.c.l.b16 %v5163
      %v5260 = vunpack.c.l.b16 %v5164
      %v5261 = vpack.c.b16 %v5246, %v5245
      %v5262 = vpack.c.b16 %v5248, %v5247
      %v5263 = vpack.c.b16 %v5250, %v5249
      %v5264 = vpack.c.b16 %v5252, %v5251
      %v5265 = vpack.c.b16 %v5254, %v5253
      %v5266 = vpack.c.b16 %v5256, %v5255
      %v5267 = vpack.c.b16 %v5258, %v5257
      %v5268 = vpack.c.b16 %v5260, %v5259
      %5277 = vmatprep.subr.bf16.mxu0 0
      %5278 = vmatpush1.bf16.msra.mxu0 %v5261
      %5279 = vmatprep.subr.bf16.mxu0 0
      %5280 = vmatpush1.bf16.msra.mxu0 %v5262
      %5281 = vmatprep.subr.bf16.mxu0 0
      %5282 = vmatpush1.bf16.msra.mxu0 %v5263
      %5283 = vmatprep.subr.bf16.mxu0 0
      %5284 = vmatpush1.bf16.msra.mxu0 %v5264
      %5285 = vmatprep.subr.bf16.mxu0 0
      %5286 = vmatpush1.bf16.msra.mxu0 %v5265
      %5287 = vmatprep.subr.bf16.mxu0 0
      %5288 = vmatpush1.bf16.msra.mxu0 %v5266
      %5289 = vmatprep.subr.bf16.mxu0 0
      %5290 = vmatpush1.bf16.msra.mxu0 %v5267
      %5291 = vmatprep.subr.bf16.mxu0 0
      %5292 = vmatpush1.bf16.msra.mxu0 %v5268
      %5293 = vmatprep.subr.bf16.mxu0 0
      %5294 = vmatpush1.bf16.msra.mxu0 0
      %5295 = vmatprep.subr.bf16.mxu0 0
      %5296 = vmatpush1.bf16.msra.mxu0 0
      %5297 = vmatprep.subr.bf16.mxu0 0
      %5298 = vmatpush1.bf16.msra.mxu0 0
      %5299 = vmatprep.subr.bf16.mxu0 0
      %5300 = vmatpush1.bf16.msra.mxu0 0
      %5301 = vmatprep.subr.bf16.mxu0 0
      %5302 = vmatpush1.bf16.msra.mxu0 0
      %5303 = vmatprep.subr.bf16.mxu0 0
      %5304 = vmatpush1.bf16.msra.mxu0 0
      %5305 = vmatprep.subr.bf16.mxu0 0
      %5306 = vmatpush1.bf16.msra.mxu0 0
      %5307 = vmatprep.subr.bf16.mxu0 0
      %5308 = vmatpush1.bf16.msra.mxu0 0
      %5309 = vmatprep.mubr.bf16.mxu0 0
      %5310 = vmatmul.mubr.bf16.gmra.mrb[0].mxu0 %v5197
      %v5311 = vpop.f32.mrb[0].mxu0
      %v5312 = vadd.f32 0.0, %v5311
      %v5313 = vpop.f32.mrb[0].mxu0
      %v5314 = vpop.f32.mrb[0].mxu0
      %v5315 = vadd.f32 0.0, %v5314
      %v5316 = vpop.f32.mrb[0].mxu0
      %5317 = vmatprep.mubr.bf16.mxu0 0
      %5318 = vmatmul.mubr.bf16.gmra.mrb[0].mxu0 %v5198
      %v5319 = vpop.f32.mrb[0].mxu0
      %v5320 = vadd.f32 0.0, %v5319
      %v5321 = vpop.f32.mrb[0].mxu0
      %v5322 = vpop.f32.mrb[0].mxu0
      %v5323 = vadd.f32 0.0, %v5322
      %v5324 = vpop.f32.mrb[0].mxu0
      %5325 = vmatprep.mubr.bf16.mxu0 0
      %5326 = vmatmul.mubr.bf16.gmra.mrb[0].mxu0 %v5199
      %v5327 = vpop.f32.mrb[0].mxu0
      %v5328 = vadd.f32 0.0, %v5327
      %v5329 = vpop.f32.mrb[0].mxu0
      %v5330 = vpop.f32.mrb[0].mxu0
      %v5331 = vadd.f32 0.0, %v5330
      %v5332 = vpop.f32.mrb[0].mxu0
      %5333 = vmatprep.mubr.bf16.mxu0 0
      %5334 = vmatmul.mubr.bf16.gmra.mrb[0].mxu0 %v5200
      %v5335 = vpop.f32.mrb[0].mxu0
      %v5336 = vadd.f32 0.0, %v5335
      %v5337 = vpop.f32.mrb[0].mxu0
      %v5338 = vpop.f32.mrb[0].mxu0
      %v5339 = vadd.f32 0.0, %v5338
      %v5340 = vpop.f32.mrb[0].mxu0
      %5341 = vmatprep.mubr.bf16.mxu0 0
      %5342 = vmatmul.mubr.bf16.gmra.mrb[0].mxu0 %v5201
      %v5343 = vpop.f32.mrb[0].mxu0
      %v5344 = vadd.f32 0.0, %v5343
      %v5345 = vpop.f32.mrb[0].mxu0
      %v5346 = vpop.f32.mrb[0].mxu0
      %v5347 = vadd.f32 0.0, %v5346
      %v5348 = vpop.f32.mrb[0].mxu0
      %5349 = vmatprep.mubr.bf16.mxu0 0
      %5350 = vmatmul.mubr.bf16.gmra.mrb[0].mxu0 %v5202
      %v5351 = vpop.f32.mrb[0].mxu0
      %v5352 = vadd.f32 0.0, %v5351
      %v5353 = vpop.f32.mrb[0].mxu0
      %v5354 = vpop.f32.mrb[0].mxu0
      %v5355 = vadd.f32 0.0, %v5354
      %v5356 = vpop.f32.mrb[0].mxu0
      %5357 = vmatprep.mubr.bf16.mxu0 0
      %5358 = vmatmul.mubr.bf16.gmra.mrb[0].mxu0 %v5203
      %v5359 = vpop.f32.mrb[0].mxu0
      %v5360 = vadd.f32 0.0, %v5359
      %v5361 = vpop.f32.mrb[0].mxu0
      %v5362 = vpop.f32.mrb[0].mxu0
      %v5363 = vadd.f32 0.0, %v5362
      %v5364 = vpop.f32.mrb[0].mxu0
      %5365 = vmatprep.mubr.bf16.mxu0 0
      %5366 = vmatmul.mubr.bf16.gmra.mrb[0].mxu0 %v5204
      %v5367 = vpop.f32.mrb[0].mxu0
      %v5368 = vadd.f32 0.0, %v5367
      %v5369 = vpop.f32.mrb[0].mxu0
      %v5370 = vpop.f32.mrb[0].mxu0
      %v5371 = vadd.f32 0.0, %v5370
      %v5372 = vpop.f32.mrb[0].mxu0
      %5373 = vmatprep.mubr.bf16.mxu0 0
      %5374 = vmatmul.mubr.bf16.gmra.mrb[0].mxu0 %v5205
      %v5375 = vpop.f32.mrb[0].mxu0
      %v5376 = vadd.f32 0.0, %v5375
      %v5377 = vpop.f32.mrb[0].mxu0
      %v5378 = vpop.f32.mrb[0].mxu0
      %v5379 = vadd.f32 0.0, %v5378
      %v5380 = vpop.f32.mrb[0].mxu0
      %5381 = vmatprep.mubr.bf16.mxu0 0
      %5382 = vmatmul.mubr.bf16.gmra.mrb[0].mxu0 %v5206
      %v5383 = vpop.f32.mrb[0].mxu0
      %v5384 = vadd.f32 0.0, %v5383
      %v5385 = vpop.f32.mrb[0].mxu0
      %v5386 = vpop.f32.mrb[0].mxu0
      %v5387 = vadd.f32 0.0, %v5386
      %v5388 = vpop.f32.mrb[0].mxu0
      %5389 = vmatprep.mubr.bf16.mxu0 0
      %5390 = vmatmul.mubr.bf16.gmra.mrb[0].mxu0 %v5207
      %v5391 = vpop.f32.mrb[0].mxu0
      %v5392 = vadd.f32 0.0, %v5391
      %v5393 = vpop.f32.mrb[0].mxu0
      %v5394 = vpop.f32.mrb[0].mxu0
      %v5395 = vadd.f32 0.0, %v5394
      %v5396 = vpop.f32.mrb[0].mxu0
      %5397 = vmatprep.mubr.bf16.mxu0 0
      %5398 = vmatmul.mubr.bf16.gmra.mrb[0].mxu0 %v5208
      %v5399 = vpop.f32.mrb[0].mxu0
      %v5400 = vadd.f32 0.0, %v5399
      %v5401 = vpop.f32.mrb[0].mxu0
      %v5402 = vpop.f32.mrb[0].mxu0
      %v5403 = vadd.f32 0.0, %v5402
      %v5404 = vpop.f32.mrb[0].mxu0
      %5405 = vmatprep.mubr.bf16.mxu0 0
      %5406 = vmatmul.mubr.bf16.gmra.mrb[0].mxu0 %v5209
      %v5407 = vpop.f32.mrb[0].mxu0
      %v5408 = vadd.f32 0.0, %v5407
      %v5409 = vpop.f32.mrb[0].mxu0
      %v5410 = vpop.f32.mrb[0].mxu0
      %v5411 = vadd.f32 0.0, %v5410
      %v5412 = vpop.f32.mrb[0].mxu0
      %5413 = vmatprep.mubr.bf16.mxu0 0
      %5414 = vmatmul.mubr.bf16.gmra.mrb[0].mxu0 %v5210
      %v5415 = vpop.f32.mrb[0].mxu0
      %v5416 = vadd.f32 0.0, %v5415
      %v5417 = vpop.f32.mrb[0].mxu0
      %v5418 = vpop.f32.mrb[0].mxu0
      %v5419 = vadd.f32 0.0, %v5418
      %v5420 = vpop.f32.mrb[0].mxu0
      %5421 = vmatprep.mubr.bf16.mxu0 0
      %5422 = vmatmul.mubr.bf16.gmra.mrb[0].mxu0 %v5211
      %v5423 = vpop.f32.mrb[0].mxu0
      %v5424 = vadd.f32 0.0, %v5423
      %v5425 = vpop.f32.mrb[0].mxu0
      %v5426 = vpop.f32.mrb[0].mxu0
      %v5427 = vadd.f32 0.0, %v5426
      %v5428 = vpop.f32.mrb[0].mxu0
      %5429 = vmatprep.mubr.bf16.mxu0 0
      %5430 = vmatmul.mubr.bf16.gmra.mrb[0].mxu0 %v5212
      %v5431 = vpop.f32.mrb[0].mxu0
      %v5432 = vadd.f32 0.0, %v5431
      %v5433 = vpop.f32.mrb[0].mxu0
      %v5434 = vpop.f32.mrb[0].mxu0
      %v5435 = vadd.f32 0.0, %v5434
      %v5436 = vpop.f32.mrb[0].mxu0
      %5437 = vdwg.mxu0
      %v5470 = vunpack.c.l.b16 %v4412
      %v5471 = vunpack.c.l.b16 %v4413
      %v5472 = vunpack.c.l.b16 %v4414
      %v5473 = vunpack.c.l.b16 %v4415
      %v5474 = vunpack.c.l.b16 %v4416
      %v5475 = vunpack.c.l.b16 %v4417
      %v5476 = vunpack.c.l.b16 %v4418
      %v5477 = vunpack.c.l.b16 %v4419
      %v5478 = vunpack.c.l.b16 %v4420
      %v5479 = vunpack.c.l.b16 %v4421
      %v5480 = vunpack.c.l.b16 %v4422
      %v5481 = vunpack.c.l.b16 %v4423
      %v5482 = vunpack.c.l.b16 %v4424
      %v5483 = vunpack.c.l.b16 %v4425
      %v5484 = vunpack.c.l.b16 %v4426
      %v5485 = vunpack.c.l.b16 %v4427
      %v5486 = vunpack.c.l.b16 %v4428
      %v5487 = vunpack.c.l.b16 %v4429
      %v5488 = vunpack.c.l.b16 %v4430
      %v5489 = vunpack.c.l.b16 %v4431
      %v5490 = vunpack.c.l.b16 %v4432
      %v5491 = vunpack.c.l.b16 %v4433
      %v5492 = vunpack.c.l.b16 %v4434
      %v5493 = vunpack.c.l.b16 %v4435
      %v5494 = vunpack.c.l.b16 %v4436
      %v5495 = vunpack.c.l.b16 %v4437
      %v5496 = vunpack.c.l.b16 %v4438
      %v5497 = vunpack.c.l.b16 %v4439
      %v5498 = vunpack.c.l.b16 %v4440
      %v5499 = vunpack.c.l.b16 %v4441
      %v5500 = vunpack.c.l.b16 %v4442
      %v5501 = vunpack.c.l.b16 %v4443
      %v5502 = vpack.c.b16 %v5471, %v5470
      %v5503 = vpack.c.b16 %v5473, %v5472
      %v5504 = vpack.c.b16 %v5475, %v5474
      %v5505 = vpack.c.b16 %v5477, %v5476
      %v5506 = vpack.c.b16 %v5479, %v5478
      %v5507 = vpack.c.b16 %v5481, %v5480
      %v5508 = vpack.c.b16 %v5483, %v5482
      %v5509 = vpack.c.b16 %v5485, %v5484
      %v5510 = vpack.c.b16 %v5487, %v5486
      %v5511 = vpack.c.b16 %v5489, %v5488
      %v5512 = vpack.c.b16 %v5491, %v5490
      %v5513 = vpack.c.b16 %v5493, %v5492
      %v5514 = vpack.c.b16 %v5495, %v5494
      %v5515 = vpack.c.b16 %v5497, %v5496
      %v5516 = vpack.c.b16 %v5499, %v5498
      %v5517 = vpack.c.b16 %v5501, %v5500
      %v5550 = vunpack.c.l.b16 %v5132
      %v5551 = vunpack.c.l.b16 %v5133
      %v5552 = vunpack.c.l.b16 %v5134
      %v5553 = vunpack.c.l.b16 %v5135
      %v5554 = vunpack.c.l.b16 %v5136
      %v5555 = vunpack.c.l.b16 %v5137
      %v5556 = vunpack.c.l.b16 %v5138
      %v5557 = vunpack.c.l.b16 %v5139
      %v5558 = vunpack.c.l.b16 %v5140
      %v5559 = vunpack.c.l.b16 %v5141
      %v5560 = vunpack.c.l.b16 %v5142
      %v5561 = vunpack.c.l.b16 %v5143
      %v5562 = vunpack.c.l.b16 %v5144
      %v5563 = vunpack.c.l.b16 %v5145
      %v5564 = vunpack.c.l.b16 %v5146
      %v5565 = vunpack.c.l.b16 %v5147
      %v5566 = vpack.c.b16 %v5551, %v5550
      %v5567 = vpack.c.b16 %v5553, %v5552
      %v5568 = vpack.c.b16 %v5555, %v5554
      %v5569 = vpack.c.b16 %v5557, %v5556
      %v5570 = vpack.c.b16 %v5559, %v5558
      %v5571 = vpack.c.b16 %v5561, %v5560
      %v5572 = vpack.c.b16 %v5563, %v5562
      %v5573 = vpack.c.b16 %v5565, %v5564
      %5582 = vmatprep.subr.bf16.mxu0 0
      %5583 = vmatpush1.bf16.msra.mxu0 %v5566
      %5584 = vmatprep.subr.bf16.mxu0 0
      %5585 = vmatpush1.bf16.msra.mxu0 %v5567
      %5586 = vmatprep.subr.bf16.mxu0 0
      %5587 = vmatpush1.bf16.msra.mxu0 %v5568
      %5588 = vmatprep.subr.bf16.mxu0 0
      %5589 = vmatpush1.bf16.msra.mxu0 %v5569
      %5590 = vmatprep.subr.bf16.mxu0 0
      %5591 = vmatpush1.bf16.msra.mxu0 %v5570
      %5592 = vmatprep.subr.bf16.mxu0 0
      %5593 = vmatpush1.bf16.msra.mxu0 %v5571
      %5594 = vmatprep.subr.bf16.mxu0 0
      %5595 = vmatpush1.bf16.msra.mxu0 %v5572
      %5596 = vmatprep.subr.bf16.mxu0 0
      %5597 = vmatpush1.bf16.msra.mxu0 %v5573
      %5598 = vmatprep.subr.bf16.mxu0 0
      %5599 = vmatpush1.bf16.msra.mxu0 0
      %5600 = vmatprep.subr.bf16.mxu0 0
      %5601 = vmatpush1.bf16.msra.mxu0 0
      %5602 = vmatprep.subr.bf16.mxu0 0
      %5603 = vmatpush1.bf16.msra.mxu0 0
      %5604 = vmatprep.subr.bf16.mxu0 0
      %5605 = vmatpush1.bf16.msra.mxu0 0
      %5606 = vmatprep.subr.bf16.mxu0 0
      %5607 = vmatpush1.bf16.msra.mxu0 0
      %5608 = vmatprep.subr.bf16.mxu0 0
      %5609 = vmatpush1.bf16.msra.mxu0 0
      %5610 = vmatprep.subr.bf16.mxu0 0
      %5611 = vmatpush1.bf16.msra.mxu0 0
      %5612 = vmatprep.subr.bf16.mxu0 0
      %5613 = vmatpush1.bf16.msra.mxu0 0
      %5614 = vmatprep.mubr.bf16.mxu0 0
      %5615 = vmatmul.mubr.bf16.gmra.mrb[0].mxu0 %v5502
      %v5616 = vpop.f32.mrb[0].mxu0
      %v5617 = vadd.f32 %v5312, %v5616
      %v5618 = vpop.f32.mrb[0].mxu0
      %v5619 = vpop.f32.mrb[0].mxu0
      %v5620 = vadd.f32 %v5315, %v5619
      %v5621 = vpop.f32.mrb[0].mxu0
      %5622 = vmatprep.mubr.bf16.mxu0 0
      %5623 = vmatmul.mubr.bf16.gmra.mrb[0].mxu0 %v5503
      %v5624 = vpop.f32.mrb[0].mxu0
      %v5625 = vadd.f32 %v5320, %v5624
      %v5626 = vpop.f32.mrb[0].mxu0
      %v5627 = vpop.f32.mrb[0].mxu0
      %v5628 = vadd.f32 %v5323, %v5627
      %v5629 = vpop.f32.mrb[0].mxu0
      %5630 = vmatprep.mubr.bf16.mxu0 0
      %5631 = vmatmul.mubr.bf16.gmra.mrb[0].mxu0 %v5504
      %v5632 = vpop.f32.mrb[0].mxu0
      %v5633 = vadd.f32 %v5328, %v5632
      %v5634 = vpop.f32.mrb[0].mxu0
      %v5635 = vpop.f32.mrb[0].mxu0
      %v5636 = vadd.f32 %v5331, %v5635
      %v5637 = vpop.f32.mrb[0].mxu0
      %5638 = vmatprep.mubr.bf16.mxu0 0
      %5639 = vmatmul.mubr.bf16.gmra.mrb[0].mxu0 %v5505
      %v5640 = vpop.f32.mrb[0].mxu0
      %v5641 = vadd.f32 %v5336, %v5640
      %v5642 = vpop.f32.mrb[0].mxu0
      %v5643 = vpop.f32.mrb[0].mxu0
      %v5644 = vadd.f32 %v5339, %v5643
      %v5645 = vpop.f32.mrb[0].mxu0
      %5646 = vmatprep.mubr.bf16.mxu0 0
      %5647 = vmatmul.mubr.bf16.gmra.mrb[0].mxu0 %v5506
      %v5648 = vpop.f32.mrb[0].mxu0
      %v5649 = vadd.f32 %v5344, %v5648
      %v5650 = vpop.f32.mrb[0].mxu0
      %v5651 = vpop.f32.mrb[0].mxu0
      %v5652 = vadd.f32 %v5347, %v5651
      %v5653 = vpop.f32.mrb[0].mxu0
      %5654 = vmatprep.mubr.bf16.mxu0 0
      %5655 = vmatmul.mubr.bf16.gmra.mrb[0].mxu0 %v5507
      %v5656 = vpop.f32.mrb[0].mxu0
      %v5657 = vadd.f32 %v5352, %v5656
      %v5658 = vpop.f32.mrb[0].mxu0
      %v5659 = vpop.f32.mrb[0].mxu0
      %v5660 = vadd.f32 %v5355, %v5659
      %v5661 = vpop.f32.mrb[0].mxu0
      %5662 = vmatprep.mubr.bf16.mxu0 0
      %5663 = vmatmul.mubr.bf16.gmra.mrb[0].mxu0 %v5508
      %v5664 = vpop.f32.mrb[0].mxu0
      %v5665 = vadd.f32 %v5360, %v5664
      %v5666 = vpop.f32.mrb[0].mxu0
      %v5667 = vpop.f32.mrb[0].mxu0
      %v5668 = vadd.f32 %v5363, %v5667
      %v5669 = vpop.f32.mrb[0].mxu0
      %5670 = vmatprep.mubr.bf16.mxu0 0
      %5671 = vmatmul.mubr.bf16.gmra.mrb[0].mxu0 %v5509
      %v5672 = vpop.f32.mrb[0].mxu0
      %v5673 = vadd.f32 %v5368, %v5672
      %v5674 = vpop.f32.mrb[0].mxu0
      %v5675 = vpop.f32.mrb[0].mxu0
      %v5676 = vadd.f32 %v5371, %v5675
      %v5677 = vpop.f32.mrb[0].mxu0
      %5678 = vmatprep.mubr.bf16.mxu0 0
      %5679 = vmatmul.mubr.bf16.gmra.mrb[0].mxu0 %v5510
      %v5680 = vpop.f32.mrb[0].mxu0
      %v5681 = vadd.f32 %v5376, %v5680
      %v5682 = vpop.f32.mrb[0].mxu0
      %v5683 = vpop.f32.mrb[0].mxu0
      %v5684 = vadd.f32 %v5379, %v5683
      %v5685 = vpop.f32.mrb[0].mxu0
      %5686 = vmatprep.mubr.bf16.mxu0 0
      %5687 = vmatmul.mubr.bf16.gmra.mrb[0].mxu0 %v5511
      %v5688 = vpop.f32.mrb[0].mxu0
      %v5689 = vadd.f32 %v5384, %v5688
      %v5690 = vpop.f32.mrb[0].mxu0
      %v5691 = vpop.f32.mrb[0].mxu0
      %v5692 = vadd.f32 %v5387, %v5691
      %v5693 = vpop.f32.mrb[0].mxu0
      %5694 = vmatprep.mubr.bf16.mxu0 0
      %5695 = vmatmul.mubr.bf16.gmra.mrb[0].mxu0 %v5512
      %v5696 = vpop.f32.mrb[0].mxu0
      %v5697 = vadd.f32 %v5392, %v5696
      %v5698 = vpop.f32.mrb[0].mxu0
      %v5699 = vpop.f32.mrb[0].mxu0
      %v5700 = vadd.f32 %v5395, %v5699
      %v5701 = vpop.f32.mrb[0].mxu0
      %5702 = vmatprep.mubr.bf16.mxu0 0
      %5703 = vmatmul.mubr.bf16.gmra.mrb[0].mxu0 %v5513
      %v5704 = vpop.f32.mrb[0].mxu0
      %v5705 = vadd.f32 %v5400, %v5704
      %v5706 = vpop.f32.mrb[0].mxu0
      %v5707 = vpop.f32.mrb[0].mxu0
      %v5708 = vadd.f32 %v5403, %v5707
      %v5709 = vpop.f32.mrb[0].mxu0
      %5710 = vmatprep.mubr.bf16.mxu0 0
      %5711 = vmatmul.mubr.bf16.gmra.mrb[0].mxu0 %v5514
      %v5712 = vpop.f32.mrb[0].mxu0
      %v5713 = vadd.f32 %v5408, %v5712
      %v5714 = vpop.f32.mrb[0].mxu0
      %v5715 = vpop.f32.mrb[0].mxu0
      %v5716 = vadd.f32 %v5411, %v5715
      %v5717 = vpop.f32.mrb[0].mxu0
      %5718 = vmatprep.mubr.bf16.mxu0 0
      %5719 = vmatmul.mubr.bf16.gmra.mrb[0].mxu0 %v5515
      %v5720 = vpop.f32.mrb[0].mxu0
      %v5721 = vadd.f32 %v5416, %v5720
      %v5722 = vpop.f32.mrb[0].mxu0
      %v5723 = vpop.f32.mrb[0].mxu0
      %v5724 = vadd.f32 %v5419, %v5723
      %v5725 = vpop.f32.mrb[0].mxu0
      %5726 = vmatprep.mubr.bf16.mxu0 0
      %5727 = vmatmul.mubr.bf16.gmra.mrb[0].mxu0 %v5516
      %v5728 = vpop.f32.mrb[0].mxu0
      %v5729 = vadd.f32 %v5424, %v5728
      %v5730 = vpop.f32.mrb[0].mxu0
      %v5731 = vpop.f32.mrb[0].mxu0
      %v5732 = vadd.f32 %v5427, %v5731
      %v5733 = vpop.f32.mrb[0].mxu0
      %5734 = vmatprep.mubr.bf16.mxu0 0
      %5735 = vmatmul.mubr.bf16.gmra.mrb[0].mxu0 %v5517
      %v5736 = vpop.f32.mrb[0].mxu0
      %v5737 = vadd.f32 %v5432, %v5736
      %v5738 = vpop.f32.mrb[0].mxu0
      %v5739 = vpop.f32.mrb[0].mxu0
      %v5740 = vadd.f32 %v5435, %v5739
      %v5741 = vpop.f32.mrb[0].mxu0
      %5742 = vdwg.mxu0
      %s5743 = scalar_lea.vmem %s3, 128
      %v5744 = vld [vmem:[%s5743] sm:$0xf]
      %v5745 = vld [vmem:[%s5743 + $0x4] sm:$0xf]
      %v5746 = vld [vmem:[%s5743 + $0x8] sm:$0xf]
      %v5747 = vld [vmem:[%s5743 + $0xc] sm:$0xf]
      %v5748 = vld [vmem:[%s5743 + $0x10] sm:$0xf]
      %v5749 = vld [vmem:[%s5743 + $0x14] sm:$0xf]
      %v5750 = vld [vmem:[%s5743 + $0x18] sm:$0xf]
      %v5751 = vld [vmem:[%s5743 + $0x1c] sm:$0xf]
      %v5752 = vld [vmem:[%s5743 + $0x20] sm:$0xf]
      %v5753 = vld [vmem:[%s5743 + $0x24] sm:$0xf]
      %v5754 = vld [vmem:[%s5743 + $0x28] sm:$0xf]
      %v5755 = vld [vmem:[%s5743 + $0x2c] sm:$0xf]
      %v5756 = vld [vmem:[%s5743 + $0x30] sm:$0xf]
      %v5757 = vld [vmem:[%s5743 + $0x34] sm:$0xf]
      %v5758 = vld [vmem:[%s5743 + $0x38] sm:$0xf]
      %v5759 = vld [vmem:[%s5743 + $0x3c] sm:$0xf]
      %v5760 = vunpack.c.l.b16 %v5009
      %v5761 = vunpack.c.l.b16 %v5012
      %v5762 = vunpack.c.l.b16 %v5016
      %v5763 = vunpack.c.l.b16 %v5019
      %v5764 = vunpack.c.l.b16 %v5023
      %v5765 = vunpack.c.l.b16 %v5026
      %v5766 = vunpack.c.l.b16 %v5030
      %v5767 = vunpack.c.l.b16 %v5033
      %v5768 = vunpack.c.l.b16 %v5037
      %v5769 = vunpack.c.l.b16 %v5040
      %v5770 = vunpack.c.l.b16 %v5044
      %v5771 = vunpack.c.l.b16 %v5047
      %v5772 = vunpack.c.l.b16 %v5051
      %v5773 = vunpack.c.l.b16 %v5054
      %v5774 = vunpack.c.l.b16 %v5058
      %v5775 = vunpack.c.l.b16 %v5061
      %v5776 = vunpack.c.l.b16 %v5065
      %v5777 = vunpack.c.l.b16 %v5068
      %v5778 = vunpack.c.l.b16 %v5072
      %v5779 = vunpack.c.l.b16 %v5075
      %v5780 = vunpack.c.l.b16 %v5079
      %v5781 = vunpack.c.l.b16 %v5082
      %v5782 = vunpack.c.l.b16 %v5086
      %v5783 = vunpack.c.l.b16 %v5089
      %v5784 = vunpack.c.l.b16 %v5093
      %v5785 = vunpack.c.l.b16 %v5096
      %v5786 = vunpack.c.l.b16 %v5100
      %v5787 = vunpack.c.l.b16 %v5103
      %v5788 = vunpack.c.l.b16 %v5107
      %v5789 = vunpack.c.l.b16 %v5110
      %v5790 = vunpack.c.l.b16 %v5114
      %v5791 = vunpack.c.l.b16 %v5117
      %v5792 = vpack.c.b16 %v5761, %v5760
      %v5793 = vpack.c.b16 %v5763, %v5762
      %v5794 = vpack.c.b16 %v5765, %v5764
      %v5795 = vpack.c.b16 %v5767, %v5766
      %v5796 = vpack.c.b16 %v5769, %v5768
      %v5797 = vpack.c.b16 %v5771, %v5770
      %v5798 = vpack.c.b16 %v5773, %v5772
      %v5799 = vpack.c.b16 %v5775, %v5774
      %v5800 = vpack.c.b16 %v5777, %v5776
      %v5801 = vpack.c.b16 %v5779, %v5778
      %v5802 = vpack.c.b16 %v5781, %v5780
      %v5803 = vpack.c.b16 %v5783, %v5782
      %v5804 = vpack.c.b16 %v5785, %v5784
      %v5805 = vpack.c.b16 %v5787, %v5786
      %v5806 = vpack.c.b16 %v5789, %v5788
      %v5807 = vpack.c.b16 %v5791, %v5790
      %v5840 = vunpack.c.l.b16 %v5744
      %v5841 = vunpack.c.l.b16 %v5745
      %v5842 = vunpack.c.l.b16 %v5746
      %v5843 = vunpack.c.l.b16 %v5747
      %v5844 = vunpack.c.l.b16 %v5748
      %v5845 = vunpack.c.l.b16 %v5749
      %v5846 = vunpack.c.l.b16 %v5750
      %v5847 = vunpack.c.l.b16 %v5751
      %v5848 = vunpack.c.l.b16 %v5752
      %v5849 = vunpack.c.l.b16 %v5753
      %v5850 = vunpack.c.l.b16 %v5754
      %v5851 = vunpack.c.l.b16 %v5755
      %v5852 = vunpack.c.l.b16 %v5756
      %v5853 = vunpack.c.l.b16 %v5757
      %v5854 = vunpack.c.l.b16 %v5758
      %v5855 = vunpack.c.l.b16 %v5759
      %v5856 = vpack.c.b16 %v5841, %v5840
      %v5857 = vpack.c.b16 %v5843, %v5842
      %v5858 = vpack.c.b16 %v5845, %v5844
      %v5859 = vpack.c.b16 %v5847, %v5846
      %v5860 = vpack.c.b16 %v5849, %v5848
      %v5861 = vpack.c.b16 %v5851, %v5850
      %v5862 = vpack.c.b16 %v5853, %v5852
      %v5863 = vpack.c.b16 %v5855, %v5854
      %5872 = vmatprep.subr.bf16.mxu0 0
      %5873 = vmatpush1.bf16.msra.mxu0 %v5856
      %5874 = vmatprep.subr.bf16.mxu0 0
      %5875 = vmatpush1.bf16.msra.mxu0 %v5857
      %5876 = vmatprep.subr.bf16.mxu0 0
      %5877 = vmatpush1.bf16.msra.mxu0 %v5858
      %5878 = vmatprep.subr.bf16.mxu0 0
      %5879 = vmatpush1.bf16.msra.mxu0 %v5859
      %5880 = vmatprep.subr.bf16.mxu0 0
      %5881 = vmatpush1.bf16.msra.mxu0 %v5860
      %5882 = vmatprep.subr.bf16.mxu0 0
      %5883 = vmatpush1.bf16.msra.mxu0 %v5861
      %5884 = vmatprep.subr.bf16.mxu0 0
      %5885 = vmatpush1.bf16.msra.mxu0 %v5862
      %5886 = vmatprep.subr.bf16.mxu0 0
      %5887 = vmatpush1.bf16.msra.mxu0 %v5863
      %5888 = vmatprep.subr.bf16.mxu0 0
      %5889 = vmatpush1.bf16.msra.mxu0 0
      %5890 = vmatprep.subr.bf16.mxu0 0
      %5891 = vmatpush1.bf16.msra.mxu0 0
      %5892 = vmatprep.subr.bf16.mxu0 0
      %5893 = vmatpush1.bf16.msra.mxu0 0
      %5894 = vmatprep.subr.bf16.mxu0 0
      %5895 = vmatpush1.bf16.msra.mxu0 0
      %5896 = vmatprep.subr.bf16.mxu0 0
      %5897 = vmatpush1.bf16.msra.mxu0 0
      %5898 = vmatprep.subr.bf16.mxu0 0
      %5899 = vmatpush1.bf16.msra.mxu0 0
      %5900 = vmatprep.subr.bf16.mxu0 0
      %5901 = vmatpush1.bf16.msra.mxu0 0
      %5902 = vmatprep.subr.bf16.mxu0 0
      %5903 = vmatpush1.bf16.msra.mxu0 0
      %5904 = vmatprep.mubr.bf16.mxu0 0
      %5905 = vmatmul.mubr.bf16.gmra.mrb[0].mxu0 %v5792
      %v5906 = vpop.f32.mrb[0].mxu0
      %v5907 = vadd.f32 0.0, %v5906
      %v5908 = vpop.f32.mrb[0].mxu0
      %v5909 = vpop.f32.mrb[0].mxu0
      %v5910 = vadd.f32 0.0, %v5909
      %v5911 = vpop.f32.mrb[0].mxu0
      %5912 = vmatprep.mubr.bf16.mxu0 0
      %5913 = vmatmul.mubr.bf16.gmra.mrb[0].mxu0 %v5793
      %v5914 = vpop.f32.mrb[0].mxu0
      %v5915 = vadd.f32 0.0, %v5914
      %v5916 = vpop.f32.mrb[0].mxu0
      %v5917 = vpop.f32.mrb[0].mxu0
      %v5918 = vadd.f32 0.0, %v5917
      %v5919 = vpop.f32.mrb[0].mxu0
      %5920 = vmatprep.mubr.bf16.mxu0 0
      %5921 = vmatmul.mubr.bf16.gmra.mrb[0].mxu0 %v5794
      %v5922 = vpop.f32.mrb[0].mxu0
      %v5923 = vadd.f32 0.0, %v5922
      %v5924 = vpop.f32.mrb[0].mxu0
      %v5925 = vpop.f32.mrb[0].mxu0
      %v5926 = vadd.f32 0.0, %v5925
      %v5927 = vpop.f32.mrb[0].mxu0
      %5928 = vmatprep.mubr.bf16.mxu0 0
      %5929 = vmatmul.mubr.bf16.gmra.mrb[0].mxu0 %v5795
      %v5930 = vpop.f32.mrb[0].mxu0
      %v5931 = vadd.f32 0.0, %v5930
      %v5932 = vpop.f32.mrb[0].mxu0
      %v5933 = vpop.f32.mrb[0].mxu0
      %v5934 = vadd.f32 0.0, %v5933
      %v5935 = vpop.f32.mrb[0].mxu0
      %5936 = vmatprep.mubr.bf16.mxu0 0
      %5937 = vmatmul.mubr.bf16.gmra.mrb[0].mxu0 %v5796
      %v5938 = vpop.f32.mrb[0].mxu0
      %v5939 = vadd.f32 0.0, %v5938
      %v5940 = vpop.f32.mrb[0].mxu0
      %v5941 = vpop.f32.mrb[0].mxu0
      %v5942 = vadd.f32 0.0, %v5941
      %v5943 = vpop.f32.mrb[0].mxu0
      %5944 = vmatprep.mubr.bf16.mxu0 0
      %5945 = vmatmul.mubr.bf16.gmra.mrb[0].mxu0 %v5797
      %v5946 = vpop.f32.mrb[0].mxu0
      %v5947 = vadd.f32 0.0, %v5946
      %v5948 = vpop.f32.mrb[0].mxu0
      %v5949 = vpop.f32.mrb[0].mxu0
      %v5950 = vadd.f32 0.0, %v5949
      %v5951 = vpop.f32.mrb[0].mxu0
      %5952 = vmatprep.mubr.bf16.mxu0 0
      %5953 = vmatmul.mubr.bf16.gmra.mrb[0].mxu0 %v5798
      %v5954 = vpop.f32.mrb[0].mxu0
      %v5955 = vadd.f32 0.0, %v5954
      %v5956 = vpop.f32.mrb[0].mxu0
      %v5957 = vpop.f32.mrb[0].mxu0
      %v5958 = vadd.f32 0.0, %v5957
      %v5959 = vpop.f32.mrb[0].mxu0
      %5960 = vmatprep.mubr.bf16.mxu0 0
      %5961 = vmatmul.mubr.bf16.gmra.mrb[0].mxu0 %v5799
      %v5962 = vpop.f32.mrb[0].mxu0
      %v5963 = vadd.f32 0.0, %v5962
      %v5964 = vpop.f32.mrb[0].mxu0
      %v5965 = vpop.f32.mrb[0].mxu0
      %v5966 = vadd.f32 0.0, %v5965
      %v5967 = vpop.f32.mrb[0].mxu0
      %5968 = vmatprep.mubr.bf16.mxu0 0
      %5969 = vmatmul.mubr.bf16.gmra.mrb[0].mxu0 %v5800
      %v5970 = vpop.f32.mrb[0].mxu0
      %v5971 = vadd.f32 0.0, %v5970
      %v5972 = vpop.f32.mrb[0].mxu0
      %v5973 = vpop.f32.mrb[0].mxu0
      %v5974 = vadd.f32 0.0, %v5973
      %v5975 = vpop.f32.mrb[0].mxu0
      %5976 = vmatprep.mubr.bf16.mxu0 0
      %5977 = vmatmul.mubr.bf16.gmra.mrb[0].mxu0 %v5801
      %v5978 = vpop.f32.mrb[0].mxu0
      %v5979 = vadd.f32 0.0, %v5978
      %v5980 = vpop.f32.mrb[0].mxu0
      %v5981 = vpop.f32.mrb[0].mxu0
      %v5982 = vadd.f32 0.0, %v5981
      %v5983 = vpop.f32.mrb[0].mxu0
      %5984 = vmatprep.mubr.bf16.mxu0 0
      %5985 = vmatmul.mubr.bf16.gmra.mrb[0].mxu0 %v5802
      %v5986 = vpop.f32.mrb[0].mxu0
      %v5987 = vadd.f32 0.0, %v5986
      %v5988 = vpop.f32.mrb[0].mxu0
      %v5989 = vpop.f32.mrb[0].mxu0
      %v5990 = vadd.f32 0.0, %v5989
      %v5991 = vpop.f32.mrb[0].mxu0
      %5992 = vmatprep.mubr.bf16.mxu0 0
      %5993 = vmatmul.mubr.bf16.gmra.mrb[0].mxu0 %v5803
      %v5994 = vpop.f32.mrb[0].mxu0
      %v5995 = vadd.f32 0.0, %v5994
      %v5996 = vpop.f32.mrb[0].mxu0
      %v5997 = vpop.f32.mrb[0].mxu0
      %v5998 = vadd.f32 0.0, %v5997
      %v5999 = vpop.f32.mrb[0].mxu0
      %6000 = vmatprep.mubr.bf16.mxu0 0
      %6001 = vmatmul.mubr.bf16.gmra.mrb[0].mxu0 %v5804
      %v6002 = vpop.f32.mrb[0].mxu0
      %v6003 = vadd.f32 0.0, %v6002
      %v6004 = vpop.f32.mrb[0].mxu0
      %v6005 = vpop.f32.mrb[0].mxu0
      %v6006 = vadd.f32 0.0, %v6005
      %v6007 = vpop.f32.mrb[0].mxu0
      %6008 = vmatprep.mubr.bf16.mxu0 0
      %6009 = vmatmul.mubr.bf16.gmra.mrb[0].mxu0 %v5805
      %v6010 = vpop.f32.mrb[0].mxu0
      %v6011 = vadd.f32 0.0, %v6010
      %v6012 = vpop.f32.mrb[0].mxu0
      %v6013 = vpop.f32.mrb[0].mxu0
      %v6014 = vadd.f32 0.0, %v6013
      %v6015 = vpop.f32.mrb[0].mxu0
      %6016 = vmatprep.mubr.bf16.mxu0 0
      %6017 = vmatmul.mubr.bf16.gmra.mrb[0].mxu0 %v5806
      %v6018 = vpop.f32.mrb[0].mxu0
      %v6019 = vadd.f32 0.0, %v6018
      %v6020 = vpop.f32.mrb[0].mxu0
      %v6021 = vpop.f32.mrb[0].mxu0
      %v6022 = vadd.f32 0.0, %v6021
      %v6023 = vpop.f32.mrb[0].mxu0
      %6024 = vmatprep.mubr.bf16.mxu0 0
      %6025 = vmatmul.mubr.bf16.gmra.mrb[0].mxu0 %v5807
      %v6026 = vpop.f32.mrb[0].mxu0
      %v6027 = vadd.f32 0.0, %v6026
      %v6028 = vpop.f32.mrb[0].mxu0
      %v6029 = vpop.f32.mrb[0].mxu0
      %v6030 = vadd.f32 0.0, %v6029
      %v6031 = vpop.f32.mrb[0].mxu0
      %6032 = vdwg.mxu0
      %v6033 = vadd.f32 %v5617, %v5907
      %v6034 = vadd.f32 %v5620, %v5910
      %v6035 = vadd.f32 %v5625, %v5915
      %v6036 = vadd.f32 %v5628, %v5918
      %v6037 = vadd.f32 %v5633, %v5923
      %v6038 = vadd.f32 %v5636, %v5926
      %v6039 = vadd.f32 %v5641, %v5931
      %v6040 = vadd.f32 %v5644, %v5934
      %v6041 = vadd.f32 %v5649, %v5939
      %v6042 = vadd.f32 %v5652, %v5942
      %v6043 = vadd.f32 %v5657, %v5947
      %v6044 = vadd.f32 %v5660, %v5950
      %v6045 = vadd.f32 %v5665, %v5955
      %v6046 = vadd.f32 %v5668, %v5958
      %v6047 = vadd.f32 %v5673, %v5963
      %v6048 = vadd.f32 %v5676, %v5966
      %v6049 = vadd.f32 %v5681, %v5971
      %v6050 = vadd.f32 %v5684, %v5974
      %v6051 = vadd.f32 %v5689, %v5979
      %v6052 = vadd.f32 %v5692, %v5982
      %v6053 = vadd.f32 %v5697, %v5987
      %v6054 = vadd.f32 %v5700, %v5990
      %v6055 = vadd.f32 %v5705, %v5995
      %v6056 = vadd.f32 %v5708, %v5998
      %v6057 = vadd.f32 %v5713, %v6003
      %v6058 = vadd.f32 %v5716, %v6006
      %v6059 = vadd.f32 %v5721, %v6011
      %v6060 = vadd.f32 %v5724, %v6014
      %v6061 = vadd.f32 %v5729, %v6019
      %v6062 = vadd.f32 %v5732, %v6022
      %v6063 = vadd.f32 %v5737, %v6027
      %v6064 = vadd.f32 %v5740, %v6030
      %s6065 = scalar_lea.vmem %s3, 192
      %v6066 = vld [vmem:[%s6065] sm:$0xf]
      %v6067 = vld [vmem:[%s6065 + $0x4] sm:$0xf]
      %v6068 = vld [vmem:[%s6065 + $0x8] sm:$0xf]
      %v6069 = vld [vmem:[%s6065 + $0xc] sm:$0xf]
      %v6070 = vld [vmem:[%s6065 + $0x10] sm:$0xf]
      %v6071 = vld [vmem:[%s6065 + $0x14] sm:$0xf]
      %v6072 = vld [vmem:[%s6065 + $0x18] sm:$0xf]
      %v6073 = vld [vmem:[%s6065 + $0x1c] sm:$0xf]
      %v6074 = vld [vmem:[%s6065 + $0x20] sm:$0xf]
      %v6075 = vld [vmem:[%s6065 + $0x24] sm:$0xf]
      %v6076 = vld [vmem:[%s6065 + $0x28] sm:$0xf]
      %v6077 = vld [vmem:[%s6065 + $0x2c] sm:$0xf]
      %v6078 = vld [vmem:[%s6065 + $0x30] sm:$0xf]
      %v6079 = vld [vmem:[%s6065 + $0x34] sm:$0xf]
      %v6080 = vld [vmem:[%s6065 + $0x38] sm:$0xf]
      %v6081 = vld [vmem:[%s6065 + $0x3c] sm:$0xf]
      %v6084 = vunpack.c.l.b16 %v4444
      %v6085 = vunpack.c.l.b16 %v4445
      %v6086 = vpack.c.b16 %v6085, %v6084
      %v6104 = vunpack.c.l.b16 %v6066
      %v6105 = vunpack.c.l.b16 %v6067
      %v6106 = vunpack.c.l.b16 %v6068
      %v6107 = vunpack.c.l.b16 %v6069
      %v6108 = vunpack.c.l.b16 %v6070
      %v6109 = vunpack.c.l.b16 %v6071
      %v6110 = vunpack.c.l.b16 %v6072
      %v6111 = vunpack.c.l.b16 %v6073
      %v6112 = vunpack.c.l.b16 %v6074
      %v6113 = vunpack.c.l.b16 %v6075
      %v6114 = vunpack.c.l.b16 %v6076
      %v6115 = vunpack.c.l.b16 %v6077
      %v6116 = vunpack.c.l.b16 %v6078
      %v6117 = vunpack.c.l.b16 %v6079
      %v6118 = vunpack.c.l.b16 %v6080
      %v6119 = vunpack.c.l.b16 %v6081
      %v6120 = vpack.c.b16 %v6105, %v6104
      %v6121 = vpack.c.b16 %v6107, %v6106
      %v6122 = vpack.c.b16 %v6109, %v6108
      %v6123 = vpack.c.b16 %v6111, %v6110
      %v6124 = vpack.c.b16 %v6113, %v6112
      %v6125 = vpack.c.b16 %v6115, %v6114
      %v6126 = vpack.c.b16 %v6117, %v6116
      %v6127 = vpack.c.b16 %v6119, %v6118
      %6136 = vmatprep.subr.bf16.mxu0 0
      %6137 = vmatpush1.bf16.msra.mxu0 %v6120
      %6138 = vmatprep.subr.bf16.mxu0 0
      %6139 = vmatpush1.bf16.msra.mxu0 %v6121
      %6140 = vmatprep.subr.bf16.mxu0 0
      %6141 = vmatpush1.bf16.msra.mxu0 %v6122
      %6142 = vmatprep.subr.bf16.mxu0 0
      %6143 = vmatpush1.bf16.msra.mxu0 %v6123
      %6144 = vmatprep.subr.bf16.mxu0 0
      %6145 = vmatpush1.bf16.msra.mxu0 %v6124
      %6146 = vmatprep.subr.bf16.mxu0 0
      %6147 = vmatpush1.bf16.msra.mxu0 %v6125
      %6148 = vmatprep.subr.bf16.mxu0 0
      %6149 = vmatpush1.bf16.msra.mxu0 %v6126
      %6150 = vmatprep.subr.bf16.mxu0 0
      %6151 = vmatpush1.bf16.msra.mxu0 %v6127
      %6152 = vmatprep.subr.bf16.mxu0 0
      %6153 = vmatpush1.bf16.msra.mxu0 0
      %6154 = vmatprep.subr.bf16.mxu0 0
      %6155 = vmatpush1.bf16.msra.mxu0 0
      %6156 = vmatprep.subr.bf16.mxu0 0
      %6157 = vmatpush1.bf16.msra.mxu0 0
      %6158 = vmatprep.subr.bf16.mxu0 0
      %6159 = vmatpush1.bf16.msra.mxu0 0
      %6160 = vmatprep.subr.bf16.mxu0 0
      %6161 = vmatpush1.bf16.msra.mxu0 0
      %6162 = vmatprep.subr.bf16.mxu0 0
      %6163 = vmatpush1.bf16.msra.mxu0 0
      %6164 = vmatprep.subr.bf16.mxu0 0
      %6165 = vmatpush1.bf16.msra.mxu0 0
      %6166 = vmatprep.subr.bf16.mxu0 0
      %6167 = vmatpush1.bf16.msra.mxu0 0
      %6168 = vmatprep.mubr.bf16.mxu0 0
      %6169 = vmatmul.mubr.bf16.gmra.mrb[0].mxu0 %v5503
      %v6170 = vpop.f32.mrb[0].mxu0
      %v6171 = vadd.f32 0.0, %v6170
      %v6172 = vpop.f32.mrb[0].mxu0
      %v6173 = vpop.f32.mrb[0].mxu0
      %v6174 = vadd.f32 0.0, %v6173
      %v6175 = vpop.f32.mrb[0].mxu0
      %6176 = vmatprep.mubr.bf16.mxu0 0
      %6177 = vmatmul.mubr.bf16.gmra.mrb[0].mxu0 %v5504
      %v6178 = vpop.f32.mrb[0].mxu0
      %v6179 = vadd.f32 0.0, %v6178
      %v6180 = vpop.f32.mrb[0].mxu0
      %v6181 = vpop.f32.mrb[0].mxu0
      %v6182 = vadd.f32 0.0, %v6181
      %v6183 = vpop.f32.mrb[0].mxu0
      %6184 = vmatprep.mubr.bf16.mxu0 0
      %6185 = vmatmul.mubr.bf16.gmra.mrb[0].mxu0 %v5505
      %v6186 = vpop.f32.mrb[0].mxu0
      %v6187 = vadd.f32 0.0, %v6186
      %v6188 = vpop.f32.mrb[0].mxu0
      %v6189 = vpop.f32.mrb[0].mxu0
      %v6190 = vadd.f32 0.0, %v6189
      %v6191 = vpop.f32.mrb[0].mxu0
      %6192 = vmatprep.mubr.bf16.mxu0 0
      %6193 = vmatmul.mubr.bf16.gmra.mrb[0].mxu0 %v5506
      %v6194 = vpop.f32.mrb[0].mxu0
      %v6195 = vadd.f32 0.0, %v6194
      %v6196 = vpop.f32.mrb[0].mxu0
      %v6197 = vpop.f32.mrb[0].mxu0
      %v6198 = vadd.f32 0.0, %v6197
      %v6199 = vpop.f32.mrb[0].mxu0
      %6200 = vmatprep.mubr.bf16.mxu0 0
      %6201 = vmatmul.mubr.bf16.gmra.mrb[0].mxu0 %v5507
      %v6202 = vpop.f32.mrb[0].mxu0
      %v6203 = vadd.f32 0.0, %v6202
      %v6204 = vpop.f32.mrb[0].mxu0
      %v6205 = vpop.f32.mrb[0].mxu0
      %v6206 = vadd.f32 0.0, %v6205
      %v6207 = vpop.f32.mrb[0].mxu0
      %6208 = vmatprep.mubr.bf16.mxu0 0
      %6209 = vmatmul.mubr.bf16.gmra.mrb[0].mxu0 %v5508
      %v6210 = vpop.f32.mrb[0].mxu0
      %v6211 = vadd.f32 0.0, %v6210
      %v6212 = vpop.f32.mrb[0].mxu0
      %v6213 = vpop.f32.mrb[0].mxu0
      %v6214 = vadd.f32 0.0, %v6213
      %v6215 = vpop.f32.mrb[0].mxu0
      %6216 = vmatprep.mubr.bf16.mxu0 0
      %6217 = vmatmul.mubr.bf16.gmra.mrb[0].mxu0 %v5509
      %v6218 = vpop.f32.mrb[0].mxu0
      %v6219 = vadd.f32 0.0, %v6218
      %v6220 = vpop.f32.mrb[0].mxu0
      %v6221 = vpop.f32.mrb[0].mxu0
      %v6222 = vadd.f32 0.0, %v6221
      %v6223 = vpop.f32.mrb[0].mxu0
      %6224 = vmatprep.mubr.bf16.mxu0 0
      %6225 = vmatmul.mubr.bf16.gmra.mrb[0].mxu0 %v5510
      %v6226 = vpop.f32.mrb[0].mxu0
      %v6227 = vadd.f32 0.0, %v6226
      %v6228 = vpop.f32.mrb[0].mxu0
      %v6229 = vpop.f32.mrb[0].mxu0
      %v6230 = vadd.f32 0.0, %v6229
      %v6231 = vpop.f32.mrb[0].mxu0
      %6232 = vmatprep.mubr.bf16.mxu0 0
      %6233 = vmatmul.mubr.bf16.gmra.mrb[0].mxu0 %v5511
      %v6234 = vpop.f32.mrb[0].mxu0
      %v6235 = vadd.f32 0.0, %v6234
      %v6236 = vpop.f32.mrb[0].mxu0
      %v6237 = vpop.f32.mrb[0].mxu0
      %v6238 = vadd.f32 0.0, %v6237
      %v6239 = vpop.f32.mrb[0].mxu0
      %6240 = vmatprep.mubr.bf16.mxu0 0
      %6241 = vmatmul.mubr.bf16.gmra.mrb[0].mxu0 %v5512
      %v6242 = vpop.f32.mrb[0].mxu0
      %v6243 = vadd.f32 0.0, %v6242
      %v6244 = vpop.f32.mrb[0].mxu0
      %v6245 = vpop.f32.mrb[0].mxu0
      %v6246 = vadd.f32 0.0, %v6245
      %v6247 = vpop.f32.mrb[0].mxu0
      %6248 = vmatprep.mubr.bf16.mxu0 0
      %6249 = vmatmul.mubr.bf16.gmra.mrb[0].mxu0 %v5513
      %v6250 = vpop.f32.mrb[0].mxu0
      %v6251 = vadd.f32 0.0, %v6250
      %v6252 = vpop.f32.mrb[0].mxu0
      %v6253 = vpop.f32.mrb[0].mxu0
      %v6254 = vadd.f32 0.0, %v6253
      %v6255 = vpop.f32.mrb[0].mxu0
      %6256 = vmatprep.mubr.bf16.mxu0 0
      %6257 = vmatmul.mubr.bf16.gmra.mrb[0].mxu0 %v5514
      %v6258 = vpop.f32.mrb[0].mxu0
      %v6259 = vadd.f32 0.0, %v6258
      %v6260 = vpop.f32.mrb[0].mxu0
      %v6261 = vpop.f32.mrb[0].mxu0
      %v6262 = vadd.f32 0.0, %v6261
      %v6263 = vpop.f32.mrb[0].mxu0
      %6264 = vmatprep.mubr.bf16.mxu0 0
      %6265 = vmatmul.mubr.bf16.gmra.mrb[0].mxu0 %v5515
      %v6266 = vpop.f32.mrb[0].mxu0
      %v6267 = vadd.f32 0.0, %v6266
      %v6268 = vpop.f32.mrb[0].mxu0
      %v6269 = vpop.f32.mrb[0].mxu0
      %v6270 = vadd.f32 0.0, %v6269
      %v6271 = vpop.f32.mrb[0].mxu0
      %6272 = vmatprep.mubr.bf16.mxu0 0
      %6273 = vmatmul.mubr.bf16.gmra.mrb[0].mxu0 %v5516
      %v6274 = vpop.f32.mrb[0].mxu0
      %v6275 = vadd.f32 0.0, %v6274
      %v6276 = vpop.f32.mrb[0].mxu0
      %v6277 = vpop.f32.mrb[0].mxu0
      %v6278 = vadd.f32 0.0, %v6277
      %v6279 = vpop.f32.mrb[0].mxu0
      %6280 = vmatprep.mubr.bf16.mxu0 0
      %6281 = vmatmul.mubr.bf16.gmra.mrb[0].mxu0 %v5517
      %v6282 = vpop.f32.mrb[0].mxu0
      %v6283 = vadd.f32 0.0, %v6282
      %v6284 = vpop.f32.mrb[0].mxu0
      %v6285 = vpop.f32.mrb[0].mxu0
      %v6286 = vadd.f32 0.0, %v6285
      %v6287 = vpop.f32.mrb[0].mxu0
      %6288 = vmatprep.mubr.bf16.mxu0 0
      %6289 = vmatmul.mubr.bf16.gmra.mrb[0].mxu0 %v6086
      %v6290 = vpop.f32.mrb[0].mxu0
      %v6291 = vadd.f32 0.0, %v6290
      %v6292 = vpop.f32.mrb[0].mxu0
      %v6293 = vpop.f32.mrb[0].mxu0
      %v6294 = vadd.f32 0.0, %v6293
      %v6295 = vpop.f32.mrb[0].mxu0
      %6296 = vdwg.mxu0
      %v6297 = vadd.f32 %v6033, %v6171
      %v6298 = vadd.f32 %v6034, %v6174
      %v6299 = vadd.f32 %v6035, %v6179
      %v6300 = vadd.f32 %v6036, %v6182
      %v6301 = vadd.f32 %v6037, %v6187
      %v6302 = vadd.f32 %v6038, %v6190
      %v6303 = vadd.f32 %v6039, %v6195
      %v6304 = vadd.f32 %v6040, %v6198
      %v6305 = vadd.f32 %v6041, %v6203
      %v6306 = vadd.f32 %v6042, %v6206
      %v6307 = vadd.f32 %v6043, %v6211
      %v6308 = vadd.f32 %v6044, %v6214
      %v6309 = vadd.f32 %v6045, %v6219
      %v6310 = vadd.f32 %v6046, %v6222
      %v6311 = vadd.f32 %v6047, %v6227
      %v6312 = vadd.f32 %v6048, %v6230
      %v6313 = vadd.f32 %v6049, %v6235
      %v6314 = vadd.f32 %v6050, %v6238
      %v6315 = vadd.f32 %v6051, %v6243
      %v6316 = vadd.f32 %v6052, %v6246
      %v6317 = vadd.f32 %v6053, %v6251
      %v6318 = vadd.f32 %v6054, %v6254
      %v6319 = vadd.f32 %v6055, %v6259
      %v6320 = vadd.f32 %v6056, %v6262
      %v6321 = vadd.f32 %v6057, %v6267
      %v6322 = vadd.f32 %v6058, %v6270
      %v6323 = vadd.f32 %v6059, %v6275
      %v6324 = vadd.f32 %v6060, %v6278
      %v6325 = vadd.f32 %v6061, %v6283
      %v6326 = vadd.f32 %v6062, %v6286
      %v6327 = vadd.f32 %v6063, %v6291
      %v6328 = vadd.f32 %v6064, %v6294
      %s6329 = scalar_lea.vmem %s3, 256
      %v6330 = vld [vmem:[%s6329] sm:$0xf]
      %v6331 = vld [vmem:[%s6329 + $0x4] sm:$0xf]
      %v6332 = vld [vmem:[%s6329 + $0x8] sm:$0xf]
      %v6333 = vld [vmem:[%s6329 + $0xc] sm:$0xf]
      %v6334 = vld [vmem:[%s6329 + $0x10] sm:$0xf]
      %v6335 = vld [vmem:[%s6329 + $0x14] sm:$0xf]
      %v6336 = vld [vmem:[%s6329 + $0x18] sm:$0xf]
      %v6337 = vld [vmem:[%s6329 + $0x1c] sm:$0xf]
      %v6338 = vld [vmem:[%s6329 + $0x20] sm:$0xf]
      %v6339 = vld [vmem:[%s6329 + $0x24] sm:$0xf]
      %v6340 = vld [vmem:[%s6329 + $0x28] sm:$0xf]
      %v6341 = vld [vmem:[%s6329 + $0x2c] sm:$0xf]
      %v6342 = vld [vmem:[%s6329 + $0x30] sm:$0xf]
      %v6343 = vld [vmem:[%s6329 + $0x34] sm:$0xf]
      %v6344 = vld [vmem:[%s6329 + $0x38] sm:$0xf]
      %v6345 = vld [vmem:[%s6329 + $0x3c] sm:$0xf]
      %v6346 = vunpack.c.l.b16 %v4899
      %v6347 = vunpack.c.l.b16 %v4909
      %v6348 = vpack.c.b16 %v6347, %v6346
      %v6366 = vunpack.c.l.b16 %v6330
      %v6367 = vunpack.c.l.b16 %v6331
      %v6368 = vunpack.c.l.b16 %v6332
      %v6369 = vunpack.c.l.b16 %v6333
      %v6370 = vunpack.c.l.b16 %v6334
      %v6371 = vunpack.c.l.b16 %v6335
      %v6372 = vunpack.c.l.b16 %v6336
      %v6373 = vunpack.c.l.b16 %v6337
      %v6374 = vunpack.c.l.b16 %v6338
      %v6375 = vunpack.c.l.b16 %v6339
      %v6376 = vunpack.c.l.b16 %v6340
      %v6377 = vunpack.c.l.b16 %v6341
      %v6378 = vunpack.c.l.b16 %v6342
      %v6379 = vunpack.c.l.b16 %v6343
      %v6380 = vunpack.c.l.b16 %v6344
      %v6381 = vunpack.c.l.b16 %v6345
      %v6382 = vpack.c.b16 %v6367, %v6366
      %v6383 = vpack.c.b16 %v6369, %v6368
      %v6384 = vpack.c.b16 %v6371, %v6370
      %v6385 = vpack.c.b16 %v6373, %v6372
      %v6386 = vpack.c.b16 %v6375, %v6374
      %v6387 = vpack.c.b16 %v6377, %v6376
      %v6388 = vpack.c.b16 %v6379, %v6378
      %v6389 = vpack.c.b16 %v6381, %v6380
      %6398 = vmatprep.subr.bf16.mxu0 0
      %6399 = vmatpush1.bf16.msra.mxu0 %v6382
      %6400 = vmatprep.subr.bf16.mxu0 0
      %6401 = vmatpush1.bf16.msra.mxu0 %v6383
      %6402 = vmatprep.subr.bf16.mxu0 0
      %6403 = vmatpush1.bf16.msra.mxu0 %v6384
      %6404 = vmatprep.subr.bf16.mxu0 0
      %6405 = vmatpush1.bf16.msra.mxu0 %v6385
      %6406 = vmatprep.subr.bf16.mxu0 0
      %6407 = vmatpush1.bf16.msra.mxu0 %v6386
      %6408 = vmatprep.subr.bf16.mxu0 0
      %6409 = vmatpush1.bf16.msra.mxu0 %v6387
      %6410 = vmatprep.subr.bf16.mxu0 0
      %6411 = vmatpush1.bf16.msra.mxu0 %v6388
      %6412 = vmatprep.subr.bf16.mxu0 0
      %6413 = vmatpush1.bf16.msra.mxu0 %v6389
      %6414 = vmatprep.subr.bf16.mxu0 0
      %6415 = vmatpush1.bf16.msra.mxu0 0
      %6416 = vmatprep.subr.bf16.mxu0 0
      %6417 = vmatpush1.bf16.msra.mxu0 0
      %6418 = vmatprep.subr.bf16.mxu0 0
      %6419 = vmatpush1.bf16.msra.mxu0 0
      %6420 = vmatprep.subr.bf16.mxu0 0
      %6421 = vmatpush1.bf16.msra.mxu0 0
      %6422 = vmatprep.subr.bf16.mxu0 0
      %6423 = vmatpush1.bf16.msra.mxu0 0
      %6424 = vmatprep.subr.bf16.mxu0 0
      %6425 = vmatpush1.bf16.msra.mxu0 0
      %6426 = vmatprep.subr.bf16.mxu0 0
      %6427 = vmatpush1.bf16.msra.mxu0 0
      %6428 = vmatprep.subr.bf16.mxu0 0
      %6429 = vmatpush1.bf16.msra.mxu0 0
      %6430 = vmatprep.mubr.bf16.mxu0 0
      %6431 = vmatmul.mubr.bf16.gmra.mrb[0].mxu0 %v5198
      %v6432 = vpop.f32.mrb[0].mxu0
      %v6433 = vadd.f32 0.0, %v6432
      %v6434 = vpop.f32.mrb[0].mxu0
      %v6435 = vpop.f32.mrb[0].mxu0
      %v6436 = vadd.f32 0.0, %v6435
      %v6437 = vpop.f32.mrb[0].mxu0
      %6438 = vmatprep.mubr.bf16.mxu0 0
      %6439 = vmatmul.mubr.bf16.gmra.mrb[0].mxu0 %v5199
      %v6440 = vpop.f32.mrb[0].mxu0
      %v6441 = vadd.f32 0.0, %v6440
      %v6442 = vpop.f32.mrb[0].mxu0
      %v6443 = vpop.f32.mrb[0].mxu0
      %v6444 = vadd.f32 0.0, %v6443
      %v6445 = vpop.f32.mrb[0].mxu0
      %6446 = vmatprep.mubr.bf16.mxu0 0
      %6447 = vmatmul.mubr.bf16.gmra.mrb[0].mxu0 %v5200
      %v6448 = vpop.f32.mrb[0].mxu0
      %v6449 = vadd.f32 0.0, %v6448
      %v6450 = vpop.f32.mrb[0].mxu0
      %v6451 = vpop.f32.mrb[0].mxu0
      %v6452 = vadd.f32 0.0, %v6451
      %v6453 = vpop.f32.mrb[0].mxu0
      %6454 = vmatprep.mubr.bf16.mxu0 0
      %6455 = vmatmul.mubr.bf16.gmra.mrb[0].mxu0 %v5201
      %v6456 = vpop.f32.mrb[0].mxu0
      %v6457 = vadd.f32 0.0, %v6456
      %v6458 = vpop.f32.mrb[0].mxu0
      %v6459 = vpop.f32.mrb[0].mxu0
      %v6460 = vadd.f32 0.0, %v6459
      %v6461 = vpop.f32.mrb[0].mxu0
      %6462 = vmatprep.mubr.bf16.mxu0 0
      %6463 = vmatmul.mubr.bf16.gmra.mrb[0].mxu0 %v5202
      %v6464 = vpop.f32.mrb[0].mxu0
      %v6465 = vadd.f32 0.0, %v6464
      %v6466 = vpop.f32.mrb[0].mxu0
      %v6467 = vpop.f32.mrb[0].mxu0
      %v6468 = vadd.f32 0.0, %v6467
      %v6469 = vpop.f32.mrb[0].mxu0
      %6470 = vmatprep.mubr.bf16.mxu0 0
      %6471 = vmatmul.mubr.bf16.gmra.mrb[0].mxu0 %v5203
      %v6472 = vpop.f32.mrb[0].mxu0
      %v6473 = vadd.f32 0.0, %v6472
      %v6474 = vpop.f32.mrb[0].mxu0
      %v6475 = vpop.f32.mrb[0].mxu0
      %v6476 = vadd.f32 0.0, %v6475
      %v6477 = vpop.f32.mrb[0].mxu0
      %6478 = vmatprep.mubr.bf16.mxu0 0
      %6479 = vmatmul.mubr.bf16.gmra.mrb[0].mxu0 %v5204
      %v6480 = vpop.f32.mrb[0].mxu0
      %v6481 = vadd.f32 0.0, %v6480
      %v6482 = vpop.f32.mrb[0].mxu0
      %v6483 = vpop.f32.mrb[0].mxu0
      %v6484 = vadd.f32 0.0, %v6483
      %v6485 = vpop.f32.mrb[0].mxu0
      %6486 = vmatprep.mubr.bf16.mxu0 0
      %6487 = vmatmul.mubr.bf16.gmra.mrb[0].mxu0 %v5205
      %v6488 = vpop.f32.mrb[0].mxu0
      %v6489 = vadd.f32 0.0, %v6488
      %v6490 = vpop.f32.mrb[0].mxu0
      %v6491 = vpop.f32.mrb[0].mxu0
      %v6492 = vadd.f32 0.0, %v6491
      %v6493 = vpop.f32.mrb[0].mxu0
      %6494 = vmatprep.mubr.bf16.mxu0 0
      %6495 = vmatmul.mubr.bf16.gmra.mrb[0].mxu0 %v5206
      %v6496 = vpop.f32.mrb[0].mxu0
      %v6497 = vadd.f32 0.0, %v6496
      %v6498 = vpop.f32.mrb[0].mxu0
      %v6499 = vpop.f32.mrb[0].mxu0
      %v6500 = vadd.f32 0.0, %v6499
      %v6501 = vpop.f32.mrb[0].mxu0
      %6502 = vmatprep.mubr.bf16.mxu0 0
      %6503 = vmatmul.mubr.bf16.gmra.mrb[0].mxu0 %v5207
      %v6504 = vpop.f32.mrb[0].mxu0
      %v6505 = vadd.f32 0.0, %v6504
      %v6506 = vpop.f32.mrb[0].mxu0
      %v6507 = vpop.f32.mrb[0].mxu0
      %v6508 = vadd.f32 0.0, %v6507
      %v6509 = vpop.f32.mrb[0].mxu0
      %6510 = vmatprep.mubr.bf16.mxu0 0
      %6511 = vmatmul.mubr.bf16.gmra.mrb[0].mxu0 %v5208
      %v6512 = vpop.f32.mrb[0].mxu0
      %v6513 = vadd.f32 0.0, %v6512
      %v6514 = vpop.f32.mrb[0].mxu0
      %v6515 = vpop.f32.mrb[0].mxu0
      %v6516 = vadd.f32 0.0, %v6515
      %v6517 = vpop.f32.mrb[0].mxu0
      %6518 = vmatprep.mubr.bf16.mxu0 0
      %6519 = vmatmul.mubr.bf16.gmra.mrb[0].mxu0 %v5209
      %v6520 = vpop.f32.mrb[0].mxu0
      %v6521 = vadd.f32 0.0, %v6520
      %v6522 = vpop.f32.mrb[0].mxu0
      %v6523 = vpop.f32.mrb[0].mxu0
      %v6524 = vadd.f32 0.0, %v6523
      %v6525 = vpop.f32.mrb[0].mxu0
      %6526 = vmatprep.mubr.bf16.mxu0 0
      %6527 = vmatmul.mubr.bf16.gmra.mrb[0].mxu0 %v5210
      %v6528 = vpop.f32.mrb[0].mxu0
      %v6529 = vadd.f32 0.0, %v6528
      %v6530 = vpop.f32.mrb[0].mxu0
      %v6531 = vpop.f32.mrb[0].mxu0
      %v6532 = vadd.f32 0.0, %v6531
      %v6533 = vpop.f32.mrb[0].mxu0
      %6534 = vmatprep.mubr.bf16.mxu0 0
      %6535 = vmatmul.mubr.bf16.gmra.mrb[0].mxu0 %v5211
      %v6536 = vpop.f32.mrb[0].mxu0
      %v6537 = vadd.f32 0.0, %v6536
      %v6538 = vpop.f32.mrb[0].mxu0
      %v6539 = vpop.f32.mrb[0].mxu0
      %v6540 = vadd.f32 0.0, %v6539
      %v6541 = vpop.f32.mrb[0].mxu0
      %6542 = vmatprep.mubr.bf16.mxu0 0
      %6543 = vmatmul.mubr.bf16.gmra.mrb[0].mxu0 %v5212
      %v6544 = vpop.f32.mrb[0].mxu0
      %v6545 = vadd.f32 0.0, %v6544
      %v6546 = vpop.f32.mrb[0].mxu0
      %v6547 = vpop.f32.mrb[0].mxu0
      %v6548 = vadd.f32 0.0, %v6547
      %v6549 = vpop.f32.mrb[0].mxu0
      %6550 = vmatprep.mubr.bf16.mxu0 0
      %6551 = vmatmul.mubr.bf16.gmra.mrb[0].mxu0 %v6348
      %v6552 = vpop.f32.mrb[0].mxu0
      %v6553 = vadd.f32 0.0, %v6552
      %v6554 = vpop.f32.mrb[0].mxu0
      %v6555 = vpop.f32.mrb[0].mxu0
      %v6556 = vadd.f32 0.0, %v6555
      %v6557 = vpop.f32.mrb[0].mxu0
      %6558 = vdwg.mxu0
      %v6559 = vadd.f32 %v6297, %v6433
      %v6560 = vadd.f32 %v6298, %v6436
      %v6561 = vadd.f32 %v6299, %v6441
      %v6562 = vadd.f32 %v6300, %v6444
      %v6563 = vadd.f32 %v6301, %v6449
      %v6564 = vadd.f32 %v6302, %v6452
      %v6565 = vadd.f32 %v6303, %v6457
      %v6566 = vadd.f32 %v6304, %v6460
      %v6567 = vadd.f32 %v6305, %v6465
      %v6568 = vadd.f32 %v6306, %v6468
      %v6569 = vadd.f32 %v6307, %v6473
      %v6570 = vadd.f32 %v6308, %v6476
      %v6571 = vadd.f32 %v6309, %v6481
      %v6572 = vadd.f32 %v6310, %v6484
      %v6573 = vadd.f32 %v6311, %v6489
      %v6574 = vadd.f32 %v6312, %v6492
      %v6575 = vadd.f32 %v6313, %v6497
      %v6576 = vadd.f32 %v6314, %v6500
      %v6577 = vadd.f32 %v6315, %v6505
      %v6578 = vadd.f32 %v6316, %v6508
      %v6579 = vadd.f32 %v6317, %v6513
      %v6580 = vadd.f32 %v6318, %v6516
      %v6581 = vadd.f32 %v6319, %v6521
      %v6582 = vadd.f32 %v6320, %v6524
      %v6583 = vadd.f32 %v6321, %v6529
      %v6584 = vadd.f32 %v6322, %v6532
      %v6585 = vadd.f32 %v6323, %v6537
      %v6586 = vadd.f32 %v6324, %v6540
      %v6587 = vadd.f32 %v6325, %v6545
      %v6588 = vadd.f32 %v6326, %v6548
      %v6589 = vadd.f32 %v6327, %v6553
      %v6590 = vadd.f32 %v6328, %v6556
      %s6591 = scalar_lea.vmem %s3, 320
      %v6592 = vld [vmem:[%s6591] sm:$0xf]
      %v6593 = vld [vmem:[%s6591 + $0x4] sm:$0xf]
      %v6594 = vld [vmem:[%s6591 + $0x8] sm:$0xf]
      %v6595 = vld [vmem:[%s6591 + $0xc] sm:$0xf]
      %v6596 = vld [vmem:[%s6591 + $0x10] sm:$0xf]
      %v6597 = vld [vmem:[%s6591 + $0x14] sm:$0xf]
      %v6598 = vld [vmem:[%s6591 + $0x18] sm:$0xf]
      %v6599 = vld [vmem:[%s6591 + $0x1c] sm:$0xf]
      %v6600 = vld [vmem:[%s6591 + $0x20] sm:$0xf]
      %v6601 = vld [vmem:[%s6591 + $0x24] sm:$0xf]
      %v6602 = vld [vmem:[%s6591 + $0x28] sm:$0xf]
      %v6603 = vld [vmem:[%s6591 + $0x2c] sm:$0xf]
      %v6604 = vld [vmem:[%s6591 + $0x30] sm:$0xf]
      %v6605 = vld [vmem:[%s6591 + $0x34] sm:$0xf]
      %v6606 = vld [vmem:[%s6591 + $0x38] sm:$0xf]
      %v6607 = vld [vmem:[%s6591 + $0x3c] sm:$0xf]
      %v6608 = vunpack.c.l.b16 %v5121
      %v6609 = vunpack.c.l.b16 %v5124
      %v6610 = vpack.c.b16 %v6609, %v6608
      %v6628 = vunpack.c.l.b16 %v6592
      %v6629 = vunpack.c.l.b16 %v6593
      %v6630 = vunpack.c.l.b16 %v6594
      %v6631 = vunpack.c.l.b16 %v6595
      %v6632 = vunpack.c.l.b16 %v6596
      %v6633 = vunpack.c.l.b16 %v6597
      %v6634 = vunpack.c.l.b16 %v6598
      %v6635 = vunpack.c.l.b16 %v6599
      %v6636 = vunpack.c.l.b16 %v6600
      %v6637 = vunpack.c.l.b16 %v6601
      %v6638 = vunpack.c.l.b16 %v6602
      %v6639 = vunpack.c.l.b16 %v6603
      %v6640 = vunpack.c.l.b16 %v6604
      %v6641 = vunpack.c.l.b16 %v6605
      %v6642 = vunpack.c.l.b16 %v6606
      %v6643 = vunpack.c.l.b16 %v6607
      %v6644 = vpack.c.b16 %v6629, %v6628
      %v6645 = vpack.c.b16 %v6631, %v6630
      %v6646 = vpack.c.b16 %v6633, %v6632
      %v6647 = vpack.c.b16 %v6635, %v6634
      %v6648 = vpack.c.b16 %v6637, %v6636
      %v6649 = vpack.c.b16 %v6639, %v6638
      %v6650 = vpack.c.b16 %v6641, %v6640
      %v6651 = vpack.c.b16 %v6643, %v6642
      %6660 = vmatprep.subr.bf16.mxu0 0
      %6661 = vmatpush1.bf16.msra.mxu0 %v6644
      %6662 = vmatprep.subr.bf16.mxu0 0
      %6663 = vmatpush1.bf16.msra.mxu0 %v6645
      %6664 = vmatprep.subr.bf16.mxu0 0
      %6665 = vmatpush1.bf16.msra.mxu0 %v6646
      %6666 = vmatprep.subr.bf16.mxu0 0
      %6667 = vmatpush1.bf16.msra.mxu0 %v6647
      %6668 = vmatprep.subr.bf16.mxu0 0
      %6669 = vmatpush1.bf16.msra.mxu0 %v6648
      %6670 = vmatprep.subr.bf16.mxu0 0
      %6671 = vmatpush1.bf16.msra.mxu0 %v6649
      %6672 = vmatprep.subr.bf16.mxu0 0
      %6673 = vmatpush1.bf16.msra.mxu0 %v6650
      %6674 = vmatprep.subr.bf16.mxu0 0
      %6675 = vmatpush1.bf16.msra.mxu0 %v6651
      %6676 = vmatprep.subr.bf16.mxu0 0
      %6677 = vmatpush1.bf16.msra.mxu0 0
      %6678 = vmatprep.subr.bf16.mxu0 0
      %6679 = vmatpush1.bf16.msra.mxu0 0
      %6680 = vmatprep.subr.bf16.mxu0 0
      %6681 = vmatpush1.bf16.msra.mxu0 0
      %6682 = vmatprep.subr.bf16.mxu0 0
      %6683 = vmatpush1.bf16.msra.mxu0 0
      %6684 = vmatprep.subr.bf16.mxu0 0
      %6685 = vmatpush1.bf16.msra.mxu0 0
      %6686 = vmatprep.subr.bf16.mxu0 0
      %6687 = vmatpush1.bf16.msra.mxu0 0
      %6688 = vmatprep.subr.bf16.mxu0 0
      %6689 = vmatpush1.bf16.msra.mxu0 0
      %6690 = vmatprep.subr.bf16.mxu0 0
      %6691 = vmatpush1.bf16.msra.mxu0 0
      %6692 = vmatprep.mubr.bf16.mxu0 0
      %6693 = vmatmul.mubr.bf16.gmra.mrb[0].mxu0 %v5793
      %v6694 = vpop.f32.mrb[0].mxu0
      %v6695 = vadd.f32 0.0, %v6694
      %v6696 = vpop.f32.mrb[0].mxu0
      %v6697 = vpop.f32.mrb[0].mxu0
      %v6698 = vadd.f32 0.0, %v6697
      %v6699 = vpop.f32.mrb[0].mxu0
      %6700 = vmatprep.mubr.bf16.mxu0 0
      %6701 = vmatmul.mubr.bf16.gmra.mrb[0].mxu0 %v5794
      %v6702 = vpop.f32.mrb[0].mxu0
      %v6703 = vadd.f32 0.0, %v6702
      %v6704 = vpop.f32.mrb[0].mxu0
      %v6705 = vpop.f32.mrb[0].mxu0
      %v6706 = vadd.f32 0.0, %v6705
      %v6707 = vpop.f32.mrb[0].mxu0
      %6708 = vmatprep.mubr.bf16.mxu0 0
      %6709 = vmatmul.mubr.bf16.gmra.mrb[0].mxu0 %v5795
      %v6710 = vpop.f32.mrb[0].mxu0
      %v6711 = vadd.f32 0.0, %v6710
      %v6712 = vpop.f32.mrb[0].mxu0
      %v6713 = vpop.f32.mrb[0].mxu0
      %v6714 = vadd.f32 0.0, %v6713
      %v6715 = vpop.f32.mrb[0].mxu0
      %6716 = vmatprep.mubr.bf16.mxu0 0
      %6717 = vmatmul.mubr.bf16.gmra.mrb[0].mxu0 %v5796
      %v6718 = vpop.f32.mrb[0].mxu0
      %v6719 = vadd.f32 0.0, %v6718
      %v6720 = vpop.f32.mrb[0].mxu0
      %v6721 = vpop.f32.mrb[0].mxu0
      %v6722 = vadd.f32 0.0, %v6721
      %v6723 = vpop.f32.mrb[0].mxu0
      %6724 = vmatprep.mubr.bf16.mxu0 0
      %6725 = vmatmul.mubr.bf16.gmra.mrb[0].mxu0 %v5797
      %v6726 = vpop.f32.mrb[0].mxu0
      %v6727 = vadd.f32 0.0, %v6726
      %v6728 = vpop.f32.mrb[0].mxu0
      %v6729 = vpop.f32.mrb[0].mxu0
      %v6730 = vadd.f32 0.0, %v6729
      %v6731 = vpop.f32.mrb[0].mxu0
      %6732 = vmatprep.mubr.bf16.mxu0 0
      %6733 = vmatmul.mubr.bf16.gmra.mrb[0].mxu0 %v5798
      %v6734 = vpop.f32.mrb[0].mxu0
      %v6735 = vadd.f32 0.0, %v6734
      %v6736 = vpop.f32.mrb[0].mxu0
      %v6737 = vpop.f32.mrb[0].mxu0
      %v6738 = vadd.f32 0.0, %v6737
      %v6739 = vpop.f32.mrb[0].mxu0
      %6740 = vmatprep.mubr.bf16.mxu0 0
      %6741 = vmatmul.mubr.bf16.gmra.mrb[0].mxu0 %v5799
      %v6742 = vpop.f32.mrb[0].mxu0
      %v6743 = vadd.f32 0.0, %v6742
      %v6744 = vpop.f32.mrb[0].mxu0
      %v6745 = vpop.f32.mrb[0].mxu0
      %v6746 = vadd.f32 0.0, %v6745
      %v6747 = vpop.f32.mrb[0].mxu0
      %6748 = vmatprep.mubr.bf16.mxu0 0
      %6749 = vmatmul.mubr.bf16.gmra.mrb[0].mxu0 %v5800
      %v6750 = vpop.f32.mrb[0].mxu0
      %v6751 = vadd.f32 0.0, %v6750
      %v6752 = vpop.f32.mrb[0].mxu0
      %v6753 = vpop.f32.mrb[0].mxu0
      %v6754 = vadd.f32 0.0, %v6753
      %v6755 = vpop.f32.mrb[0].mxu0
      %6756 = vmatprep.mubr.bf16.mxu0 0
      %6757 = vmatmul.mubr.bf16.gmra.mrb[0].mxu0 %v5801
      %v6758 = vpop.f32.mrb[0].mxu0
      %v6759 = vadd.f32 0.0, %v6758
      %v6760 = vpop.f32.mrb[0].mxu0
      %v6761 = vpop.f32.mrb[0].mxu0
      %v6762 = vadd.f32 0.0, %v6761
      %v6763 = vpop.f32.mrb[0].mxu0
      %6764 = vmatprep.mubr.bf16.mxu0 0
      %6765 = vmatmul.mubr.bf16.gmra.mrb[0].mxu0 %v5802
      %v6766 = vpop.f32.mrb[0].mxu0
      %v6767 = vadd.f32 0.0, %v6766
      %v6768 = vpop.f32.mrb[0].mxu0
      %v6769 = vpop.f32.mrb[0].mxu0
      %v6770 = vadd.f32 0.0, %v6769
      %v6771 = vpop.f32.mrb[0].mxu0
      %6772 = vmatprep.mubr.bf16.mxu0 0
      %6773 = vmatmul.mubr.bf16.gmra.mrb[0].mxu0 %v5803
      %v6774 = vpop.f32.mrb[0].mxu0
      %v6775 = vadd.f32 0.0, %v6774
      %v6776 = vpop.f32.mrb[0].mxu0
      %v6777 = vpop.f32.mrb[0].mxu0
      %v6778 = vadd.f32 0.0, %v6777
      %v6779 = vpop.f32.mrb[0].mxu0
      %6780 = vmatprep.mubr.bf16.mxu0 0
      %6781 = vmatmul.mubr.bf16.gmra.mrb[0].mxu0 %v5804
      %v6782 = vpop.f32.mrb[0].mxu0
      %v6783 = vadd.f32 0.0, %v6782
      %v6784 = vpop.f32.mrb[0].mxu0
      %v6785 = vpop.f32.mrb[0].mxu0
      %v6786 = vadd.f32 0.0, %v6785
      %v6787 = vpop.f32.mrb[0].mxu0
      %6788 = vmatprep.mubr.bf16.mxu0 0
      %6789 = vmatmul.mubr.bf16.gmra.mrb[0].mxu0 %v5805
      %v6790 = vpop.f32.mrb[0].mxu0
      %v6791 = vadd.f32 0.0, %v6790
      %v6792 = vpop.f32.mrb[0].mxu0
      %v6793 = vpop.f32.mrb[0].mxu0
      %v6794 = vadd.f32 0.0, %v6793
      %v6795 = vpop.f32.mrb[0].mxu0
      %6796 = vmatprep.mubr.bf16.mxu0 0
      %6797 = vmatmul.mubr.bf16.gmra.mrb[0].mxu0 %v5806
      %v6798 = vpop.f32.mrb[0].mxu0
      %v6799 = vadd.f32 0.0, %v6798
      %v6800 = vpop.f32.mrb[0].mxu0
      %v6801 = vpop.f32.mrb[0].mxu0
      %v6802 = vadd.f32 0.0, %v6801
      %v6803 = vpop.f32.mrb[0].mxu0
      %6804 = vmatprep.mubr.bf16.mxu0 0
      %6805 = vmatmul.mubr.bf16.gmra.mrb[0].mxu0 %v5807
      %v6806 = vpop.f32.mrb[0].mxu0
      %v6807 = vadd.f32 0.0, %v6806
      %v6808 = vpop.f32.mrb[0].mxu0
      %v6809 = vpop.f32.mrb[0].mxu0
      %v6810 = vadd.f32 0.0, %v6809
      %v6811 = vpop.f32.mrb[0].mxu0
      %6812 = vmatprep.mubr.bf16.mxu0 0
      %6813 = vmatmul.mubr.bf16.gmra.mrb[0].mxu0 %v6610
      %v6814 = vpop.f32.mrb[0].mxu0
      %v6815 = vadd.f32 0.0, %v6814
      %v6816 = vpop.f32.mrb[0].mxu0
      %v6817 = vpop.f32.mrb[0].mxu0
      %v6818 = vadd.f32 0.0, %v6817
      %v6819 = vpop.f32.mrb[0].mxu0
      %6820 = vdwg.mxu0
      %v6821 = vadd.f32 %v6559, %v6695
      %v6822 = vadd.f32 %v6560, %v6698
      %v6823 = vadd.f32 %v6561, %v6703
      %v6824 = vadd.f32 %v6562, %v6706
      %v6825 = vadd.f32 %v6563, %v6711
      %v6826 = vadd.f32 %v6564, %v6714
      %v6827 = vadd.f32 %v6565, %v6719
      %v6828 = vadd.f32 %v6566, %v6722
      %v6829 = vadd.f32 %v6567, %v6727
      %v6830 = vadd.f32 %v6568, %v6730
      %v6831 = vadd.f32 %v6569, %v6735
      %v6832 = vadd.f32 %v6570, %v6738
      %v6833 = vadd.f32 %v6571, %v6743
      %v6834 = vadd.f32 %v6572, %v6746
      %v6835 = vadd.f32 %v6573, %v6751
      %v6836 = vadd.f32 %v6574, %v6754
      %v6837 = vadd.f32 %v6575, %v6759
      %v6838 = vadd.f32 %v6576, %v6762
      %v6839 = vadd.f32 %v6577, %v6767
      %v6840 = vadd.f32 %v6578, %v6770
      %v6841 = vadd.f32 %v6579, %v6775
      %v6842 = vadd.f32 %v6580, %v6778
      %v6843 = vadd.f32 %v6581, %v6783
      %v6844 = vadd.f32 %v6582, %v6786
      %v6845 = vadd.f32 %v6583, %v6791
      %v6846 = vadd.f32 %v6584, %v6794
      %v6847 = vadd.f32 %v6585, %v6799
      %v6848 = vadd.f32 %v6586, %v6802
      %v6849 = vadd.f32 %v6587, %v6807
      %v6850 = vadd.f32 %v6588, %v6810
      %v6851 = vadd.f32 %v6589, %v6815
      %v6852 = vadd.f32 %v6590, %v6818
      %s6853 = scalar_lea.vmem %s3, 384
      %v6854 = vld [vmem:[%s6853] sm:$0xf]
      %v6855 = vld [vmem:[%s6853 + $0x4] sm:$0xf]
      %v6856 = vld [vmem:[%s6853 + $0x8] sm:$0xf]
      %v6857 = vld [vmem:[%s6853 + $0xc] sm:$0xf]
      %v6858 = vld [vmem:[%s6853 + $0x10] sm:$0xf]
      %v6859 = vld [vmem:[%s6853 + $0x14] sm:$0xf]
      %v6860 = vld [vmem:[%s6853 + $0x18] sm:$0xf]
      %v6861 = vld [vmem:[%s6853 + $0x1c] sm:$0xf]
      %v6862 = vld [vmem:[%s6853 + $0x20] sm:$0xf]
      %v6863 = vld [vmem:[%s6853 + $0x24] sm:$0xf]
      %v6864 = vld [vmem:[%s6853 + $0x28] sm:$0xf]
      %v6865 = vld [vmem:[%s6853 + $0x2c] sm:$0xf]
      %v6866 = vld [vmem:[%s6853 + $0x30] sm:$0xf]
      %v6867 = vld [vmem:[%s6853 + $0x34] sm:$0xf]
      %v6868 = vld [vmem:[%s6853 + $0x38] sm:$0xf]
      %v6869 = vld [vmem:[%s6853 + $0x3c] sm:$0xf]
      %v6872 = vunpack.c.l.b16 %v4446
      %v6873 = vunpack.c.l.b16 %v4447
      %v6874 = vpack.c.b16 %v6873, %v6872
      %v6892 = vunpack.c.l.b16 %v6854
      %v6893 = vunpack.c.l.b16 %v6855
      %v6894 = vunpack.c.l.b16 %v6856
      %v6895 = vunpack.c.l.b16 %v6857
      %v6896 = vunpack.c.l.b16 %v6858
      %v6897 = vunpack.c.l.b16 %v6859
      %v6898 = vunpack.c.l.b16 %v6860
      %v6899 = vunpack.c.l.b16 %v6861
      %v6900 = vunpack.c.l.b16 %v6862
      %v6901 = vunpack.c.l.b16 %v6863
      %v6902 = vunpack.c.l.b16 %v6864
      %v6903 = vunpack.c.l.b16 %v6865
      %v6904 = vunpack.c.l.b16 %v6866
      %v6905 = vunpack.c.l.b16 %v6867
      %v6906 = vunpack.c.l.b16 %v6868
      %v6907 = vunpack.c.l.b16 %v6869
      %v6908 = vpack.c.b16 %v6893, %v6892
      %v6909 = vpack.c.b16 %v6895, %v6894
      %v6910 = vpack.c.b16 %v6897, %v6896
      %v6911 = vpack.c.b16 %v6899, %v6898
      %v6912 = vpack.c.b16 %v6901, %v6900
      %v6913 = vpack.c.b16 %v6903, %v6902
      %v6914 = vpack.c.b16 %v6905, %v6904
      %v6915 = vpack.c.b16 %v6907, %v6906
      %6924 = vmatprep.subr.bf16.mxu0 0
      %6925 = vmatpush1.bf16.msra.mxu0 %v6908
      %6926 = vmatprep.subr.bf16.mxu0 0
      %6927 = vmatpush1.bf16.msra.mxu0 %v6909
      %6928 = vmatprep.subr.bf16.mxu0 0
      %6929 = vmatpush1.bf16.msra.mxu0 %v6910
      %6930 = vmatprep.subr.bf16.mxu0 0
      %6931 = vmatpush1.bf16.msra.mxu0 %v6911
      %6932 = vmatprep.subr.bf16.mxu0 0
      %6933 = vmatpush1.bf16.msra.mxu0 %v6912
      %6934 = vmatprep.subr.bf16.mxu0 0
      %6935 = vmatpush1.bf16.msra.mxu0 %v6913
      %6936 = vmatprep.subr.bf16.mxu0 0
      %6937 = vmatpush1.bf16.msra.mxu0 %v6914
      %6938 = vmatprep.subr.bf16.mxu0 0
      %6939 = vmatpush1.bf16.msra.mxu0 %v6915
      %6940 = vmatprep.subr.bf16.mxu0 0
      %6941 = vmatpush1.bf16.msra.mxu0 0
      %6942 = vmatprep.subr.bf16.mxu0 0
      %6943 = vmatpush1.bf16.msra.mxu0 0
      %6944 = vmatprep.subr.bf16.mxu0 0
      %6945 = vmatpush1.bf16.msra.mxu0 0
      %6946 = vmatprep.subr.bf16.mxu0 0
      %6947 = vmatpush1.bf16.msra.mxu0 0
      %6948 = vmatprep.subr.bf16.mxu0 0
      %6949 = vmatpush1.bf16.msra.mxu0 0
      %6950 = vmatprep.subr.bf16.mxu0 0
      %6951 = vmatpush1.bf16.msra.mxu0 0
      %6952 = vmatprep.subr.bf16.mxu0 0
      %6953 = vmatpush1.bf16.msra.mxu0 0
      %6954 = vmatprep.subr.bf16.mxu0 0
      %6955 = vmatpush1.bf16.msra.mxu0 0
      %6956 = vmatprep.mubr.bf16.mxu0 0
      %6957 = vmatmul.mubr.bf16.gmra.mrb[0].mxu0 %v5504
      %v6958 = vpop.f32.mrb[0].mxu0
      %v6959 = vadd.f32 0.0, %v6958
      %v6960 = vpop.f32.mrb[0].mxu0
      %v6961 = vpop.f32.mrb[0].mxu0
      %v6962 = vadd.f32 0.0, %v6961
      %v6963 = vpop.f32.mrb[0].mxu0
      %6964 = vmatprep.mubr.bf16.mxu0 0
      %6965 = vmatmul.mubr.bf16.gmra.mrb[0].mxu0 %v5505
      %v6966 = vpop.f32.mrb[0].mxu0
      %v6967 = vadd.f32 0.0, %v6966
      %v6968 = vpop.f32.mrb[0].mxu0
      %v6969 = vpop.f32.mrb[0].mxu0
      %v6970 = vadd.f32 0.0, %v6969
      %v6971 = vpop.f32.mrb[0].mxu0
      %6972 = vmatprep.mubr.bf16.mxu0 0
      %6973 = vmatmul.mubr.bf16.gmra.mrb[0].mxu0 %v5506
      %v6974 = vpop.f32.mrb[0].mxu0
      %v6975 = vadd.f32 0.0, %v6974
      %v6976 = vpop.f32.mrb[0].mxu0
      %v6977 = vpop.f32.mrb[0].mxu0
      %v6978 = vadd.f32 0.0, %v6977
      %v6979 = vpop.f32.mrb[0].mxu0
      %6980 = vmatprep.mubr.bf16.mxu0 0
      %6981 = vmatmul.mubr.bf16.gmra.mrb[0].mxu0 %v5507
      %v6982 = vpop.f32.mrb[0].mxu0
      %v6983 = vadd.f32 0.0, %v6982
      %v6984 = vpop.f32.mrb[0].mxu0
      %v6985 = vpop.f32.mrb[0].mxu0
      %v6986 = vadd.f32 0.0, %v6985
      %v6987 = vpop.f32.mrb[0].mxu0
      %6988 = vmatprep.mubr.bf16.mxu0 0
      %6989 = vmatmul.mubr.bf16.gmra.mrb[0].mxu0 %v5508
      %v6990 = vpop.f32.mrb[0].mxu0
      %v6991 = vadd.f32 0.0, %v6990
      %v6992 = vpop.f32.mrb[0].mxu0
      %v6993 = vpop.f32.mrb[0].mxu0
      %v6994 = vadd.f32 0.0, %v6993
      %v6995 = vpop.f32.mrb[0].mxu0
      %6996 = vmatprep.mubr.bf16.mxu0 0
      %6997 = vmatmul.mubr.bf16.gmra.mrb[0].mxu0 %v5509
      %v6998 = vpop.f32.mrb[0].mxu0
      %v6999 = vadd.f32 0.0, %v6998
      %v7000 = vpop.f32.mrb[0].mxu0
      %v7001 = vpop.f32.mrb[0].mxu0
      %v7002 = vadd.f32 0.0, %v7001
      %v7003 = vpop.f32.mrb[0].mxu0
      %7004 = vmatprep.mubr.bf16.mxu0 0
      %7005 = vmatmul.mubr.bf16.gmra.mrb[0].mxu0 %v5510
      %v7006 = vpop.f32.mrb[0].mxu0
      %v7007 = vadd.f32 0.0, %v7006
      %v7008 = vpop.f32.mrb[0].mxu0
      %v7009 = vpop.f32.mrb[0].mxu0
      %v7010 = vadd.f32 0.0, %v7009
      %v7011 = vpop.f32.mrb[0].mxu0
      %7012 = vmatprep.mubr.bf16.mxu0 0
      %7013 = vmatmul.mubr.bf16.gmra.mrb[0].mxu0 %v5511
      %v7014 = vpop.f32.mrb[0].mxu0
      %v7015 = vadd.f32 0.0, %v7014
      %v7016 = vpop.f32.mrb[0].mxu0
      %v7017 = vpop.f32.mrb[0].mxu0
      %v7018 = vadd.f32 0.0, %v7017
      %v7019 = vpop.f32.mrb[0].mxu0
      %7020 = vmatprep.mubr.bf16.mxu0 0
      %7021 = vmatmul.mubr.bf16.gmra.mrb[0].mxu0 %v5512
      %v7022 = vpop.f32.mrb[0].mxu0
      %v7023 = vadd.f32 0.0, %v7022
      %v7024 = vpop.f32.mrb[0].mxu0
      %v7025 = vpop.f32.mrb[0].mxu0
      %v7026 = vadd.f32 0.0, %v7025
      %v7027 = vpop.f32.mrb[0].mxu0
      %7028 = vmatprep.mubr.bf16.mxu0 0
      %7029 = vmatmul.mubr.bf16.gmra.mrb[0].mxu0 %v5513
      %v7030 = vpop.f32.mrb[0].mxu0
      %v7031 = vadd.f32 0.0, %v7030
      %v7032 = vpop.f32.mrb[0].mxu0
      %v7033 = vpop.f32.mrb[0].mxu0
      %v7034 = vadd.f32 0.0, %v7033
      %v7035 = vpop.f32.mrb[0].mxu0
      %7036 = vmatprep.mubr.bf16.mxu0 0
      %7037 = vmatmul.mubr.bf16.gmra.mrb[0].mxu0 %v5514
      %v7038 = vpop.f32.mrb[0].mxu0
      %v7039 = vadd.f32 0.0, %v7038
      %v7040 = vpop.f32.mrb[0].mxu0
      %v7041 = vpop.f32.mrb[0].mxu0
      %v7042 = vadd.f32 0.0, %v7041
      %v7043 = vpop.f32.mrb[0].mxu0
      %7044 = vmatprep.mubr.bf16.mxu0 0
      %7045 = vmatmul.mubr.bf16.gmra.mrb[0].mxu0 %v5515
      %v7046 = vpop.f32.mrb[0].mxu0
      %v7047 = vadd.f32 0.0, %v7046
      %v7048 = vpop.f32.mrb[0].mxu0
      %v7049 = vpop.f32.mrb[0].mxu0
      %v7050 = vadd.f32 0.0, %v7049
      %v7051 = vpop.f32.mrb[0].mxu0
      %7052 = vmatprep.mubr.bf16.mxu0 0
      %7053 = vmatmul.mubr.bf16.gmra.mrb[0].mxu0 %v5516
      %v7054 = vpop.f32.mrb[0].mxu0
      %v7055 = vadd.f32 0.0, %v7054
      %v7056 = vpop.f32.mrb[0].mxu0
      %v7057 = vpop.f32.mrb[0].mxu0
      %v7058 = vadd.f32 0.0, %v7057
      %v7059 = vpop.f32.mrb[0].mxu0
      %7060 = vmatprep.mubr.bf16.mxu0 0
      %7061 = vmatmul.mubr.bf16.gmra.mrb[0].mxu0 %v5517
      %v7062 = vpop.f32.mrb[0].mxu0
      %v7063 = vadd.f32 0.0, %v7062
      %v7064 = vpop.f32.mrb[0].mxu0
      %v7065 = vpop.f32.mrb[0].mxu0
      %v7066 = vadd.f32 0.0, %v7065
      %v7067 = vpop.f32.mrb[0].mxu0
      %7068 = vmatprep.mubr.bf16.mxu0 0
      %7069 = vmatmul.mubr.bf16.gmra.mrb[0].mxu0 %v6086
      %v7070 = vpop.f32.mrb[0].mxu0
      %v7071 = vadd.f32 0.0, %v7070
      %v7072 = vpop.f32.mrb[0].mxu0
      %v7073 = vpop.f32.mrb[0].mxu0
      %v7074 = vadd.f32 0.0, %v7073
      %v7075 = vpop.f32.mrb[0].mxu0
      %7076 = vmatprep.mubr.bf16.mxu0 0
      %7077 = vmatmul.mubr.bf16.gmra.mrb[0].mxu0 %v6874
      %v7078 = vpop.f32.mrb[0].mxu0
      %v7079 = vadd.f32 0.0, %v7078
      %v7080 = vpop.f32.mrb[0].mxu0
      %v7081 = vpop.f32.mrb[0].mxu0
      %v7082 = vadd.f32 0.0, %v7081
      %v7083 = vpop.f32.mrb[0].mxu0
      %7084 = vdwg.mxu0
      %v7085 = vadd.f32 %v6821, %v6959
      %v7086 = vadd.f32 %v6822, %v6962
      %v7087 = vadd.f32 %v6823, %v6967
      %v7088 = vadd.f32 %v6824, %v6970
      %v7089 = vadd.f32 %v6825, %v6975
      %v7090 = vadd.f32 %v6826, %v6978
      %v7091 = vadd.f32 %v6827, %v6983
      %v7092 = vadd.f32 %v6828, %v6986
      %v7093 = vadd.f32 %v6829, %v6991
      %v7094 = vadd.f32 %v6830, %v6994
      %v7095 = vadd.f32 %v6831, %v6999
      %v7096 = vadd.f32 %v6832, %v7002
      %v7097 = vadd.f32 %v6833, %v7007
      %v7098 = vadd.f32 %v6834, %v7010
      %v7099 = vadd.f32 %v6835, %v7015
      %v7100 = vadd.f32 %v6836, %v7018
      %v7101 = vadd.f32 %v6837, %v7023
      %v7102 = vadd.f32 %v6838, %v7026
      %v7103 = vadd.f32 %v6839, %v7031
      %v7104 = vadd.f32 %v6840, %v7034
      %v7105 = vadd.f32 %v6841, %v7039
      %v7106 = vadd.f32 %v6842, %v7042
      %v7107 = vadd.f32 %v6843, %v7047
      %v7108 = vadd.f32 %v6844, %v7050
      %v7109 = vadd.f32 %v6845, %v7055
      %v7110 = vadd.f32 %v6846, %v7058
      %v7111 = vadd.f32 %v6847, %v7063
      %v7112 = vadd.f32 %v6848, %v7066
      %v7113 = vadd.f32 %v6849, %v7071
      %v7114 = vadd.f32 %v6850, %v7074
      %v7115 = vadd.f32 %v6851, %v7079
      %v7116 = vadd.f32 %v6852, %v7082
      %s7117 = scalar_lea.vmem %s3, 448
      %v7118 = vld [vmem:[%s7117] sm:$0xf]
      %v7119 = vld [vmem:[%s7117 + $0x4] sm:$0xf]
      %v7120 = vld [vmem:[%s7117 + $0x8] sm:$0xf]
      %v7121 = vld [vmem:[%s7117 + $0xc] sm:$0xf]
      %v7122 = vld [vmem:[%s7117 + $0x10] sm:$0xf]
      %v7123 = vld [vmem:[%s7117 + $0x14] sm:$0xf]
      %v7124 = vld [vmem:[%s7117 + $0x18] sm:$0xf]
      %v7125 = vld [vmem:[%s7117 + $0x1c] sm:$0xf]
      %v7126 = vld [vmem:[%s7117 + $0x20] sm:$0xf]
      %v7127 = vld [vmem:[%s7117 + $0x24] sm:$0xf]
      %v7128 = vld [vmem:[%s7117 + $0x28] sm:$0xf]
      %v7129 = vld [vmem:[%s7117 + $0x2c] sm:$0xf]
      %v7130 = vld [vmem:[%s7117 + $0x30] sm:$0xf]
      %v7131 = vld [vmem:[%s7117 + $0x34] sm:$0xf]
      %v7132 = vld [vmem:[%s7117 + $0x38] sm:$0xf]
      %v7133 = vld [vmem:[%s7117 + $0x3c] sm:$0xf]
      %v7134 = vunpack.c.l.b16 %v4923
      %v7135 = vunpack.c.l.b16 %v4933
      %v7136 = vpack.c.b16 %v7135, %v7134
      %v7154 = vunpack.c.l.b16 %v7118
      %v7155 = vunpack.c.l.b16 %v7119
      %v7156 = vunpack.c.l.b16 %v7120
      %v7157 = vunpack.c.l.b16 %v7121
      %v7158 = vunpack.c.l.b16 %v7122
      %v7159 = vunpack.c.l.b16 %v7123
      %v7160 = vunpack.c.l.b16 %v7124
      %v7161 = vunpack.c.l.b16 %v7125
      %v7162 = vunpack.c.l.b16 %v7126
      %v7163 = vunpack.c.l.b16 %v7127
      %v7164 = vunpack.c.l.b16 %v7128
      %v7165 = vunpack.c.l.b16 %v7129
      %v7166 = vunpack.c.l.b16 %v7130
      %v7167 = vunpack.c.l.b16 %v7131
      %v7168 = vunpack.c.l.b16 %v7132
      %v7169 = vunpack.c.l.b16 %v7133
      %v7170 = vpack.c.b16 %v7155, %v7154
      %v7171 = vpack.c.b16 %v7157, %v7156
      %v7172 = vpack.c.b16 %v7159, %v7158
      %v7173 = vpack.c.b16 %v7161, %v7160
      %v7174 = vpack.c.b16 %v7163, %v7162
      %v7175 = vpack.c.b16 %v7165, %v7164
      %v7176 = vpack.c.b16 %v7167, %v7166
      %v7177 = vpack.c.b16 %v7169, %v7168
      %7186 = vmatprep.subr.bf16.mxu0 0
      %7187 = vmatpush1.bf16.msra.mxu0 %v7170
      %7188 = vmatprep.subr.bf16.mxu0 0
      %7189 = vmatpush1.bf16.msra.mxu0 %v7171
      %7190 = vmatprep.subr.bf16.mxu0 0
      %7191 = vmatpush1.bf16.msra.mxu0 %v7172
      %7192 = vmatprep.subr.bf16.mxu0 0
      %7193 = vmatpush1.bf16.msra.mxu0 %v7173
      %7194 = vmatprep.subr.bf16.mxu0 0
      %7195 = vmatpush1.bf16.msra.mxu0 %v7174
      %7196 = vmatprep.subr.bf16.mxu0 0
      %7197 = vmatpush1.bf16.msra.mxu0 %v7175
      %7198 = vmatprep.subr.bf16.mxu0 0
      %7199 = vmatpush1.bf16.msra.mxu0 %v7176
      %7200 = vmatprep.subr.bf16.mxu0 0
      %7201 = vmatpush1.bf16.msra.mxu0 %v7177
      %7202 = vmatprep.subr.bf16.mxu0 0
      %7203 = vmatpush1.bf16.msra.mxu0 0
      %7204 = vmatprep.subr.bf16.mxu0 0
      %7205 = vmatpush1.bf16.msra.mxu0 0
      %7206 = vmatprep.subr.bf16.mxu0 0
      %7207 = vmatpush1.bf16.msra.mxu0 0
      %7208 = vmatprep.subr.bf16.mxu0 0
      %7209 = vmatpush1.bf16.msra.mxu0 0
      %7210 = vmatprep.subr.bf16.mxu0 0
      %7211 = vmatpush1.bf16.msra.mxu0 0
      %7212 = vmatprep.subr.bf16.mxu0 0
      %7213 = vmatpush1.bf16.msra.mxu0 0
      %7214 = vmatprep.subr.bf16.mxu0 0
      %7215 = vmatpush1.bf16.msra.mxu0 0
      %7216 = vmatprep.subr.bf16.mxu0 0
      %7217 = vmatpush1.bf16.msra.mxu0 0
      %7218 = vmatprep.mubr.bf16.mxu0 0
      %7219 = vmatmul.mubr.bf16.gmra.mrb[0].mxu0 %v5199
      %v7220 = vpop.f32.mrb[0].mxu0
      %v7221 = vadd.f32 0.0, %v7220
      %v7222 = vpop.f32.mrb[0].mxu0
      %v7223 = vpop.f32.mrb[0].mxu0
      %v7224 = vadd.f32 0.0, %v7223
      %v7225 = vpop.f32.mrb[0].mxu0
      %7226 = vmatprep.mubr.bf16.mxu0 0
      %7227 = vmatmul.mubr.bf16.gmra.mrb[0].mxu0 %v5200
      %v7228 = vpop.f32.mrb[0].mxu0
      %v7229 = vadd.f32 0.0, %v7228
      %v7230 = vpop.f32.mrb[0].mxu0
      %v7231 = vpop.f32.mrb[0].mxu0
      %v7232 = vadd.f32 0.0, %v7231
      %v7233 = vpop.f32.mrb[0].mxu0
      %7234 = vmatprep.mubr.bf16.mxu0 0
      %7235 = vmatmul.mubr.bf16.gmra.mrb[0].mxu0 %v5201
      %v7236 = vpop.f32.mrb[0].mxu0
      %v7237 = vadd.f32 0.0, %v7236
      %v7238 = vpop.f32.mrb[0].mxu0
      %v7239 = vpop.f32.mrb[0].mxu0
      %v7240 = vadd.f32 0.0, %v7239
      %v7241 = vpop.f32.mrb[0].mxu0
      %7242 = vmatprep.mubr.bf16.mxu0 0
      %7243 = vmatmul.mubr.bf16.gmra.mrb[0].mxu0 %v5202
      %v7244 = vpop.f32.mrb[0].mxu0
      %v7245 = vadd.f32 0.0, %v7244
      %v7246 = vpop.f32.mrb[0].mxu0
      %v7247 = vpop.f32.mrb[0].mxu0
      %v7248 = vadd.f32 0.0, %v7247
      %v7249 = vpop.f32.mrb[0].mxu0
      %7250 = vmatprep.mubr.bf16.mxu0 0
      %7251 = vmatmul.mubr.bf16.gmra.mrb[0].mxu0 %v5203
      %v7252 = vpop.f32.mrb[0].mxu0
      %v7253 = vadd.f32 0.0, %v7252
      %v7254 = vpop.f32.mrb[0].mxu0
      %v7255 = vpop.f32.mrb[0].mxu0
      %v7256 = vadd.f32 0.0, %v7255
      %v7257 = vpop.f32.mrb[0].mxu0
      %7258 = vmatprep.mubr.bf16.mxu0 0
      %7259 = vmatmul.mubr.bf16.gmra.mrb[0].mxu0 %v5204
      %v7260 = vpop.f32.mrb[0].mxu0
      %v7261 = vadd.f32 0.0, %v7260
      %v7262 = vpop.f32.mrb[0].mxu0
      %v7263 = vpop.f32.mrb[0].mxu0
      %v7264 = vadd.f32 0.0, %v7263
      %v7265 = vpop.f32.mrb[0].mxu0
      %7266 = vmatprep.mubr.bf16.mxu0 0
      %7267 = vmatmul.mubr.bf16.gmra.mrb[0].mxu0 %v5205
      %v7268 = vpop.f32.mrb[0].mxu0
      %v7269 = vadd.f32 0.0, %v7268
      %v7270 = vpop.f32.mrb[0].mxu0
      %v7271 = vpop.f32.mrb[0].mxu0
      %v7272 = vadd.f32 0.0, %v7271
      %v7273 = vpop.f32.mrb[0].mxu0
      %7274 = vmatprep.mubr.bf16.mxu0 0
      %7275 = vmatmul.mubr.bf16.gmra.mrb[0].mxu0 %v5206
      %v7276 = vpop.f32.mrb[0].mxu0
      %v7277 = vadd.f32 0.0, %v7276
      %v7278 = vpop.f32.mrb[0].mxu0
      %v7279 = vpop.f32.mrb[0].mxu0
      %v7280 = vadd.f32 0.0, %v7279
      %v7281 = vpop.f32.mrb[0].mxu0
      %7282 = vmatprep.mubr.bf16.mxu0 0
      %7283 = vmatmul.mubr.bf16.gmra.mrb[0].mxu0 %v5207
      %v7284 = vpop.f32.mrb[0].mxu0
      %v7285 = vadd.f32 0.0, %v7284
      %v7286 = vpop.f32.mrb[0].mxu0
      %v7287 = vpop.f32.mrb[0].mxu0
      %v7288 = vadd.f32 0.0, %v7287
      %v7289 = vpop.f32.mrb[0].mxu0
      %7290 = vmatprep.mubr.bf16.mxu0 0
      %7291 = vmatmul.mubr.bf16.gmra.mrb[0].mxu0 %v5208
      %v7292 = vpop.f32.mrb[0].mxu0
      %v7293 = vadd.f32 0.0, %v7292
      %v7294 = vpop.f32.mrb[0].mxu0
      %v7295 = vpop.f32.mrb[0].mxu0
      %v7296 = vadd.f32 0.0, %v7295
      %v7297 = vpop.f32.mrb[0].mxu0
      %7298 = vmatprep.mubr.bf16.mxu0 0
      %7299 = vmatmul.mubr.bf16.gmra.mrb[0].mxu0 %v5209
      %v7300 = vpop.f32.mrb[0].mxu0
      %v7301 = vadd.f32 0.0, %v7300
      %v7302 = vpop.f32.mrb[0].mxu0
      %v7303 = vpop.f32.mrb[0].mxu0
      %v7304 = vadd.f32 0.0, %v7303
      %v7305 = vpop.f32.mrb[0].mxu0
      %7306 = vmatprep.mubr.bf16.mxu0 0
      %7307 = vmatmul.mubr.bf16.gmra.mrb[0].mxu0 %v5210
      %v7308 = vpop.f32.mrb[0].mxu0
      %v7309 = vadd.f32 0.0, %v7308
      %v7310 = vpop.f32.mrb[0].mxu0
      %v7311 = vpop.f32.mrb[0].mxu0
      %v7312 = vadd.f32 0.0, %v7311
      %v7313 = vpop.f32.mrb[0].mxu0
      %7314 = vmatprep.mubr.bf16.mxu0 0
      %7315 = vmatmul.mubr.bf16.gmra.mrb[0].mxu0 %v5211
      %v7316 = vpop.f32.mrb[0].mxu0
      %v7317 = vadd.f32 0.0, %v7316
      %v7318 = vpop.f32.mrb[0].mxu0
      %v7319 = vpop.f32.mrb[0].mxu0
      %v7320 = vadd.f32 0.0, %v7319
      %v7321 = vpop.f32.mrb[0].mxu0
      %7322 = vmatprep.mubr.bf16.mxu0 0
      %7323 = vmatmul.mubr.bf16.gmra.mrb[0].mxu0 %v5212
      %v7324 = vpop.f32.mrb[0].mxu0
      %v7325 = vadd.f32 0.0, %v7324
      %v7326 = vpop.f32.mrb[0].mxu0
      %v7327 = vpop.f32.mrb[0].mxu0
      %v7328 = vadd.f32 0.0, %v7327
      %v7329 = vpop.f32.mrb[0].mxu0
      %7330 = vmatprep.mubr.bf16.mxu0 0
      %7331 = vmatmul.mubr.bf16.gmra.mrb[0].mxu0 %v6348
      %v7332 = vpop.f32.mrb[0].mxu0
      %v7333 = vadd.f32 0.0, %v7332
      %v7334 = vpop.f32.mrb[0].mxu0
      %v7335 = vpop.f32.mrb[0].mxu0
      %v7336 = vadd.f32 0.0, %v7335
      %v7337 = vpop.f32.mrb[0].mxu0
      %7338 = vmatprep.mubr.bf16.mxu0 0
      %7339 = vmatmul.mubr.bf16.gmra.mrb[0].mxu0 %v7136
      %v7340 = vpop.f32.mrb[0].mxu0
      %v7341 = vadd.f32 0.0, %v7340
      %v7342 = vpop.f32.mrb[0].mxu0
      %v7343 = vpop.f32.mrb[0].mxu0
      %v7344 = vadd.f32 0.0, %v7343
      %v7345 = vpop.f32.mrb[0].mxu0
      %7346 = vdwg.mxu0
      %v7347 = vadd.f32 %v7085, %v7221
      %v7348 = vadd.f32 %v7086, %v7224
      %v7349 = vadd.f32 %v7087, %v7229
      %v7350 = vadd.f32 %v7088, %v7232
      %v7351 = vadd.f32 %v7089, %v7237
      %v7352 = vadd.f32 %v7090, %v7240
      %v7353 = vadd.f32 %v7091, %v7245
      %v7354 = vadd.f32 %v7092, %v7248
      %v7355 = vadd.f32 %v7093, %v7253
      %v7356 = vadd.f32 %v7094, %v7256
      %v7357 = vadd.f32 %v7095, %v7261
      %v7358 = vadd.f32 %v7096, %v7264
      %v7359 = vadd.f32 %v7097, %v7269
      %v7360 = vadd.f32 %v7098, %v7272
      %v7361 = vadd.f32 %v7099, %v7277
      %v7362 = vadd.f32 %v7100, %v7280
      %v7363 = vadd.f32 %v7101, %v7285
      %v7364 = vadd.f32 %v7102, %v7288
      %v7365 = vadd.f32 %v7103, %v7293
      %v7366 = vadd.f32 %v7104, %v7296
      %v7367 = vadd.f32 %v7105, %v7301
      %v7368 = vadd.f32 %v7106, %v7304
      %v7369 = vadd.f32 %v7107, %v7309
      %v7370 = vadd.f32 %v7108, %v7312
      %v7371 = vadd.f32 %v7109, %v7317
      %v7372 = vadd.f32 %v7110, %v7320
      %v7373 = vadd.f32 %v7111, %v7325
      %v7374 = vadd.f32 %v7112, %v7328
      %v7375 = vadd.f32 %v7113, %v7333
      %v7376 = vadd.f32 %v7114, %v7336
      %v7377 = vadd.f32 %v7115, %v7341
      %v7378 = vadd.f32 %v7116, %v7344
      %s7379 = scalar_lea.vmem %s3, 512
      %v7380 = vld [vmem:[%s7379] sm:$0xf]
      %v7381 = vld [vmem:[%s7379 + $0x4] sm:$0xf]
      %v7382 = vld [vmem:[%s7379 + $0x8] sm:$0xf]
      %v7383 = vld [vmem:[%s7379 + $0xc] sm:$0xf]
      %v7384 = vld [vmem:[%s7379 + $0x10] sm:$0xf]
      %v7385 = vld [vmem:[%s7379 + $0x14] sm:$0xf]
      %v7386 = vld [vmem:[%s7379 + $0x18] sm:$0xf]
      %v7387 = vld [vmem:[%s7379 + $0x1c] sm:$0xf]
      %v7388 = vld [vmem:[%s7379 + $0x20] sm:$0xf]
      %v7389 = vld [vmem:[%s7379 + $0x24] sm:$0xf]
      %v7390 = vld [vmem:[%s7379 + $0x28] sm:$0xf]
      %v7391 = vld [vmem:[%s7379 + $0x2c] sm:$0xf]
      %v7392 = vld [vmem:[%s7379 + $0x30] sm:$0xf]
      %v7393 = vld [vmem:[%s7379 + $0x34] sm:$0xf]
      %v7394 = vld [vmem:[%s7379 + $0x38] sm:$0xf]
      %v7395 = vld [vmem:[%s7379 + $0x3c] sm:$0xf]
      %v7396 = vunpack.c.l.b16 %v5128
      %v7397 = vunpack.c.l.b16 %v5131
      %v7398 = vpack.c.b16 %v7397, %v7396
      %v7416 = vunpack.c.l.b16 %v7380
      %v7417 = vunpack.c.l.b16 %v7381
      %v7418 = vunpack.c.l.b16 %v7382
      %v7419 = vunpack.c.l.b16 %v7383
      %v7420 = vunpack.c.l.b16 %v7384
      %v7421 = vunpack.c.l.b16 %v7385
      %v7422 = vunpack.c.l.b16 %v7386
      %v7423 = vunpack.c.l.b16 %v7387
      %v7424 = vunpack.c.l.b16 %v7388
      %v7425 = vunpack.c.l.b16 %v7389
      %v7426 = vunpack.c.l.b16 %v7390
      %v7427 = vunpack.c.l.b16 %v7391
      %v7428 = vunpack.c.l.b16 %v7392
      %v7429 = vunpack.c.l.b16 %v7393
      %v7430 = vunpack.c.l.b16 %v7394
      %v7431 = vunpack.c.l.b16 %v7395
      %v7432 = vpack.c.b16 %v7417, %v7416
      %v7433 = vpack.c.b16 %v7419, %v7418
      %v7434 = vpack.c.b16 %v7421, %v7420
      %v7435 = vpack.c.b16 %v7423, %v7422
      %v7436 = vpack.c.b16 %v7425, %v7424
      %v7437 = vpack.c.b16 %v7427, %v7426
      %v7438 = vpack.c.b16 %v7429, %v7428
      %v7439 = vpack.c.b16 %v7431, %v7430
      %7448 = vmatprep.subr.bf16.mxu0 0
      %7449 = vmatpush1.bf16.msra.mxu0 %v7432
      %7450 = vmatprep.subr.bf16.mxu0 0
      %7451 = vmatpush1.bf16.msra.mxu0 %v7433
      %7452 = vmatprep.subr.bf16.mxu0 0
      %7453 = vmatpush1.bf16.msra.mxu0 %v7434
      %7454 = vmatprep.subr.bf16.mxu0 0
      %7455 = vmatpush1.bf16.msra.mxu0 %v7435
      %7456 = vmatprep.subr.bf16.mxu0 0
      %7457 = vmatpush1.bf16.msra.mxu0 %v7436
      %7458 = vmatprep.subr.bf16.mxu0 0
      %7459 = vmatpush1.bf16.msra.mxu0 %v7437
      %7460 = vmatprep.subr.bf16.mxu0 0
      %7461 = vmatpush1.bf16.msra.mxu0 %v7438
      %7462 = vmatprep.subr.bf16.mxu0 0
      %7463 = vmatpush1.bf16.msra.mxu0 %v7439
      %7464 = vmatprep.subr.bf16.mxu0 0
      %7465 = vmatpush1.bf16.msra.mxu0 0
      %7466 = vmatprep.subr.bf16.mxu0 0
      %7467 = vmatpush1.bf16.msra.mxu0 0
      %7468 = vmatprep.subr.bf16.mxu0 0
      %7469 = vmatpush1.bf16.msra.mxu0 0
      %7470 = vmatprep.subr.bf16.mxu0 0
      %7471 = vmatpush1.bf16.msra.mxu0 0
      %7472 = vmatprep.subr.bf16.mxu0 0
      %7473 = vmatpush1.bf16.msra.mxu0 0
      %7474 = vmatprep.subr.bf16.mxu0 0
      %7475 = vmatpush1.bf16.msra.mxu0 0
      %7476 = vmatprep.subr.bf16.mxu0 0
      %7477 = vmatpush1.bf16.msra.mxu0 0
      %7478 = vmatprep.subr.bf16.mxu0 0
      %7479 = vmatpush1.bf16.msra.mxu0 0
      %7480 = vmatprep.mubr.bf16.mxu0 0
      %7481 = vmatmul.mubr.bf16.gmra.mrb[0].mxu0 %v5794
      %v7482 = vpop.f32.mrb[0].mxu0
      %v7483 = vadd.f32 0.0, %v7482
      %v7484 = vpop.f32.mrb[0].mxu0
      %v7485 = vpop.f32.mrb[0].mxu0
      %v7486 = vadd.f32 0.0, %v7485
      %v7487 = vpop.f32.mrb[0].mxu0
      %7488 = vmatprep.mubr.bf16.mxu0 0
      %7489 = vmatmul.mubr.bf16.gmra.mrb[0].mxu0 %v5795
      %v7490 = vpop.f32.mrb[0].mxu0
      %v7491 = vadd.f32 0.0, %v7490
      %v7492 = vpop.f32.mrb[0].mxu0
      %v7493 = vpop.f32.mrb[0].mxu0
      %v7494 = vadd.f32 0.0, %v7493
      %v7495 = vpop.f32.mrb[0].mxu0
      %7496 = vmatprep.mubr.bf16.mxu0 0
      %7497 = vmatmul.mubr.bf16.gmra.mrb[0].mxu0 %v5796
      %v7498 = vpop.f32.mrb[0].mxu0
      %v7499 = vadd.f32 0.0, %v7498
      %v7500 = vpop.f32.mrb[0].mxu0
      %v7501 = vpop.f32.mrb[0].mxu0
      %v7502 = vadd.f32 0.0, %v7501
      %v7503 = vpop.f32.mrb[0].mxu0
      %7504 = vmatprep.mubr.bf16.mxu0 0
      %7505 = vmatmul.mubr.bf16.gmra.mrb[0].mxu0 %v5797
      %v7506 = vpop.f32.mrb[0].mxu0
      %v7507 = vadd.f32 0.0, %v7506
      %v7508 = vpop.f32.mrb[0].mxu0
      %v7509 = vpop.f32.mrb[0].mxu0
      %v7510 = vadd.f32 0.0, %v7509
      %v7511 = vpop.f32.mrb[0].mxu0
      %7512 = vmatprep.mubr.bf16.mxu0 0
      %7513 = vmatmul.mubr.bf16.gmra.mrb[0].mxu0 %v5798
      %v7514 = vpop.f32.mrb[0].mxu0
      %v7515 = vadd.f32 0.0, %v7514
      %v7516 = vpop.f32.mrb[0].mxu0
      %v7517 = vpop.f32.mrb[0].mxu0
      %v7518 = vadd.f32 0.0, %v7517
      %v7519 = vpop.f32.mrb[0].mxu0
      %7520 = vmatprep.mubr.bf16.mxu0 0
      %7521 = vmatmul.mubr.bf16.gmra.mrb[0].mxu0 %v5799
      %v7522 = vpop.f32.mrb[0].mxu0
      %v7523 = vadd.f32 0.0, %v7522
      %v7524 = vpop.f32.mrb[0].mxu0
      %v7525 = vpop.f32.mrb[0].mxu0
      %v7526 = vadd.f32 0.0, %v7525
      %v7527 = vpop.f32.mrb[0].mxu0
      %7528 = vmatprep.mubr.bf16.mxu0 0
      %7529 = vmatmul.mubr.bf16.gmra.mrb[0].mxu0 %v5800
      %v7530 = vpop.f32.mrb[0].mxu0
      %v7531 = vadd.f32 0.0, %v7530
      %v7532 = vpop.f32.mrb[0].mxu0
      %v7533 = vpop.f32.mrb[0].mxu0
      %v7534 = vadd.f32 0.0, %v7533
      %v7535 = vpop.f32.mrb[0].mxu0
      %7536 = vmatprep.mubr.bf16.mxu0 0
      %7537 = vmatmul.mubr.bf16.gmra.mrb[0].mxu0 %v5801
      %v7538 = vpop.f32.mrb[0].mxu0
      %v7539 = vadd.f32 0.0, %v7538
      %v7540 = vpop.f32.mrb[0].mxu0
      %v7541 = vpop.f32.mrb[0].mxu0
      %v7542 = vadd.f32 0.0, %v7541
      %v7543 = vpop.f32.mrb[0].mxu0
      %7544 = vmatprep.mubr.bf16.mxu0 0
      %7545 = vmatmul.mubr.bf16.gmra.mrb[0].mxu0 %v5802
      %v7546 = vpop.f32.mrb[0].mxu0
      %v7547 = vadd.f32 0.0, %v7546
      %v7548 = vpop.f32.mrb[0].mxu0
      %v7549 = vpop.f32.mrb[0].mxu0
      %v7550 = vadd.f32 0.0, %v7549
      %v7551 = vpop.f32.mrb[0].mxu0
      %7552 = vmatprep.mubr.bf16.mxu0 0
      %7553 = vmatmul.mubr.bf16.gmra.mrb[0].mxu0 %v5803
      %v7554 = vpop.f32.mrb[0].mxu0
      %v7555 = vadd.f32 0.0, %v7554
      %v7556 = vpop.f32.mrb[0].mxu0
      %v7557 = vpop.f32.mrb[0].mxu0
      %v7558 = vadd.f32 0.0, %v7557
      %v7559 = vpop.f32.mrb[0].mxu0
      %7560 = vmatprep.mubr.bf16.mxu0 0
      %7561 = vmatmul.mubr.bf16.gmra.mrb[0].mxu0 %v5804
      %v7562 = vpop.f32.mrb[0].mxu0
      %v7563 = vadd.f32 0.0, %v7562
      %v7564 = vpop.f32.mrb[0].mxu0
      %v7565 = vpop.f32.mrb[0].mxu0
      %v7566 = vadd.f32 0.0, %v7565
      %v7567 = vpop.f32.mrb[0].mxu0
      %7568 = vmatprep.mubr.bf16.mxu0 0
      %7569 = vmatmul.mubr.bf16.gmra.mrb[0].mxu0 %v5805
      %v7570 = vpop.f32.mrb[0].mxu0
      %v7571 = vadd.f32 0.0, %v7570
      %v7572 = vpop.f32.mrb[0].mxu0
      %v7573 = vpop.f32.mrb[0].mxu0
      %v7574 = vadd.f32 0.0, %v7573
      %v7575 = vpop.f32.mrb[0].mxu0
      %7576 = vmatprep.mubr.bf16.mxu0 0
      %7577 = vmatmul.mubr.bf16.gmra.mrb[0].mxu0 %v5806
      %v7578 = vpop.f32.mrb[0].mxu0
      %v7579 = vadd.f32 0.0, %v7578
      %v7580 = vpop.f32.mrb[0].mxu0
      %v7581 = vpop.f32.mrb[0].mxu0
      %v7582 = vadd.f32 0.0, %v7581
      %v7583 = vpop.f32.mrb[0].mxu0
      %7584 = vmatprep.mubr.bf16.mxu0 0
      %7585 = vmatmul.mubr.bf16.gmra.mrb[0].mxu0 %v5807
      %v7586 = vpop.f32.mrb[0].mxu0
      %v7587 = vadd.f32 0.0, %v7586
      %v7588 = vpop.f32.mrb[0].mxu0
      %v7589 = vpop.f32.mrb[0].mxu0
      %v7590 = vadd.f32 0.0, %v7589
      %v7591 = vpop.f32.mrb[0].mxu0
      %7592 = vmatprep.mubr.bf16.mxu0 0
      %7593 = vmatmul.mubr.bf16.gmra.mrb[0].mxu0 %v6610
      %v7594 = vpop.f32.mrb[0].mxu0
      %v7595 = vadd.f32 0.0, %v7594
      %v7596 = vpop.f32.mrb[0].mxu0
      %v7597 = vpop.f32.mrb[0].mxu0
      %v7598 = vadd.f32 0.0, %v7597
      %v7599 = vpop.f32.mrb[0].mxu0
      %7600 = vmatprep.mubr.bf16.mxu0 0
      %7601 = vmatmul.mubr.bf16.gmra.mrb[0].mxu0 %v7398
      %v7602 = vpop.f32.mrb[0].mxu0
      %v7603 = vadd.f32 0.0, %v7602
      %v7604 = vpop.f32.mrb[0].mxu0
      %v7605 = vpop.f32.mrb[0].mxu0
      %v7606 = vadd.f32 0.0, %v7605
      %v7607 = vpop.f32.mrb[0].mxu0
      %7608 = vdwg.mxu0
      %v7609 = vadd.f32 %v7347, %v7483
      %v7610 = vadd.f32 %v7348, %v7486
      %v7611 = vadd.f32 %v7349, %v7491
      %v7612 = vadd.f32 %v7350, %v7494
      %v7613 = vadd.f32 %v7351, %v7499
      %v7614 = vadd.f32 %v7352, %v7502
      %v7615 = vadd.f32 %v7353, %v7507
      %v7616 = vadd.f32 %v7354, %v7510
      %v7617 = vadd.f32 %v7355, %v7515
      %v7618 = vadd.f32 %v7356, %v7518
      %v7619 = vadd.f32 %v7357, %v7523
      %v7620 = vadd.f32 %v7358, %v7526
      %v7621 = vadd.f32 %v7359, %v7531
      %v7622 = vadd.f32 %v7360, %v7534
      %v7623 = vadd.f32 %v7361, %v7539
      %v7624 = vadd.f32 %v7362, %v7542
      %v7625 = vadd.f32 %v7363, %v7547
      %v7626 = vadd.f32 %v7364, %v7550
      %v7627 = vadd.f32 %v7365, %v7555
      %v7628 = vadd.f32 %v7366, %v7558
      %v7629 = vadd.f32 %v7367, %v7563
      %v7630 = vadd.f32 %v7368, %v7566
      %v7631 = vadd.f32 %v7369, %v7571
      %v7632 = vadd.f32 %v7370, %v7574
      %v7633 = vadd.f32 %v7371, %v7579
      %v7634 = vadd.f32 %v7372, %v7582
      %v7635 = vadd.f32 %v7373, %v7587
      %v7636 = vadd.f32 %v7374, %v7590
      %v7637 = vadd.f32 %v7375, %v7595
      %v7638 = vadd.f32 %v7376, %v7598
      %v7639 = vadd.f32 %v7377, %v7603
      %v7640 = vadd.f32 %v7378, %v7606
      %v7642 = vlaneseq
      %v7643 = vshrl.u32 %v7642, 7
      %v7644 = vsub.s32 0, %v7643
      %v7645 = vrot.slane %v4411, %v7644
      %v7647 = vadd.f32 %v7609, %v7645
      %v7648 = vadd.f32 %v7610, %v7645
      %v7649 = vadd.f32 %v7611, %v7645
      %v7650 = vadd.f32 %v7612, %v7645
      %v7651 = vadd.f32 %v7613, %v7645
      %v7652 = vadd.f32 %v7614, %v7645
      %v7653 = vadd.f32 %v7615, %v7645
      %v7654 = vadd.f32 %v7616, %v7645
      %v7655 = vadd.f32 %v7617, %v7645
      %v7656 = vadd.f32 %v7618, %v7645
      %v7657 = vadd.f32 %v7619, %v7645
      %v7658 = vadd.f32 %v7620, %v7645
      %v7659 = vadd.f32 %v7621, %v7645
      %v7660 = vadd.f32 %v7622, %v7645
      %v7661 = vadd.f32 %v7623, %v7645
      %v7662 = vadd.f32 %v7624, %v7645
      %v7663 = vadd.f32 %v7625, %v7645
      %v7664 = vadd.f32 %v7626, %v7645
      %v7665 = vadd.f32 %v7627, %v7645
      %v7666 = vadd.f32 %v7628, %v7645
      %v7667 = vadd.f32 %v7629, %v7645
      %v7668 = vadd.f32 %v7630, %v7645
      %v7669 = vadd.f32 %v7631, %v7645
      %v7670 = vadd.f32 %v7632, %v7645
      %v7671 = vadd.f32 %v7633, %v7645
      %v7672 = vadd.f32 %v7634, %v7645
      %v7673 = vadd.f32 %v7635, %v7645
      %v7674 = vadd.f32 %v7636, %v7645
      %v7675 = vadd.f32 %v7637, %v7645
      %v7676 = vadd.f32 %v7638, %v7645
      %v7677 = vadd.f32 %v7639, %v7645
      %v7678 = vadd.f32 %v7640, %v7645
      %vm7679 = vcmp.gt.f32.partialorder %v7647, 0.0
      %vm7680 = vcmp.gt.f32.partialorder %v7648, 0.0
      %vm7681 = vcmp.gt.f32.partialorder %v7649, 0.0
      %vm7682 = vcmp.gt.f32.partialorder %v7650, 0.0
      %vm7683 = vcmp.gt.f32.partialorder %v7651, 0.0
      %vm7684 = vcmp.gt.f32.partialorder %v7652, 0.0
      %vm7685 = vcmp.gt.f32.partialorder %v7653, 0.0
      %vm7686 = vcmp.gt.f32.partialorder %v7654, 0.0
      %vm7687 = vcmp.gt.f32.partialorder %v7655, 0.0
      %vm7688 = vcmp.gt.f32.partialorder %v7656, 0.0
      %vm7689 = vcmp.gt.f32.partialorder %v7657, 0.0
      %vm7690 = vcmp.gt.f32.partialorder %v7658, 0.0
      %vm7691 = vcmp.gt.f32.partialorder %v7659, 0.0
      %vm7692 = vcmp.gt.f32.partialorder %v7660, 0.0
      %vm7693 = vcmp.gt.f32.partialorder %v7661, 0.0
      %vm7694 = vcmp.gt.f32.partialorder %v7662, 0.0
      %vm7695 = vcmp.gt.f32.partialorder %v7663, 0.0
      %vm7696 = vcmp.gt.f32.partialorder %v7664, 0.0
      %vm7697 = vcmp.gt.f32.partialorder %v7665, 0.0
      %vm7698 = vcmp.gt.f32.partialorder %v7666, 0.0
      %vm7699 = vcmp.gt.f32.partialorder %v7667, 0.0
      %vm7700 = vcmp.gt.f32.partialorder %v7668, 0.0
      %vm7701 = vcmp.gt.f32.partialorder %v7669, 0.0
      %vm7702 = vcmp.gt.f32.partialorder %v7670, 0.0
      %vm7703 = vcmp.gt.f32.partialorder %v7671, 0.0
      %vm7704 = vcmp.gt.f32.partialorder %v7672, 0.0
      %vm7705 = vcmp.gt.f32.partialorder %v7673, 0.0
      %vm7706 = vcmp.gt.f32.partialorder %v7674, 0.0
      %vm7707 = vcmp.gt.f32.partialorder %v7675, 0.0
      %vm7708 = vcmp.gt.f32.partialorder %v7676, 0.0
      %vm7709 = vcmp.gt.f32.partialorder %v7677, 0.0
      %vm7710 = vcmp.gt.f32.partialorder %v7678, 0.0
      %v7711 = vmul.f32 %v7647, 0.2
      %v7712 = vmul.f32 %v7648, 0.2
      %v7713 = vmul.f32 %v7649, 0.2
      %v7714 = vmul.f32 %v7650, 0.2
      %v7715 = vmul.f32 %v7651, 0.2
      %v7716 = vmul.f32 %v7652, 0.2
      %v7717 = vmul.f32 %v7653, 0.2
      %v7718 = vmul.f32 %v7654, 0.2
      %v7719 = vmul.f32 %v7655, 0.2
      %v7720 = vmul.f32 %v7656, 0.2
      %v7721 = vmul.f32 %v7657, 0.2
      %v7722 = vmul.f32 %v7658, 0.2
      %v7723 = vmul.f32 %v7659, 0.2
      %v7724 = vmul.f32 %v7660, 0.2
      %v7725 = vmul.f32 %v7661, 0.2
      %v7726 = vmul.f32 %v7662, 0.2
      %v7727 = vmul.f32 %v7663, 0.2
      %v7728 = vmul.f32 %v7664, 0.2
      %v7729 = vmul.f32 %v7665, 0.2
      %v7730 = vmul.f32 %v7666, 0.2
      %v7731 = vmul.f32 %v7667, 0.2
      %v7732 = vmul.f32 %v7668, 0.2
      %v7733 = vmul.f32 %v7669, 0.2
      %v7734 = vmul.f32 %v7670, 0.2
      %v7735 = vmul.f32 %v7671, 0.2
      %v7736 = vmul.f32 %v7672, 0.2
      %v7737 = vmul.f32 %v7673, 0.2
      %v7738 = vmul.f32 %v7674, 0.2
      %v7739 = vmul.f32 %v7675, 0.2
      %v7740 = vmul.f32 %v7676, 0.2
      %v7741 = vmul.f32 %v7677, 0.2
      %v7742 = vmul.f32 %v7678, 0.2
      %v7743 = vsel %vm7679, %v7647, %v7711
      %v7744 = vsel %vm7680, %v7648, %v7712
      %v7745 = vsel %vm7681, %v7649, %v7713
      %v7746 = vsel %vm7682, %v7650, %v7714
      %v7747 = vsel %vm7683, %v7651, %v7715
      %v7748 = vsel %vm7684, %v7652, %v7716
      %v7749 = vsel %vm7685, %v7653, %v7717
      %v7750 = vsel %vm7686, %v7654, %v7718
      %v7751 = vsel %vm7687, %v7655, %v7719
      %v7752 = vsel %vm7688, %v7656, %v7720
      %v7753 = vsel %vm7689, %v7657, %v7721
      %v7754 = vsel %vm7690, %v7658, %v7722
      %v7755 = vsel %vm7691, %v7659, %v7723
      %v7756 = vsel %vm7692, %v7660, %v7724
      %v7757 = vsel %vm7693, %v7661, %v7725
      %v7758 = vsel %vm7694, %v7662, %v7726
      %v7759 = vsel %vm7695, %v7663, %v7727
      %v7760 = vsel %vm7696, %v7664, %v7728
      %v7761 = vsel %vm7697, %v7665, %v7729
      %v7762 = vsel %vm7698, %v7666, %v7730
      %v7763 = vsel %vm7699, %v7667, %v7731
      %v7764 = vsel %vm7700, %v7668, %v7732
      %v7765 = vsel %vm7701, %v7669, %v7733
      %v7766 = vsel %vm7702, %v7670, %v7734
      %v7767 = vsel %vm7703, %v7671, %v7735
      %v7768 = vsel %vm7704, %v7672, %v7736
      %v7769 = vsel %vm7705, %v7673, %v7737
      %v7770 = vsel %vm7706, %v7674, %v7738
      %v7771 = vsel %vm7707, %v7675, %v7739
      %v7772 = vsel %vm7708, %v7676, %v7740
      %v7773 = vsel %vm7709, %v7677, %v7741
      %v7774 = vsel %vm7710, %v7678, %v7742
      %v7775 = vmul.f32 %v7743, %v7743
      %v7776 = vmul.f32 %v7744, %v7744
      %v7777 = vmul.f32 %v7745, %v7745
      %v7778 = vmul.f32 %v7746, %v7746
      %v7779 = vmul.f32 %v7747, %v7747
      %v7780 = vmul.f32 %v7748, %v7748
      %v7781 = vmul.f32 %v7749, %v7749
      %v7782 = vmul.f32 %v7750, %v7750
      %v7783 = vmul.f32 %v7751, %v7751
      %v7784 = vmul.f32 %v7752, %v7752
      %v7785 = vmul.f32 %v7753, %v7753
      %v7786 = vmul.f32 %v7754, %v7754
      %v7787 = vmul.f32 %v7755, %v7755
      %v7788 = vmul.f32 %v7756, %v7756
      %v7789 = vmul.f32 %v7757, %v7757
      %v7790 = vmul.f32 %v7758, %v7758
      %v7791 = vmul.f32 %v7759, %v7759
      %v7792 = vmul.f32 %v7760, %v7760
      %v7793 = vmul.f32 %v7761, %v7761
      %v7794 = vmul.f32 %v7762, %v7762
      %v7795 = vmul.f32 %v7763, %v7763
      %v7796 = vmul.f32 %v7764, %v7764
      %v7797 = vmul.f32 %v7765, %v7765
      %v7798 = vmul.f32 %v7766, %v7766
      %v7799 = vmul.f32 %v7767, %v7767
      %v7800 = vmul.f32 %v7768, %v7768
      %v7801 = vmul.f32 %v7769, %v7769
      %v7802 = vmul.f32 %v7770, %v7770
      %v7803 = vmul.f32 %v7771, %v7771
      %v7804 = vmul.f32 %v7772, %v7772
      %v7805 = vmul.f32 %v7773, %v7773
      %v7806 = vmul.f32 %v7774, %v7774
      %7807 = vadd.xlane.f32.xlu0 %v7775
      %v7808 = vpop.xlane.xlu0 %7807
      %7809 = vadd.xlane.f32.xlu0 %v7776
      %v7810 = vpop.xlane.xlu0 %7809
      %7811 = vadd.xlane.f32.xlu0 %v7777
      %v7812 = vpop.xlane.xlu0 %7811
      %7813 = vadd.xlane.f32.xlu0 %v7778
      %v7814 = vpop.xlane.xlu0 %7813
      %7815 = vadd.xlane.f32.xlu0 %v7779
      %v7816 = vpop.xlane.xlu0 %7815
      %7817 = vadd.xlane.f32.xlu0 %v7780
      %v7818 = vpop.xlane.xlu0 %7817
      %7819 = vadd.xlane.f32.xlu0 %v7781
      %v7820 = vpop.xlane.xlu0 %7819
      %7821 = vadd.xlane.f32.xlu0 %v7782
      %v7822 = vpop.xlane.xlu0 %7821
      %7823 = vadd.xlane.f32.xlu0 %v7783
      %v7824 = vpop.xlane.xlu0 %7823
      %7825 = vadd.xlane.f32.xlu0 %v7784
      %v7826 = vpop.xlane.xlu0 %7825
      %7827 = vadd.xlane.f32.xlu0 %v7785
      %v7828 = vpop.xlane.xlu0 %7827
      %7829 = vadd.xlane.f32.xlu0 %v7786
      %v7830 = vpop.xlane.xlu0 %7829
      %7831 = vadd.xlane.f32.xlu0 %v7787
      %v7832 = vpop.xlane.xlu0 %7831
      %7833 = vadd.xlane.f32.xlu0 %v7788
      %v7834 = vpop.xlane.xlu0 %7833
      %7835 = vadd.xlane.f32.xlu0 %v7789
      %v7836 = vpop.xlane.xlu0 %7835
      %7837 = vadd.xlane.f32.xlu0 %v7790
      %v7838 = vpop.xlane.xlu0 %7837
      %7839 = vadd.xlane.f32.xlu0 %v7791
      %v7840 = vpop.xlane.xlu0 %7839
      %7841 = vadd.xlane.f32.xlu0 %v7792
      %v7842 = vpop.xlane.xlu0 %7841
      %7843 = vadd.xlane.f32.xlu0 %v7793
      %v7844 = vpop.xlane.xlu0 %7843
      %7845 = vadd.xlane.f32.xlu0 %v7794
      %v7846 = vpop.xlane.xlu0 %7845
      %7847 = vadd.xlane.f32.xlu0 %v7795
      %v7848 = vpop.xlane.xlu0 %7847
      %7849 = vadd.xlane.f32.xlu0 %v7796
      %v7850 = vpop.xlane.xlu0 %7849
      %7851 = vadd.xlane.f32.xlu0 %v7797
      %v7852 = vpop.xlane.xlu0 %7851
      %7853 = vadd.xlane.f32.xlu0 %v7798
      %v7854 = vpop.xlane.xlu0 %7853
      %7855 = vadd.xlane.f32.xlu0 %v7799
      %v7856 = vpop.xlane.xlu0 %7855
      %7857 = vadd.xlane.f32.xlu0 %v7800
      %v7858 = vpop.xlane.xlu0 %7857
      %7859 = vadd.xlane.f32.xlu0 %v7801
      %v7860 = vpop.xlane.xlu0 %7859
      %7861 = vadd.xlane.f32.xlu0 %v7802
      %v7862 = vpop.xlane.xlu0 %7861
      %7863 = vadd.xlane.f32.xlu0 %v7803
      %v7864 = vpop.xlane.xlu0 %7863
      %7865 = vadd.xlane.f32.xlu0 %v7804
      %v7866 = vpop.xlane.xlu0 %7865
      %7867 = vadd.xlane.f32.xlu0 %v7805
      %v7868 = vpop.xlane.xlu0 %7867
      %7869 = vadd.xlane.f32.xlu0 %v7806
      %v7870 = vpop.xlane.xlu0 %7869
      %v7871 = vmul.f32 %v7808, 0.015625
      %v7872 = vmul.f32 %v7810, 0.015625
      %v7873 = vmul.f32 %v7812, 0.015625
      %v7874 = vmul.f32 %v7814, 0.015625
      %v7875 = vmul.f32 %v7816, 0.015625
      %v7876 = vmul.f32 %v7818, 0.015625
      %v7877 = vmul.f32 %v7820, 0.015625
      %v7878 = vmul.f32 %v7822, 0.015625
      %v7879 = vmul.f32 %v7824, 0.015625
      %v7880 = vmul.f32 %v7826, 0.015625
      %v7881 = vmul.f32 %v7828, 0.015625
      %v7882 = vmul.f32 %v7830, 0.015625
      %v7883 = vmul.f32 %v7832, 0.015625
      %v7884 = vmul.f32 %v7834, 0.015625
      %v7885 = vmul.f32 %v7836, 0.015625
      %v7886 = vmul.f32 %v7838, 0.015625
      %v7887 = vmul.f32 %v7840, 0.015625
      %v7888 = vmul.f32 %v7842, 0.015625
      %v7889 = vmul.f32 %v7844, 0.015625
      %v7890 = vmul.f32 %v7846, 0.015625
      %v7891 = vmul.f32 %v7848, 0.015625
      %v7892 = vmul.f32 %v7850, 0.015625
      %v7893 = vmul.f32 %v7852, 0.015625
      %v7894 = vmul.f32 %v7854, 0.015625
      %v7895 = vmul.f32 %v7856, 0.015625
      %v7896 = vmul.f32 %v7858, 0.015625
      %v7897 = vmul.f32 %v7860, 0.015625
      %v7898 = vmul.f32 %v7862, 0.015625
      %v7899 = vmul.f32 %v7864, 0.015625
      %v7900 = vmul.f32 %v7866, 0.015625
      %v7901 = vmul.f32 %v7868, 0.015625
      %v7902 = vmul.f32 %v7870, 0.015625
      %v7903 = vadd.f32 %v7871, 1e-08
      %v7904 = vadd.f32 %v7872, 1e-08
      %v7905 = vadd.f32 %v7873, 1e-08
      %v7906 = vadd.f32 %v7874, 1e-08
      %v7907 = vadd.f32 %v7875, 1e-08
      %v7908 = vadd.f32 %v7876, 1e-08
      %v7909 = vadd.f32 %v7877, 1e-08
      %v7910 = vadd.f32 %v7878, 1e-08
      %v7911 = vadd.f32 %v7879, 1e-08
      %v7912 = vadd.f32 %v7880, 1e-08
      %v7913 = vadd.f32 %v7881, 1e-08
      %v7914 = vadd.f32 %v7882, 1e-08
      %v7915 = vadd.f32 %v7883, 1e-08
      %v7916 = vadd.f32 %v7884, 1e-08
      %v7917 = vadd.f32 %v7885, 1e-08
      %v7918 = vadd.f32 %v7886, 1e-08
      %v7919 = vadd.f32 %v7887, 1e-08
      %v7920 = vadd.f32 %v7888, 1e-08
      %v7921 = vadd.f32 %v7889, 1e-08
      %v7922 = vadd.f32 %v7890, 1e-08
      %v7923 = vadd.f32 %v7891, 1e-08
      %v7924 = vadd.f32 %v7892, 1e-08
      %v7925 = vadd.f32 %v7893, 1e-08
      %v7926 = vadd.f32 %v7894, 1e-08
      %v7927 = vadd.f32 %v7895, 1e-08
      %v7928 = vadd.f32 %v7896, 1e-08
      %v7929 = vadd.f32 %v7897, 1e-08
      %v7930 = vadd.f32 %v7898, 1e-08
      %v7931 = vadd.f32 %v7899, 1e-08
      %v7932 = vadd.f32 %v7900, 1e-08
      %v7933 = vadd.f32 %v7901, 1e-08
      %v7934 = vadd.f32 %v7902, 1e-08
      %v7935 = vrsqrt.pop %v7903
      %v7936 = vrsqrt.pop %v7904
      %v7937 = vrsqrt.pop %v7905
      %v7938 = vrsqrt.pop %v7906
      %v7939 = vrsqrt.pop %v7907
      %v7940 = vrsqrt.pop %v7908
      %v7941 = vrsqrt.pop %v7909
      %v7942 = vrsqrt.pop %v7910
      %v7943 = vrsqrt.pop %v7911
      %v7944 = vrsqrt.pop %v7912
      %v7945 = vrsqrt.pop %v7913
      %v7946 = vrsqrt.pop %v7914
      %v7947 = vrsqrt.pop %v7915
      %v7948 = vrsqrt.pop %v7916
      %v7949 = vrsqrt.pop %v7917
      %v7950 = vrsqrt.pop %v7918
      %v7951 = vrsqrt.pop %v7919
      %v7952 = vrsqrt.pop %v7920
      %v7953 = vrsqrt.pop %v7921
      %v7954 = vrsqrt.pop %v7922
      %v7955 = vrsqrt.pop %v7923
      %v7956 = vrsqrt.pop %v7924
      %v7957 = vrsqrt.pop %v7925
      %v7958 = vrsqrt.pop %v7926
      %v7959 = vrsqrt.pop %v7927
      %v7960 = vrsqrt.pop %v7928
      %v7961 = vrsqrt.pop %v7929
      %v7962 = vrsqrt.pop %v7930
      %v7963 = vrsqrt.pop %v7931
      %v7964 = vrsqrt.pop %v7932
      %v7965 = vrsqrt.pop %v7933
      %v7966 = vrsqrt.pop %v7934
      %v7967 = vmul.f32 %v7743, %v7935
      %v7968 = vmul.f32 %v7744, %v7936
      %v7969 = vmul.f32 %v7745, %v7937
      %v7970 = vmul.f32 %v7746, %v7938
      %v7971 = vmul.f32 %v7747, %v7939
      %v7972 = vmul.f32 %v7748, %v7940
      %v7973 = vmul.f32 %v7749, %v7941
      %v7974 = vmul.f32 %v7750, %v7942
      %v7975 = vmul.f32 %v7751, %v7943
      %v7976 = vmul.f32 %v7752, %v7944
      %v7977 = vmul.f32 %v7753, %v7945
      %v7978 = vmul.f32 %v7754, %v7946
      %v7979 = vmul.f32 %v7755, %v7947
      %v7980 = vmul.f32 %v7756, %v7948
      %v7981 = vmul.f32 %v7757, %v7949
      %v7982 = vmul.f32 %v7758, %v7950
      %v7983 = vmul.f32 %v7759, %v7951
      %v7984 = vmul.f32 %v7760, %v7952
      %v7985 = vmul.f32 %v7761, %v7953
      %v7986 = vmul.f32 %v7762, %v7954
      %v7987 = vmul.f32 %v7763, %v7955
      %v7988 = vmul.f32 %v7764, %v7956
      %v7989 = vmul.f32 %v7765, %v7957
      %v7990 = vmul.f32 %v7766, %v7958
      %v7991 = vmul.f32 %v7767, %v7959
      %v7992 = vmul.f32 %v7768, %v7960
      %v7993 = vmul.f32 %v7769, %v7961
      %v7994 = vmul.f32 %v7770, %v7962
      %v7995 = vmul.f32 %v7771, %v7963
      %v7996 = vmul.f32 %v7772, %v7964
      %v7997 = vmul.f32 %v7773, %v7965
      %v7998 = vmul.f32 %v7774, %v7966
      %7999 = vst [vmem:[%s224] sm:$0xff] %v7967
      %8000 = vst [vmem:[%s224 + $0x8] sm:$0xff] %v7968
      %8001 = vst [vmem:[%s224 + $0x10] sm:$0xff] %v7969
      %8002 = vst [vmem:[%s224 + $0x18] sm:$0xff] %v7970
      %8003 = vst [vmem:[%s224 + $0x20] sm:$0xff] %v7971
      %8004 = vst [vmem:[%s224 + $0x28] sm:$0xff] %v7972
      %8005 = vst [vmem:[%s224 + $0x30] sm:$0xff] %v7973
      %8006 = vst [vmem:[%s224 + $0x38] sm:$0xff] %v7974
      %8007 = vst [vmem:[%s224 + $0x40] sm:$0xff] %v7975
      %8008 = vst [vmem:[%s224 + $0x48] sm:$0xff] %v7976
      %8009 = vst [vmem:[%s224 + $0x50] sm:$0xff] %v7977
      %8010 = vst [vmem:[%s224 + $0x58] sm:$0xff] %v7978
      %8011 = vst [vmem:[%s224 + $0x60] sm:$0xff] %v7979
      %8012 = vst [vmem:[%s224 + $0x68] sm:$0xff] %v7980
      %8013 = vst [vmem:[%s224 + $0x70] sm:$0xff] %v7981
      %8014 = vst [vmem:[%s224 + $0x78] sm:$0xff] %v7982
      %8015 = vst [vmem:[%s224 + $0x80] sm:$0xff] %v7983
      %8016 = vst [vmem:[%s224 + $0x88] sm:$0xff] %v7984
      %8017 = vst [vmem:[%s224 + $0x90] sm:$0xff] %v7985
      %8018 = vst [vmem:[%s224 + $0x98] sm:$0xff] %v7986
      %8019 = vst [vmem:[%s224 + $0xa0] sm:$0xff] %v7987
      %8020 = vst [vmem:[%s224 + $0xa8] sm:$0xff] %v7988
      %8021 = vst [vmem:[%s224 + $0xb0] sm:$0xff] %v7989
      %8022 = vst [vmem:[%s224 + $0xb8] sm:$0xff] %v7990
      %8023 = vst [vmem:[%s224 + $0xc0] sm:$0xff] %v7991
      %8024 = vst [vmem:[%s224 + $0xc8] sm:$0xff] %v7992
      %8025 = vst [vmem:[%s224 + $0xd0] sm:$0xff] %v7993
      %8026 = vst [vmem:[%s224 + $0xd8] sm:$0xff] %v7994
      %8027 = vst [vmem:[%s224 + $0xe0] sm:$0xff] %v7995
      %8028 = vst [vmem:[%s224 + $0xe8] sm:$0xff] %v7996
      %8029 = vst [vmem:[%s224 + $0xf0] sm:$0xff] %v7997
      %8030 = vst [vmem:[%s224 + $0xf8] sm:$0xff] %v7998
      %p8031 = scmp.lt.s32.totalorder %s16, 1
      %s8032 = scalar_select %p8031, %s16, 1
      %s8033 = smul.addr %s8032, 32
      %s8034 = smul.addr %s8033, 8
      %s8035 = scalar_lea.vmem %s5, %s8034
      // Predicated region
      $region41: #{conv_block_forward.1} parent=39 // pred_check
        %p8036 = pneg %p144
      $region42: #{conv_block_forward.1} parent=39 // pred_check_branch
        %8038 = sbr.rel (%p8036) target = $region44
      $region43: #{conv_block_forward.1} parent=39 // pred_region
        _
      $region44: #{conv_block_forward.1} parent=39 // pred_fallthru
        _
    $region40: #{conv_block_forward.1} parent=5 // pred_fallthru
      _
    %p8039 = scmp.le.s32.totalorder 2, %s11
    // Predicated region
    $region45: #{conv_block_forward.1} parent=5 // pred_check
      %p8040 = pneg %p8039
    $region46: #{conv_block_forward.1} parent=5 // pred_check_branch
      %8042 = sbr.rel (%p8040) target = $region48
    $region47: #{conv_block_forward.1} parent=5 // pred_region
      %s8043 = ssub.s32 %s11, 2
      // Predicated region
      $region49: #{conv_block_forward.1} parent=47 // pred_check
        %p8044 = pneg %p150
      $region50: #{conv_block_forward.1} parent=47 // pred_check_branch
        %8046 = sbr.rel (%p8044) target = $region52
      $region51: #{conv_block_forward.1} parent=47 // pred_region
        %p8047 = scmp.lt.s32.totalorder %s17, 1
        %s8048 = scalar_select %p8047, %s17, 1
        %s8049 = smul.addr %s8048, 32
        %s8050 = smul.addr %s8049, 8
        %s8051 = scalar_lea.vmem %s5, %s8050
      $region52: #{conv_block_forward.1} parent=47 // pred_fallthru
        _
    $region48: #{conv_block_forward.1} parent=5 // pred_fallthru
      _
  $region6: #{conv_block_forward.1} parent=0 // loop_footer
    %s15 = sadd.s32 1, %s11
  $region7: #{conv_block_forward.1} parent=0 // loop_footer_branch
    %10 = sbr.rel target = $region3
  $region8: #{conv_block_forward.1} parent=0 // loop_exit
    _

</llo_original>
